<compile_context>
chip_gen: v6e
topology: v6e:2x2x1
jax: 0.10.0
libtpu: 0.0.40
codegen_flags: <defaults>
</compile_context>

<pallas_src>
import jax
import jax.numpy as jnp
from jax import lax
from jax.experimental import pallas as pl
from jax.experimental.pallas import tpu as pltpu


def _se_conv_bn_kernel(se_ref, w1_ref, x_ref, w2_ref, gb_ref, o_ref):
    """se_ref: [1, Cse+1] f32 (last entry = 1.0);  w1_ref: [C, Cse+1] bf16
    (last column = conv bias);  x_ref: [C, HW] f32;  w2_ref: [Cout, C] bf16;
    gb_ref: [Cout, 2] f32 (col 0 = gamma, col 1 = beta);  o_ref: [Cout, HW] f32.
    """
    # ---- 1x1 conv (Cse -> C) on the squeeze vector; bias via the 1.0 column -
    w1 = w1_ref[...].astype(jnp.float32)                      # [C, Cse+1]
    y = jnp.sum(w1 * se_ref[...], axis=1, keepdims=True)      # [C, 1], f32 acc
    gate = 1.0 / (1.0 + jnp.exp(-y))                          # exact sigmoid

    # ---- excite: broadcast-mul with the feature map, cast to bf16 for MXU ---
    xs = (x_ref[...] * gate).astype(jnp.bfloat16)             # [C, HW]

    # ---- 1x1 conv (C -> Cout): z = w2 @ xs on the MXU, f32 accumulation -----
    z = jnp.dot(w2_ref[...], xs,
                preferred_element_type=jnp.float32)           # [Cout, HW] f32

    # ---- BatchNorm2d (training mode): batch stats over N*H*W = HW -----------
    inv_n = 1.0 / z.shape[1]
    mean = jnp.sum(z, axis=1, keepdims=True) * inv_n          # [Cout, 1]
    zc = z - mean
    var = jnp.sum(zc * zc, axis=1, keepdims=True) * inv_n     # biased (PyTorch)
    inv_std = lax.rsqrt(var + 1e-3)

    gb = gb_ref[...]                                          # [Cout, 2]
    gamma = gb[:, 0:1]
    beta = gb[:, 1:2]
    o_ref[...] = zc * (inv_std * gamma) + beta


def se_conv_bn(se_aug, w1, x_chw, w2, gb):
    """se_aug: [1, Cse+1] f32; w1: [C, Cse+1] bf16; x_chw: [C, HW] f32;
    w2: [Cout, C] bf16; gb: [Cout, 2] f32  ->  [Cout, HW] f32."""
    c, hw = x_chw.shape
    c_aug = se_aug.shape[1]
    cout = w2.shape[0]
    assert w1.shape == (c, c_aug) and w2.shape == (cout, c) and gb.shape == (cout, 2)

    cost = pl.CostEstimate(
        flops=2 * cout * c * hw + 2 * c * c_aug + 8 * cout * hw,
        transcendentals=c + cout,
        bytes_accessed=(se_aug.size * 4 + w1.size * 2 + x_chw.size * 4
                        + w2.size * 2 + gb.size * 4 + cout * hw * 4),
    )

    return pl.pallas_call(
        _se_conv_bn_kernel,
        out_shape=jax.ShapeDtypeStruct((cout, hw), jnp.float32),
        grid=(1,),
        in_specs=[
            pl.BlockSpec((1, c_aug), lambda i: (0, 0)),   # se vector (tiny)
            pl.BlockSpec((c, c_aug), lambda i: (0, 0)),   # w1 (+bias col), bf16
            pl.BlockSpec((c, hw), lambda i: (0, 0)),      # feature map [C, HW]
            pl.BlockSpec((cout, c), lambda i: (0, 0)),    # w2, bf16
            pl.BlockSpec((cout, 2), lambda i: (0, 0)),    # [gamma | beta]
        ],
        out_specs=pl.BlockSpec((cout, hw), lambda i: (0, 0)),
        compiler_params=pltpu.CompilerParams(
            dimension_semantics=("arbitrary",),
            vmem_limit_bytes=32 << 20,   # footprint ~4 MiB; safe on v5e/v6e/v7x
        ),
        cost_estimate=cost,
    )(se_aug, w1, x_chw, w2, gb)


def prepare_params(raw):
    """One-time weight layout/dtype prep (done offline for real models)."""
    c_out, c = raw["w2"].shape
    # Fold the conv bias into w1 as an extra column (applied via se's 1.0 tail)
    w1_aug = jnp.concatenate([raw["w1"], raw["b1"].reshape(c, 1)], axis=1)
    return {
        "w1": w1_aug.astype(jnp.bfloat16),                # [C, Cse+1]
        "w2": raw["w2"].astype(jnp.bfloat16),             # [Cout, C]
        # gamma/beta packed as two columns -> a single lane-padded slab
        "gb": jnp.stack([raw["gamma"], raw["beta"]], axis=1).astype(jnp.float32),
    }


def module_forward(x615, x612, params):
    """x615: [1, 86, 1, 1], x612: [1, 2064, 7, 7] (NCHW) -> [1, 344, 7, 7]."""
    n, c, h, w = x612.shape
    assert n == 1
    se = x615.reshape(1, -1).astype(jnp.float32)          # [1, Cse]
    # Constant-1 tail absorbs the conv bias (folded as the last w1 column),
    # removing the old [C, 1] bias DMA (~1 MiB of pure lane padding).
    se_aug = jnp.concatenate([se, jnp.ones((1, 1), jnp.float32)], axis=1)
    # N=1: NCHW -> [C, HW] is a plain row-major reshape (no transpose).
    # TODO(synk): if the upstream op keeps x in the padded (7,7)->(8,128) tiled
    # layout, hand it over directly as a 2D [C, HW] slab to avoid a relayout.
    x_chw = x612.reshape(c, h * w)
    out = se_conv_bn(se_aug, params["w1"], x_chw, params["w2"], params["gb"])
    cout = params["gb"].shape[0]
    return out.reshape(n, cout, h, w)                     # free reshape to NCHW


def _reference(x615, x612, raw):
    """Plain-JAX f32 reference of the PyTorch module."""
    se = x615.reshape(1, -1)
    y = se @ raw["w1"].T + raw["b1"][None, :]
    gate = jax.nn.sigmoid(y)                                   # [1, C]
    xs = x612 * gate.reshape(1, -1, 1, 1)
    z = jnp.einsum("nchw,oc->nohw", xs, raw["w2"])             # [1, Cout, H, W]
    mean = jnp.mean(z, axis=(0, 2, 3), keepdims=True)
    var = jnp.mean((z - mean) ** 2, axis=(0, 2, 3), keepdims=True)
    g = raw["gamma"].reshape(1, -1, 1, 1)
    b = raw["beta"].reshape(1, -1, 1, 1)
    return (z - mean) * lax.rsqrt(var + 1e-3) * g + b


if __name__ == "__main__":
    key = jax.random.PRNGKey(0)
    ks = jax.random.split(key, 7)

    C_SE, C, C_OUT, H, W = 86, 2064, 344, 7, 7

    # Inputs (shapes fixed by the module's channel counts).
    x612 = jax.random.normal(ks[0], (1, C, H, W), dtype=jnp.float32)
    x615 = jax.random.normal(ks[1], (1, C_SE, 1, 1), dtype=jnp.float32)

    # Synthetic parameters in PyTorch layout.
    raw = {
        "w1": jax.random.normal(ks[2], (C, C_SE), jnp.float32) / jnp.sqrt(C_SE),
        "b1": 0.05 * jax.random.normal(ks[3], (C,), jnp.float32),
        "w2": jax.random.normal(ks[4], (C_OUT, C), jnp.float32) / jnp.sqrt(C),
        "gamma": 1.0 + 0.1 * jax.random.normal(ks[5], (C_OUT,), jnp.float32),
        "beta": 0.1 * jax.random.normal(ks[6], (C_OUT,), jnp.float32),
    }
    params = prepare_params(raw)

    fwd = jax.jit(module_forward)
    out = jax.block_until_ready(fwd(x615, x612, params))
    assert out.shape == (1, C_OUT, H, W), out.shape

    ref = jax.block_until_ready(_reference(x615, x612, raw))
    # Tolerance accounts for bf16 weights on the MXU (f32 accumulation); the
    # sigmoid and BatchNorm paths are exact f32.
    if not jnp.allclose(out, ref, atol=3e-2, rtol=3e-2):
        err = float(jnp.max(jnp.abs(out - ref)))
        raise AssertionError(f"Pallas kernel mismatch, max abs err = {err}")

    print("KERNEL_OK")
</pallas_src>

<mosaic_0001>
module attributes {stable_mosaic.version = 11 : i64} {
  func.func @_se_conv_bn_kernel(%arg0: i32, %arg1: memref<1x87xf32, #tpu.memory_space<vmem>>, %arg2: memref<2064x87xbf16, #tpu.memory_space<vmem>>, %arg3: memref<2064x49xf32, #tpu.memory_space<vmem>>, %arg4: memref<344x2064xbf16, #tpu.memory_space<vmem>>, %arg5: memref<344x2xf32, #tpu.memory_space<vmem>>, %arg6: memref<344x49xf32, #tpu.memory_space<vmem>>) attributes {dimension_semantics = [#tpu.dimension_semantics<arbitrary>], iteration_bounds = array<i64: 1>, scalar_prefetch = 0 : i64, scratch_operands = 0 : i64, tpu.core_type = #tpu.core_type<tc>, window_params = [{pipeline_mode = #tpu.pipeline_mode<synchronous>, transform_indices = @transform_0, window_bounds = array<i64: 1, 87>}, {pipeline_mode = #tpu.pipeline_mode<synchronous>, transform_indices = @transform_1, window_bounds = array<i64: 2064, 87>}, {pipeline_mode = #tpu.pipeline_mode<synchronous>, transform_indices = @transform_2, window_bounds = array<i64: 2064, 49>}, {pipeline_mode = #tpu.pipeline_mode<synchronous>, transform_indices = @transform_3, window_bounds = array<i64: 344, 2064>}, {pipeline_mode = #tpu.pipeline_mode<synchronous>, transform_indices = @transform_4, window_bounds = array<i64: 344, 2>}, {pipeline_mode = #tpu.pipeline_mode<synchronous>, transform_indices = @transform_5, window_bounds = array<i64: 344, 49>}]} {
    %c0 = arith.constant 0 : index
    %c0_0 = arith.constant 0 : index
    %0 = vector.load %arg2[%c0, %c0_0] : memref<2064x87xbf16, #tpu.memory_space<vmem>>, vector<2064x87xbf16>
    %1 = arith.extf %0 : vector<2064x87xbf16> to vector<2064x87xf32>
    %c0_1 = arith.constant 0 : index
    %c0_2 = arith.constant 0 : index
    %2 = vector.load %arg1[%c0_1, %c0_2] : memref<1x87xf32, #tpu.memory_space<vmem>>, vector<1x87xf32>
    %3 = vector.broadcast %2 : vector<1x87xf32> to vector<2064x87xf32>
    %4 = arith.mulf %1, %3 : vector<2064x87xf32>
    %cst = arith.constant dense<0.000000e+00> : vector<2064xf32>
    %5 = vector.multi_reduction <add>, %4, %cst [1] : vector<2064x87xf32> to vector<2064xf32>
    %6 = vector.shape_cast %5 : vector<2064xf32> to vector<2064x1xf32>
    %cst_3 = arith.constant 0.000000e+00 : f32
    %7 = vector.broadcast %cst_3 : f32 to vector<2064x1xf32>
    %8 = arith.subf %7, %6 : vector<2064x1xf32>
    %9 = math.exp %8 : vector<2064x1xf32>
    %cst_4 = arith.constant 1.000000e+00 : f32
    %10 = vector.broadcast %cst_4 : f32 to vector<2064x1xf32>
    %11 = arith.addf %10, %9 : vector<2064x1xf32>
    %cst_5 = arith.constant 1.000000e+00 : f32
    %12 = vector.broadcast %cst_5 : f32 to vector<2064x1xf32>
    %13 = arith.divf %12, %11 : vector<2064x1xf32>
    %c0_6 = arith.constant 0 : index
    %c0_7 = arith.constant 0 : index
    %14 = vector.load %arg3[%c0_6, %c0_7] : memref<2064x49xf32, #tpu.memory_space<vmem>>, vector<2064x49xf32>
    %15 = vector.broadcast %13 : vector<2064x1xf32> to vector<2064x49xf32>
    %16 = arith.mulf %14, %15 : vector<2064x49xf32>
    %17 = arith.truncf %16 : vector<2064x49xf32> to vector<2064x49xbf16>
    %c0_8 = arith.constant 0 : index
    %c0_9 = arith.constant 0 : index
    %18 = vector.load %arg4[%c0_8, %c0_9] : memref<344x2064xbf16, #tpu.memory_space<vmem>>, vector<344x2064xbf16>
    %cst_10 = arith.constant dense<0.000000e+00> : vector<344x49xf32>
    %19 = tpu.matmul %18, %17, %cst_10 {dimension_numbers = #tpu.dot_dimension_numbers<[1], [0], [0], [1], [0, 0, 1, 1], [], []>} : vector<344x2064xbf16>, vector<2064x49xbf16>, vector<344x49xf32> -> vector<344x49xf32>
    %cst_11 = arith.constant dense<0.000000e+00> : vector<344xf32>
    %20 = vector.multi_reduction <add>, %19, %cst_11 [1] : vector<344x49xf32> to vector<344xf32>
    %21 = vector.shape_cast %20 : vector<344xf32> to vector<344x1xf32>
    %cst_12 = arith.constant 0.0204081628 : f32
    %22 = vector.broadcast %cst_12 : f32 to vector<344x1xf32>
    %23 = arith.mulf %21, %22 : vector<344x1xf32>
    %24 = vector.broadcast %23 : vector<344x1xf32> to vector<344x49xf32>
    %25 = arith.subf %19, %24 : vector<344x49xf32>
    %26 = arith.mulf %25, %25 : vector<344x49xf32>
    %cst_13 = arith.constant dense<0.000000e+00> : vector<344xf32>
    %27 = vector.multi_reduction <add>, %26, %cst_13 [1] : vector<344x49xf32> to vector<344xf32>
    %28 = vector.shape_cast %27 : vector<344xf32> to vector<344x1xf32>
    %cst_14 = arith.constant 0.0204081628 : f32
    %29 = vector.broadcast %cst_14 : f32 to vector<344x1xf32>
    %30 = arith.mulf %28, %29 : vector<344x1xf32>
    %cst_15 = arith.constant 1.000000e-03 : f32
    %31 = vector.broadcast %cst_15 : f32 to vector<344x1xf32>
    %32 = arith.addf %30, %31 : vector<344x1xf32>
    %33 = math.rsqrt %32 : vector<344x1xf32>
    %c0_16 = arith.constant 0 : index
    %c0_17 = arith.constant 0 : index
    %34 = vector.load %arg5[%c0_16, %c0_17] : memref<344x2xf32, #tpu.memory_space<vmem>>, vector<344x2xf32>
    %35 = vector.extract_strided_slice %34 {offsets = [0, 0], sizes = [344, 1], strides = [1, 1]} : vector<344x2xf32> to vector<344x1xf32>
    %36 = vector.extract_strided_slice %34 {offsets = [0, 1], sizes = [344, 1], strides = [1, 1]} : vector<344x2xf32> to vector<344x1xf32>
    %37 = arith.mulf %33, %35 : vector<344x1xf32>
    %38 = vector.broadcast %37 : vector<344x1xf32> to vector<344x49xf32>
    %39 = arith.mulf %25, %38 : vector<344x49xf32>
    %40 = vector.broadcast %36 : vector<344x1xf32> to vector<344x49xf32>
    %41 = arith.addf %39, %40 : vector<344x49xf32>
    %c0_18 = arith.constant 0 : index
    %c0_19 = arith.constant 0 : index
    %42 = vector.load %arg6[%c0_18, %c0_19] : memref<344x49xf32, #tpu.memory_space<vmem>>, vector<344x49xf32>
    tpu.vector_store %arg6[%c0_18, %c0_19], %41 {strides = array<i32>} : memref<344x49xf32, #tpu.memory_space<vmem>>, vector<344x49xf32>,
    return
  }
  func.func @transform_0(%arg0: i32) -> (i32, i32) {
    %c0_i32 = arith.constant 0 : i32
    %c0_i32_0 = arith.constant 0 : i32
    %c0_i32_1 = arith.constant 0 : i32
    return %c0_i32, %c0_i32_0 : i32, i32
  }
  func.func @transform_1(%arg0: i32) -> (i32, i32) {
    %c0_i32 = arith.constant 0 : i32
    %c0_i32_0 = arith.constant 0 : i32
    %c0_i32_1 = arith.constant 0 : i32
    return %c0_i32, %c0_i32_0 : i32, i32
  }
  func.func @transform_2(%arg0: i32) -> (i32, i32) {
    %c0_i32 = arith.constant 0 : i32
    %c0_i32_0 = arith.constant 0 : i32
    %c0_i32_1 = arith.constant 0 : i32
    return %c0_i32, %c0_i32_0 : i32, i32
  }
  func.func @transform_3(%arg0: i32) -> (i32, i32) {
    %c0_i32 = arith.constant 0 : i32
    %c0_i32_0 = arith.constant 0 : i32
    %c0_i32_1 = arith.constant 0 : i32
    return %c0_i32, %c0_i32_0 : i32, i32
  }
  func.func @transform_4(%arg0: i32) -> (i32, i32) {
    %c0_i32 = arith.constant 0 : i32
    %c0_i32_0 = arith.constant 0 : i32
    %c0_i32_1 = arith.constant 0 : i32
    return %c0_i32, %c0_i32_0 : i32, i32
  }
  func.func @transform_5(%arg0: i32) -> (i32, i32) {
    %c0_i32 = arith.constant 0 : i32
    %c0_i32_0 = arith.constant 0 : i32
    %c0_i32_1 = arith.constant 0 : i32
    return %c0_i32, %c0_i32_0 : i32, i32
  }
}

</mosaic_0001>

<llo_original>
// kernel: module_forward.1
$region0: #{module_forward.1}
  #allocation0 [shape = 'u32[]', space=smem, size = 0x4, offset = 0x4, fixed_abs, tag = 'smem constant byte address 0x4 - core index']
  #allocation1 [shape = 'u32[144,128]{1,0:T(1,128)}', space=vmem, size = 0x12000, scoped, tag = 'internal scratch']
  %s0 = inlined_call_operand.vmem [shape: f32[1,87], index: 0, kind: input, shape index: {}]
  %s1 = inlined_call_operand.vmem [shape: bf16[2064,87], index: 1, kind: input, shape index: {}]
  %s2 = inlined_call_operand.vmem [shape: f32[2064,49], index: 2, kind: input, shape index: {}]
  %s3 = inlined_call_operand.vmem [shape: bf16[344,2064], index: 3, kind: input, shape index: {}]
  %s4 = inlined_call_operand.vmem [shape: f32[344,2], index: 4, kind: input, shape index: {}]
  %s5 = inlined_call_operand.vmem [shape: f32[344,49], index: 5, kind: output, shape index: {}]
  %s6 = sld [smem:[#allocation0]]
  $region30: #{module_forward.1} parent=0
    _
  %s8 = ssub.s32 1, %s6
  %s9 = scalar_select 0, %s8, %s6
  // Predicated region
  $region2: #{module_forward.1} parent=0 // pred_check
    _
  $region3: #{module_forward.1} parent=0 // pred_check_branch
    %11 = sbr.rel (0) target = $region5
  $region4: #{module_forward.1} parent=0 // pred_region
    _
  $region5: #{module_forward.1} parent=0 // pred_fallthru
    _
  // Predicated region
  $region6: #{module_forward.1} parent=0 // pred_check
    _
  $region7: #{module_forward.1} parent=0 // pred_check_branch
    %13 = sbr.rel (0) target = $region9
  $region8: #{module_forward.1} parent=0 // pred_region
    _
  $region9: #{module_forward.1} parent=0 // pred_fallthru
    _
  // Predicated region
  $region10: #{module_forward.1} parent=0 // pred_check
    _
  $region11: #{module_forward.1} parent=0 // pred_check_branch
    %15 = sbr.rel (0) target = $region13
  $region12: #{module_forward.1} parent=0 // pred_region
    _
  $region13: #{module_forward.1} parent=0 // pred_fallthru
    _
  // Predicated region
  $region14: #{module_forward.1} parent=0 // pred_check
    _
  $region15: #{module_forward.1} parent=0 // pred_check_branch
    %17 = sbr.rel (0) target = $region17
  $region16: #{module_forward.1} parent=0 // pred_region
    _
  $region17: #{module_forward.1} parent=0 // pred_fallthru
    _
  // Predicated region
  $region18: #{module_forward.1} parent=0 // pred_check
    _
  $region19: #{module_forward.1} parent=0 // pred_check_branch
    %19 = sbr.rel (0) target = $region21
  $region20: #{module_forward.1} parent=0 // pred_region
    _
  $region21: #{module_forward.1} parent=0 // pred_fallthru
    _
  %v21 = vld [vmem:[%s1] sm:$0xf]
  %v22 = vld [vmem:[%s1 + $0x4] sm:$0xf]
  %v23 = vld [vmem:[%s1 + $0x8] sm:$0xf]
  %v24 = vld [vmem:[%s1 + $0xc] sm:$0xf]
  %v25 = vld [vmem:[%s1 + $0x10] sm:$0xf]
  %v26 = vld [vmem:[%s1 + $0x14] sm:$0xf]
  %v27 = vld [vmem:[%s1 + $0x18] sm:$0xf]
  %v28 = vld [vmem:[%s1 + $0x1c] sm:$0xf]
  %v29 = vld [vmem:[%s1 + $0x20] sm:$0xf]
  %v30 = vld [vmem:[%s1 + $0x24] sm:$0xf]
  %v31 = vld [vmem:[%s1 + $0x28] sm:$0xf]
  %v32 = vld [vmem:[%s1 + $0x2c] sm:$0xf]
  %v33 = vld [vmem:[%s1 + $0x30] sm:$0xf]
  %v34 = vld [vmem:[%s1 + $0x34] sm:$0xf]
  %v35 = vld [vmem:[%s1 + $0x38] sm:$0xf]
  %v36 = vld [vmem:[%s1 + $0x3c] sm:$0xf]
  %v37 = vld [vmem:[%s1 + $0x40] sm:$0xf]
  %v38 = vld [vmem:[%s1 + $0x44] sm:$0xf]
  %v39 = vld [vmem:[%s1 + $0x48] sm:$0xf]
  %v40 = vld [vmem:[%s1 + $0x4c] sm:$0xf]
  %v41 = vld [vmem:[%s1 + $0x50] sm:$0xf]
  %v42 = vld [vmem:[%s1 + $0x54] sm:$0xf]
  %v43 = vld [vmem:[%s1 + $0x58] sm:$0xf]
  %v44 = vld [vmem:[%s1 + $0x5c] sm:$0xf]
  %v45 = vld [vmem:[%s1 + $0x60] sm:$0xf]
  %v46 = vld [vmem:[%s1 + $0x64] sm:$0xf]
  %v47 = vld [vmem:[%s1 + $0x68] sm:$0xf]
  %v48 = vld [vmem:[%s1 + $0x6c] sm:$0xf]
  %v49 = vld [vmem:[%s1 + $0x70] sm:$0xf]
  %v50 = vld [vmem:[%s1 + $0x74] sm:$0xf]
  %v51 = vld [vmem:[%s1 + $0x78] sm:$0xf]
  %v52 = vld [vmem:[%s1 + $0x7c] sm:$0xf]
  %v53 = vld [vmem:[%s1 + $0x80] sm:$0xf]
  %v54 = vld [vmem:[%s1 + $0x84] sm:$0xf]
  %v55 = vld [vmem:[%s1 + $0x88] sm:$0xf]
  %v56 = vld [vmem:[%s1 + $0x8c] sm:$0xf]
  %v57 = vld [vmem:[%s1 + $0x90] sm:$0xf]
  %v58 = vld [vmem:[%s1 + $0x94] sm:$0xf]
  %v59 = vld [vmem:[%s1 + $0x98] sm:$0xf]
  %v60 = vld [vmem:[%s1 + $0x9c] sm:$0xf]
  %v61 = vld [vmem:[%s1 + $0xa0] sm:$0xf]
  %v62 = vld [vmem:[%s1 + $0xa4] sm:$0xf]
  %v63 = vld [vmem:[%s1 + $0xa8] sm:$0xf]
  %v64 = vld [vmem:[%s1 + $0xac] sm:$0xf]
  %v65 = vld [vmem:[%s1 + $0xb0] sm:$0xf]
  %v66 = vld [vmem:[%s1 + $0xb4] sm:$0xf]
  %v67 = vld [vmem:[%s1 + $0xb8] sm:$0xf]
  %v68 = vld [vmem:[%s1 + $0xbc] sm:$0xf]
  %v69 = vld [vmem:[%s1 + $0xc0] sm:$0xf]
  %v70 = vld [vmem:[%s1 + $0xc4] sm:$0xf]
  %v71 = vld [vmem:[%s1 + $0xc8] sm:$0xf]
  %v72 = vld [vmem:[%s1 + $0xcc] sm:$0xf]
  %v73 = vld [vmem:[%s1 + $0xd0] sm:$0xf]
  %v74 = vld [vmem:[%s1 + $0xd4] sm:$0xf]
  %v75 = vld [vmem:[%s1 + $0xd8] sm:$0xf]
  %v76 = vld [vmem:[%s1 + $0xdc] sm:$0xf]
  %v77 = vld [vmem:[%s1 + $0xe0] sm:$0xf]
  %v78 = vld [vmem:[%s1 + $0xe4] sm:$0xf]
  %v79 = vld [vmem:[%s1 + $0xe8] sm:$0xf]
  %v80 = vld [vmem:[%s1 + $0xec] sm:$0xf]
  %v81 = vld [vmem:[%s1 + $0xf0] sm:$0xf]
  %v82 = vld [vmem:[%s1 + $0xf4] sm:$0xf]
  %v83 = vld [vmem:[%s1 + $0xf8] sm:$0xf]
  %v84 = vld [vmem:[%s1 + $0xfc] sm:$0xf]
  %v85 = vld [vmem:[%s1 + $0x100] sm:$0xf]
  %v86 = vld [vmem:[%s1 + $0x104] sm:$0xf]
  %v87 = vld [vmem:[%s1 + $0x108] sm:$0xf]
  %v88 = vld [vmem:[%s1 + $0x10c] sm:$0xf]
  %v89 = vld [vmem:[%s1 + $0x110] sm:$0xf]
  %v90 = vld [vmem:[%s1 + $0x114] sm:$0xf]
  %v91 = vld [vmem:[%s1 + $0x118] sm:$0xf]
  %v92 = vld [vmem:[%s1 + $0x11c] sm:$0xf]
  %v93 = vld [vmem:[%s1 + $0x120] sm:$0xf]
  %v94 = vld [vmem:[%s1 + $0x124] sm:$0xf]
  %v95 = vld [vmem:[%s1 + $0x128] sm:$0xf]
  %v96 = vld [vmem:[%s1 + $0x12c] sm:$0xf]
  %v97 = vld [vmem:[%s1 + $0x130] sm:$0xf]
  %v98 = vld [vmem:[%s1 + $0x134] sm:$0xf]
  %v99 = vld [vmem:[%s1 + $0x138] sm:$0xf]
  %v100 = vld [vmem:[%s1 + $0x13c] sm:$0xf]
  %v101 = vld [vmem:[%s1 + $0x140] sm:$0xf]
  %v102 = vld [vmem:[%s1 + $0x144] sm:$0xf]
  %v103 = vld [vmem:[%s1 + $0x148] sm:$0xf]
  %v104 = vld [vmem:[%s1 + $0x14c] sm:$0xf]
  %v105 = vld [vmem:[%s1 + $0x150] sm:$0xf]
  %v106 = vld [vmem:[%s1 + $0x154] sm:$0xf]
  %v107 = vld [vmem:[%s1 + $0x158] sm:$0xf]
  %v108 = vld [vmem:[%s1 + $0x15c] sm:$0xf]
  %v109 = vld [vmem:[%s1 + $0x160] sm:$0xf]
  %v110 = vld [vmem:[%s1 + $0x164] sm:$0xf]
  %v111 = vld [vmem:[%s1 + $0x168] sm:$0xf]
  %v112 = vld [vmem:[%s1 + $0x16c] sm:$0xf]
  %v113 = vld [vmem:[%s1 + $0x170] sm:$0xf]
  %v114 = vld [vmem:[%s1 + $0x174] sm:$0xf]
  %v115 = vld [vmem:[%s1 + $0x178] sm:$0xf]
  %v116 = vld [vmem:[%s1 + $0x17c] sm:$0xf]
  %v117 = vld [vmem:[%s1 + $0x180] sm:$0xf]
  %v118 = vld [vmem:[%s1 + $0x184] sm:$0xf]
  %v119 = vld [vmem:[%s1 + $0x188] sm:$0xf]
  %v120 = vld [vmem:[%s1 + $0x18c] sm:$0xf]
  %v121 = vld [vmem:[%s1 + $0x190] sm:$0xf]
  %v122 = vld [vmem:[%s1 + $0x194] sm:$0xf]
  %v123 = vld [vmem:[%s1 + $0x198] sm:$0xf]
  %v124 = vld [vmem:[%s1 + $0x19c] sm:$0xf]
  %v125 = vld [vmem:[%s1 + $0x1a0] sm:$0xf]
  %v126 = vld [vmem:[%s1 + $0x1a4] sm:$0xf]
  %v127 = vld [vmem:[%s1 + $0x1a8] sm:$0xf]
  %v128 = vld [vmem:[%s1 + $0x1ac] sm:$0xf]
  %v129 = vld [vmem:[%s1 + $0x1b0] sm:$0xf]
  %v130 = vld [vmem:[%s1 + $0x1b4] sm:$0xf]
  %v131 = vld [vmem:[%s1 + $0x1b8] sm:$0xf]
  %v132 = vld [vmem:[%s1 + $0x1bc] sm:$0xf]
  %v133 = vld [vmem:[%s1 + $0x1c0] sm:$0xf]
  %v134 = vld [vmem:[%s1 + $0x1c4] sm:$0xf]
  %v135 = vld [vmem:[%s1 + $0x1c8] sm:$0xf]
  %v136 = vld [vmem:[%s1 + $0x1cc] sm:$0xf]
  %v137 = vld [vmem:[%s1 + $0x1d0] sm:$0xf]
  %v138 = vld [vmem:[%s1 + $0x1d4] sm:$0xf]
  %v139 = vld [vmem:[%s1 + $0x1d8] sm:$0xf]
  %v140 = vld [vmem:[%s1 + $0x1dc] sm:$0xf]
  %v141 = vld [vmem:[%s1 + $0x1e0] sm:$0xf]
  %v142 = vld [vmem:[%s1 + $0x1e4] sm:$0xf]
  %v143 = vld [vmem:[%s1 + $0x1e8] sm:$0xf]
  %v144 = vld [vmem:[%s1 + $0x1ec] sm:$0xf]
  %v145 = vld [vmem:[%s1 + $0x1f0] sm:$0xf]
  %v146 = vld [vmem:[%s1 + $0x1f4] sm:$0xf]
  %v147 = vld [vmem:[%s1 + $0x1f8] sm:$0xf]
  %v148 = vld [vmem:[%s1 + $0x1fc] sm:$0xf]
  %v149 = vld [vmem:[%s1 + $0x200] sm:$0xf]
  %v150 = vld [vmem:[%s1 + $0x204] sm:$0xf]
  %v151 = vld [vmem:[%s1 + $0x208] sm:$0xf]
  %v152 = vld [vmem:[%s1 + $0x20c] sm:$0xf]
  %v153 = vld [vmem:[%s1 + $0x210] sm:$0xf]
  %v154 = vld [vmem:[%s1 + $0x214] sm:$0xf]
  %v155 = vld [vmem:[%s1 + $0x218] sm:$0xf]
  %v156 = vld [vmem:[%s1 + $0x21c] sm:$0xf]
  %v157 = vld [vmem:[%s1 + $0x220] sm:$0xf]
  %v158 = vld [vmem:[%s1 + $0x224] sm:$0xf]
  %v159 = vld [vmem:[%s1 + $0x228] sm:$0xf]
  %v160 = vld [vmem:[%s1 + $0x22c] sm:$0xf]
  %v161 = vld [vmem:[%s1 + $0x230] sm:$0xf]
  %v162 = vld [vmem:[%s1 + $0x234] sm:$0xf]
  %v163 = vld [vmem:[%s1 + $0x238] sm:$0xf]
  %v164 = vld [vmem:[%s1 + $0x23c] sm:$0xf]
  %v165 = vld [vmem:[%s1 + $0x240] sm:$0xf]
  %v166 = vld [vmem:[%s1 + $0x244] sm:$0xf]
  %v167 = vld [vmem:[%s1 + $0x248] sm:$0xf]
  %v168 = vld [vmem:[%s1 + $0x24c] sm:$0xf]
  %v169 = vld [vmem:[%s1 + $0x250] sm:$0xf]
  %v170 = vld [vmem:[%s1 + $0x254] sm:$0xf]
  %v171 = vld [vmem:[%s1 + $0x258] sm:$0xf]
  %v172 = vld [vmem:[%s1 + $0x25c] sm:$0xf]
  %v173 = vld [vmem:[%s1 + $0x260] sm:$0xf]
  %v174 = vld [vmem:[%s1 + $0x264] sm:$0xf]
  %v175 = vld [vmem:[%s1 + $0x268] sm:$0xf]
  %v176 = vld [vmem:[%s1 + $0x26c] sm:$0xf]
  %v177 = vld [vmem:[%s1 + $0x270] sm:$0xf]
  %v178 = vld [vmem:[%s1 + $0x274] sm:$0xf]
  %v179 = vld [vmem:[%s1 + $0x278] sm:$0xf]
  %v180 = vld [vmem:[%s1 + $0x27c] sm:$0xf]
  %v181 = vld [vmem:[%s1 + $0x280] sm:$0xf]
  %v182 = vld [vmem:[%s1 + $0x284] sm:$0xf]
  %v183 = vld [vmem:[%s1 + $0x288] sm:$0xf]
  %v184 = vld [vmem:[%s1 + $0x28c] sm:$0xf]
  %v185 = vld [vmem:[%s1 + $0x290] sm:$0xf]
  %v186 = vld [vmem:[%s1 + $0x294] sm:$0xf]
  %v187 = vld [vmem:[%s1 + $0x298] sm:$0xf]
  %v188 = vld [vmem:[%s1 + $0x29c] sm:$0xf]
  %v189 = vld [vmem:[%s1 + $0x2a0] sm:$0xf]
  %v190 = vld [vmem:[%s1 + $0x2a4] sm:$0xf]
  %v191 = vld [vmem:[%s1 + $0x2a8] sm:$0xf]
  %v192 = vld [vmem:[%s1 + $0x2ac] sm:$0xf]
  %v193 = vld [vmem:[%s1 + $0x2b0] sm:$0xf]
  %v194 = vld [vmem:[%s1 + $0x2b4] sm:$0xf]
  %v195 = vld [vmem:[%s1 + $0x2b8] sm:$0xf]
  %v196 = vld [vmem:[%s1 + $0x2bc] sm:$0xf]
  %v197 = vld [vmem:[%s1 + $0x2c0] sm:$0xf]
  %v198 = vld [vmem:[%s1 + $0x2c4] sm:$0xf]
  %v199 = vld [vmem:[%s1 + $0x2c8] sm:$0xf]
  %v200 = vld [vmem:[%s1 + $0x2cc] sm:$0xf]
  %v201 = vld [vmem:[%s1 + $0x2d0] sm:$0xf]
  %v202 = vld [vmem:[%s1 + $0x2d4] sm:$0xf]
  %v203 = vld [vmem:[%s1 + $0x2d8] sm:$0xf]
  %v204 = vld [vmem:[%s1 + $0x2dc] sm:$0xf]
  %v205 = vld [vmem:[%s1 + $0x2e0] sm:$0xf]
  %v206 = vld [vmem:[%s1 + $0x2e4] sm:$0xf]
  %v207 = vld [vmem:[%s1 + $0x2e8] sm:$0xf]
  %v208 = vld [vmem:[%s1 + $0x2ec] sm:$0xf]
  %v209 = vld [vmem:[%s1 + $0x2f0] sm:$0xf]
  %v210 = vld [vmem:[%s1 + $0x2f4] sm:$0xf]
  %v211 = vld [vmem:[%s1 + $0x2f8] sm:$0xf]
  %v212 = vld [vmem:[%s1 + $0x2fc] sm:$0xf]
  %v213 = vld [vmem:[%s1 + $0x300] sm:$0xf]
  %v214 = vld [vmem:[%s1 + $0x304] sm:$0xf]
  %v215 = vld [vmem:[%s1 + $0x308] sm:$0xf]
  %v216 = vld [vmem:[%s1 + $0x30c] sm:$0xf]
  %v217 = vld [vmem:[%s1 + $0x310] sm:$0xf]
  %v218 = vld [vmem:[%s1 + $0x314] sm:$0xf]
  %v219 = vld [vmem:[%s1 + $0x318] sm:$0xf]
  %v220 = vld [vmem:[%s1 + $0x31c] sm:$0xf]
  %v221 = vld [vmem:[%s1 + $0x320] sm:$0xf]
  %v222 = vld [vmem:[%s1 + $0x324] sm:$0xf]
  %v223 = vld [vmem:[%s1 + $0x328] sm:$0xf]
  %v224 = vld [vmem:[%s1 + $0x32c] sm:$0xf]
  %v225 = vld [vmem:[%s1 + $0x330] sm:$0xf]
  %v226 = vld [vmem:[%s1 + $0x334] sm:$0xf]
  %v227 = vld [vmem:[%s1 + $0x338] sm:$0xf]
  %v228 = vld [vmem:[%s1 + $0x33c] sm:$0xf]
  %v229 = vld [vmem:[%s1 + $0x340] sm:$0xf]
  %v230 = vld [vmem:[%s1 + $0x344] sm:$0xf]
  %v231 = vld [vmem:[%s1 + $0x348] sm:$0xf]
  %v232 = vld [vmem:[%s1 + $0x34c] sm:$0xf]
  %v233 = vld [vmem:[%s1 + $0x350] sm:$0xf]
  %v234 = vld [vmem:[%s1 + $0x354] sm:$0xf]
  %v235 = vld [vmem:[%s1 + $0x358] sm:$0xf]
  %v236 = vld [vmem:[%s1 + $0x35c] sm:$0xf]
  %v237 = vld [vmem:[%s1 + $0x360] sm:$0xf]
  %v238 = vld [vmem:[%s1 + $0x364] sm:$0xf]
  %v239 = vld [vmem:[%s1 + $0x368] sm:$0xf]
  %v240 = vld [vmem:[%s1 + $0x36c] sm:$0xf]
  %v241 = vld [vmem:[%s1 + $0x370] sm:$0xf]
  %v242 = vld [vmem:[%s1 + $0x374] sm:$0xf]
  %v243 = vld [vmem:[%s1 + $0x378] sm:$0xf]
  %v244 = vld [vmem:[%s1 + $0x37c] sm:$0xf]
  %v245 = vld [vmem:[%s1 + $0x380] sm:$0xf]
  %v246 = vld [vmem:[%s1 + $0x384] sm:$0xf]
  %v247 = vld [vmem:[%s1 + $0x388] sm:$0xf]
  %v248 = vld [vmem:[%s1 + $0x38c] sm:$0xf]
  %v249 = vld [vmem:[%s1 + $0x390] sm:$0xf]
  %v250 = vld [vmem:[%s1 + $0x394] sm:$0xf]
  %v251 = vld [vmem:[%s1 + $0x398] sm:$0xf]
  %v252 = vld [vmem:[%s1 + $0x39c] sm:$0xf]
  %v253 = vld [vmem:[%s1 + $0x3a0] sm:$0xf]
  %v254 = vld [vmem:[%s1 + $0x3a4] sm:$0xf]
  %v255 = vld [vmem:[%s1 + $0x3a8] sm:$0xf]
  %v256 = vld [vmem:[%s1 + $0x3ac] sm:$0xf]
  %v257 = vld [vmem:[%s1 + $0x3b0] sm:$0xf]
  %v258 = vld [vmem:[%s1 + $0x3b4] sm:$0xf]
  %v259 = vld [vmem:[%s1 + $0x3b8] sm:$0xf]
  %v260 = vld [vmem:[%s1 + $0x3bc] sm:$0xf]
  %v261 = vld [vmem:[%s1 + $0x3c0] sm:$0xf]
  %v262 = vld [vmem:[%s1 + $0x3c4] sm:$0xf]
  %v263 = vld [vmem:[%s1 + $0x3c8] sm:$0xf]
  %v264 = vld [vmem:[%s1 + $0x3cc] sm:$0xf]
  %v265 = vld [vmem:[%s1 + $0x3d0] sm:$0xf]
  %v266 = vld [vmem:[%s1 + $0x3d4] sm:$0xf]
  %v267 = vld [vmem:[%s1 + $0x3d8] sm:$0xf]
  %v268 = vld [vmem:[%s1 + $0x3dc] sm:$0xf]
  %v269 = vld [vmem:[%s1 + $0x3e0] sm:$0xf]
  %v270 = vld [vmem:[%s1 + $0x3e4] sm:$0xf]
  %v271 = vld [vmem:[%s1 + $0x3e8] sm:$0xf]
  %v272 = vld [vmem:[%s1 + $0x3ec] sm:$0xf]
  %v273 = vld [vmem:[%s1 + $0x3f0] sm:$0xf]
  %v274 = vld [vmem:[%s1 + $0x3f4] sm:$0xf]
  %v275 = vld [vmem:[%s1 + $0x3f8] sm:$0xf]
  %v276 = vld [vmem:[%s1 + $0x3fc] sm:$0xf]
  %v277 = vld [vmem:[%s1 + $0x400] sm:$0xf]
  %v278 = vld [vmem:[%s1 + $0x404] sm:$0xf]
  %v279 = vunpack.c.l.bf16 %v21
  %v280 = vunpack.c.l.bf16 %v22
  %v281 = vunpack.c.l.bf16 %v23
  %v282 = vunpack.c.l.bf16 %v24
  %v283 = vunpack.c.l.bf16 %v25
  %v284 = vunpack.c.l.bf16 %v26
  %v285 = vunpack.c.l.bf16 %v27
  %v286 = vunpack.c.l.bf16 %v28
  %v287 = vunpack.c.l.bf16 %v29
  %v288 = vunpack.c.l.bf16 %v30
  %v289 = vunpack.c.l.bf16 %v31
  %v290 = vunpack.c.l.bf16 %v32
  %v291 = vunpack.c.l.bf16 %v33
  %v292 = vunpack.c.l.bf16 %v34
  %v293 = vunpack.c.l.bf16 %v35
  %v294 = vunpack.c.l.bf16 %v36
  %v295 = vunpack.c.l.bf16 %v37
  %v296 = vunpack.c.l.bf16 %v38
  %v297 = vunpack.c.l.bf16 %v39
  %v298 = vunpack.c.l.bf16 %v40
  %v299 = vunpack.c.l.bf16 %v41
  %v300 = vunpack.c.l.bf16 %v42
  %v301 = vunpack.c.l.bf16 %v43
  %v302 = vunpack.c.l.bf16 %v44
  %v303 = vunpack.c.l.bf16 %v45
  %v304 = vunpack.c.l.bf16 %v46
  %v305 = vunpack.c.l.bf16 %v47
  %v306 = vunpack.c.l.bf16 %v48
  %v307 = vunpack.c.l.bf16 %v49
  %v308 = vunpack.c.l.bf16 %v50
  %v309 = vunpack.c.l.bf16 %v51
  %v310 = vunpack.c.l.bf16 %v52
  %v311 = vunpack.c.l.bf16 %v53
  %v312 = vunpack.c.l.bf16 %v54
  %v313 = vunpack.c.l.bf16 %v55
  %v314 = vunpack.c.l.bf16 %v56
  %v315 = vunpack.c.l.bf16 %v57
  %v316 = vunpack.c.l.bf16 %v58
  %v317 = vunpack.c.l.bf16 %v59
  %v318 = vunpack.c.l.bf16 %v60
  %v319 = vunpack.c.l.bf16 %v61
  %v320 = vunpack.c.l.bf16 %v62
  %v321 = vunpack.c.l.bf16 %v63
  %v322 = vunpack.c.l.bf16 %v64
  %v323 = vunpack.c.l.bf16 %v65
  %v324 = vunpack.c.l.bf16 %v66
  %v325 = vunpack.c.l.bf16 %v67
  %v326 = vunpack.c.l.bf16 %v68
  %v327 = vunpack.c.l.bf16 %v69
  %v328 = vunpack.c.l.bf16 %v70
  %v329 = vunpack.c.l.bf16 %v71
  %v330 = vunpack.c.l.bf16 %v72
  %v331 = vunpack.c.l.bf16 %v73
  %v332 = vunpack.c.l.bf16 %v74
  %v333 = vunpack.c.l.bf16 %v75
  %v334 = vunpack.c.l.bf16 %v76
  %v335 = vunpack.c.l.bf16 %v77
  %v336 = vunpack.c.l.bf16 %v78
  %v337 = vunpack.c.l.bf16 %v79
  %v338 = vunpack.c.l.bf16 %v80
  %v339 = vunpack.c.l.bf16 %v81
  %v340 = vunpack.c.l.bf16 %v82
  %v341 = vunpack.c.l.bf16 %v83
  %v342 = vunpack.c.l.bf16 %v84
  %v343 = vunpack.c.l.bf16 %v85
  %v344 = vunpack.c.l.bf16 %v86
  %v345 = vunpack.c.l.bf16 %v87
  %v346 = vunpack.c.l.bf16 %v88
  %v347 = vunpack.c.l.bf16 %v89
  %v348 = vunpack.c.l.bf16 %v90
  %v349 = vunpack.c.l.bf16 %v91
  %v350 = vunpack.c.l.bf16 %v92
  %v351 = vunpack.c.l.bf16 %v93
  %v352 = vunpack.c.l.bf16 %v94
  %v353 = vunpack.c.l.bf16 %v95
  %v354 = vunpack.c.l.bf16 %v96
  %v355 = vunpack.c.l.bf16 %v97
  %v356 = vunpack.c.l.bf16 %v98
  %v357 = vunpack.c.l.bf16 %v99
  %v358 = vunpack.c.l.bf16 %v100
  %v359 = vunpack.c.l.bf16 %v101
  %v360 = vunpack.c.l.bf16 %v102
  %v361 = vunpack.c.l.bf16 %v103
  %v362 = vunpack.c.l.bf16 %v104
  %v363 = vunpack.c.l.bf16 %v105
  %v364 = vunpack.c.l.bf16 %v106
  %v365 = vunpack.c.l.bf16 %v107
  %v366 = vunpack.c.l.bf16 %v108
  %v367 = vunpack.c.l.bf16 %v109
  %v368 = vunpack.c.l.bf16 %v110
  %v369 = vunpack.c.l.bf16 %v111
  %v370 = vunpack.c.l.bf16 %v112
  %v371 = vunpack.c.l.bf16 %v113
  %v372 = vunpack.c.l.bf16 %v114
  %v373 = vunpack.c.l.bf16 %v115
  %v374 = vunpack.c.l.bf16 %v116
  %v375 = vunpack.c.l.bf16 %v117
  %v376 = vunpack.c.l.bf16 %v118
  %v377 = vunpack.c.l.bf16 %v119
  %v378 = vunpack.c.l.bf16 %v120
  %v379 = vunpack.c.l.bf16 %v121
  %v380 = vunpack.c.l.bf16 %v122
  %v381 = vunpack.c.l.bf16 %v123
  %v382 = vunpack.c.l.bf16 %v124
  %v383 = vunpack.c.l.bf16 %v125
  %v384 = vunpack.c.l.bf16 %v126
  %v385 = vunpack.c.l.bf16 %v127
  %v386 = vunpack.c.l.bf16 %v128
  %v387 = vunpack.c.l.bf16 %v129
  %v388 = vunpack.c.l.bf16 %v130
  %v389 = vunpack.c.l.bf16 %v131
  %v390 = vunpack.c.l.bf16 %v132
  %v391 = vunpack.c.l.bf16 %v133
  %v392 = vunpack.c.l.bf16 %v134
  %v393 = vunpack.c.l.bf16 %v135
  %v394 = vunpack.c.l.bf16 %v136
  %v395 = vunpack.c.l.bf16 %v137
  %v396 = vunpack.c.l.bf16 %v138
  %v397 = vunpack.c.l.bf16 %v139
  %v398 = vunpack.c.l.bf16 %v140
  %v399 = vunpack.c.l.bf16 %v141
  %v400 = vunpack.c.l.bf16 %v142
  %v401 = vunpack.c.l.bf16 %v143
  %v402 = vunpack.c.l.bf16 %v144
  %v403 = vunpack.c.l.bf16 %v145
  %v404 = vunpack.c.l.bf16 %v146
  %v405 = vunpack.c.l.bf16 %v147
  %v406 = vunpack.c.l.bf16 %v148
  %v407 = vunpack.c.l.bf16 %v149
  %v408 = vunpack.c.l.bf16 %v150
  %v409 = vunpack.c.l.bf16 %v151
  %v410 = vunpack.c.l.bf16 %v152
  %v411 = vunpack.c.l.bf16 %v153
  %v412 = vunpack.c.l.bf16 %v154
  %v413 = vunpack.c.l.bf16 %v155
  %v414 = vunpack.c.l.bf16 %v156
  %v415 = vunpack.c.l.bf16 %v157
  %v416 = vunpack.c.l.bf16 %v158
  %v417 = vunpack.c.l.bf16 %v159
  %v418 = vunpack.c.l.bf16 %v160
  %v419 = vunpack.c.l.bf16 %v161
  %v420 = vunpack.c.l.bf16 %v162
  %v421 = vunpack.c.l.bf16 %v163
  %v422 = vunpack.c.l.bf16 %v164
  %v423 = vunpack.c.l.bf16 %v165
  %v424 = vunpack.c.l.bf16 %v166
  %v425 = vunpack.c.l.bf16 %v167
  %v426 = vunpack.c.l.bf16 %v168
  %v427 = vunpack.c.l.bf16 %v169
  %v428 = vunpack.c.l.bf16 %v170
  %v429 = vunpack.c.l.bf16 %v171
  %v430 = vunpack.c.l.bf16 %v172
  %v431 = vunpack.c.l.bf16 %v173
  %v432 = vunpack.c.l.bf16 %v174
  %v433 = vunpack.c.l.bf16 %v175
  %v434 = vunpack.c.l.bf16 %v176
  %v435 = vunpack.c.l.bf16 %v177
  %v436 = vunpack.c.l.bf16 %v178
  %v437 = vunpack.c.l.bf16 %v179
  %v438 = vunpack.c.l.bf16 %v180
  %v439 = vunpack.c.l.bf16 %v181
  %v440 = vunpack.c.l.bf16 %v182
  %v441 = vunpack.c.l.bf16 %v183
  %v442 = vunpack.c.l.bf16 %v184
  %v443 = vunpack.c.l.bf16 %v185
  %v444 = vunpack.c.l.bf16 %v186
  %v445 = vunpack.c.l.bf16 %v187
  %v446 = vunpack.c.l.bf16 %v188
  %v447 = vunpack.c.l.bf16 %v189
  %v448 = vunpack.c.l.bf16 %v190
  %v449 = vunpack.c.l.bf16 %v191
  %v450 = vunpack.c.l.bf16 %v192
  %v451 = vunpack.c.l.bf16 %v193
  %v452 = vunpack.c.l.bf16 %v194
  %v453 = vunpack.c.l.bf16 %v195
  %v454 = vunpack.c.l.bf16 %v196
  %v455 = vunpack.c.l.bf16 %v197
  %v456 = vunpack.c.l.bf16 %v198
  %v457 = vunpack.c.l.bf16 %v199
  %v458 = vunpack.c.l.bf16 %v200
  %v459 = vunpack.c.l.bf16 %v201
  %v460 = vunpack.c.l.bf16 %v202
  %v461 = vunpack.c.l.bf16 %v203
  %v462 = vunpack.c.l.bf16 %v204
  %v463 = vunpack.c.l.bf16 %v205
  %v464 = vunpack.c.l.bf16 %v206
  %v465 = vunpack.c.l.bf16 %v207
  %v466 = vunpack.c.l.bf16 %v208
  %v467 = vunpack.c.l.bf16 %v209
  %v468 = vunpack.c.l.bf16 %v210
  %v469 = vunpack.c.l.bf16 %v211
  %v470 = vunpack.c.l.bf16 %v212
  %v471 = vunpack.c.l.bf16 %v213
  %v472 = vunpack.c.l.bf16 %v214
  %v473 = vunpack.c.l.bf16 %v215
  %v474 = vunpack.c.l.bf16 %v216
  %v475 = vunpack.c.l.bf16 %v217
  %v476 = vunpack.c.l.bf16 %v218
  %v477 = vunpack.c.l.bf16 %v219
  %v478 = vunpack.c.l.bf16 %v220
  %v479 = vunpack.c.l.bf16 %v221
  %v480 = vunpack.c.l.bf16 %v222
  %v481 = vunpack.c.l.bf16 %v223
  %v482 = vunpack.c.l.bf16 %v224
  %v483 = vunpack.c.l.bf16 %v225
  %v484 = vunpack.c.l.bf16 %v226
  %v485 = vunpack.c.l.bf16 %v227
  %v486 = vunpack.c.l.bf16 %v228
  %v487 = vunpack.c.l.bf16 %v229
  %v488 = vunpack.c.l.bf16 %v230
  %v489 = vunpack.c.l.bf16 %v231
  %v490 = vunpack.c.l.bf16 %v232
  %v491 = vunpack.c.l.bf16 %v233
  %v492 = vunpack.c.l.bf16 %v234
  %v493 = vunpack.c.l.bf16 %v235
  %v494 = vunpack.c.l.bf16 %v236
  %v495 = vunpack.c.l.bf16 %v237
  %v496 = vunpack.c.l.bf16 %v238
  %v497 = vunpack.c.l.bf16 %v239
  %v498 = vunpack.c.l.bf16 %v240
  %v499 = vunpack.c.l.bf16 %v241
  %v500 = vunpack.c.l.bf16 %v242
  %v501 = vunpack.c.l.bf16 %v243
  %v502 = vunpack.c.l.bf16 %v244
  %v503 = vunpack.c.l.bf16 %v245
  %v504 = vunpack.c.l.bf16 %v246
  %v505 = vunpack.c.l.bf16 %v247
  %v506 = vunpack.c.l.bf16 %v248
  %v507 = vunpack.c.l.bf16 %v249
  %v508 = vunpack.c.l.bf16 %v250
  %v509 = vunpack.c.l.bf16 %v251
  %v510 = vunpack.c.l.bf16 %v252
  %v511 = vunpack.c.l.bf16 %v253
  %v512 = vunpack.c.l.bf16 %v254
  %v513 = vunpack.c.l.bf16 %v255
  %v514 = vunpack.c.l.bf16 %v256
  %v515 = vunpack.c.l.bf16 %v257
  %v516 = vunpack.c.l.bf16 %v258
  %v517 = vunpack.c.l.bf16 %v259
  %v518 = vunpack.c.l.bf16 %v260
  %v519 = vunpack.c.l.bf16 %v261
  %v520 = vunpack.c.l.bf16 %v262
  %v521 = vunpack.c.l.bf16 %v263
  %v522 = vunpack.c.l.bf16 %v264
  %v523 = vunpack.c.l.bf16 %v265
  %v524 = vunpack.c.l.bf16 %v266
  %v525 = vunpack.c.l.bf16 %v267
  %v526 = vunpack.c.l.bf16 %v268
  %v527 = vunpack.c.l.bf16 %v269
  %v528 = vunpack.c.l.bf16 %v270
  %v529 = vunpack.c.l.bf16 %v271
  %v530 = vunpack.c.l.bf16 %v272
  %v531 = vunpack.c.l.bf16 %v273
  %v532 = vunpack.c.l.bf16 %v274
  %v533 = vunpack.c.l.bf16 %v275
  %v534 = vunpack.c.l.bf16 %v276
  %v535 = vunpack.c.l.bf16 %v277
  %v536 = vunpack.c.l.bf16 %v278
  %v537 = vld [vmem:[%s0] sm:$0x1]
  %v539 = vlaneseq
  %v540 = vshrl.u32 %v539, 7
  %v541 = vsub.s32 0, %v540
  %v542 = vrot.slane %v537, %v541
  %v544 = vmul.f32 %v279, %v542
  %v545 = vmul.f32 %v280, %v542
  %v546 = vmul.f32 %v281, %v542
  %v547 = vmul.f32 %v282, %v542
  %v548 = vmul.f32 %v283, %v542
  %v549 = vmul.f32 %v284, %v542
  %v550 = vmul.f32 %v285, %v542
  %v551 = vmul.f32 %v286, %v542
  %v552 = vmul.f32 %v287, %v542
  %v553 = vmul.f32 %v288, %v542
  %v554 = vmul.f32 %v289, %v542
  %v555 = vmul.f32 %v290, %v542
  %v556 = vmul.f32 %v291, %v542
  %v557 = vmul.f32 %v292, %v542
  %v558 = vmul.f32 %v293, %v542
  %v559 = vmul.f32 %v294, %v542
  %v560 = vmul.f32 %v295, %v542
  %v561 = vmul.f32 %v296, %v542
  %v562 = vmul.f32 %v297, %v542
  %v563 = vmul.f32 %v298, %v542
  %v564 = vmul.f32 %v299, %v542
  %v565 = vmul.f32 %v300, %v542
  %v566 = vmul.f32 %v301, %v542
  %v567 = vmul.f32 %v302, %v542
  %v568 = vmul.f32 %v303, %v542
  %v569 = vmul.f32 %v304, %v542
  %v570 = vmul.f32 %v305, %v542
  %v571 = vmul.f32 %v306, %v542
  %v572 = vmul.f32 %v307, %v542
  %v573 = vmul.f32 %v308, %v542
  %v574 = vmul.f32 %v309, %v542
  %v575 = vmul.f32 %v310, %v542
  %v576 = vmul.f32 %v311, %v542
  %v577 = vmul.f32 %v312, %v542
  %v578 = vmul.f32 %v313, %v542
  %v579 = vmul.f32 %v314, %v542
  %v580 = vmul.f32 %v315, %v542
  %v581 = vmul.f32 %v316, %v542
  %v582 = vmul.f32 %v317, %v542
  %v583 = vmul.f32 %v318, %v542
  %v584 = vmul.f32 %v319, %v542
  %v585 = vmul.f32 %v320, %v542
  %v586 = vmul.f32 %v321, %v542
  %v587 = vmul.f32 %v322, %v542
  %v588 = vmul.f32 %v323, %v542
  %v589 = vmul.f32 %v324, %v542
  %v590 = vmul.f32 %v325, %v542
  %v591 = vmul.f32 %v326, %v542
  %v592 = vmul.f32 %v327, %v542
  %v593 = vmul.f32 %v328, %v542
  %v594 = vmul.f32 %v329, %v542
  %v595 = vmul.f32 %v330, %v542
  %v596 = vmul.f32 %v331, %v542
  %v597 = vmul.f32 %v332, %v542
  %v598 = vmul.f32 %v333, %v542
  %v599 = vmul.f32 %v334, %v542
  %v600 = vmul.f32 %v335, %v542
  %v601 = vmul.f32 %v336, %v542
  %v602 = vmul.f32 %v337, %v542
  %v603 = vmul.f32 %v338, %v542
  %v604 = vmul.f32 %v339, %v542
  %v605 = vmul.f32 %v340, %v542
  %v606 = vmul.f32 %v341, %v542
  %v607 = vmul.f32 %v342, %v542
  %v608 = vmul.f32 %v343, %v542
  %v609 = vmul.f32 %v344, %v542
  %v610 = vmul.f32 %v345, %v542
  %v611 = vmul.f32 %v346, %v542
  %v612 = vmul.f32 %v347, %v542
  %v613 = vmul.f32 %v348, %v542
  %v614 = vmul.f32 %v349, %v542
  %v615 = vmul.f32 %v350, %v542
  %v616 = vmul.f32 %v351, %v542
  %v617 = vmul.f32 %v352, %v542
  %v618 = vmul.f32 %v353, %v542
  %v619 = vmul.f32 %v354, %v542
  %v620 = vmul.f32 %v355, %v542
  %v621 = vmul.f32 %v356, %v542
  %v622 = vmul.f32 %v357, %v542
  %v623 = vmul.f32 %v358, %v542
  %v624 = vmul.f32 %v359, %v542
  %v625 = vmul.f32 %v360, %v542
  %v626 = vmul.f32 %v361, %v542
  %v627 = vmul.f32 %v362, %v542
  %v628 = vmul.f32 %v363, %v542
  %v629 = vmul.f32 %v364, %v542
  %v630 = vmul.f32 %v365, %v542
  %v631 = vmul.f32 %v366, %v542
  %v632 = vmul.f32 %v367, %v542
  %v633 = vmul.f32 %v368, %v542
  %v634 = vmul.f32 %v369, %v542
  %v635 = vmul.f32 %v370, %v542
  %v636 = vmul.f32 %v371, %v542
  %v637 = vmul.f32 %v372, %v542
  %v638 = vmul.f32 %v373, %v542
  %v639 = vmul.f32 %v374, %v542
  %v640 = vmul.f32 %v375, %v542
  %v641 = vmul.f32 %v376, %v542
  %v642 = vmul.f32 %v377, %v542
  %v643 = vmul.f32 %v378, %v542
  %v644 = vmul.f32 %v379, %v542
  %v645 = vmul.f32 %v380, %v542
  %v646 = vmul.f32 %v381, %v542
  %v647 = vmul.f32 %v382, %v542
  %v648 = vmul.f32 %v383, %v542
  %v649 = vmul.f32 %v384, %v542
  %v650 = vmul.f32 %v385, %v542
  %v651 = vmul.f32 %v386, %v542
  %v652 = vmul.f32 %v387, %v542
  %v653 = vmul.f32 %v388, %v542
  %v654 = vmul.f32 %v389, %v542
  %v655 = vmul.f32 %v390, %v542
  %v656 = vmul.f32 %v391, %v542
  %v657 = vmul.f32 %v392, %v542
  %v658 = vmul.f32 %v393, %v542
  %v659 = vmul.f32 %v394, %v542
  %v660 = vmul.f32 %v395, %v542
  %v661 = vmul.f32 %v396, %v542
  %v662 = vmul.f32 %v397, %v542
  %v663 = vmul.f32 %v398, %v542
  %v664 = vmul.f32 %v399, %v542
  %v665 = vmul.f32 %v400, %v542
  %v666 = vmul.f32 %v401, %v542
  %v667 = vmul.f32 %v402, %v542
  %v668 = vmul.f32 %v403, %v542
  %v669 = vmul.f32 %v404, %v542
  %v670 = vmul.f32 %v405, %v542
  %v671 = vmul.f32 %v406, %v542
  %v672 = vmul.f32 %v407, %v542
  %v673 = vmul.f32 %v408, %v542
  %v674 = vmul.f32 %v409, %v542
  %v675 = vmul.f32 %v410, %v542
  %v676 = vmul.f32 %v411, %v542
  %v677 = vmul.f32 %v412, %v542
  %v678 = vmul.f32 %v413, %v542
  %v679 = vmul.f32 %v414, %v542
  %v680 = vmul.f32 %v415, %v542
  %v681 = vmul.f32 %v416, %v542
  %v682 = vmul.f32 %v417, %v542
  %v683 = vmul.f32 %v418, %v542
  %v684 = vmul.f32 %v419, %v542
  %v685 = vmul.f32 %v420, %v542
  %v686 = vmul.f32 %v421, %v542
  %v687 = vmul.f32 %v422, %v542
  %v688 = vmul.f32 %v423, %v542
  %v689 = vmul.f32 %v424, %v542
  %v690 = vmul.f32 %v425, %v542
  %v691 = vmul.f32 %v426, %v542
  %v692 = vmul.f32 %v427, %v542
  %v693 = vmul.f32 %v428, %v542
  %v694 = vmul.f32 %v429, %v542
  %v695 = vmul.f32 %v430, %v542
  %v696 = vmul.f32 %v431, %v542
  %v697 = vmul.f32 %v432, %v542
  %v698 = vmul.f32 %v433, %v542
  %v699 = vmul.f32 %v434, %v542
  %v700 = vmul.f32 %v435, %v542
  %v701 = vmul.f32 %v436, %v542
  %v702 = vmul.f32 %v437, %v542
  %v703 = vmul.f32 %v438, %v542
  %v704 = vmul.f32 %v439, %v542
  %v705 = vmul.f32 %v440, %v542
  %v706 = vmul.f32 %v441, %v542
  %v707 = vmul.f32 %v442, %v542
  %v708 = vmul.f32 %v443, %v542
  %v709 = vmul.f32 %v444, %v542
  %v710 = vmul.f32 %v445, %v542
  %v711 = vmul.f32 %v446, %v542
  %v712 = vmul.f32 %v447, %v542
  %v713 = vmul.f32 %v448, %v542
  %v714 = vmul.f32 %v449, %v542
  %v715 = vmul.f32 %v450, %v542
  %v716 = vmul.f32 %v451, %v542
  %v717 = vmul.f32 %v452, %v542
  %v718 = vmul.f32 %v453, %v542
  %v719 = vmul.f32 %v454, %v542
  %v720 = vmul.f32 %v455, %v542
  %v721 = vmul.f32 %v456, %v542
  %v722 = vmul.f32 %v457, %v542
  %v723 = vmul.f32 %v458, %v542
  %v724 = vmul.f32 %v459, %v542
  %v725 = vmul.f32 %v460, %v542
  %v726 = vmul.f32 %v461, %v542
  %v727 = vmul.f32 %v462, %v542
  %v728 = vmul.f32 %v463, %v542
  %v729 = vmul.f32 %v464, %v542
  %v730 = vmul.f32 %v465, %v542
  %v731 = vmul.f32 %v466, %v542
  %v732 = vmul.f32 %v467, %v542
  %v733 = vmul.f32 %v468, %v542
  %v734 = vmul.f32 %v469, %v542
  %v735 = vmul.f32 %v470, %v542
  %v736 = vmul.f32 %v471, %v542
  %v737 = vmul.f32 %v472, %v542
  %v738 = vmul.f32 %v473, %v542
  %v739 = vmul.f32 %v474, %v542
  %v740 = vmul.f32 %v475, %v542
  %v741 = vmul.f32 %v476, %v542
  %v742 = vmul.f32 %v477, %v542
  %v743 = vmul.f32 %v478, %v542
  %v744 = vmul.f32 %v479, %v542
  %v745 = vmul.f32 %v480, %v542
  %v746 = vmul.f32 %v481, %v542
  %v747 = vmul.f32 %v482, %v542
  %v748 = vmul.f32 %v483, %v542
  %v749 = vmul.f32 %v484, %v542
  %v750 = vmul.f32 %v485, %v542
  %v751 = vmul.f32 %v486, %v542
  %v752 = vmul.f32 %v487, %v542
  %v753 = vmul.f32 %v488, %v542
  %v754 = vmul.f32 %v489, %v542
  %v755 = vmul.f32 %v490, %v542
  %v756 = vmul.f32 %v491, %v542
  %v757 = vmul.f32 %v492, %v542
  %v758 = vmul.f32 %v493, %v542
  %v759 = vmul.f32 %v494, %v542
  %v760 = vmul.f32 %v495, %v542
  %v761 = vmul.f32 %v496, %v542
  %v762 = vmul.f32 %v497, %v542
  %v763 = vmul.f32 %v498, %v542
  %v764 = vmul.f32 %v499, %v542
  %v765 = vmul.f32 %v500, %v542
  %v766 = vmul.f32 %v501, %v542
  %v767 = vmul.f32 %v502, %v542
  %v768 = vmul.f32 %v503, %v542
  %v769 = vmul.f32 %v504, %v542
  %v770 = vmul.f32 %v505, %v542
  %v771 = vmul.f32 %v506, %v542
  %v772 = vmul.f32 %v507, %v542
  %v773 = vmul.f32 %v508, %v542
  %v774 = vmul.f32 %v509, %v542
  %v775 = vmul.f32 %v510, %v542
  %v776 = vmul.f32 %v511, %v542
  %v777 = vmul.f32 %v512, %v542
  %v778 = vmul.f32 %v513, %v542
  %v779 = vmul.f32 %v514, %v542
  %v780 = vmul.f32 %v515, %v542
  %v781 = vmul.f32 %v516, %v542
  %v782 = vmul.f32 %v517, %v542
  %v783 = vmul.f32 %v518, %v542
  %v784 = vmul.f32 %v519, %v542
  %v785 = vmul.f32 %v520, %v542
  %v786 = vmul.f32 %v521, %v542
  %v787 = vmul.f32 %v522, %v542
  %v788 = vmul.f32 %v523, %v542
  %v789 = vmul.f32 %v524, %v542
  %v790 = vmul.f32 %v525, %v542
  %v791 = vmul.f32 %v526, %v542
  %v792 = vmul.f32 %v527, %v542
  %v793 = vmul.f32 %v528, %v542
  %v794 = vmul.f32 %v529, %v542
  %v795 = vmul.f32 %v530, %v542
  %v796 = vmul.f32 %v531, %v542
  %v797 = vmul.f32 %v532, %v542
  %v798 = vmul.f32 %v533, %v542
  %v799 = vmul.f32 %v534, %v542
  %v800 = vmul.f32 %v535, %v542
  %v801 = vmul.f32 %v536, %v542
  %vm802 = vcmask 711680
  %v803 = vsel %vm802, %v544, 0.0
  %804 = vadd.xlane.f32.xlu0 %v803
  %v805 = vpop.xlane.xlu0 %804
  %v806 = vsel %vm802, %v545, 0.0
  %807 = vadd.xlane.f32.xlu0 %v806
  %v808 = vpop.xlane.xlu0 %807
  %v809 = vsel %vm802, %v546, 0.0
  %810 = vadd.xlane.f32.xlu0 %v809
  %v811 = vpop.xlane.xlu0 %810
  %v812 = vsel %vm802, %v547, 0.0
  %813 = vadd.xlane.f32.xlu0 %v812
  %v814 = vpop.xlane.xlu0 %813
  %v815 = vsel %vm802, %v548, 0.0
  %816 = vadd.xlane.f32.xlu0 %v815
  %v817 = vpop.xlane.xlu0 %816
  %v818 = vsel %vm802, %v549, 0.0
  %819 = vadd.xlane.f32.xlu0 %v818
  %v820 = vpop.xlane.xlu0 %819
  %v821 = vsel %vm802, %v550, 0.0
  %822 = vadd.xlane.f32.xlu0 %v821
  %v823 = vpop.xlane.xlu0 %822
  %v824 = vsel %vm802, %v551, 0.0
  %825 = vadd.xlane.f32.xlu0 %v824
  %v826 = vpop.xlane.xlu0 %825
  %v827 = vsel %vm802, %v552, 0.0
  %828 = vadd.xlane.f32.xlu0 %v827
  %v829 = vpop.xlane.xlu0 %828
  %v830 = vsel %vm802, %v553, 0.0
  %831 = vadd.xlane.f32.xlu0 %v830
  %v832 = vpop.xlane.xlu0 %831
  %v833 = vsel %vm802, %v554, 0.0
  %834 = vadd.xlane.f32.xlu0 %v833
  %v835 = vpop.xlane.xlu0 %834
  %v836 = vsel %vm802, %v555, 0.0
  %837 = vadd.xlane.f32.xlu0 %v836
  %v838 = vpop.xlane.xlu0 %837
  %v839 = vsel %vm802, %v556, 0.0
  %840 = vadd.xlane.f32.xlu0 %v839
  %v841 = vpop.xlane.xlu0 %840
  %v842 = vsel %vm802, %v557, 0.0
  %843 = vadd.xlane.f32.xlu0 %v842
  %v844 = vpop.xlane.xlu0 %843
  %v845 = vsel %vm802, %v558, 0.0
  %846 = vadd.xlane.f32.xlu0 %v845
  %v847 = vpop.xlane.xlu0 %846
  %v848 = vsel %vm802, %v559, 0.0
  %849 = vadd.xlane.f32.xlu0 %v848
  %v850 = vpop.xlane.xlu0 %849
  %v851 = vsel %vm802, %v560, 0.0
  %852 = vadd.xlane.f32.xlu0 %v851
  %v853 = vpop.xlane.xlu0 %852
  %v854 = vsel %vm802, %v561, 0.0
  %855 = vadd.xlane.f32.xlu0 %v854
  %v856 = vpop.xlane.xlu0 %855
  %v857 = vsel %vm802, %v562, 0.0
  %858 = vadd.xlane.f32.xlu0 %v857
  %v859 = vpop.xlane.xlu0 %858
  %v860 = vsel %vm802, %v563, 0.0
  %861 = vadd.xlane.f32.xlu0 %v860
  %v862 = vpop.xlane.xlu0 %861
  %v863 = vsel %vm802, %v564, 0.0
  %864 = vadd.xlane.f32.xlu0 %v863
  %v865 = vpop.xlane.xlu0 %864
  %v866 = vsel %vm802, %v565, 0.0
  %867 = vadd.xlane.f32.xlu0 %v866
  %v868 = vpop.xlane.xlu0 %867
  %v869 = vsel %vm802, %v566, 0.0
  %870 = vadd.xlane.f32.xlu0 %v869
  %v871 = vpop.xlane.xlu0 %870
  %v872 = vsel %vm802, %v567, 0.0
  %873 = vadd.xlane.f32.xlu0 %v872
  %v874 = vpop.xlane.xlu0 %873
  %v875 = vsel %vm802, %v568, 0.0
  %876 = vadd.xlane.f32.xlu0 %v875
  %v877 = vpop.xlane.xlu0 %876
  %v878 = vsel %vm802, %v569, 0.0
  %879 = vadd.xlane.f32.xlu0 %v878
  %v880 = vpop.xlane.xlu0 %879
  %v881 = vsel %vm802, %v570, 0.0
  %882 = vadd.xlane.f32.xlu0 %v881
  %v883 = vpop.xlane.xlu0 %882
  %v884 = vsel %vm802, %v571, 0.0
  %885 = vadd.xlane.f32.xlu0 %v884
  %v886 = vpop.xlane.xlu0 %885
  %v887 = vsel %vm802, %v572, 0.0
  %888 = vadd.xlane.f32.xlu0 %v887
  %v889 = vpop.xlane.xlu0 %888
  %v890 = vsel %vm802, %v573, 0.0
  %891 = vadd.xlane.f32.xlu0 %v890
  %v892 = vpop.xlane.xlu0 %891
  %v893 = vsel %vm802, %v574, 0.0
  %894 = vadd.xlane.f32.xlu0 %v893
  %v895 = vpop.xlane.xlu0 %894
  %v896 = vsel %vm802, %v575, 0.0
  %897 = vadd.xlane.f32.xlu0 %v896
  %v898 = vpop.xlane.xlu0 %897
  %v899 = vsel %vm802, %v576, 0.0
  %900 = vadd.xlane.f32.xlu0 %v899
  %v901 = vpop.xlane.xlu0 %900
  %v902 = vsel %vm802, %v577, 0.0
  %903 = vadd.xlane.f32.xlu0 %v902
  %v904 = vpop.xlane.xlu0 %903
  %v905 = vsel %vm802, %v578, 0.0
  %906 = vadd.xlane.f32.xlu0 %v905
  %v907 = vpop.xlane.xlu0 %906
  %v908 = vsel %vm802, %v579, 0.0
  %909 = vadd.xlane.f32.xlu0 %v908
  %v910 = vpop.xlane.xlu0 %909
  %v911 = vsel %vm802, %v580, 0.0
  %912 = vadd.xlane.f32.xlu0 %v911
  %v913 = vpop.xlane.xlu0 %912
  %v914 = vsel %vm802, %v581, 0.0
  %915 = vadd.xlane.f32.xlu0 %v914
  %v916 = vpop.xlane.xlu0 %915
  %v917 = vsel %vm802, %v582, 0.0
  %918 = vadd.xlane.f32.xlu0 %v917
  %v919 = vpop.xlane.xlu0 %918
  %v920 = vsel %vm802, %v583, 0.0
  %921 = vadd.xlane.f32.xlu0 %v920
  %v922 = vpop.xlane.xlu0 %921
  %v923 = vsel %vm802, %v584, 0.0
  %924 = vadd.xlane.f32.xlu0 %v923
  %v925 = vpop.xlane.xlu0 %924
  %v926 = vsel %vm802, %v585, 0.0
  %927 = vadd.xlane.f32.xlu0 %v926
  %v928 = vpop.xlane.xlu0 %927
  %v929 = vsel %vm802, %v586, 0.0
  %930 = vadd.xlane.f32.xlu0 %v929
  %v931 = vpop.xlane.xlu0 %930
  %v932 = vsel %vm802, %v587, 0.0
  %933 = vadd.xlane.f32.xlu0 %v932
  %v934 = vpop.xlane.xlu0 %933
  %v935 = vsel %vm802, %v588, 0.0
  %936 = vadd.xlane.f32.xlu0 %v935
  %v937 = vpop.xlane.xlu0 %936
  %v938 = vsel %vm802, %v589, 0.0
  %939 = vadd.xlane.f32.xlu0 %v938
  %v940 = vpop.xlane.xlu0 %939
  %v941 = vsel %vm802, %v590, 0.0
  %942 = vadd.xlane.f32.xlu0 %v941
  %v943 = vpop.xlane.xlu0 %942
  %v944 = vsel %vm802, %v591, 0.0
  %945 = vadd.xlane.f32.xlu0 %v944
  %v946 = vpop.xlane.xlu0 %945
  %v947 = vsel %vm802, %v592, 0.0
  %948 = vadd.xlane.f32.xlu0 %v947
  %v949 = vpop.xlane.xlu0 %948
  %v950 = vsel %vm802, %v593, 0.0
  %951 = vadd.xlane.f32.xlu0 %v950
  %v952 = vpop.xlane.xlu0 %951
  %v953 = vsel %vm802, %v594, 0.0
  %954 = vadd.xlane.f32.xlu0 %v953
  %v955 = vpop.xlane.xlu0 %954
  %v956 = vsel %vm802, %v595, 0.0
  %957 = vadd.xlane.f32.xlu0 %v956
  %v958 = vpop.xlane.xlu0 %957
  %v959 = vsel %vm802, %v596, 0.0
  %960 = vadd.xlane.f32.xlu0 %v959
  %v961 = vpop.xlane.xlu0 %960
  %v962 = vsel %vm802, %v597, 0.0
  %963 = vadd.xlane.f32.xlu0 %v962
  %v964 = vpop.xlane.xlu0 %963
  %v965 = vsel %vm802, %v598, 0.0
  %966 = vadd.xlane.f32.xlu0 %v965
  %v967 = vpop.xlane.xlu0 %966
  %v968 = vsel %vm802, %v599, 0.0
  %969 = vadd.xlane.f32.xlu0 %v968
  %v970 = vpop.xlane.xlu0 %969
  %v971 = vsel %vm802, %v600, 0.0
  %972 = vadd.xlane.f32.xlu0 %v971
  %v973 = vpop.xlane.xlu0 %972
  %v974 = vsel %vm802, %v601, 0.0
  %975 = vadd.xlane.f32.xlu0 %v974
  %v976 = vpop.xlane.xlu0 %975
  %v977 = vsel %vm802, %v602, 0.0
  %978 = vadd.xlane.f32.xlu0 %v977
  %v979 = vpop.xlane.xlu0 %978
  %v980 = vsel %vm802, %v603, 0.0
  %981 = vadd.xlane.f32.xlu0 %v980
  %v982 = vpop.xlane.xlu0 %981
  %v983 = vsel %vm802, %v604, 0.0
  %984 = vadd.xlane.f32.xlu0 %v983
  %v985 = vpop.xlane.xlu0 %984
  %v986 = vsel %vm802, %v605, 0.0
  %987 = vadd.xlane.f32.xlu0 %v986
  %v988 = vpop.xlane.xlu0 %987
  %v989 = vsel %vm802, %v606, 0.0
  %990 = vadd.xlane.f32.xlu0 %v989
  %v991 = vpop.xlane.xlu0 %990
  %v992 = vsel %vm802, %v607, 0.0
  %993 = vadd.xlane.f32.xlu0 %v992
  %v994 = vpop.xlane.xlu0 %993
  %v995 = vsel %vm802, %v608, 0.0
  %996 = vadd.xlane.f32.xlu0 %v995
  %v997 = vpop.xlane.xlu0 %996
  %v998 = vsel %vm802, %v609, 0.0
  %999 = vadd.xlane.f32.xlu0 %v998
  %v1000 = vpop.xlane.xlu0 %999
  %v1001 = vsel %vm802, %v610, 0.0
  %1002 = vadd.xlane.f32.xlu0 %v1001
  %v1003 = vpop.xlane.xlu0 %1002
  %v1004 = vsel %vm802, %v611, 0.0
  %1005 = vadd.xlane.f32.xlu0 %v1004
  %v1006 = vpop.xlane.xlu0 %1005
  %v1007 = vsel %vm802, %v612, 0.0
  %1008 = vadd.xlane.f32.xlu0 %v1007
  %v1009 = vpop.xlane.xlu0 %1008
  %v1010 = vsel %vm802, %v613, 0.0
  %1011 = vadd.xlane.f32.xlu0 %v1010
  %v1012 = vpop.xlane.xlu0 %1011
  %v1013 = vsel %vm802, %v614, 0.0
  %1014 = vadd.xlane.f32.xlu0 %v1013
  %v1015 = vpop.xlane.xlu0 %1014
  %v1016 = vsel %vm802, %v615, 0.0
  %1017 = vadd.xlane.f32.xlu0 %v1016
  %v1018 = vpop.xlane.xlu0 %1017
  %v1019 = vsel %vm802, %v616, 0.0
  %1020 = vadd.xlane.f32.xlu0 %v1019
  %v1021 = vpop.xlane.xlu0 %1020
  %v1022 = vsel %vm802, %v617, 0.0
  %1023 = vadd.xlane.f32.xlu0 %v1022
  %v1024 = vpop.xlane.xlu0 %1023
  %v1025 = vsel %vm802, %v618, 0.0
  %1026 = vadd.xlane.f32.xlu0 %v1025
  %v1027 = vpop.xlane.xlu0 %1026
  %v1028 = vsel %vm802, %v619, 0.0
  %1029 = vadd.xlane.f32.xlu0 %v1028
  %v1030 = vpop.xlane.xlu0 %1029
  %v1031 = vsel %vm802, %v620, 0.0
  %1032 = vadd.xlane.f32.xlu0 %v1031
  %v1033 = vpop.xlane.xlu0 %1032
  %v1034 = vsel %vm802, %v621, 0.0
  %1035 = vadd.xlane.f32.xlu0 %v1034
  %v1036 = vpop.xlane.xlu0 %1035
  %v1037 = vsel %vm802, %v622, 0.0
  %1038 = vadd.xlane.f32.xlu0 %v1037
  %v1039 = vpop.xlane.xlu0 %1038
  %v1040 = vsel %vm802, %v623, 0.0
  %1041 = vadd.xlane.f32.xlu0 %v1040
  %v1042 = vpop.xlane.xlu0 %1041
  %v1043 = vsel %vm802, %v624, 0.0
  %1044 = vadd.xlane.f32.xlu0 %v1043
  %v1045 = vpop.xlane.xlu0 %1044
  %v1046 = vsel %vm802, %v625, 0.0
  %1047 = vadd.xlane.f32.xlu0 %v1046
  %v1048 = vpop.xlane.xlu0 %1047
  %v1049 = vsel %vm802, %v626, 0.0
  %1050 = vadd.xlane.f32.xlu0 %v1049
  %v1051 = vpop.xlane.xlu0 %1050
  %v1052 = vsel %vm802, %v627, 0.0
  %1053 = vadd.xlane.f32.xlu0 %v1052
  %v1054 = vpop.xlane.xlu0 %1053
  %v1055 = vsel %vm802, %v628, 0.0
  %1056 = vadd.xlane.f32.xlu0 %v1055
  %v1057 = vpop.xlane.xlu0 %1056
  %v1058 = vsel %vm802, %v629, 0.0
  %1059 = vadd.xlane.f32.xlu0 %v1058
  %v1060 = vpop.xlane.xlu0 %1059
  %v1061 = vsel %vm802, %v630, 0.0
  %1062 = vadd.xlane.f32.xlu0 %v1061
  %v1063 = vpop.xlane.xlu0 %1062
  %v1064 = vsel %vm802, %v631, 0.0
  %1065 = vadd.xlane.f32.xlu0 %v1064
  %v1066 = vpop.xlane.xlu0 %1065
  %v1067 = vsel %vm802, %v632, 0.0
  %1068 = vadd.xlane.f32.xlu0 %v1067
  %v1069 = vpop.xlane.xlu0 %1068
  %v1070 = vsel %vm802, %v633, 0.0
  %1071 = vadd.xlane.f32.xlu0 %v1070
  %v1072 = vpop.xlane.xlu0 %1071
  %v1073 = vsel %vm802, %v634, 0.0
  %1074 = vadd.xlane.f32.xlu0 %v1073
  %v1075 = vpop.xlane.xlu0 %1074
  %v1076 = vsel %vm802, %v635, 0.0
  %1077 = vadd.xlane.f32.xlu0 %v1076
  %v1078 = vpop.xlane.xlu0 %1077
  %v1079 = vsel %vm802, %v636, 0.0
  %1080 = vadd.xlane.f32.xlu0 %v1079
  %v1081 = vpop.xlane.xlu0 %1080
  %v1082 = vsel %vm802, %v637, 0.0
  %1083 = vadd.xlane.f32.xlu0 %v1082
  %v1084 = vpop.xlane.xlu0 %1083
  %v1085 = vsel %vm802, %v638, 0.0
  %1086 = vadd.xlane.f32.xlu0 %v1085
  %v1087 = vpop.xlane.xlu0 %1086
  %v1088 = vsel %vm802, %v639, 0.0
  %1089 = vadd.xlane.f32.xlu0 %v1088
  %v1090 = vpop.xlane.xlu0 %1089
  %v1091 = vsel %vm802, %v640, 0.0
  %1092 = vadd.xlane.f32.xlu0 %v1091
  %v1093 = vpop.xlane.xlu0 %1092
  %v1094 = vsel %vm802, %v641, 0.0
  %1095 = vadd.xlane.f32.xlu0 %v1094
  %v1096 = vpop.xlane.xlu0 %1095
  %v1097 = vsel %vm802, %v642, 0.0
  %1098 = vadd.xlane.f32.xlu0 %v1097
  %v1099 = vpop.xlane.xlu0 %1098
  %v1100 = vsel %vm802, %v643, 0.0
  %1101 = vadd.xlane.f32.xlu0 %v1100
  %v1102 = vpop.xlane.xlu0 %1101
  %v1103 = vsel %vm802, %v644, 0.0
  %1104 = vadd.xlane.f32.xlu0 %v1103
  %v1105 = vpop.xlane.xlu0 %1104
  %v1106 = vsel %vm802, %v645, 0.0
  %1107 = vadd.xlane.f32.xlu0 %v1106
  %v1108 = vpop.xlane.xlu0 %1107
  %v1109 = vsel %vm802, %v646, 0.0
  %1110 = vadd.xlane.f32.xlu0 %v1109
  %v1111 = vpop.xlane.xlu0 %1110
  %v1112 = vsel %vm802, %v647, 0.0
  %1113 = vadd.xlane.f32.xlu0 %v1112
  %v1114 = vpop.xlane.xlu0 %1113
  %v1115 = vsel %vm802, %v648, 0.0
  %1116 = vadd.xlane.f32.xlu0 %v1115
  %v1117 = vpop.xlane.xlu0 %1116
  %v1118 = vsel %vm802, %v649, 0.0
  %1119 = vadd.xlane.f32.xlu0 %v1118
  %v1120 = vpop.xlane.xlu0 %1119
  %v1121 = vsel %vm802, %v650, 0.0
  %1122 = vadd.xlane.f32.xlu0 %v1121
  %v1123 = vpop.xlane.xlu0 %1122
  %v1124 = vsel %vm802, %v651, 0.0
  %1125 = vadd.xlane.f32.xlu0 %v1124
  %v1126 = vpop.xlane.xlu0 %1125
  %v1127 = vsel %vm802, %v652, 0.0
  %1128 = vadd.xlane.f32.xlu0 %v1127
  %v1129 = vpop.xlane.xlu0 %1128
  %v1130 = vsel %vm802, %v653, 0.0
  %1131 = vadd.xlane.f32.xlu0 %v1130
  %v1132 = vpop.xlane.xlu0 %1131
  %v1133 = vsel %vm802, %v654, 0.0
  %1134 = vadd.xlane.f32.xlu0 %v1133
  %v1135 = vpop.xlane.xlu0 %1134
  %v1136 = vsel %vm802, %v655, 0.0
  %1137 = vadd.xlane.f32.xlu0 %v1136
  %v1138 = vpop.xlane.xlu0 %1137
  %v1139 = vsel %vm802, %v656, 0.0
  %1140 = vadd.xlane.f32.xlu0 %v1139
  %v1141 = vpop.xlane.xlu0 %1140
  %v1142 = vsel %vm802, %v657, 0.0
  %1143 = vadd.xlane.f32.xlu0 %v1142
  %v1144 = vpop.xlane.xlu0 %1143
  %v1145 = vsel %vm802, %v658, 0.0
  %1146 = vadd.xlane.f32.xlu0 %v1145
  %v1147 = vpop.xlane.xlu0 %1146
  %v1148 = vsel %vm802, %v659, 0.0
  %1149 = vadd.xlane.f32.xlu0 %v1148
  %v1150 = vpop.xlane.xlu0 %1149
  %v1151 = vsel %vm802, %v660, 0.0
  %1152 = vadd.xlane.f32.xlu0 %v1151
  %v1153 = vpop.xlane.xlu0 %1152
  %v1154 = vsel %vm802, %v661, 0.0
  %1155 = vadd.xlane.f32.xlu0 %v1154
  %v1156 = vpop.xlane.xlu0 %1155
  %v1157 = vsel %vm802, %v662, 0.0
  %1158 = vadd.xlane.f32.xlu0 %v1157
  %v1159 = vpop.xlane.xlu0 %1158
  %v1160 = vsel %vm802, %v663, 0.0
  %1161 = vadd.xlane.f32.xlu0 %v1160
  %v1162 = vpop.xlane.xlu0 %1161
  %v1163 = vsel %vm802, %v664, 0.0
  %1164 = vadd.xlane.f32.xlu0 %v1163
  %v1165 = vpop.xlane.xlu0 %1164
  %v1166 = vsel %vm802, %v665, 0.0
  %1167 = vadd.xlane.f32.xlu0 %v1166
  %v1168 = vpop.xlane.xlu0 %1167
  %v1169 = vsel %vm802, %v666, 0.0
  %1170 = vadd.xlane.f32.xlu0 %v1169
  %v1171 = vpop.xlane.xlu0 %1170
  %v1172 = vsel %vm802, %v667, 0.0
  %1173 = vadd.xlane.f32.xlu0 %v1172
  %v1174 = vpop.xlane.xlu0 %1173
  %v1175 = vsel %vm802, %v668, 0.0
  %1176 = vadd.xlane.f32.xlu0 %v1175
  %v1177 = vpop.xlane.xlu0 %1176
  %v1178 = vsel %vm802, %v669, 0.0
  %1179 = vadd.xlane.f32.xlu0 %v1178
  %v1180 = vpop.xlane.xlu0 %1179
  %v1181 = vsel %vm802, %v670, 0.0
  %1182 = vadd.xlane.f32.xlu0 %v1181
  %v1183 = vpop.xlane.xlu0 %1182
  %v1184 = vsel %vm802, %v671, 0.0
  %1185 = vadd.xlane.f32.xlu0 %v1184
  %v1186 = vpop.xlane.xlu0 %1185
  %v1187 = vsel %vm802, %v672, 0.0
  %1188 = vadd.xlane.f32.xlu0 %v1187
  %v1189 = vpop.xlane.xlu0 %1188
  %v1190 = vsel %vm802, %v673, 0.0
  %1191 = vadd.xlane.f32.xlu0 %v1190
  %v1192 = vpop.xlane.xlu0 %1191
  %v1193 = vsel %vm802, %v674, 0.0
  %1194 = vadd.xlane.f32.xlu0 %v1193
  %v1195 = vpop.xlane.xlu0 %1194
  %v1196 = vsel %vm802, %v675, 0.0
  %1197 = vadd.xlane.f32.xlu0 %v1196
  %v1198 = vpop.xlane.xlu0 %1197
  %v1199 = vsel %vm802, %v676, 0.0
  %1200 = vadd.xlane.f32.xlu0 %v1199
  %v1201 = vpop.xlane.xlu0 %1200
  %v1202 = vsel %vm802, %v677, 0.0
  %1203 = vadd.xlane.f32.xlu0 %v1202
  %v1204 = vpop.xlane.xlu0 %1203
  %v1205 = vsel %vm802, %v678, 0.0
  %1206 = vadd.xlane.f32.xlu0 %v1205
  %v1207 = vpop.xlane.xlu0 %1206
  %v1208 = vsel %vm802, %v679, 0.0
  %1209 = vadd.xlane.f32.xlu0 %v1208
  %v1210 = vpop.xlane.xlu0 %1209
  %v1211 = vsel %vm802, %v680, 0.0
  %1212 = vadd.xlane.f32.xlu0 %v1211
  %v1213 = vpop.xlane.xlu0 %1212
  %v1214 = vsel %vm802, %v681, 0.0
  %1215 = vadd.xlane.f32.xlu0 %v1214
  %v1216 = vpop.xlane.xlu0 %1215
  %v1217 = vsel %vm802, %v682, 0.0
  %1218 = vadd.xlane.f32.xlu0 %v1217
  %v1219 = vpop.xlane.xlu0 %1218
  %v1220 = vsel %vm802, %v683, 0.0
  %1221 = vadd.xlane.f32.xlu0 %v1220
  %v1222 = vpop.xlane.xlu0 %1221
  %v1223 = vsel %vm802, %v684, 0.0
  %1224 = vadd.xlane.f32.xlu0 %v1223
  %v1225 = vpop.xlane.xlu0 %1224
  %v1226 = vsel %vm802, %v685, 0.0
  %1227 = vadd.xlane.f32.xlu0 %v1226
  %v1228 = vpop.xlane.xlu0 %1227
  %v1229 = vsel %vm802, %v686, 0.0
  %1230 = vadd.xlane.f32.xlu0 %v1229
  %v1231 = vpop.xlane.xlu0 %1230
  %v1232 = vsel %vm802, %v687, 0.0
  %1233 = vadd.xlane.f32.xlu0 %v1232
  %v1234 = vpop.xlane.xlu0 %1233
  %v1235 = vsel %vm802, %v688, 0.0
  %1236 = vadd.xlane.f32.xlu0 %v1235
  %v1237 = vpop.xlane.xlu0 %1236
  %v1238 = vsel %vm802, %v689, 0.0
  %1239 = vadd.xlane.f32.xlu0 %v1238
  %v1240 = vpop.xlane.xlu0 %1239
  %v1241 = vsel %vm802, %v690, 0.0
  %1242 = vadd.xlane.f32.xlu0 %v1241
  %v1243 = vpop.xlane.xlu0 %1242
  %v1244 = vsel %vm802, %v691, 0.0
  %1245 = vadd.xlane.f32.xlu0 %v1244
  %v1246 = vpop.xlane.xlu0 %1245
  %v1247 = vsel %vm802, %v692, 0.0
  %1248 = vadd.xlane.f32.xlu0 %v1247
  %v1249 = vpop.xlane.xlu0 %1248
  %v1250 = vsel %vm802, %v693, 0.0
  %1251 = vadd.xlane.f32.xlu0 %v1250
  %v1252 = vpop.xlane.xlu0 %1251
  %v1253 = vsel %vm802, %v694, 0.0
  %1254 = vadd.xlane.f32.xlu0 %v1253
  %v1255 = vpop.xlane.xlu0 %1254
  %v1256 = vsel %vm802, %v695, 0.0
  %1257 = vadd.xlane.f32.xlu0 %v1256
  %v1258 = vpop.xlane.xlu0 %1257
  %v1259 = vsel %vm802, %v696, 0.0
  %1260 = vadd.xlane.f32.xlu0 %v1259
  %v1261 = vpop.xlane.xlu0 %1260
  %v1262 = vsel %vm802, %v697, 0.0
  %1263 = vadd.xlane.f32.xlu0 %v1262
  %v1264 = vpop.xlane.xlu0 %1263
  %v1265 = vsel %vm802, %v698, 0.0
  %1266 = vadd.xlane.f32.xlu0 %v1265
  %v1267 = vpop.xlane.xlu0 %1266
  %v1268 = vsel %vm802, %v699, 0.0
  %1269 = vadd.xlane.f32.xlu0 %v1268
  %v1270 = vpop.xlane.xlu0 %1269
  %v1271 = vsel %vm802, %v700, 0.0
  %1272 = vadd.xlane.f32.xlu0 %v1271
  %v1273 = vpop.xlane.xlu0 %1272
  %v1274 = vsel %vm802, %v701, 0.0
  %1275 = vadd.xlane.f32.xlu0 %v1274
  %v1276 = vpop.xlane.xlu0 %1275
  %v1277 = vsel %vm802, %v702, 0.0
  %1278 = vadd.xlane.f32.xlu0 %v1277
  %v1279 = vpop.xlane.xlu0 %1278
  %v1280 = vsel %vm802, %v703, 0.0
  %1281 = vadd.xlane.f32.xlu0 %v1280
  %v1282 = vpop.xlane.xlu0 %1281
  %v1283 = vsel %vm802, %v704, 0.0
  %1284 = vadd.xlane.f32.xlu0 %v1283
  %v1285 = vpop.xlane.xlu0 %1284
  %v1286 = vsel %vm802, %v705, 0.0
  %1287 = vadd.xlane.f32.xlu0 %v1286
  %v1288 = vpop.xlane.xlu0 %1287
  %v1289 = vsel %vm802, %v706, 0.0
  %1290 = vadd.xlane.f32.xlu0 %v1289
  %v1291 = vpop.xlane.xlu0 %1290
  %v1292 = vsel %vm802, %v707, 0.0
  %1293 = vadd.xlane.f32.xlu0 %v1292
  %v1294 = vpop.xlane.xlu0 %1293
  %v1295 = vsel %vm802, %v708, 0.0
  %1296 = vadd.xlane.f32.xlu0 %v1295
  %v1297 = vpop.xlane.xlu0 %1296
  %v1298 = vsel %vm802, %v709, 0.0
  %1299 = vadd.xlane.f32.xlu0 %v1298
  %v1300 = vpop.xlane.xlu0 %1299
  %v1301 = vsel %vm802, %v710, 0.0
  %1302 = vadd.xlane.f32.xlu0 %v1301
  %v1303 = vpop.xlane.xlu0 %1302
  %v1304 = vsel %vm802, %v711, 0.0
  %1305 = vadd.xlane.f32.xlu0 %v1304
  %v1306 = vpop.xlane.xlu0 %1305
  %v1307 = vsel %vm802, %v712, 0.0
  %1308 = vadd.xlane.f32.xlu0 %v1307
  %v1309 = vpop.xlane.xlu0 %1308
  %v1310 = vsel %vm802, %v713, 0.0
  %1311 = vadd.xlane.f32.xlu0 %v1310
  %v1312 = vpop.xlane.xlu0 %1311
  %v1313 = vsel %vm802, %v714, 0.0
  %1314 = vadd.xlane.f32.xlu0 %v1313
  %v1315 = vpop.xlane.xlu0 %1314
  %v1316 = vsel %vm802, %v715, 0.0
  %1317 = vadd.xlane.f32.xlu0 %v1316
  %v1318 = vpop.xlane.xlu0 %1317
  %v1319 = vsel %vm802, %v716, 0.0
  %1320 = vadd.xlane.f32.xlu0 %v1319
  %v1321 = vpop.xlane.xlu0 %1320
  %v1322 = vsel %vm802, %v717, 0.0
  %1323 = vadd.xlane.f32.xlu0 %v1322
  %v1324 = vpop.xlane.xlu0 %1323
  %v1325 = vsel %vm802, %v718, 0.0
  %1326 = vadd.xlane.f32.xlu0 %v1325
  %v1327 = vpop.xlane.xlu0 %1326
  %v1328 = vsel %vm802, %v719, 0.0
  %1329 = vadd.xlane.f32.xlu0 %v1328
  %v1330 = vpop.xlane.xlu0 %1329
  %v1331 = vsel %vm802, %v720, 0.0
  %1332 = vadd.xlane.f32.xlu0 %v1331
  %v1333 = vpop.xlane.xlu0 %1332
  %v1334 = vsel %vm802, %v721, 0.0
  %1335 = vadd.xlane.f32.xlu0 %v1334
  %v1336 = vpop.xlane.xlu0 %1335
  %v1337 = vsel %vm802, %v722, 0.0
  %1338 = vadd.xlane.f32.xlu0 %v1337
  %v1339 = vpop.xlane.xlu0 %1338
  %v1340 = vsel %vm802, %v723, 0.0
  %1341 = vadd.xlane.f32.xlu0 %v1340
  %v1342 = vpop.xlane.xlu0 %1341
  %v1343 = vsel %vm802, %v724, 0.0
  %1344 = vadd.xlane.f32.xlu0 %v1343
  %v1345 = vpop.xlane.xlu0 %1344
  %v1346 = vsel %vm802, %v725, 0.0
  %1347 = vadd.xlane.f32.xlu0 %v1346
  %v1348 = vpop.xlane.xlu0 %1347
  %v1349 = vsel %vm802, %v726, 0.0
  %1350 = vadd.xlane.f32.xlu0 %v1349
  %v1351 = vpop.xlane.xlu0 %1350
  %v1352 = vsel %vm802, %v727, 0.0
  %1353 = vadd.xlane.f32.xlu0 %v1352
  %v1354 = vpop.xlane.xlu0 %1353
  %v1355 = vsel %vm802, %v728, 0.0
  %1356 = vadd.xlane.f32.xlu0 %v1355
  %v1357 = vpop.xlane.xlu0 %1356
  %v1358 = vsel %vm802, %v729, 0.0
  %1359 = vadd.xlane.f32.xlu0 %v1358
  %v1360 = vpop.xlane.xlu0 %1359
  %v1361 = vsel %vm802, %v730, 0.0
  %1362 = vadd.xlane.f32.xlu0 %v1361
  %v1363 = vpop.xlane.xlu0 %1362
  %v1364 = vsel %vm802, %v731, 0.0
  %1365 = vadd.xlane.f32.xlu0 %v1364
  %v1366 = vpop.xlane.xlu0 %1365
  %v1367 = vsel %vm802, %v732, 0.0
  %1368 = vadd.xlane.f32.xlu0 %v1367
  %v1369 = vpop.xlane.xlu0 %1368
  %v1370 = vsel %vm802, %v733, 0.0
  %1371 = vadd.xlane.f32.xlu0 %v1370
  %v1372 = vpop.xlane.xlu0 %1371
  %v1373 = vsel %vm802, %v734, 0.0
  %1374 = vadd.xlane.f32.xlu0 %v1373
  %v1375 = vpop.xlane.xlu0 %1374
  %v1376 = vsel %vm802, %v735, 0.0
  %1377 = vadd.xlane.f32.xlu0 %v1376
  %v1378 = vpop.xlane.xlu0 %1377
  %v1379 = vsel %vm802, %v736, 0.0
  %1380 = vadd.xlane.f32.xlu0 %v1379
  %v1381 = vpop.xlane.xlu0 %1380
  %v1382 = vsel %vm802, %v737, 0.0
  %1383 = vadd.xlane.f32.xlu0 %v1382
  %v1384 = vpop.xlane.xlu0 %1383
  %v1385 = vsel %vm802, %v738, 0.0
  %1386 = vadd.xlane.f32.xlu0 %v1385
  %v1387 = vpop.xlane.xlu0 %1386
  %v1388 = vsel %vm802, %v739, 0.0
  %1389 = vadd.xlane.f32.xlu0 %v1388
  %v1390 = vpop.xlane.xlu0 %1389
  %v1391 = vsel %vm802, %v740, 0.0
  %1392 = vadd.xlane.f32.xlu0 %v1391
  %v1393 = vpop.xlane.xlu0 %1392
  %v1394 = vsel %vm802, %v741, 0.0
  %1395 = vadd.xlane.f32.xlu0 %v1394
  %v1396 = vpop.xlane.xlu0 %1395
  %v1397 = vsel %vm802, %v742, 0.0
  %1398 = vadd.xlane.f32.xlu0 %v1397
  %v1399 = vpop.xlane.xlu0 %1398
  %v1400 = vsel %vm802, %v743, 0.0
  %1401 = vadd.xlane.f32.xlu0 %v1400
  %v1402 = vpop.xlane.xlu0 %1401
  %v1403 = vsel %vm802, %v744, 0.0
  %1404 = vadd.xlane.f32.xlu0 %v1403
  %v1405 = vpop.xlane.xlu0 %1404
  %v1406 = vsel %vm802, %v745, 0.0
  %1407 = vadd.xlane.f32.xlu0 %v1406
  %v1408 = vpop.xlane.xlu0 %1407
  %v1409 = vsel %vm802, %v746, 0.0
  %1410 = vadd.xlane.f32.xlu0 %v1409
  %v1411 = vpop.xlane.xlu0 %1410
  %v1412 = vsel %vm802, %v747, 0.0
  %1413 = vadd.xlane.f32.xlu0 %v1412
  %v1414 = vpop.xlane.xlu0 %1413
  %v1415 = vsel %vm802, %v748, 0.0
  %1416 = vadd.xlane.f32.xlu0 %v1415
  %v1417 = vpop.xlane.xlu0 %1416
  %v1418 = vsel %vm802, %v749, 0.0
  %1419 = vadd.xlane.f32.xlu0 %v1418
  %v1420 = vpop.xlane.xlu0 %1419
  %v1421 = vsel %vm802, %v750, 0.0
  %1422 = vadd.xlane.f32.xlu0 %v1421
  %v1423 = vpop.xlane.xlu0 %1422
  %v1424 = vsel %vm802, %v751, 0.0
  %1425 = vadd.xlane.f32.xlu0 %v1424
  %v1426 = vpop.xlane.xlu0 %1425
  %v1427 = vsel %vm802, %v752, 0.0
  %1428 = vadd.xlane.f32.xlu0 %v1427
  %v1429 = vpop.xlane.xlu0 %1428
  %v1430 = vsel %vm802, %v753, 0.0
  %1431 = vadd.xlane.f32.xlu0 %v1430
  %v1432 = vpop.xlane.xlu0 %1431
  %v1433 = vsel %vm802, %v754, 0.0
  %1434 = vadd.xlane.f32.xlu0 %v1433
  %v1435 = vpop.xlane.xlu0 %1434
  %v1436 = vsel %vm802, %v755, 0.0
  %1437 = vadd.xlane.f32.xlu0 %v1436
  %v1438 = vpop.xlane.xlu0 %1437
  %v1439 = vsel %vm802, %v756, 0.0
  %1440 = vadd.xlane.f32.xlu0 %v1439
  %v1441 = vpop.xlane.xlu0 %1440
  %v1442 = vsel %vm802, %v757, 0.0
  %1443 = vadd.xlane.f32.xlu0 %v1442
  %v1444 = vpop.xlane.xlu0 %1443
  %v1445 = vsel %vm802, %v758, 0.0
  %1446 = vadd.xlane.f32.xlu0 %v1445
  %v1447 = vpop.xlane.xlu0 %1446
  %v1448 = vsel %vm802, %v759, 0.0
  %1449 = vadd.xlane.f32.xlu0 %v1448
  %v1450 = vpop.xlane.xlu0 %1449
  %v1451 = vsel %vm802, %v760, 0.0
  %1452 = vadd.xlane.f32.xlu0 %v1451
  %v1453 = vpop.xlane.xlu0 %1452
  %v1454 = vsel %vm802, %v761, 0.0
  %1455 = vadd.xlane.f32.xlu0 %v1454
  %v1456 = vpop.xlane.xlu0 %1455
  %v1457 = vsel %vm802, %v762, 0.0
  %1458 = vadd.xlane.f32.xlu0 %v1457
  %v1459 = vpop.xlane.xlu0 %1458
  %v1460 = vsel %vm802, %v763, 0.0
  %1461 = vadd.xlane.f32.xlu0 %v1460
  %v1462 = vpop.xlane.xlu0 %1461
  %v1463 = vsel %vm802, %v764, 0.0
  %1464 = vadd.xlane.f32.xlu0 %v1463
  %v1465 = vpop.xlane.xlu0 %1464
  %v1466 = vsel %vm802, %v765, 0.0
  %1467 = vadd.xlane.f32.xlu0 %v1466
  %v1468 = vpop.xlane.xlu0 %1467
  %v1469 = vsel %vm802, %v766, 0.0
  %1470 = vadd.xlane.f32.xlu0 %v1469
  %v1471 = vpop.xlane.xlu0 %1470
  %v1472 = vsel %vm802, %v767, 0.0
  %1473 = vadd.xlane.f32.xlu0 %v1472
  %v1474 = vpop.xlane.xlu0 %1473
  %v1475 = vsel %vm802, %v768, 0.0
  %1476 = vadd.xlane.f32.xlu0 %v1475
  %v1477 = vpop.xlane.xlu0 %1476
  %v1478 = vsel %vm802, %v769, 0.0
  %1479 = vadd.xlane.f32.xlu0 %v1478
  %v1480 = vpop.xlane.xlu0 %1479
  %v1481 = vsel %vm802, %v770, 0.0
  %1482 = vadd.xlane.f32.xlu0 %v1481
  %v1483 = vpop.xlane.xlu0 %1482
  %v1484 = vsel %vm802, %v771, 0.0
  %1485 = vadd.xlane.f32.xlu0 %v1484
  %v1486 = vpop.xlane.xlu0 %1485
  %v1487 = vsel %vm802, %v772, 0.0
  %1488 = vadd.xlane.f32.xlu0 %v1487
  %v1489 = vpop.xlane.xlu0 %1488
  %v1490 = vsel %vm802, %v773, 0.0
  %1491 = vadd.xlane.f32.xlu0 %v1490
  %v1492 = vpop.xlane.xlu0 %1491
  %v1493 = vsel %vm802, %v774, 0.0
  %1494 = vadd.xlane.f32.xlu0 %v1493
  %v1495 = vpop.xlane.xlu0 %1494
  %v1496 = vsel %vm802, %v775, 0.0
  %1497 = vadd.xlane.f32.xlu0 %v1496
  %v1498 = vpop.xlane.xlu0 %1497
  %v1499 = vsel %vm802, %v776, 0.0
  %1500 = vadd.xlane.f32.xlu0 %v1499
  %v1501 = vpop.xlane.xlu0 %1500
  %v1502 = vsel %vm802, %v777, 0.0
  %1503 = vadd.xlane.f32.xlu0 %v1502
  %v1504 = vpop.xlane.xlu0 %1503
  %v1505 = vsel %vm802, %v778, 0.0
  %1506 = vadd.xlane.f32.xlu0 %v1505
  %v1507 = vpop.xlane.xlu0 %1506
  %v1508 = vsel %vm802, %v779, 0.0
  %1509 = vadd.xlane.f32.xlu0 %v1508
  %v1510 = vpop.xlane.xlu0 %1509
  %v1511 = vsel %vm802, %v780, 0.0
  %1512 = vadd.xlane.f32.xlu0 %v1511
  %v1513 = vpop.xlane.xlu0 %1512
  %v1514 = vsel %vm802, %v781, 0.0
  %1515 = vadd.xlane.f32.xlu0 %v1514
  %v1516 = vpop.xlane.xlu0 %1515
  %v1517 = vsel %vm802, %v782, 0.0
  %1518 = vadd.xlane.f32.xlu0 %v1517
  %v1519 = vpop.xlane.xlu0 %1518
  %v1520 = vsel %vm802, %v783, 0.0
  %1521 = vadd.xlane.f32.xlu0 %v1520
  %v1522 = vpop.xlane.xlu0 %1521
  %v1523 = vsel %vm802, %v784, 0.0
  %1524 = vadd.xlane.f32.xlu0 %v1523
  %v1525 = vpop.xlane.xlu0 %1524
  %v1526 = vsel %vm802, %v785, 0.0
  %1527 = vadd.xlane.f32.xlu0 %v1526
  %v1528 = vpop.xlane.xlu0 %1527
  %v1529 = vsel %vm802, %v786, 0.0
  %1530 = vadd.xlane.f32.xlu0 %v1529
  %v1531 = vpop.xlane.xlu0 %1530
  %v1532 = vsel %vm802, %v787, 0.0
  %1533 = vadd.xlane.f32.xlu0 %v1532
  %v1534 = vpop.xlane.xlu0 %1533
  %v1535 = vsel %vm802, %v788, 0.0
  %1536 = vadd.xlane.f32.xlu0 %v1535
  %v1537 = vpop.xlane.xlu0 %1536
  %v1538 = vsel %vm802, %v789, 0.0
  %1539 = vadd.xlane.f32.xlu0 %v1538
  %v1540 = vpop.xlane.xlu0 %1539
  %v1541 = vsel %vm802, %v790, 0.0
  %1542 = vadd.xlane.f32.xlu0 %v1541
  %v1543 = vpop.xlane.xlu0 %1542
  %v1544 = vsel %vm802, %v791, 0.0
  %1545 = vadd.xlane.f32.xlu0 %v1544
  %v1546 = vpop.xlane.xlu0 %1545
  %v1547 = vsel %vm802, %v792, 0.0
  %1548 = vadd.xlane.f32.xlu0 %v1547
  %v1549 = vpop.xlane.xlu0 %1548
  %v1550 = vsel %vm802, %v793, 0.0
  %1551 = vadd.xlane.f32.xlu0 %v1550
  %v1552 = vpop.xlane.xlu0 %1551
  %v1553 = vsel %vm802, %v794, 0.0
  %1554 = vadd.xlane.f32.xlu0 %v1553
  %v1555 = vpop.xlane.xlu0 %1554
  %v1556 = vsel %vm802, %v795, 0.0
  %1557 = vadd.xlane.f32.xlu0 %v1556
  %v1558 = vpop.xlane.xlu0 %1557
  %v1559 = vsel %vm802, %v796, 0.0
  %1560 = vadd.xlane.f32.xlu0 %v1559
  %v1561 = vpop.xlane.xlu0 %1560
  %v1562 = vsel %vm802, %v797, 0.0
  %1563 = vadd.xlane.f32.xlu0 %v1562
  %v1564 = vpop.xlane.xlu0 %1563
  %v1565 = vsel %vm802, %v798, 0.0
  %1566 = vadd.xlane.f32.xlu0 %v1565
  %v1567 = vpop.xlane.xlu0 %1566
  %v1568 = vsel %vm802, %v799, 0.0
  %1569 = vadd.xlane.f32.xlu0 %v1568
  %v1570 = vpop.xlane.xlu0 %1569
  %v1571 = vsel %vm802, %v800, 0.0
  %1572 = vadd.xlane.f32.xlu0 %v1571
  %v1573 = vpop.xlane.xlu0 %1572
  %v1574 = vsel %vm802, %v801, 0.0
  %1575 = vadd.xlane.f32.xlu0 %v1574
  %v1576 = vpop.xlane.xlu0 %1575
  %v1577 = vsub.f32 0.0, %v805
  %v1578 = vsub.f32 0.0, %v808
  %v1579 = vsub.f32 0.0, %v811
  %v1580 = vsub.f32 0.0, %v814
  %v1581 = vsub.f32 0.0, %v817
  %v1582 = vsub.f32 0.0, %v820
  %v1583 = vsub.f32 0.0, %v823
  %v1584 = vsub.f32 0.0, %v826
  %v1585 = vsub.f32 0.0, %v829
  %v1586 = vsub.f32 0.0, %v832
  %v1587 = vsub.f32 0.0, %v835
  %v1588 = vsub.f32 0.0, %v838
  %v1589 = vsub.f32 0.0, %v841
  %v1590 = vsub.f32 0.0, %v844
  %v1591 = vsub.f32 0.0, %v847
  %v1592 = vsub.f32 0.0, %v850
  %v1593 = vsub.f32 0.0, %v853
  %v1594 = vsub.f32 0.0, %v856
  %v1595 = vsub.f32 0.0, %v859
  %v1596 = vsub.f32 0.0, %v862
  %v1597 = vsub.f32 0.0, %v865
  %v1598 = vsub.f32 0.0, %v868
  %v1599 = vsub.f32 0.0, %v871
  %v1600 = vsub.f32 0.0, %v874
  %v1601 = vsub.f32 0.0, %v877
  %v1602 = vsub.f32 0.0, %v880
  %v1603 = vsub.f32 0.0, %v883
  %v1604 = vsub.f32 0.0, %v886
  %v1605 = vsub.f32 0.0, %v889
  %v1606 = vsub.f32 0.0, %v892
  %v1607 = vsub.f32 0.0, %v895
  %v1608 = vsub.f32 0.0, %v898
  %v1609 = vsub.f32 0.0, %v901
  %v1610 = vsub.f32 0.0, %v904
  %v1611 = vsub.f32 0.0, %v907
  %v1612 = vsub.f32 0.0, %v910
  %v1613 = vsub.f32 0.0, %v913
  %v1614 = vsub.f32 0.0, %v916
  %v1615 = vsub.f32 0.0, %v919
  %v1616 = vsub.f32 0.0, %v922
  %v1617 = vsub.f32 0.0, %v925
  %v1618 = vsub.f32 0.0, %v928
  %v1619 = vsub.f32 0.0, %v931
  %v1620 = vsub.f32 0.0, %v934
  %v1621 = vsub.f32 0.0, %v937
  %v1622 = vsub.f32 0.0, %v940
  %v1623 = vsub.f32 0.0, %v943
  %v1624 = vsub.f32 0.0, %v946
  %v1625 = vsub.f32 0.0, %v949
  %v1626 = vsub.f32 0.0, %v952
  %v1627 = vsub.f32 0.0, %v955
  %v1628 = vsub.f32 0.0, %v958
  %v1629 = vsub.f32 0.0, %v961
  %v1630 = vsub.f32 0.0, %v964
  %v1631 = vsub.f32 0.0, %v967
  %v1632 = vsub.f32 0.0, %v970
  %v1633 = vsub.f32 0.0, %v973
  %v1634 = vsub.f32 0.0, %v976
  %v1635 = vsub.f32 0.0, %v979
  %v1636 = vsub.f32 0.0, %v982
  %v1637 = vsub.f32 0.0, %v985
  %v1638 = vsub.f32 0.0, %v988
  %v1639 = vsub.f32 0.0, %v991
  %v1640 = vsub.f32 0.0, %v994
  %v1641 = vsub.f32 0.0, %v997
  %v1642 = vsub.f32 0.0, %v1000
  %v1643 = vsub.f32 0.0, %v1003
  %v1644 = vsub.f32 0.0, %v1006
  %v1645 = vsub.f32 0.0, %v1009
  %v1646 = vsub.f32 0.0, %v1012
  %v1647 = vsub.f32 0.0, %v1015
  %v1648 = vsub.f32 0.0, %v1018
  %v1649 = vsub.f32 0.0, %v1021
  %v1650 = vsub.f32 0.0, %v1024
  %v1651 = vsub.f32 0.0, %v1027
  %v1652 = vsub.f32 0.0, %v1030
  %v1653 = vsub.f32 0.0, %v1033
  %v1654 = vsub.f32 0.0, %v1036
  %v1655 = vsub.f32 0.0, %v1039
  %v1656 = vsub.f32 0.0, %v1042
  %v1657 = vsub.f32 0.0, %v1045
  %v1658 = vsub.f32 0.0, %v1048
  %v1659 = vsub.f32 0.0, %v1051
  %v1660 = vsub.f32 0.0, %v1054
  %v1661 = vsub.f32 0.0, %v1057
  %v1662 = vsub.f32 0.0, %v1060
  %v1663 = vsub.f32 0.0, %v1063
  %v1664 = vsub.f32 0.0, %v1066
  %v1665 = vsub.f32 0.0, %v1069
  %v1666 = vsub.f32 0.0, %v1072
  %v1667 = vsub.f32 0.0, %v1075
  %v1668 = vsub.f32 0.0, %v1078
  %v1669 = vsub.f32 0.0, %v1081
  %v1670 = vsub.f32 0.0, %v1084
  %v1671 = vsub.f32 0.0, %v1087
  %v1672 = vsub.f32 0.0, %v1090
  %v1673 = vsub.f32 0.0, %v1093
  %v1674 = vsub.f32 0.0, %v1096
  %v1675 = vsub.f32 0.0, %v1099
  %v1676 = vsub.f32 0.0, %v1102
  %v1677 = vsub.f32 0.0, %v1105
  %v1678 = vsub.f32 0.0, %v1108
  %v1679 = vsub.f32 0.0, %v1111
  %v1680 = vsub.f32 0.0, %v1114
  %v1681 = vsub.f32 0.0, %v1117
  %v1682 = vsub.f32 0.0, %v1120
  %v1683 = vsub.f32 0.0, %v1123
  %v1684 = vsub.f32 0.0, %v1126
  %v1685 = vsub.f32 0.0, %v1129
  %v1686 = vsub.f32 0.0, %v1132
  %v1687 = vsub.f32 0.0, %v1135
  %v1688 = vsub.f32 0.0, %v1138
  %v1689 = vsub.f32 0.0, %v1141
  %v1690 = vsub.f32 0.0, %v1144
  %v1691 = vsub.f32 0.0, %v1147
  %v1692 = vsub.f32 0.0, %v1150
  %v1693 = vsub.f32 0.0, %v1153
  %v1694 = vsub.f32 0.0, %v1156
  %v1695 = vsub.f32 0.0, %v1159
  %v1696 = vsub.f32 0.0, %v1162
  %v1697 = vsub.f32 0.0, %v1165
  %v1698 = vsub.f32 0.0, %v1168
  %v1699 = vsub.f32 0.0, %v1171
  %v1700 = vsub.f32 0.0, %v1174
  %v1701 = vsub.f32 0.0, %v1177
  %v1702 = vsub.f32 0.0, %v1180
  %v1703 = vsub.f32 0.0, %v1183
  %v1704 = vsub.f32 0.0, %v1186
  %v1705 = vsub.f32 0.0, %v1189
  %v1706 = vsub.f32 0.0, %v1192
  %v1707 = vsub.f32 0.0, %v1195
  %v1708 = vsub.f32 0.0, %v1198
  %v1709 = vsub.f32 0.0, %v1201
  %v1710 = vsub.f32 0.0, %v1204
  %v1711 = vsub.f32 0.0, %v1207
  %v1712 = vsub.f32 0.0, %v1210
  %v1713 = vsub.f32 0.0, %v1213
  %v1714 = vsub.f32 0.0, %v1216
  %v1715 = vsub.f32 0.0, %v1219
  %v1716 = vsub.f32 0.0, %v1222
  %v1717 = vsub.f32 0.0, %v1225
  %v1718 = vsub.f32 0.0, %v1228
  %v1719 = vsub.f32 0.0, %v1231
  %v1720 = vsub.f32 0.0, %v1234
  %v1721 = vsub.f32 0.0, %v1237
  %v1722 = vsub.f32 0.0, %v1240
  %v1723 = vsub.f32 0.0, %v1243
  %v1724 = vsub.f32 0.0, %v1246
  %v1725 = vsub.f32 0.0, %v1249
  %v1726 = vsub.f32 0.0, %v1252
  %v1727 = vsub.f32 0.0, %v1255
  %v1728 = vsub.f32 0.0, %v1258
  %v1729 = vsub.f32 0.0, %v1261
  %v1730 = vsub.f32 0.0, %v1264
  %v1731 = vsub.f32 0.0, %v1267
  %v1732 = vsub.f32 0.0, %v1270
  %v1733 = vsub.f32 0.0, %v1273
  %v1734 = vsub.f32 0.0, %v1276
  %v1735 = vsub.f32 0.0, %v1279
  %v1736 = vsub.f32 0.0, %v1282
  %v1737 = vsub.f32 0.0, %v1285
  %v1738 = vsub.f32 0.0, %v1288
  %v1739 = vsub.f32 0.0, %v1291
  %v1740 = vsub.f32 0.0, %v1294
  %v1741 = vsub.f32 0.0, %v1297
  %v1742 = vsub.f32 0.0, %v1300
  %v1743 = vsub.f32 0.0, %v1303
  %v1744 = vsub.f32 0.0, %v1306
  %v1745 = vsub.f32 0.0, %v1309
  %v1746 = vsub.f32 0.0, %v1312
  %v1747 = vsub.f32 0.0, %v1315
  %v1748 = vsub.f32 0.0, %v1318
  %v1749 = vsub.f32 0.0, %v1321
  %v1750 = vsub.f32 0.0, %v1324
  %v1751 = vsub.f32 0.0, %v1327
  %v1752 = vsub.f32 0.0, %v1330
  %v1753 = vsub.f32 0.0, %v1333
  %v1754 = vsub.f32 0.0, %v1336
  %v1755 = vsub.f32 0.0, %v1339
  %v1756 = vsub.f32 0.0, %v1342
  %v1757 = vsub.f32 0.0, %v1345
  %v1758 = vsub.f32 0.0, %v1348
  %v1759 = vsub.f32 0.0, %v1351
  %v1760 = vsub.f32 0.0, %v1354
  %v1761 = vsub.f32 0.0, %v1357
  %v1762 = vsub.f32 0.0, %v1360
  %v1763 = vsub.f32 0.0, %v1363
  %v1764 = vsub.f32 0.0, %v1366
  %v1765 = vsub.f32 0.0, %v1369
  %v1766 = vsub.f32 0.0, %v1372
  %v1767 = vsub.f32 0.0, %v1375
  %v1768 = vsub.f32 0.0, %v1378
  %v1769 = vsub.f32 0.0, %v1381
  %v1770 = vsub.f32 0.0, %v1384
  %v1771 = vsub.f32 0.0, %v1387
  %v1772 = vsub.f32 0.0, %v1390
  %v1773 = vsub.f32 0.0, %v1393
  %v1774 = vsub.f32 0.0, %v1396
  %v1775 = vsub.f32 0.0, %v1399
  %v1776 = vsub.f32 0.0, %v1402
  %v1777 = vsub.f32 0.0, %v1405
  %v1778 = vsub.f32 0.0, %v1408
  %v1779 = vsub.f32 0.0, %v1411
  %v1780 = vsub.f32 0.0, %v1414
  %v1781 = vsub.f32 0.0, %v1417
  %v1782 = vsub.f32 0.0, %v1420
  %v1783 = vsub.f32 0.0, %v1423
  %v1784 = vsub.f32 0.0, %v1426
  %v1785 = vsub.f32 0.0, %v1429
  %v1786 = vsub.f32 0.0, %v1432
  %v1787 = vsub.f32 0.0, %v1435
  %v1788 = vsub.f32 0.0, %v1438
  %v1789 = vsub.f32 0.0, %v1441
  %v1790 = vsub.f32 0.0, %v1444
  %v1791 = vsub.f32 0.0, %v1447
  %v1792 = vsub.f32 0.0, %v1450
  %v1793 = vsub.f32 0.0, %v1453
  %v1794 = vsub.f32 0.0, %v1456
  %v1795 = vsub.f32 0.0, %v1459
  %v1796 = vsub.f32 0.0, %v1462
  %v1797 = vsub.f32 0.0, %v1465
  %v1798 = vsub.f32 0.0, %v1468
  %v1799 = vsub.f32 0.0, %v1471
  %v1800 = vsub.f32 0.0, %v1474
  %v1801 = vsub.f32 0.0, %v1477
  %v1802 = vsub.f32 0.0, %v1480
  %v1803 = vsub.f32 0.0, %v1483
  %v1804 = vsub.f32 0.0, %v1486
  %v1805 = vsub.f32 0.0, %v1489
  %v1806 = vsub.f32 0.0, %v1492
  %v1807 = vsub.f32 0.0, %v1495
  %v1808 = vsub.f32 0.0, %v1498
  %v1809 = vsub.f32 0.0, %v1501
  %v1810 = vsub.f32 0.0, %v1504
  %v1811 = vsub.f32 0.0, %v1507
  %v1812 = vsub.f32 0.0, %v1510
  %v1813 = vsub.f32 0.0, %v1513
  %v1814 = vsub.f32 0.0, %v1516
  %v1815 = vsub.f32 0.0, %v1519
  %v1816 = vsub.f32 0.0, %v1522
  %v1817 = vsub.f32 0.0, %v1525
  %v1818 = vsub.f32 0.0, %v1528
  %v1819 = vsub.f32 0.0, %v1531
  %v1820 = vsub.f32 0.0, %v1534
  %v1821 = vsub.f32 0.0, %v1537
  %v1822 = vsub.f32 0.0, %v1540
  %v1823 = vsub.f32 0.0, %v1543
  %v1824 = vsub.f32 0.0, %v1546
  %v1825 = vsub.f32 0.0, %v1549
  %v1826 = vsub.f32 0.0, %v1552
  %v1827 = vsub.f32 0.0, %v1555
  %v1828 = vsub.f32 0.0, %v1558
  %v1829 = vsub.f32 0.0, %v1561
  %v1830 = vsub.f32 0.0, %v1564
  %v1831 = vsub.f32 0.0, %v1567
  %v1832 = vsub.f32 0.0, %v1570
  %v1833 = vsub.f32 0.0, %v1573
  %v1834 = vsub.f32 0.0, %v1576
  %v1835 = vmul.f32 %v1577, 1.442695
  %v1836 = vpow.pop %v1835
  %v1837 = vmul.f32 %v1578, 1.442695
  %v1838 = vpow.pop %v1837
  %v1839 = vmul.f32 %v1579, 1.442695
  %v1840 = vpow.pop %v1839
  %v1841 = vmul.f32 %v1580, 1.442695
  %v1842 = vpow.pop %v1841
  %v1843 = vmul.f32 %v1581, 1.442695
  %v1844 = vpow.pop %v1843
  %v1845 = vmul.f32 %v1582, 1.442695
  %v1846 = vpow.pop %v1845
  %v1847 = vmul.f32 %v1583, 1.442695
  %v1848 = vpow.pop %v1847
  %v1849 = vmul.f32 %v1584, 1.442695
  %v1850 = vpow.pop %v1849
  %v1851 = vmul.f32 %v1585, 1.442695
  %v1852 = vpow.pop %v1851
  %v1853 = vmul.f32 %v1586, 1.442695
  %v1854 = vpow.pop %v1853
  %v1855 = vmul.f32 %v1587, 1.442695
  %v1856 = vpow.pop %v1855
  %v1857 = vmul.f32 %v1588, 1.442695
  %v1858 = vpow.pop %v1857
  %v1859 = vmul.f32 %v1589, 1.442695
  %v1860 = vpow.pop %v1859
  %v1861 = vmul.f32 %v1590, 1.442695
  %v1862 = vpow.pop %v1861
  %v1863 = vmul.f32 %v1591, 1.442695
  %v1864 = vpow.pop %v1863
  %v1865 = vmul.f32 %v1592, 1.442695
  %v1866 = vpow.pop %v1865
  %v1867 = vmul.f32 %v1593, 1.442695
  %v1868 = vpow.pop %v1867
  %v1869 = vmul.f32 %v1594, 1.442695
  %v1870 = vpow.pop %v1869
  %v1871 = vmul.f32 %v1595, 1.442695
  %v1872 = vpow.pop %v1871
  %v1873 = vmul.f32 %v1596, 1.442695
  %v1874 = vpow.pop %v1873
  %v1875 = vmul.f32 %v1597, 1.442695
  %v1876 = vpow.pop %v1875
  %v1877 = vmul.f32 %v1598, 1.442695
  %v1878 = vpow.pop %v1877
  %v1879 = vmul.f32 %v1599, 1.442695
  %v1880 = vpow.pop %v1879
  %v1881 = vmul.f32 %v1600, 1.442695
  %v1882 = vpow.pop %v1881
  %v1883 = vmul.f32 %v1601, 1.442695
  %v1884 = vpow.pop %v1883
  %v1885 = vmul.f32 %v1602, 1.442695
  %v1886 = vpow.pop %v1885
  %v1887 = vmul.f32 %v1603, 1.442695
  %v1888 = vpow.pop %v1887
  %v1889 = vmul.f32 %v1604, 1.442695
  %v1890 = vpow.pop %v1889
  %v1891 = vmul.f32 %v1605, 1.442695
  %v1892 = vpow.pop %v1891
  %v1893 = vmul.f32 %v1606, 1.442695
  %v1894 = vpow.pop %v1893
  %v1895 = vmul.f32 %v1607, 1.442695
  %v1896 = vpow.pop %v1895
  %v1897 = vmul.f32 %v1608, 1.442695
  %v1898 = vpow.pop %v1897
  %v1899 = vmul.f32 %v1609, 1.442695
  %v1900 = vpow.pop %v1899
  %v1901 = vmul.f32 %v1610, 1.442695
  %v1902 = vpow.pop %v1901
  %v1903 = vmul.f32 %v1611, 1.442695
  %v1904 = vpow.pop %v1903
  %v1905 = vmul.f32 %v1612, 1.442695
  %v1906 = vpow.pop %v1905
  %v1907 = vmul.f32 %v1613, 1.442695
  %v1908 = vpow.pop %v1907
  %v1909 = vmul.f32 %v1614, 1.442695
  %v1910 = vpow.pop %v1909
  %v1911 = vmul.f32 %v1615, 1.442695
  %v1912 = vpow.pop %v1911
  %v1913 = vmul.f32 %v1616, 1.442695
  %v1914 = vpow.pop %v1913
  %v1915 = vmul.f32 %v1617, 1.442695
  %v1916 = vpow.pop %v1915
  %v1917 = vmul.f32 %v1618, 1.442695
  %v1918 = vpow.pop %v1917
  %v1919 = vmul.f32 %v1619, 1.442695
  %v1920 = vpow.pop %v1919
  %v1921 = vmul.f32 %v1620, 1.442695
  %v1922 = vpow.pop %v1921
  %v1923 = vmul.f32 %v1621, 1.442695
  %v1924 = vpow.pop %v1923
  %v1925 = vmul.f32 %v1622, 1.442695
  %v1926 = vpow.pop %v1925
  %v1927 = vmul.f32 %v1623, 1.442695
  %v1928 = vpow.pop %v1927
  %v1929 = vmul.f32 %v1624, 1.442695
  %v1930 = vpow.pop %v1929
  %v1931 = vmul.f32 %v1625, 1.442695
  %v1932 = vpow.pop %v1931
  %v1933 = vmul.f32 %v1626, 1.442695
  %v1934 = vpow.pop %v1933
  %v1935 = vmul.f32 %v1627, 1.442695
  %v1936 = vpow.pop %v1935
  %v1937 = vmul.f32 %v1628, 1.442695
  %v1938 = vpow.pop %v1937
  %v1939 = vmul.f32 %v1629, 1.442695
  %v1940 = vpow.pop %v1939
  %v1941 = vmul.f32 %v1630, 1.442695
  %v1942 = vpow.pop %v1941
  %v1943 = vmul.f32 %v1631, 1.442695
  %v1944 = vpow.pop %v1943
  %v1945 = vmul.f32 %v1632, 1.442695
  %v1946 = vpow.pop %v1945
  %v1947 = vmul.f32 %v1633, 1.442695
  %v1948 = vpow.pop %v1947
  %v1949 = vmul.f32 %v1634, 1.442695
  %v1950 = vpow.pop %v1949
  %v1951 = vmul.f32 %v1635, 1.442695
  %v1952 = vpow.pop %v1951
  %v1953 = vmul.f32 %v1636, 1.442695
  %v1954 = vpow.pop %v1953
  %v1955 = vmul.f32 %v1637, 1.442695
  %v1956 = vpow.pop %v1955
  %v1957 = vmul.f32 %v1638, 1.442695
  %v1958 = vpow.pop %v1957
  %v1959 = vmul.f32 %v1639, 1.442695
  %v1960 = vpow.pop %v1959
  %v1961 = vmul.f32 %v1640, 1.442695
  %v1962 = vpow.pop %v1961
  %v1963 = vmul.f32 %v1641, 1.442695
  %v1964 = vpow.pop %v1963
  %v1965 = vmul.f32 %v1642, 1.442695
  %v1966 = vpow.pop %v1965
  %v1967 = vmul.f32 %v1643, 1.442695
  %v1968 = vpow.pop %v1967
  %v1969 = vmul.f32 %v1644, 1.442695
  %v1970 = vpow.pop %v1969
  %v1971 = vmul.f32 %v1645, 1.442695
  %v1972 = vpow.pop %v1971
  %v1973 = vmul.f32 %v1646, 1.442695
  %v1974 = vpow.pop %v1973
  %v1975 = vmul.f32 %v1647, 1.442695
  %v1976 = vpow.pop %v1975
  %v1977 = vmul.f32 %v1648, 1.442695
  %v1978 = vpow.pop %v1977
  %v1979 = vmul.f32 %v1649, 1.442695
  %v1980 = vpow.pop %v1979
  %v1981 = vmul.f32 %v1650, 1.442695
  %v1982 = vpow.pop %v1981
  %v1983 = vmul.f32 %v1651, 1.442695
  %v1984 = vpow.pop %v1983
  %v1985 = vmul.f32 %v1652, 1.442695
  %v1986 = vpow.pop %v1985
  %v1987 = vmul.f32 %v1653, 1.442695
  %v1988 = vpow.pop %v1987
  %v1989 = vmul.f32 %v1654, 1.442695
  %v1990 = vpow.pop %v1989
  %v1991 = vmul.f32 %v1655, 1.442695
  %v1992 = vpow.pop %v1991
  %v1993 = vmul.f32 %v1656, 1.442695
  %v1994 = vpow.pop %v1993
  %v1995 = vmul.f32 %v1657, 1.442695
  %v1996 = vpow.pop %v1995
  %v1997 = vmul.f32 %v1658, 1.442695
  %v1998 = vpow.pop %v1997
  %v1999 = vmul.f32 %v1659, 1.442695
  %v2000 = vpow.pop %v1999
  %v2001 = vmul.f32 %v1660, 1.442695
  %v2002 = vpow.pop %v2001
  %v2003 = vmul.f32 %v1661, 1.442695
  %v2004 = vpow.pop %v2003
  %v2005 = vmul.f32 %v1662, 1.442695
  %v2006 = vpow.pop %v2005
  %v2007 = vmul.f32 %v1663, 1.442695
  %v2008 = vpow.pop %v2007
  %v2009 = vmul.f32 %v1664, 1.442695
  %v2010 = vpow.pop %v2009
  %v2011 = vmul.f32 %v1665, 1.442695
  %v2012 = vpow.pop %v2011
  %v2013 = vmul.f32 %v1666, 1.442695
  %v2014 = vpow.pop %v2013
  %v2015 = vmul.f32 %v1667, 1.442695
  %v2016 = vpow.pop %v2015
  %v2017 = vmul.f32 %v1668, 1.442695
  %v2018 = vpow.pop %v2017
  %v2019 = vmul.f32 %v1669, 1.442695
  %v2020 = vpow.pop %v2019
  %v2021 = vmul.f32 %v1670, 1.442695
  %v2022 = vpow.pop %v2021
  %v2023 = vmul.f32 %v1671, 1.442695
  %v2024 = vpow.pop %v2023
  %v2025 = vmul.f32 %v1672, 1.442695
  %v2026 = vpow.pop %v2025
  %v2027 = vmul.f32 %v1673, 1.442695
  %v2028 = vpow.pop %v2027
  %v2029 = vmul.f32 %v1674, 1.442695
  %v2030 = vpow.pop %v2029
  %v2031 = vmul.f32 %v1675, 1.442695
  %v2032 = vpow.pop %v2031
  %v2033 = vmul.f32 %v1676, 1.442695
  %v2034 = vpow.pop %v2033
  %v2035 = vmul.f32 %v1677, 1.442695
  %v2036 = vpow.pop %v2035
  %v2037 = vmul.f32 %v1678, 1.442695
  %v2038 = vpow.pop %v2037
  %v2039 = vmul.f32 %v1679, 1.442695
  %v2040 = vpow.pop %v2039
  %v2041 = vmul.f32 %v1680, 1.442695
  %v2042 = vpow.pop %v2041
  %v2043 = vmul.f32 %v1681, 1.442695
  %v2044 = vpow.pop %v2043
  %v2045 = vmul.f32 %v1682, 1.442695
  %v2046 = vpow.pop %v2045
  %v2047 = vmul.f32 %v1683, 1.442695
  %v2048 = vpow.pop %v2047
  %v2049 = vmul.f32 %v1684, 1.442695
  %v2050 = vpow.pop %v2049
  %v2051 = vmul.f32 %v1685, 1.442695
  %v2052 = vpow.pop %v2051
  %v2053 = vmul.f32 %v1686, 1.442695
  %v2054 = vpow.pop %v2053
  %v2055 = vmul.f32 %v1687, 1.442695
  %v2056 = vpow.pop %v2055
  %v2057 = vmul.f32 %v1688, 1.442695
  %v2058 = vpow.pop %v2057
  %v2059 = vmul.f32 %v1689, 1.442695
  %v2060 = vpow.pop %v2059
  %v2061 = vmul.f32 %v1690, 1.442695
  %v2062 = vpow.pop %v2061
  %v2063 = vmul.f32 %v1691, 1.442695
  %v2064 = vpow.pop %v2063
  %v2065 = vmul.f32 %v1692, 1.442695
  %v2066 = vpow.pop %v2065
  %v2067 = vmul.f32 %v1693, 1.442695
  %v2068 = vpow.pop %v2067
  %v2069 = vmul.f32 %v1694, 1.442695
  %v2070 = vpow.pop %v2069
  %v2071 = vmul.f32 %v1695, 1.442695
  %v2072 = vpow.pop %v2071
  %v2073 = vmul.f32 %v1696, 1.442695
  %v2074 = vpow.pop %v2073
  %v2075 = vmul.f32 %v1697, 1.442695
  %v2076 = vpow.pop %v2075
  %v2077 = vmul.f32 %v1698, 1.442695
  %v2078 = vpow.pop %v2077
  %v2079 = vmul.f32 %v1699, 1.442695
  %v2080 = vpow.pop %v2079
  %v2081 = vmul.f32 %v1700, 1.442695
  %v2082 = vpow.pop %v2081
  %v2083 = vmul.f32 %v1701, 1.442695
  %v2084 = vpow.pop %v2083
  %v2085 = vmul.f32 %v1702, 1.442695
  %v2086 = vpow.pop %v2085
  %v2087 = vmul.f32 %v1703, 1.442695
  %v2088 = vpow.pop %v2087
  %v2089 = vmul.f32 %v1704, 1.442695
  %v2090 = vpow.pop %v2089
  %v2091 = vmul.f32 %v1705, 1.442695
  %v2092 = vpow.pop %v2091
  %v2093 = vmul.f32 %v1706, 1.442695
  %v2094 = vpow.pop %v2093
  %v2095 = vmul.f32 %v1707, 1.442695
  %v2096 = vpow.pop %v2095
  %v2097 = vmul.f32 %v1708, 1.442695
  %v2098 = vpow.pop %v2097
  %v2099 = vmul.f32 %v1709, 1.442695
  %v2100 = vpow.pop %v2099
  %v2101 = vmul.f32 %v1710, 1.442695
  %v2102 = vpow.pop %v2101
  %v2103 = vmul.f32 %v1711, 1.442695
  %v2104 = vpow.pop %v2103
  %v2105 = vmul.f32 %v1712, 1.442695
  %v2106 = vpow.pop %v2105
  %v2107 = vmul.f32 %v1713, 1.442695
  %v2108 = vpow.pop %v2107
  %v2109 = vmul.f32 %v1714, 1.442695
  %v2110 = vpow.pop %v2109
  %v2111 = vmul.f32 %v1715, 1.442695
  %v2112 = vpow.pop %v2111
  %v2113 = vmul.f32 %v1716, 1.442695
  %v2114 = vpow.pop %v2113
  %v2115 = vmul.f32 %v1717, 1.442695
  %v2116 = vpow.pop %v2115
  %v2117 = vmul.f32 %v1718, 1.442695
  %v2118 = vpow.pop %v2117
  %v2119 = vmul.f32 %v1719, 1.442695
  %v2120 = vpow.pop %v2119
  %v2121 = vmul.f32 %v1720, 1.442695
  %v2122 = vpow.pop %v2121
  %v2123 = vmul.f32 %v1721, 1.442695
  %v2124 = vpow.pop %v2123
  %v2125 = vmul.f32 %v1722, 1.442695
  %v2126 = vpow.pop %v2125
  %v2127 = vmul.f32 %v1723, 1.442695
  %v2128 = vpow.pop %v2127
  %v2129 = vmul.f32 %v1724, 1.442695
  %v2130 = vpow.pop %v2129
  %v2131 = vmul.f32 %v1725, 1.442695
  %v2132 = vpow.pop %v2131
  %v2133 = vmul.f32 %v1726, 1.442695
  %v2134 = vpow.pop %v2133
  %v2135 = vmul.f32 %v1727, 1.442695
  %v2136 = vpow.pop %v2135
  %v2137 = vmul.f32 %v1728, 1.442695
  %v2138 = vpow.pop %v2137
  %v2139 = vmul.f32 %v1729, 1.442695
  %v2140 = vpow.pop %v2139
  %v2141 = vmul.f32 %v1730, 1.442695
  %v2142 = vpow.pop %v2141
  %v2143 = vmul.f32 %v1731, 1.442695
  %v2144 = vpow.pop %v2143
  %v2145 = vmul.f32 %v1732, 1.442695
  %v2146 = vpow.pop %v2145
  %v2147 = vmul.f32 %v1733, 1.442695
  %v2148 = vpow.pop %v2147
  %v2149 = vmul.f32 %v1734, 1.442695
  %v2150 = vpow.pop %v2149
  %v2151 = vmul.f32 %v1735, 1.442695
  %v2152 = vpow.pop %v2151
  %v2153 = vmul.f32 %v1736, 1.442695
  %v2154 = vpow.pop %v2153
  %v2155 = vmul.f32 %v1737, 1.442695
  %v2156 = vpow.pop %v2155
  %v2157 = vmul.f32 %v1738, 1.442695
  %v2158 = vpow.pop %v2157
  %v2159 = vmul.f32 %v1739, 1.442695
  %v2160 = vpow.pop %v2159
  %v2161 = vmul.f32 %v1740, 1.442695
  %v2162 = vpow.pop %v2161
  %v2163 = vmul.f32 %v1741, 1.442695
  %v2164 = vpow.pop %v2163
  %v2165 = vmul.f32 %v1742, 1.442695
  %v2166 = vpow.pop %v2165
  %v2167 = vmul.f32 %v1743, 1.442695
  %v2168 = vpow.pop %v2167
  %v2169 = vmul.f32 %v1744, 1.442695
  %v2170 = vpow.pop %v2169
  %v2171 = vmul.f32 %v1745, 1.442695
  %v2172 = vpow.pop %v2171
  %v2173 = vmul.f32 %v1746, 1.442695
  %v2174 = vpow.pop %v2173
  %v2175 = vmul.f32 %v1747, 1.442695
  %v2176 = vpow.pop %v2175
  %v2177 = vmul.f32 %v1748, 1.442695
  %v2178 = vpow.pop %v2177
  %v2179 = vmul.f32 %v1749, 1.442695
  %v2180 = vpow.pop %v2179
  %v2181 = vmul.f32 %v1750, 1.442695
  %v2182 = vpow.pop %v2181
  %v2183 = vmul.f32 %v1751, 1.442695
  %v2184 = vpow.pop %v2183
  %v2185 = vmul.f32 %v1752, 1.442695
  %v2186 = vpow.pop %v2185
  %v2187 = vmul.f32 %v1753, 1.442695
  %v2188 = vpow.pop %v2187
  %v2189 = vmul.f32 %v1754, 1.442695
  %v2190 = vpow.pop %v2189
  %v2191 = vmul.f32 %v1755, 1.442695
  %v2192 = vpow.pop %v2191
  %v2193 = vmul.f32 %v1756, 1.442695
  %v2194 = vpow.pop %v2193
  %v2195 = vmul.f32 %v1757, 1.442695
  %v2196 = vpow.pop %v2195
  %v2197 = vmul.f32 %v1758, 1.442695
  %v2198 = vpow.pop %v2197
  %v2199 = vmul.f32 %v1759, 1.442695
  %v2200 = vpow.pop %v2199
  %v2201 = vmul.f32 %v1760, 1.442695
  %v2202 = vpow.pop %v2201
  %v2203 = vmul.f32 %v1761, 1.442695
  %v2204 = vpow.pop %v2203
  %v2205 = vmul.f32 %v1762, 1.442695
  %v2206 = vpow.pop %v2205
  %v2207 = vmul.f32 %v1763, 1.442695
  %v2208 = vpow.pop %v2207
  %v2209 = vmul.f32 %v1764, 1.442695
  %v2210 = vpow.pop %v2209
  %v2211 = vmul.f32 %v1765, 1.442695
  %v2212 = vpow.pop %v2211
  %v2213 = vmul.f32 %v1766, 1.442695
  %v2214 = vpow.pop %v2213
  %v2215 = vmul.f32 %v1767, 1.442695
  %v2216 = vpow.pop %v2215
  %v2217 = vmul.f32 %v1768, 1.442695
  %v2218 = vpow.pop %v2217
  %v2219 = vmul.f32 %v1769, 1.442695
  %v2220 = vpow.pop %v2219
  %v2221 = vmul.f32 %v1770, 1.442695
  %v2222 = vpow.pop %v2221
  %v2223 = vmul.f32 %v1771, 1.442695
  %v2224 = vpow.pop %v2223
  %v2225 = vmul.f32 %v1772, 1.442695
  %v2226 = vpow.pop %v2225
  %v2227 = vmul.f32 %v1773, 1.442695
  %v2228 = vpow.pop %v2227
  %v2229 = vmul.f32 %v1774, 1.442695
  %v2230 = vpow.pop %v2229
  %v2231 = vmul.f32 %v1775, 1.442695
  %v2232 = vpow.pop %v2231
  %v2233 = vmul.f32 %v1776, 1.442695
  %v2234 = vpow.pop %v2233
  %v2235 = vmul.f32 %v1777, 1.442695
  %v2236 = vpow.pop %v2235
  %v2237 = vmul.f32 %v1778, 1.442695
  %v2238 = vpow.pop %v2237
  %v2239 = vmul.f32 %v1779, 1.442695
  %v2240 = vpow.pop %v2239
  %v2241 = vmul.f32 %v1780, 1.442695
  %v2242 = vpow.pop %v2241
  %v2243 = vmul.f32 %v1781, 1.442695
  %v2244 = vpow.pop %v2243
  %v2245 = vmul.f32 %v1782, 1.442695
  %v2246 = vpow.pop %v2245
  %v2247 = vmul.f32 %v1783, 1.442695
  %v2248 = vpow.pop %v2247
  %v2249 = vmul.f32 %v1784, 1.442695
  %v2250 = vpow.pop %v2249
  %v2251 = vmul.f32 %v1785, 1.442695
  %v2252 = vpow.pop %v2251
  %v2253 = vmul.f32 %v1786, 1.442695
  %v2254 = vpow.pop %v2253
  %v2255 = vmul.f32 %v1787, 1.442695
  %v2256 = vpow.pop %v2255
  %v2257 = vmul.f32 %v1788, 1.442695
  %v2258 = vpow.pop %v2257
  %v2259 = vmul.f32 %v1789, 1.442695
  %v2260 = vpow.pop %v2259
  %v2261 = vmul.f32 %v1790, 1.442695
  %v2262 = vpow.pop %v2261
  %v2263 = vmul.f32 %v1791, 1.442695
  %v2264 = vpow.pop %v2263
  %v2265 = vmul.f32 %v1792, 1.442695
  %v2266 = vpow.pop %v2265
  %v2267 = vmul.f32 %v1793, 1.442695
  %v2268 = vpow.pop %v2267
  %v2269 = vmul.f32 %v1794, 1.442695
  %v2270 = vpow.pop %v2269
  %v2271 = vmul.f32 %v1795, 1.442695
  %v2272 = vpow.pop %v2271
  %v2273 = vmul.f32 %v1796, 1.442695
  %v2274 = vpow.pop %v2273
  %v2275 = vmul.f32 %v1797, 1.442695
  %v2276 = vpow.pop %v2275
  %v2277 = vmul.f32 %v1798, 1.442695
  %v2278 = vpow.pop %v2277
  %v2279 = vmul.f32 %v1799, 1.442695
  %v2280 = vpow.pop %v2279
  %v2281 = vmul.f32 %v1800, 1.442695
  %v2282 = vpow.pop %v2281
  %v2283 = vmul.f32 %v1801, 1.442695
  %v2284 = vpow.pop %v2283
  %v2285 = vmul.f32 %v1802, 1.442695
  %v2286 = vpow.pop %v2285
  %v2287 = vmul.f32 %v1803, 1.442695
  %v2288 = vpow.pop %v2287
  %v2289 = vmul.f32 %v1804, 1.442695
  %v2290 = vpow.pop %v2289
  %v2291 = vmul.f32 %v1805, 1.442695
  %v2292 = vpow.pop %v2291
  %v2293 = vmul.f32 %v1806, 1.442695
  %v2294 = vpow.pop %v2293
  %v2295 = vmul.f32 %v1807, 1.442695
  %v2296 = vpow.pop %v2295
  %v2297 = vmul.f32 %v1808, 1.442695
  %v2298 = vpow.pop %v2297
  %v2299 = vmul.f32 %v1809, 1.442695
  %v2300 = vpow.pop %v2299
  %v2301 = vmul.f32 %v1810, 1.442695
  %v2302 = vpow.pop %v2301
  %v2303 = vmul.f32 %v1811, 1.442695
  %v2304 = vpow.pop %v2303
  %v2305 = vmul.f32 %v1812, 1.442695
  %v2306 = vpow.pop %v2305
  %v2307 = vmul.f32 %v1813, 1.442695
  %v2308 = vpow.pop %v2307
  %v2309 = vmul.f32 %v1814, 1.442695
  %v2310 = vpow.pop %v2309
  %v2311 = vmul.f32 %v1815, 1.442695
  %v2312 = vpow.pop %v2311
  %v2313 = vmul.f32 %v1816, 1.442695
  %v2314 = vpow.pop %v2313
  %v2315 = vmul.f32 %v1817, 1.442695
  %v2316 = vpow.pop %v2315
  %v2317 = vmul.f32 %v1818, 1.442695
  %v2318 = vpow.pop %v2317
  %v2319 = vmul.f32 %v1819, 1.442695
  %v2320 = vpow.pop %v2319
  %v2321 = vmul.f32 %v1820, 1.442695
  %v2322 = vpow.pop %v2321
  %v2323 = vmul.f32 %v1821, 1.442695
  %v2324 = vpow.pop %v2323
  %v2325 = vmul.f32 %v1822, 1.442695
  %v2326 = vpow.pop %v2325
  %v2327 = vmul.f32 %v1823, 1.442695
  %v2328 = vpow.pop %v2327
  %v2329 = vmul.f32 %v1824, 1.442695
  %v2330 = vpow.pop %v2329
  %v2331 = vmul.f32 %v1825, 1.442695
  %v2332 = vpow.pop %v2331
  %v2333 = vmul.f32 %v1826, 1.442695
  %v2334 = vpow.pop %v2333
  %v2335 = vmul.f32 %v1827, 1.442695
  %v2336 = vpow.pop %v2335
  %v2337 = vmul.f32 %v1828, 1.442695
  %v2338 = vpow.pop %v2337
  %v2339 = vmul.f32 %v1829, 1.442695
  %v2340 = vpow.pop %v2339
  %v2341 = vmul.f32 %v1830, 1.442695
  %v2342 = vpow.pop %v2341
  %v2343 = vmul.f32 %v1831, 1.442695
  %v2344 = vpow.pop %v2343
  %v2345 = vmul.f32 %v1832, 1.442695
  %v2346 = vpow.pop %v2345
  %v2347 = vmul.f32 %v1833, 1.442695
  %v2348 = vpow.pop %v2347
  %v2349 = vmul.f32 %v1834, 1.442695
  %v2350 = vpow.pop %v2349
  %v2351 = vadd.f32 %v1836, 1.0
  %v2352 = vadd.f32 %v1838, 1.0
  %v2353 = vadd.f32 %v1840, 1.0
  %v2354 = vadd.f32 %v1842, 1.0
  %v2355 = vadd.f32 %v1844, 1.0
  %v2356 = vadd.f32 %v1846, 1.0
  %v2357 = vadd.f32 %v1848, 1.0
  %v2358 = vadd.f32 %v1850, 1.0
  %v2359 = vadd.f32 %v1852, 1.0
  %v2360 = vadd.f32 %v1854, 1.0
  %v2361 = vadd.f32 %v1856, 1.0
  %v2362 = vadd.f32 %v1858, 1.0
  %v2363 = vadd.f32 %v1860, 1.0
  %v2364 = vadd.f32 %v1862, 1.0
  %v2365 = vadd.f32 %v1864, 1.0
  %v2366 = vadd.f32 %v1866, 1.0
  %v2367 = vadd.f32 %v1868, 1.0
  %v2368 = vadd.f32 %v1870, 1.0
  %v2369 = vadd.f32 %v1872, 1.0
  %v2370 = vadd.f32 %v1874, 1.0
  %v2371 = vadd.f32 %v1876, 1.0
  %v2372 = vadd.f32 %v1878, 1.0
  %v2373 = vadd.f32 %v1880, 1.0
  %v2374 = vadd.f32 %v1882, 1.0
  %v2375 = vadd.f32 %v1884, 1.0
  %v2376 = vadd.f32 %v1886, 1.0
  %v2377 = vadd.f32 %v1888, 1.0
  %v2378 = vadd.f32 %v1890, 1.0
  %v2379 = vadd.f32 %v1892, 1.0
  %v2380 = vadd.f32 %v1894, 1.0
  %v2381 = vadd.f32 %v1896, 1.0
  %v2382 = vadd.f32 %v1898, 1.0
  %v2383 = vadd.f32 %v1900, 1.0
  %v2384 = vadd.f32 %v1902, 1.0
  %v2385 = vadd.f32 %v1904, 1.0
  %v2386 = vadd.f32 %v1906, 1.0
  %v2387 = vadd.f32 %v1908, 1.0
  %v2388 = vadd.f32 %v1910, 1.0
  %v2389 = vadd.f32 %v1912, 1.0
  %v2390 = vadd.f32 %v1914, 1.0
  %v2391 = vadd.f32 %v1916, 1.0
  %v2392 = vadd.f32 %v1918, 1.0
  %v2393 = vadd.f32 %v1920, 1.0
  %v2394 = vadd.f32 %v1922, 1.0
  %v2395 = vadd.f32 %v1924, 1.0
  %v2396 = vadd.f32 %v1926, 1.0
  %v2397 = vadd.f32 %v1928, 1.0
  %v2398 = vadd.f32 %v1930, 1.0
  %v2399 = vadd.f32 %v1932, 1.0
  %v2400 = vadd.f32 %v1934, 1.0
  %v2401 = vadd.f32 %v1936, 1.0
  %v2402 = vadd.f32 %v1938, 1.0
  %v2403 = vadd.f32 %v1940, 1.0
  %v2404 = vadd.f32 %v1942, 1.0
  %v2405 = vadd.f32 %v1944, 1.0
  %v2406 = vadd.f32 %v1946, 1.0
  %v2407 = vadd.f32 %v1948, 1.0
  %v2408 = vadd.f32 %v1950, 1.0
  %v2409 = vadd.f32 %v1952, 1.0
  %v2410 = vadd.f32 %v1954, 1.0
  %v2411 = vadd.f32 %v1956, 1.0
  %v2412 = vadd.f32 %v1958, 1.0
  %v2413 = vadd.f32 %v1960, 1.0
  %v2414 = vadd.f32 %v1962, 1.0
  %v2415 = vadd.f32 %v1964, 1.0
  %v2416 = vadd.f32 %v1966, 1.0
  %v2417 = vadd.f32 %v1968, 1.0
  %v2418 = vadd.f32 %v1970, 1.0
  %v2419 = vadd.f32 %v1972, 1.0
  %v2420 = vadd.f32 %v1974, 1.0
  %v2421 = vadd.f32 %v1976, 1.0
  %v2422 = vadd.f32 %v1978, 1.0
  %v2423 = vadd.f32 %v1980, 1.0
  %v2424 = vadd.f32 %v1982, 1.0
  %v2425 = vadd.f32 %v1984, 1.0
  %v2426 = vadd.f32 %v1986, 1.0
  %v2427 = vadd.f32 %v1988, 1.0
  %v2428 = vadd.f32 %v1990, 1.0
  %v2429 = vadd.f32 %v1992, 1.0
  %v2430 = vadd.f32 %v1994, 1.0
  %v2431 = vadd.f32 %v1996, 1.0
  %v2432 = vadd.f32 %v1998, 1.0
  %v2433 = vadd.f32 %v2000, 1.0
  %v2434 = vadd.f32 %v2002, 1.0
  %v2435 = vadd.f32 %v2004, 1.0
  %v2436 = vadd.f32 %v2006, 1.0
  %v2437 = vadd.f32 %v2008, 1.0
  %v2438 = vadd.f32 %v2010, 1.0
  %v2439 = vadd.f32 %v2012, 1.0
  %v2440 = vadd.f32 %v2014, 1.0
  %v2441 = vadd.f32 %v2016, 1.0
  %v2442 = vadd.f32 %v2018, 1.0
  %v2443 = vadd.f32 %v2020, 1.0
  %v2444 = vadd.f32 %v2022, 1.0
  %v2445 = vadd.f32 %v2024, 1.0
  %v2446 = vadd.f32 %v2026, 1.0
  %v2447 = vadd.f32 %v2028, 1.0
  %v2448 = vadd.f32 %v2030, 1.0
  %v2449 = vadd.f32 %v2032, 1.0
  %v2450 = vadd.f32 %v2034, 1.0
  %v2451 = vadd.f32 %v2036, 1.0
  %v2452 = vadd.f32 %v2038, 1.0
  %v2453 = vadd.f32 %v2040, 1.0
  %v2454 = vadd.f32 %v2042, 1.0
  %v2455 = vadd.f32 %v2044, 1.0
  %v2456 = vadd.f32 %v2046, 1.0
  %v2457 = vadd.f32 %v2048, 1.0
  %v2458 = vadd.f32 %v2050, 1.0
  %v2459 = vadd.f32 %v2052, 1.0
  %v2460 = vadd.f32 %v2054, 1.0
  %v2461 = vadd.f32 %v2056, 1.0
  %v2462 = vadd.f32 %v2058, 1.0
  %v2463 = vadd.f32 %v2060, 1.0
  %v2464 = vadd.f32 %v2062, 1.0
  %v2465 = vadd.f32 %v2064, 1.0
  %v2466 = vadd.f32 %v2066, 1.0
  %v2467 = vadd.f32 %v2068, 1.0
  %v2468 = vadd.f32 %v2070, 1.0
  %v2469 = vadd.f32 %v2072, 1.0
  %v2470 = vadd.f32 %v2074, 1.0
  %v2471 = vadd.f32 %v2076, 1.0
  %v2472 = vadd.f32 %v2078, 1.0
  %v2473 = vadd.f32 %v2080, 1.0
  %v2474 = vadd.f32 %v2082, 1.0
  %v2475 = vadd.f32 %v2084, 1.0
  %v2476 = vadd.f32 %v2086, 1.0
  %v2477 = vadd.f32 %v2088, 1.0
  %v2478 = vadd.f32 %v2090, 1.0
  %v2479 = vadd.f32 %v2092, 1.0
  %v2480 = vadd.f32 %v2094, 1.0
  %v2481 = vadd.f32 %v2096, 1.0
  %v2482 = vadd.f32 %v2098, 1.0
  %v2483 = vadd.f32 %v2100, 1.0
  %v2484 = vadd.f32 %v2102, 1.0
  %v2485 = vadd.f32 %v2104, 1.0
  %v2486 = vadd.f32 %v2106, 1.0
  %v2487 = vadd.f32 %v2108, 1.0
  %v2488 = vadd.f32 %v2110, 1.0
  %v2489 = vadd.f32 %v2112, 1.0
  %v2490 = vadd.f32 %v2114, 1.0
  %v2491 = vadd.f32 %v2116, 1.0
  %v2492 = vadd.f32 %v2118, 1.0
  %v2493 = vadd.f32 %v2120, 1.0
  %v2494 = vadd.f32 %v2122, 1.0
  %v2495 = vadd.f32 %v2124, 1.0
  %v2496 = vadd.f32 %v2126, 1.0
  %v2497 = vadd.f32 %v2128, 1.0
  %v2498 = vadd.f32 %v2130, 1.0
  %v2499 = vadd.f32 %v2132, 1.0
  %v2500 = vadd.f32 %v2134, 1.0
  %v2501 = vadd.f32 %v2136, 1.0
  %v2502 = vadd.f32 %v2138, 1.0
  %v2503 = vadd.f32 %v2140, 1.0
  %v2504 = vadd.f32 %v2142, 1.0
  %v2505 = vadd.f32 %v2144, 1.0
  %v2506 = vadd.f32 %v2146, 1.0
  %v2507 = vadd.f32 %v2148, 1.0
  %v2508 = vadd.f32 %v2150, 1.0
  %v2509 = vadd.f32 %v2152, 1.0
  %v2510 = vadd.f32 %v2154, 1.0
  %v2511 = vadd.f32 %v2156, 1.0
  %v2512 = vadd.f32 %v2158, 1.0
  %v2513 = vadd.f32 %v2160, 1.0
  %v2514 = vadd.f32 %v2162, 1.0
  %v2515 = vadd.f32 %v2164, 1.0
  %v2516 = vadd.f32 %v2166, 1.0
  %v2517 = vadd.f32 %v2168, 1.0
  %v2518 = vadd.f32 %v2170, 1.0
  %v2519 = vadd.f32 %v2172, 1.0
  %v2520 = vadd.f32 %v2174, 1.0
  %v2521 = vadd.f32 %v2176, 1.0
  %v2522 = vadd.f32 %v2178, 1.0
  %v2523 = vadd.f32 %v2180, 1.0
  %v2524 = vadd.f32 %v2182, 1.0
  %v2525 = vadd.f32 %v2184, 1.0
  %v2526 = vadd.f32 %v2186, 1.0
  %v2527 = vadd.f32 %v2188, 1.0
  %v2528 = vadd.f32 %v2190, 1.0
  %v2529 = vadd.f32 %v2192, 1.0
  %v2530 = vadd.f32 %v2194, 1.0
  %v2531 = vadd.f32 %v2196, 1.0
  %v2532 = vadd.f32 %v2198, 1.0
  %v2533 = vadd.f32 %v2200, 1.0
  %v2534 = vadd.f32 %v2202, 1.0
  %v2535 = vadd.f32 %v2204, 1.0
  %v2536 = vadd.f32 %v2206, 1.0
  %v2537 = vadd.f32 %v2208, 1.0
  %v2538 = vadd.f32 %v2210, 1.0
  %v2539 = vadd.f32 %v2212, 1.0
  %v2540 = vadd.f32 %v2214, 1.0
  %v2541 = vadd.f32 %v2216, 1.0
  %v2542 = vadd.f32 %v2218, 1.0
  %v2543 = vadd.f32 %v2220, 1.0
  %v2544 = vadd.f32 %v2222, 1.0
  %v2545 = vadd.f32 %v2224, 1.0
  %v2546 = vadd.f32 %v2226, 1.0
  %v2547 = vadd.f32 %v2228, 1.0
  %v2548 = vadd.f32 %v2230, 1.0
  %v2549 = vadd.f32 %v2232, 1.0
  %v2550 = vadd.f32 %v2234, 1.0
  %v2551 = vadd.f32 %v2236, 1.0
  %v2552 = vadd.f32 %v2238, 1.0
  %v2553 = vadd.f32 %v2240, 1.0
  %v2554 = vadd.f32 %v2242, 1.0
  %v2555 = vadd.f32 %v2244, 1.0
  %v2556 = vadd.f32 %v2246, 1.0
  %v2557 = vadd.f32 %v2248, 1.0
  %v2558 = vadd.f32 %v2250, 1.0
  %v2559 = vadd.f32 %v2252, 1.0
  %v2560 = vadd.f32 %v2254, 1.0
  %v2561 = vadd.f32 %v2256, 1.0
  %v2562 = vadd.f32 %v2258, 1.0
  %v2563 = vadd.f32 %v2260, 1.0
  %v2564 = vadd.f32 %v2262, 1.0
  %v2565 = vadd.f32 %v2264, 1.0
  %v2566 = vadd.f32 %v2266, 1.0
  %v2567 = vadd.f32 %v2268, 1.0
  %v2568 = vadd.f32 %v2270, 1.0
  %v2569 = vadd.f32 %v2272, 1.0
  %v2570 = vadd.f32 %v2274, 1.0
  %v2571 = vadd.f32 %v2276, 1.0
  %v2572 = vadd.f32 %v2278, 1.0
  %v2573 = vadd.f32 %v2280, 1.0
  %v2574 = vadd.f32 %v2282, 1.0
  %v2575 = vadd.f32 %v2284, 1.0
  %v2576 = vadd.f32 %v2286, 1.0
  %v2577 = vadd.f32 %v2288, 1.0
  %v2578 = vadd.f32 %v2290, 1.0
  %v2579 = vadd.f32 %v2292, 1.0
  %v2580 = vadd.f32 %v2294, 1.0
  %v2581 = vadd.f32 %v2296, 1.0
  %v2582 = vadd.f32 %v2298, 1.0
  %v2583 = vadd.f32 %v2300, 1.0
  %v2584 = vadd.f32 %v2302, 1.0
  %v2585 = vadd.f32 %v2304, 1.0
  %v2586 = vadd.f32 %v2306, 1.0
  %v2587 = vadd.f32 %v2308, 1.0
  %v2588 = vadd.f32 %v2310, 1.0
  %v2589 = vadd.f32 %v2312, 1.0
  %v2590 = vadd.f32 %v2314, 1.0
  %v2591 = vadd.f32 %v2316, 1.0
  %v2592 = vadd.f32 %v2318, 1.0
  %v2593 = vadd.f32 %v2320, 1.0
  %v2594 = vadd.f32 %v2322, 1.0
  %v2595 = vadd.f32 %v2324, 1.0
  %v2596 = vadd.f32 %v2326, 1.0
  %v2597 = vadd.f32 %v2328, 1.0
  %v2598 = vadd.f32 %v2330, 1.0
  %v2599 = vadd.f32 %v2332, 1.0
  %v2600 = vadd.f32 %v2334, 1.0
  %v2601 = vadd.f32 %v2336, 1.0
  %v2602 = vadd.f32 %v2338, 1.0
  %v2603 = vadd.f32 %v2340, 1.0
  %v2604 = vadd.f32 %v2342, 1.0
  %v2605 = vadd.f32 %v2344, 1.0
  %v2606 = vadd.f32 %v2346, 1.0
  %v2607 = vadd.f32 %v2348, 1.0
  %v2608 = vadd.f32 %v2350, 1.0
  %v2609 = vrcp.pop %v2351
  %v2610 = vmul.f32 1.0, %v2609
  %v2611 = vrcp.pop %v2352
  %v2612 = vmul.f32 1.0, %v2611
  %v2613 = vrcp.pop %v2353
  %v2614 = vmul.f32 1.0, %v2613
  %v2615 = vrcp.pop %v2354
  %v2616 = vmul.f32 1.0, %v2615
  %v2617 = vrcp.pop %v2355
  %v2618 = vmul.f32 1.0, %v2617
  %v2619 = vrcp.pop %v2356
  %v2620 = vmul.f32 1.0, %v2619
  %v2621 = vrcp.pop %v2357
  %v2622 = vmul.f32 1.0, %v2621
  %v2623 = vrcp.pop %v2358
  %v2624 = vmul.f32 1.0, %v2623
  %v2625 = vrcp.pop %v2359
  %v2626 = vmul.f32 1.0, %v2625
  %v2627 = vrcp.pop %v2360
  %v2628 = vmul.f32 1.0, %v2627
  %v2629 = vrcp.pop %v2361
  %v2630 = vmul.f32 1.0, %v2629
  %v2631 = vrcp.pop %v2362
  %v2632 = vmul.f32 1.0, %v2631
  %v2633 = vrcp.pop %v2363
  %v2634 = vmul.f32 1.0, %v2633
  %v2635 = vrcp.pop %v2364
  %v2636 = vmul.f32 1.0, %v2635
  %v2637 = vrcp.pop %v2365
  %v2638 = vmul.f32 1.0, %v2637
  %v2639 = vrcp.pop %v2366
  %v2640 = vmul.f32 1.0, %v2639
  %v2641 = vrcp.pop %v2367
  %v2642 = vmul.f32 1.0, %v2641
  %v2643 = vrcp.pop %v2368
  %v2644 = vmul.f32 1.0, %v2643
  %v2645 = vrcp.pop %v2369
  %v2646 = vmul.f32 1.0, %v2645
  %v2647 = vrcp.pop %v2370
  %v2648 = vmul.f32 1.0, %v2647
  %v2649 = vrcp.pop %v2371
  %v2650 = vmul.f32 1.0, %v2649
  %v2651 = vrcp.pop %v2372
  %v2652 = vmul.f32 1.0, %v2651
  %v2653 = vrcp.pop %v2373
  %v2654 = vmul.f32 1.0, %v2653
  %v2655 = vrcp.pop %v2374
  %v2656 = vmul.f32 1.0, %v2655
  %v2657 = vrcp.pop %v2375
  %v2658 = vmul.f32 1.0, %v2657
  %v2659 = vrcp.pop %v2376
  %v2660 = vmul.f32 1.0, %v2659
  %v2661 = vrcp.pop %v2377
  %v2662 = vmul.f32 1.0, %v2661
  %v2663 = vrcp.pop %v2378
  %v2664 = vmul.f32 1.0, %v2663
  %v2665 = vrcp.pop %v2379
  %v2666 = vmul.f32 1.0, %v2665
  %v2667 = vrcp.pop %v2380
  %v2668 = vmul.f32 1.0, %v2667
  %v2669 = vrcp.pop %v2381
  %v2670 = vmul.f32 1.0, %v2669
  %v2671 = vrcp.pop %v2382
  %v2672 = vmul.f32 1.0, %v2671
  %v2673 = vrcp.pop %v2383
  %v2674 = vmul.f32 1.0, %v2673
  %v2675 = vrcp.pop %v2384
  %v2676 = vmul.f32 1.0, %v2675
  %v2677 = vrcp.pop %v2385
  %v2678 = vmul.f32 1.0, %v2677
  %v2679 = vrcp.pop %v2386
  %v2680 = vmul.f32 1.0, %v2679
  %v2681 = vrcp.pop %v2387
  %v2682 = vmul.f32 1.0, %v2681
  %v2683 = vrcp.pop %v2388
  %v2684 = vmul.f32 1.0, %v2683
  %v2685 = vrcp.pop %v2389
  %v2686 = vmul.f32 1.0, %v2685
  %v2687 = vrcp.pop %v2390
  %v2688 = vmul.f32 1.0, %v2687
  %v2689 = vrcp.pop %v2391
  %v2690 = vmul.f32 1.0, %v2689
  %v2691 = vrcp.pop %v2392
  %v2692 = vmul.f32 1.0, %v2691
  %v2693 = vrcp.pop %v2393
  %v2694 = vmul.f32 1.0, %v2693
  %v2695 = vrcp.pop %v2394
  %v2696 = vmul.f32 1.0, %v2695
  %v2697 = vrcp.pop %v2395
  %v2698 = vmul.f32 1.0, %v2697
  %v2699 = vrcp.pop %v2396
  %v2700 = vmul.f32 1.0, %v2699
  %v2701 = vrcp.pop %v2397
  %v2702 = vmul.f32 1.0, %v2701
  %v2703 = vrcp.pop %v2398
  %v2704 = vmul.f32 1.0, %v2703
  %v2705 = vrcp.pop %v2399
  %v2706 = vmul.f32 1.0, %v2705
  %v2707 = vrcp.pop %v2400
  %v2708 = vmul.f32 1.0, %v2707
  %v2709 = vrcp.pop %v2401
  %v2710 = vmul.f32 1.0, %v2709
  %v2711 = vrcp.pop %v2402
  %v2712 = vmul.f32 1.0, %v2711
  %v2713 = vrcp.pop %v2403
  %v2714 = vmul.f32 1.0, %v2713
  %v2715 = vrcp.pop %v2404
  %v2716 = vmul.f32 1.0, %v2715
  %v2717 = vrcp.pop %v2405
  %v2718 = vmul.f32 1.0, %v2717
  %v2719 = vrcp.pop %v2406
  %v2720 = vmul.f32 1.0, %v2719
  %v2721 = vrcp.pop %v2407
  %v2722 = vmul.f32 1.0, %v2721
  %v2723 = vrcp.pop %v2408
  %v2724 = vmul.f32 1.0, %v2723
  %v2725 = vrcp.pop %v2409
  %v2726 = vmul.f32 1.0, %v2725
  %v2727 = vrcp.pop %v2410
  %v2728 = vmul.f32 1.0, %v2727
  %v2729 = vrcp.pop %v2411
  %v2730 = vmul.f32 1.0, %v2729
  %v2731 = vrcp.pop %v2412
  %v2732 = vmul.f32 1.0, %v2731
  %v2733 = vrcp.pop %v2413
  %v2734 = vmul.f32 1.0, %v2733
  %v2735 = vrcp.pop %v2414
  %v2736 = vmul.f32 1.0, %v2735
  %v2737 = vrcp.pop %v2415
  %v2738 = vmul.f32 1.0, %v2737
  %v2739 = vrcp.pop %v2416
  %v2740 = vmul.f32 1.0, %v2739
  %v2741 = vrcp.pop %v2417
  %v2742 = vmul.f32 1.0, %v2741
  %v2743 = vrcp.pop %v2418
  %v2744 = vmul.f32 1.0, %v2743
  %v2745 = vrcp.pop %v2419
  %v2746 = vmul.f32 1.0, %v2745
  %v2747 = vrcp.pop %v2420
  %v2748 = vmul.f32 1.0, %v2747
  %v2749 = vrcp.pop %v2421
  %v2750 = vmul.f32 1.0, %v2749
  %v2751 = vrcp.pop %v2422
  %v2752 = vmul.f32 1.0, %v2751
  %v2753 = vrcp.pop %v2423
  %v2754 = vmul.f32 1.0, %v2753
  %v2755 = vrcp.pop %v2424
  %v2756 = vmul.f32 1.0, %v2755
  %v2757 = vrcp.pop %v2425
  %v2758 = vmul.f32 1.0, %v2757
  %v2759 = vrcp.pop %v2426
  %v2760 = vmul.f32 1.0, %v2759
  %v2761 = vrcp.pop %v2427
  %v2762 = vmul.f32 1.0, %v2761
  %v2763 = vrcp.pop %v2428
  %v2764 = vmul.f32 1.0, %v2763
  %v2765 = vrcp.pop %v2429
  %v2766 = vmul.f32 1.0, %v2765
  %v2767 = vrcp.pop %v2430
  %v2768 = vmul.f32 1.0, %v2767
  %v2769 = vrcp.pop %v2431
  %v2770 = vmul.f32 1.0, %v2769
  %v2771 = vrcp.pop %v2432
  %v2772 = vmul.f32 1.0, %v2771
  %v2773 = vrcp.pop %v2433
  %v2774 = vmul.f32 1.0, %v2773
  %v2775 = vrcp.pop %v2434
  %v2776 = vmul.f32 1.0, %v2775
  %v2777 = vrcp.pop %v2435
  %v2778 = vmul.f32 1.0, %v2777
  %v2779 = vrcp.pop %v2436
  %v2780 = vmul.f32 1.0, %v2779
  %v2781 = vrcp.pop %v2437
  %v2782 = vmul.f32 1.0, %v2781
  %v2783 = vrcp.pop %v2438
  %v2784 = vmul.f32 1.0, %v2783
  %v2785 = vrcp.pop %v2439
  %v2786 = vmul.f32 1.0, %v2785
  %v2787 = vrcp.pop %v2440
  %v2788 = vmul.f32 1.0, %v2787
  %v2789 = vrcp.pop %v2441
  %v2790 = vmul.f32 1.0, %v2789
  %v2791 = vrcp.pop %v2442
  %v2792 = vmul.f32 1.0, %v2791
  %v2793 = vrcp.pop %v2443
  %v2794 = vmul.f32 1.0, %v2793
  %v2795 = vrcp.pop %v2444
  %v2796 = vmul.f32 1.0, %v2795
  %v2797 = vrcp.pop %v2445
  %v2798 = vmul.f32 1.0, %v2797
  %v2799 = vrcp.pop %v2446
  %v2800 = vmul.f32 1.0, %v2799
  %v2801 = vrcp.pop %v2447
  %v2802 = vmul.f32 1.0, %v2801
  %v2803 = vrcp.pop %v2448
  %v2804 = vmul.f32 1.0, %v2803
  %v2805 = vrcp.pop %v2449
  %v2806 = vmul.f32 1.0, %v2805
  %v2807 = vrcp.pop %v2450
  %v2808 = vmul.f32 1.0, %v2807
  %v2809 = vrcp.pop %v2451
  %v2810 = vmul.f32 1.0, %v2809
  %v2811 = vrcp.pop %v2452
  %v2812 = vmul.f32 1.0, %v2811
  %v2813 = vrcp.pop %v2453
  %v2814 = vmul.f32 1.0, %v2813
  %v2815 = vrcp.pop %v2454
  %v2816 = vmul.f32 1.0, %v2815
  %v2817 = vrcp.pop %v2455
  %v2818 = vmul.f32 1.0, %v2817
  %v2819 = vrcp.pop %v2456
  %v2820 = vmul.f32 1.0, %v2819
  %v2821 = vrcp.pop %v2457
  %v2822 = vmul.f32 1.0, %v2821
  %v2823 = vrcp.pop %v2458
  %v2824 = vmul.f32 1.0, %v2823
  %v2825 = vrcp.pop %v2459
  %v2826 = vmul.f32 1.0, %v2825
  %v2827 = vrcp.pop %v2460
  %v2828 = vmul.f32 1.0, %v2827
  %v2829 = vrcp.pop %v2461
  %v2830 = vmul.f32 1.0, %v2829
  %v2831 = vrcp.pop %v2462
  %v2832 = vmul.f32 1.0, %v2831
  %v2833 = vrcp.pop %v2463
  %v2834 = vmul.f32 1.0, %v2833
  %v2835 = vrcp.pop %v2464
  %v2836 = vmul.f32 1.0, %v2835
  %v2837 = vrcp.pop %v2465
  %v2838 = vmul.f32 1.0, %v2837
  %v2839 = vrcp.pop %v2466
  %v2840 = vmul.f32 1.0, %v2839
  %v2841 = vrcp.pop %v2467
  %v2842 = vmul.f32 1.0, %v2841
  %v2843 = vrcp.pop %v2468
  %v2844 = vmul.f32 1.0, %v2843
  %v2845 = vrcp.pop %v2469
  %v2846 = vmul.f32 1.0, %v2845
  %v2847 = vrcp.pop %v2470
  %v2848 = vmul.f32 1.0, %v2847
  %v2849 = vrcp.pop %v2471
  %v2850 = vmul.f32 1.0, %v2849
  %v2851 = vrcp.pop %v2472
  %v2852 = vmul.f32 1.0, %v2851
  %v2853 = vrcp.pop %v2473
  %v2854 = vmul.f32 1.0, %v2853
  %v2855 = vrcp.pop %v2474
  %v2856 = vmul.f32 1.0, %v2855
  %v2857 = vrcp.pop %v2475
  %v2858 = vmul.f32 1.0, %v2857
  %v2859 = vrcp.pop %v2476
  %v2860 = vmul.f32 1.0, %v2859
  %v2861 = vrcp.pop %v2477
  %v2862 = vmul.f32 1.0, %v2861
  %v2863 = vrcp.pop %v2478
  %v2864 = vmul.f32 1.0, %v2863
  %v2865 = vrcp.pop %v2479
  %v2866 = vmul.f32 1.0, %v2865
  %v2867 = vrcp.pop %v2480
  %v2868 = vmul.f32 1.0, %v2867
  %v2869 = vrcp.pop %v2481
  %v2870 = vmul.f32 1.0, %v2869
  %v2871 = vrcp.pop %v2482
  %v2872 = vmul.f32 1.0, %v2871
  %v2873 = vrcp.pop %v2483
  %v2874 = vmul.f32 1.0, %v2873
  %v2875 = vrcp.pop %v2484
  %v2876 = vmul.f32 1.0, %v2875
  %v2877 = vrcp.pop %v2485
  %v2878 = vmul.f32 1.0, %v2877
  %v2879 = vrcp.pop %v2486
  %v2880 = vmul.f32 1.0, %v2879
  %v2881 = vrcp.pop %v2487
  %v2882 = vmul.f32 1.0, %v2881
  %v2883 = vrcp.pop %v2488
  %v2884 = vmul.f32 1.0, %v2883
  %v2885 = vrcp.pop %v2489
  %v2886 = vmul.f32 1.0, %v2885
  %v2887 = vrcp.pop %v2490
  %v2888 = vmul.f32 1.0, %v2887
  %v2889 = vrcp.pop %v2491
  %v2890 = vmul.f32 1.0, %v2889
  %v2891 = vrcp.pop %v2492
  %v2892 = vmul.f32 1.0, %v2891
  %v2893 = vrcp.pop %v2493
  %v2894 = vmul.f32 1.0, %v2893
  %v2895 = vrcp.pop %v2494
  %v2896 = vmul.f32 1.0, %v2895
  %v2897 = vrcp.pop %v2495
  %v2898 = vmul.f32 1.0, %v2897
  %v2899 = vrcp.pop %v2496
  %v2900 = vmul.f32 1.0, %v2899
  %v2901 = vrcp.pop %v2497
  %v2902 = vmul.f32 1.0, %v2901
  %v2903 = vrcp.pop %v2498
  %v2904 = vmul.f32 1.0, %v2903
  %v2905 = vrcp.pop %v2499
  %v2906 = vmul.f32 1.0, %v2905
  %v2907 = vrcp.pop %v2500
  %v2908 = vmul.f32 1.0, %v2907
  %v2909 = vrcp.pop %v2501
  %v2910 = vmul.f32 1.0, %v2909
  %v2911 = vrcp.pop %v2502
  %v2912 = vmul.f32 1.0, %v2911
  %v2913 = vrcp.pop %v2503
  %v2914 = vmul.f32 1.0, %v2913
  %v2915 = vrcp.pop %v2504
  %v2916 = vmul.f32 1.0, %v2915
  %v2917 = vrcp.pop %v2505
  %v2918 = vmul.f32 1.0, %v2917
  %v2919 = vrcp.pop %v2506
  %v2920 = vmul.f32 1.0, %v2919
  %v2921 = vrcp.pop %v2507
  %v2922 = vmul.f32 1.0, %v2921
  %v2923 = vrcp.pop %v2508
  %v2924 = vmul.f32 1.0, %v2923
  %v2925 = vrcp.pop %v2509
  %v2926 = vmul.f32 1.0, %v2925
  %v2927 = vrcp.pop %v2510
  %v2928 = vmul.f32 1.0, %v2927
  %v2929 = vrcp.pop %v2511
  %v2930 = vmul.f32 1.0, %v2929
  %v2931 = vrcp.pop %v2512
  %v2932 = vmul.f32 1.0, %v2931
  %v2933 = vrcp.pop %v2513
  %v2934 = vmul.f32 1.0, %v2933
  %v2935 = vrcp.pop %v2514
  %v2936 = vmul.f32 1.0, %v2935
  %v2937 = vrcp.pop %v2515
  %v2938 = vmul.f32 1.0, %v2937
  %v2939 = vrcp.pop %v2516
  %v2940 = vmul.f32 1.0, %v2939
  %v2941 = vrcp.pop %v2517
  %v2942 = vmul.f32 1.0, %v2941
  %v2943 = vrcp.pop %v2518
  %v2944 = vmul.f32 1.0, %v2943
  %v2945 = vrcp.pop %v2519
  %v2946 = vmul.f32 1.0, %v2945
  %v2947 = vrcp.pop %v2520
  %v2948 = vmul.f32 1.0, %v2947
  %v2949 = vrcp.pop %v2521
  %v2950 = vmul.f32 1.0, %v2949
  %v2951 = vrcp.pop %v2522
  %v2952 = vmul.f32 1.0, %v2951
  %v2953 = vrcp.pop %v2523
  %v2954 = vmul.f32 1.0, %v2953
  %v2955 = vrcp.pop %v2524
  %v2956 = vmul.f32 1.0, %v2955
  %v2957 = vrcp.pop %v2525
  %v2958 = vmul.f32 1.0, %v2957
  %v2959 = vrcp.pop %v2526
  %v2960 = vmul.f32 1.0, %v2959
  %v2961 = vrcp.pop %v2527
  %v2962 = vmul.f32 1.0, %v2961
  %v2963 = vrcp.pop %v2528
  %v2964 = vmul.f32 1.0, %v2963
  %v2965 = vrcp.pop %v2529
  %v2966 = vmul.f32 1.0, %v2965
  %v2967 = vrcp.pop %v2530
  %v2968 = vmul.f32 1.0, %v2967
  %v2969 = vrcp.pop %v2531
  %v2970 = vmul.f32 1.0, %v2969
  %v2971 = vrcp.pop %v2532
  %v2972 = vmul.f32 1.0, %v2971
  %v2973 = vrcp.pop %v2533
  %v2974 = vmul.f32 1.0, %v2973
  %v2975 = vrcp.pop %v2534
  %v2976 = vmul.f32 1.0, %v2975
  %v2977 = vrcp.pop %v2535
  %v2978 = vmul.f32 1.0, %v2977
  %v2979 = vrcp.pop %v2536
  %v2980 = vmul.f32 1.0, %v2979
  %v2981 = vrcp.pop %v2537
  %v2982 = vmul.f32 1.0, %v2981
  %v2983 = vrcp.pop %v2538
  %v2984 = vmul.f32 1.0, %v2983
  %v2985 = vrcp.pop %v2539
  %v2986 = vmul.f32 1.0, %v2985
  %v2987 = vrcp.pop %v2540
  %v2988 = vmul.f32 1.0, %v2987
  %v2989 = vrcp.pop %v2541
  %v2990 = vmul.f32 1.0, %v2989
  %v2991 = vrcp.pop %v2542
  %v2992 = vmul.f32 1.0, %v2991
  %v2993 = vrcp.pop %v2543
  %v2994 = vmul.f32 1.0, %v2993
  %v2995 = vrcp.pop %v2544
  %v2996 = vmul.f32 1.0, %v2995
  %v2997 = vrcp.pop %v2545
  %v2998 = vmul.f32 1.0, %v2997
  %v2999 = vrcp.pop %v2546
  %v3000 = vmul.f32 1.0, %v2999
  %v3001 = vrcp.pop %v2547
  %v3002 = vmul.f32 1.0, %v3001
  %v3003 = vrcp.pop %v2548
  %v3004 = vmul.f32 1.0, %v3003
  %v3005 = vrcp.pop %v2549
  %v3006 = vmul.f32 1.0, %v3005
  %v3007 = vrcp.pop %v2550
  %v3008 = vmul.f32 1.0, %v3007
  %v3009 = vrcp.pop %v2551
  %v3010 = vmul.f32 1.0, %v3009
  %v3011 = vrcp.pop %v2552
  %v3012 = vmul.f32 1.0, %v3011
  %v3013 = vrcp.pop %v2553
  %v3014 = vmul.f32 1.0, %v3013
  %v3015 = vrcp.pop %v2554
  %v3016 = vmul.f32 1.0, %v3015
  %v3017 = vrcp.pop %v2555
  %v3018 = vmul.f32 1.0, %v3017
  %v3019 = vrcp.pop %v2556
  %v3020 = vmul.f32 1.0, %v3019
  %v3021 = vrcp.pop %v2557
  %v3022 = vmul.f32 1.0, %v3021
  %v3023 = vrcp.pop %v2558
  %v3024 = vmul.f32 1.0, %v3023
  %v3025 = vrcp.pop %v2559
  %v3026 = vmul.f32 1.0, %v3025
  %v3027 = vrcp.pop %v2560
  %v3028 = vmul.f32 1.0, %v3027
  %v3029 = vrcp.pop %v2561
  %v3030 = vmul.f32 1.0, %v3029
  %v3031 = vrcp.pop %v2562
  %v3032 = vmul.f32 1.0, %v3031
  %v3033 = vrcp.pop %v2563
  %v3034 = vmul.f32 1.0, %v3033
  %v3035 = vrcp.pop %v2564
  %v3036 = vmul.f32 1.0, %v3035
  %v3037 = vrcp.pop %v2565
  %v3038 = vmul.f32 1.0, %v3037
  %v3039 = vrcp.pop %v2566
  %v3040 = vmul.f32 1.0, %v3039
  %v3041 = vrcp.pop %v2567
  %v3042 = vmul.f32 1.0, %v3041
  %v3043 = vrcp.pop %v2568
  %v3044 = vmul.f32 1.0, %v3043
  %v3045 = vrcp.pop %v2569
  %v3046 = vmul.f32 1.0, %v3045
  %v3047 = vrcp.pop %v2570
  %v3048 = vmul.f32 1.0, %v3047
  %v3049 = vrcp.pop %v2571
  %v3050 = vmul.f32 1.0, %v3049
  %v3051 = vrcp.pop %v2572
  %v3052 = vmul.f32 1.0, %v3051
  %v3053 = vrcp.pop %v2573
  %v3054 = vmul.f32 1.0, %v3053
  %v3055 = vrcp.pop %v2574
  %v3056 = vmul.f32 1.0, %v3055
  %v3057 = vrcp.pop %v2575
  %v3058 = vmul.f32 1.0, %v3057
  %v3059 = vrcp.pop %v2576
  %v3060 = vmul.f32 1.0, %v3059
  %v3061 = vrcp.pop %v2577
  %v3062 = vmul.f32 1.0, %v3061
  %v3063 = vrcp.pop %v2578
  %v3064 = vmul.f32 1.0, %v3063
  %v3065 = vrcp.pop %v2579
  %v3066 = vmul.f32 1.0, %v3065
  %v3067 = vrcp.pop %v2580
  %v3068 = vmul.f32 1.0, %v3067
  %v3069 = vrcp.pop %v2581
  %v3070 = vmul.f32 1.0, %v3069
  %v3071 = vrcp.pop %v2582
  %v3072 = vmul.f32 1.0, %v3071
  %v3073 = vrcp.pop %v2583
  %v3074 = vmul.f32 1.0, %v3073
  %v3075 = vrcp.pop %v2584
  %v3076 = vmul.f32 1.0, %v3075
  %v3077 = vrcp.pop %v2585
  %v3078 = vmul.f32 1.0, %v3077
  %v3079 = vrcp.pop %v2586
  %v3080 = vmul.f32 1.0, %v3079
  %v3081 = vrcp.pop %v2587
  %v3082 = vmul.f32 1.0, %v3081
  %v3083 = vrcp.pop %v2588
  %v3084 = vmul.f32 1.0, %v3083
  %v3085 = vrcp.pop %v2589
  %v3086 = vmul.f32 1.0, %v3085
  %v3087 = vrcp.pop %v2590
  %v3088 = vmul.f32 1.0, %v3087
  %v3089 = vrcp.pop %v2591
  %v3090 = vmul.f32 1.0, %v3089
  %v3091 = vrcp.pop %v2592
  %v3092 = vmul.f32 1.0, %v3091
  %v3093 = vrcp.pop %v2593
  %v3094 = vmul.f32 1.0, %v3093
  %v3095 = vrcp.pop %v2594
  %v3096 = vmul.f32 1.0, %v3095
  %v3097 = vrcp.pop %v2595
  %v3098 = vmul.f32 1.0, %v3097
  %v3099 = vrcp.pop %v2596
  %v3100 = vmul.f32 1.0, %v3099
  %v3101 = vrcp.pop %v2597
  %v3102 = vmul.f32 1.0, %v3101
  %v3103 = vrcp.pop %v2598
  %v3104 = vmul.f32 1.0, %v3103
  %v3105 = vrcp.pop %v2599
  %v3106 = vmul.f32 1.0, %v3105
  %v3107 = vrcp.pop %v2600
  %v3108 = vmul.f32 1.0, %v3107
  %v3109 = vrcp.pop %v2601
  %v3110 = vmul.f32 1.0, %v3109
  %v3111 = vrcp.pop %v2602
  %v3112 = vmul.f32 1.0, %v3111
  %v3113 = vrcp.pop %v2603
  %v3114 = vmul.f32 1.0, %v3113
  %v3115 = vrcp.pop %v2604
  %v3116 = vmul.f32 1.0, %v3115
  %v3117 = vrcp.pop %v2605
  %v3118 = vmul.f32 1.0, %v3117
  %v3119 = vrcp.pop %v2606
  %v3120 = vmul.f32 1.0, %v3119
  %v3121 = vrcp.pop %v2607
  %v3122 = vmul.f32 1.0, %v3121
  %v3123 = vrcp.pop %v2608
  %v3124 = vmul.f32 1.0, %v3123
  %v3125 = vld [vmem:[%s2] sm:$0xff]
  %v3126 = vld [vmem:[%s2 + $0x8] sm:$0xff]
  %v3127 = vld [vmem:[%s2 + $0x10] sm:$0xff]
  %v3128 = vld [vmem:[%s2 + $0x18] sm:$0xff]
  %v3129 = vld [vmem:[%s2 + $0x20] sm:$0xff]
  %v3130 = vld [vmem:[%s2 + $0x28] sm:$0xff]
  %v3131 = vld [vmem:[%s2 + $0x30] sm:$0xff]
  %v3132 = vld [vmem:[%s2 + $0x38] sm:$0xff]
  %v3133 = vld [vmem:[%s2 + $0x40] sm:$0xff]
  %v3134 = vld [vmem:[%s2 + $0x48] sm:$0xff]
  %v3135 = vld [vmem:[%s2 + $0x50] sm:$0xff]
  %v3136 = vld [vmem:[%s2 + $0x58] sm:$0xff]
  %v3137 = vld [vmem:[%s2 + $0x60] sm:$0xff]
  %v3138 = vld [vmem:[%s2 + $0x68] sm:$0xff]
  %v3139 = vld [vmem:[%s2 + $0x70] sm:$0xff]
  %v3140 = vld [vmem:[%s2 + $0x78] sm:$0xff]
  %v3141 = vld [vmem:[%s2 + $0x80] sm:$0xff]
  %v3142 = vld [vmem:[%s2 + $0x88] sm:$0xff]
  %v3143 = vld [vmem:[%s2 + $0x90] sm:$0xff]
  %v3144 = vld [vmem:[%s2 + $0x98] sm:$0xff]
  %v3145 = vld [vmem:[%s2 + $0xa0] sm:$0xff]
  %v3146 = vld [vmem:[%s2 + $0xa8] sm:$0xff]
  %v3147 = vld [vmem:[%s2 + $0xb0] sm:$0xff]
  %v3148 = vld [vmem:[%s2 + $0xb8] sm:$0xff]
  %v3149 = vld [vmem:[%s2 + $0xc0] sm:$0xff]
  %v3150 = vld [vmem:[%s2 + $0xc8] sm:$0xff]
  %v3151 = vld [vmem:[%s2 + $0xd0] sm:$0xff]
  %v3152 = vld [vmem:[%s2 + $0xd8] sm:$0xff]
  %v3153 = vld [vmem:[%s2 + $0xe0] sm:$0xff]
  %v3154 = vld [vmem:[%s2 + $0xe8] sm:$0xff]
  %v3155 = vld [vmem:[%s2 + $0xf0] sm:$0xff]
  %v3156 = vld [vmem:[%s2 + $0xf8] sm:$0xff]
  %v3157 = vld [vmem:[%s2 + $0x100] sm:$0xff]
  %v3158 = vld [vmem:[%s2 + $0x108] sm:$0xff]
  %v3159 = vld [vmem:[%s2 + $0x110] sm:$0xff]
  %v3160 = vld [vmem:[%s2 + $0x118] sm:$0xff]
  %v3161 = vld [vmem:[%s2 + $0x120] sm:$0xff]
  %v3162 = vld [vmem:[%s2 + $0x128] sm:$0xff]
  %v3163 = vld [vmem:[%s2 + $0x130] sm:$0xff]
  %v3164 = vld [vmem:[%s2 + $0x138] sm:$0xff]
  %v3165 = vld [vmem:[%s2 + $0x140] sm:$0xff]
  %v3166 = vld [vmem:[%s2 + $0x148] sm:$0xff]
  %v3167 = vld [vmem:[%s2 + $0x150] sm:$0xff]
  %v3168 = vld [vmem:[%s2 + $0x158] sm:$0xff]
  %v3169 = vld [vmem:[%s2 + $0x160] sm:$0xff]
  %v3170 = vld [vmem:[%s2 + $0x168] sm:$0xff]
  %v3171 = vld [vmem:[%s2 + $0x170] sm:$0xff]
  %v3172 = vld [vmem:[%s2 + $0x178] sm:$0xff]
  %v3173 = vld [vmem:[%s2 + $0x180] sm:$0xff]
  %v3174 = vld [vmem:[%s2 + $0x188] sm:$0xff]
  %v3175 = vld [vmem:[%s2 + $0x190] sm:$0xff]
  %v3176 = vld [vmem:[%s2 + $0x198] sm:$0xff]
  %v3177 = vld [vmem:[%s2 + $0x1a0] sm:$0xff]
  %v3178 = vld [vmem:[%s2 + $0x1a8] sm:$0xff]
  %v3179 = vld [vmem:[%s2 + $0x1b0] sm:$0xff]
  %v3180 = vld [vmem:[%s2 + $0x1b8] sm:$0xff]
  %v3181 = vld [vmem:[%s2 + $0x1c0] sm:$0xff]
  %v3182 = vld [vmem:[%s2 + $0x1c8] sm:$0xff]
  %v3183 = vld [vmem:[%s2 + $0x1d0] sm:$0xff]
  %v3184 = vld [vmem:[%s2 + $0x1d8] sm:$0xff]
  %v3185 = vld [vmem:[%s2 + $0x1e0] sm:$0xff]
  %v3186 = vld [vmem:[%s2 + $0x1e8] sm:$0xff]
  %v3187 = vld [vmem:[%s2 + $0x1f0] sm:$0xff]
  %v3188 = vld [vmem:[%s2 + $0x1f8] sm:$0xff]
  %v3189 = vld [vmem:[%s2 + $0x200] sm:$0xff]
  %v3190 = vld [vmem:[%s2 + $0x208] sm:$0xff]
  %v3191 = vld [vmem:[%s2 + $0x210] sm:$0xff]
  %v3192 = vld [vmem:[%s2 + $0x218] sm:$0xff]
  %v3193 = vld [vmem:[%s2 + $0x220] sm:$0xff]
  %v3194 = vld [vmem:[%s2 + $0x228] sm:$0xff]
  %v3195 = vld [vmem:[%s2 + $0x230] sm:$0xff]
  %v3196 = vld [vmem:[%s2 + $0x238] sm:$0xff]
  %v3197 = vld [vmem:[%s2 + $0x240] sm:$0xff]
  %v3198 = vld [vmem:[%s2 + $0x248] sm:$0xff]
  %v3199 = vld [vmem:[%s2 + $0x250] sm:$0xff]
  %v3200 = vld [vmem:[%s2 + $0x258] sm:$0xff]
  %v3201 = vld [vmem:[%s2 + $0x260] sm:$0xff]
  %v3202 = vld [vmem:[%s2 + $0x268] sm:$0xff]
  %v3203 = vld [vmem:[%s2 + $0x270] sm:$0xff]
  %v3204 = vld [vmem:[%s2 + $0x278] sm:$0xff]
  %v3205 = vld [vmem:[%s2 + $0x280] sm:$0xff]
  %v3206 = vld [vmem:[%s2 + $0x288] sm:$0xff]
  %v3207 = vld [vmem:[%s2 + $0x290] sm:$0xff]
  %v3208 = vld [vmem:[%s2 + $0x298] sm:$0xff]
  %v3209 = vld [vmem:[%s2 + $0x2a0] sm:$0xff]
  %v3210 = vld [vmem:[%s2 + $0x2a8] sm:$0xff]
  %v3211 = vld [vmem:[%s2 + $0x2b0] sm:$0xff]
  %v3212 = vld [vmem:[%s2 + $0x2b8] sm:$0xff]
  %v3213 = vld [vmem:[%s2 + $0x2c0] sm:$0xff]
  %v3214 = vld [vmem:[%s2 + $0x2c8] sm:$0xff]
  %v3215 = vld [vmem:[%s2 + $0x2d0] sm:$0xff]
  %v3216 = vld [vmem:[%s2 + $0x2d8] sm:$0xff]
  %v3217 = vld [vmem:[%s2 + $0x2e0] sm:$0xff]
  %v3218 = vld [vmem:[%s2 + $0x2e8] sm:$0xff]
  %v3219 = vld [vmem:[%s2 + $0x2f0] sm:$0xff]
  %v3220 = vld [vmem:[%s2 + $0x2f8] sm:$0xff]
  %v3221 = vld [vmem:[%s2 + $0x300] sm:$0xff]
  %v3222 = vld [vmem:[%s2 + $0x308] sm:$0xff]
  %v3223 = vld [vmem:[%s2 + $0x310] sm:$0xff]
  %v3224 = vld [vmem:[%s2 + $0x318] sm:$0xff]
  %v3225 = vld [vmem:[%s2 + $0x320] sm:$0xff]
  %v3226 = vld [vmem:[%s2 + $0x328] sm:$0xff]
  %v3227 = vld [vmem:[%s2 + $0x330] sm:$0xff]
  %v3228 = vld [vmem:[%s2 + $0x338] sm:$0xff]
  %v3229 = vld [vmem:[%s2 + $0x340] sm:$0xff]
  %v3230 = vld [vmem:[%s2 + $0x348] sm:$0xff]
  %v3231 = vld [vmem:[%s2 + $0x350] sm:$0xff]
  %v3232 = vld [vmem:[%s2 + $0x358] sm:$0xff]
  %v3233 = vld [vmem:[%s2 + $0x360] sm:$0xff]
  %v3234 = vld [vmem:[%s2 + $0x368] sm:$0xff]
  %v3235 = vld [vmem:[%s2 + $0x370] sm:$0xff]
  %v3236 = vld [vmem:[%s2 + $0x378] sm:$0xff]
  %v3237 = vld [vmem:[%s2 + $0x380] sm:$0xff]
  %v3238 = vld [vmem:[%s2 + $0x388] sm:$0xff]
  %v3239 = vld [vmem:[%s2 + $0x390] sm:$0xff]
  %v3240 = vld [vmem:[%s2 + $0x398] sm:$0xff]
  %v3241 = vld [vmem:[%s2 + $0x3a0] sm:$0xff]
  %v3242 = vld [vmem:[%s2 + $0x3a8] sm:$0xff]
  %v3243 = vld [vmem:[%s2 + $0x3b0] sm:$0xff]
  %v3244 = vld [vmem:[%s2 + $0x3b8] sm:$0xff]
  %v3245 = vld [vmem:[%s2 + $0x3c0] sm:$0xff]
  %v3246 = vld [vmem:[%s2 + $0x3c8] sm:$0xff]
  %v3247 = vld [vmem:[%s2 + $0x3d0] sm:$0xff]
  %v3248 = vld [vmem:[%s2 + $0x3d8] sm:$0xff]
  %v3249 = vld [vmem:[%s2 + $0x3e0] sm:$0xff]
  %v3250 = vld [vmem:[%s2 + $0x3e8] sm:$0xff]
  %v3251 = vld [vmem:[%s2 + $0x3f0] sm:$0xff]
  %v3252 = vld [vmem:[%s2 + $0x3f8] sm:$0xff]
  %v3253 = vld [vmem:[%s2 + $0x400] sm:$0xff]
  %v3254 = vld [vmem:[%s2 + $0x408] sm:$0xff]
  %v3255 = vld [vmem:[%s2 + $0x410] sm:$0xff]
  %v3256 = vld [vmem:[%s2 + $0x418] sm:$0xff]
  %v3257 = vld [vmem:[%s2 + $0x420] sm:$0xff]
  %v3258 = vld [vmem:[%s2 + $0x428] sm:$0xff]
  %v3259 = vld [vmem:[%s2 + $0x430] sm:$0xff]
  %v3260 = vld [vmem:[%s2 + $0x438] sm:$0xff]
  %v3261 = vld [vmem:[%s2 + $0x440] sm:$0xff]
  %v3262 = vld [vmem:[%s2 + $0x448] sm:$0xff]
  %v3263 = vld [vmem:[%s2 + $0x450] sm:$0xff]
  %v3264 = vld [vmem:[%s2 + $0x458] sm:$0xff]
  %v3265 = vld [vmem:[%s2 + $0x460] sm:$0xff]
  %v3266 = vld [vmem:[%s2 + $0x468] sm:$0xff]
  %v3267 = vld [vmem:[%s2 + $0x470] sm:$0xff]
  %v3268 = vld [vmem:[%s2 + $0x478] sm:$0xff]
  %v3269 = vld [vmem:[%s2 + $0x480] sm:$0xff]
  %v3270 = vld [vmem:[%s2 + $0x488] sm:$0xff]
  %v3271 = vld [vmem:[%s2 + $0x490] sm:$0xff]
  %v3272 = vld [vmem:[%s2 + $0x498] sm:$0xff]
  %v3273 = vld [vmem:[%s2 + $0x4a0] sm:$0xff]
  %v3274 = vld [vmem:[%s2 + $0x4a8] sm:$0xff]
  %v3275 = vld [vmem:[%s2 + $0x4b0] sm:$0xff]
  %v3276 = vld [vmem:[%s2 + $0x4b8] sm:$0xff]
  %v3277 = vld [vmem:[%s2 + $0x4c0] sm:$0xff]
  %v3278 = vld [vmem:[%s2 + $0x4c8] sm:$0xff]
  %v3279 = vld [vmem:[%s2 + $0x4d0] sm:$0xff]
  %v3280 = vld [vmem:[%s2 + $0x4d8] sm:$0xff]
  %v3281 = vld [vmem:[%s2 + $0x4e0] sm:$0xff]
  %v3282 = vld [vmem:[%s2 + $0x4e8] sm:$0xff]
  %v3283 = vld [vmem:[%s2 + $0x4f0] sm:$0xff]
  %v3284 = vld [vmem:[%s2 + $0x4f8] sm:$0xff]
  %v3285 = vld [vmem:[%s2 + $0x500] sm:$0xff]
  %v3286 = vld [vmem:[%s2 + $0x508] sm:$0xff]
  %v3287 = vld [vmem:[%s2 + $0x510] sm:$0xff]
  %v3288 = vld [vmem:[%s2 + $0x518] sm:$0xff]
  %v3289 = vld [vmem:[%s2 + $0x520] sm:$0xff]
  %v3290 = vld [vmem:[%s2 + $0x528] sm:$0xff]
  %v3291 = vld [vmem:[%s2 + $0x530] sm:$0xff]
  %v3292 = vld [vmem:[%s2 + $0x538] sm:$0xff]
  %v3293 = vld [vmem:[%s2 + $0x540] sm:$0xff]
  %v3294 = vld [vmem:[%s2 + $0x548] sm:$0xff]
  %v3295 = vld [vmem:[%s2 + $0x550] sm:$0xff]
  %v3296 = vld [vmem:[%s2 + $0x558] sm:$0xff]
  %v3297 = vld [vmem:[%s2 + $0x560] sm:$0xff]
  %v3298 = vld [vmem:[%s2 + $0x568] sm:$0xff]
  %v3299 = vld [vmem:[%s2 + $0x570] sm:$0xff]
  %v3300 = vld [vmem:[%s2 + $0x578] sm:$0xff]
  %v3301 = vld [vmem:[%s2 + $0x580] sm:$0xff]
  %v3302 = vld [vmem:[%s2 + $0x588] sm:$0xff]
  %v3303 = vld [vmem:[%s2 + $0x590] sm:$0xff]
  %v3304 = vld [vmem:[%s2 + $0x598] sm:$0xff]
  %v3305 = vld [vmem:[%s2 + $0x5a0] sm:$0xff]
  %v3306 = vld [vmem:[%s2 + $0x5a8] sm:$0xff]
  %v3307 = vld [vmem:[%s2 + $0x5b0] sm:$0xff]
  %v3308 = vld [vmem:[%s2 + $0x5b8] sm:$0xff]
  %v3309 = vld [vmem:[%s2 + $0x5c0] sm:$0xff]
  %v3310 = vld [vmem:[%s2 + $0x5c8] sm:$0xff]
  %v3311 = vld [vmem:[%s2 + $0x5d0] sm:$0xff]
  %v3312 = vld [vmem:[%s2 + $0x5d8] sm:$0xff]
  %v3313 = vld [vmem:[%s2 + $0x5e0] sm:$0xff]
  %v3314 = vld [vmem:[%s2 + $0x5e8] sm:$0xff]
  %v3315 = vld [vmem:[%s2 + $0x5f0] sm:$0xff]
  %v3316 = vld [vmem:[%s2 + $0x5f8] sm:$0xff]
  %v3317 = vld [vmem:[%s2 + $0x600] sm:$0xff]
  %v3318 = vld [vmem:[%s2 + $0x608] sm:$0xff]
  %v3319 = vld [vmem:[%s2 + $0x610] sm:$0xff]
  %v3320 = vld [vmem:[%s2 + $0x618] sm:$0xff]
  %v3321 = vld [vmem:[%s2 + $0x620] sm:$0xff]
  %v3322 = vld [vmem:[%s2 + $0x628] sm:$0xff]
  %v3323 = vld [vmem:[%s2 + $0x630] sm:$0xff]
  %v3324 = vld [vmem:[%s2 + $0x638] sm:$0xff]
  %v3325 = vld [vmem:[%s2 + $0x640] sm:$0xff]
  %v3326 = vld [vmem:[%s2 + $0x648] sm:$0xff]
  %v3327 = vld [vmem:[%s2 + $0x650] sm:$0xff]
  %v3328 = vld [vmem:[%s2 + $0x658] sm:$0xff]
  %v3329 = vld [vmem:[%s2 + $0x660] sm:$0xff]
  %v3330 = vld [vmem:[%s2 + $0x668] sm:$0xff]
  %v3331 = vld [vmem:[%s2 + $0x670] sm:$0xff]
  %v3332 = vld [vmem:[%s2 + $0x678] sm:$0xff]
  %v3333 = vld [vmem:[%s2 + $0x680] sm:$0xff]
  %v3334 = vld [vmem:[%s2 + $0x688] sm:$0xff]
  %v3335 = vld [vmem:[%s2 + $0x690] sm:$0xff]
  %v3336 = vld [vmem:[%s2 + $0x698] sm:$0xff]
  %v3337 = vld [vmem:[%s2 + $0x6a0] sm:$0xff]
  %v3338 = vld [vmem:[%s2 + $0x6a8] sm:$0xff]
  %v3339 = vld [vmem:[%s2 + $0x6b0] sm:$0xff]
  %v3340 = vld [vmem:[%s2 + $0x6b8] sm:$0xff]
  %v3341 = vld [vmem:[%s2 + $0x6c0] sm:$0xff]
  %v3342 = vld [vmem:[%s2 + $0x6c8] sm:$0xff]
  %v3343 = vld [vmem:[%s2 + $0x6d0] sm:$0xff]
  %v3344 = vld [vmem:[%s2 + $0x6d8] sm:$0xff]
  %v3345 = vld [vmem:[%s2 + $0x6e0] sm:$0xff]
  %v3346 = vld [vmem:[%s2 + $0x6e8] sm:$0xff]
  %v3347 = vld [vmem:[%s2 + $0x6f0] sm:$0xff]
  %v3348 = vld [vmem:[%s2 + $0x6f8] sm:$0xff]
  %v3349 = vld [vmem:[%s2 + $0x700] sm:$0xff]
  %v3350 = vld [vmem:[%s2 + $0x708] sm:$0xff]
  %v3351 = vld [vmem:[%s2 + $0x710] sm:$0xff]
  %v3352 = vld [vmem:[%s2 + $0x718] sm:$0xff]
  %v3353 = vld [vmem:[%s2 + $0x720] sm:$0xff]
  %v3354 = vld [vmem:[%s2 + $0x728] sm:$0xff]
  %v3355 = vld [vmem:[%s2 + $0x730] sm:$0xff]
  %v3356 = vld [vmem:[%s2 + $0x738] sm:$0xff]
  %v3357 = vld [vmem:[%s2 + $0x740] sm:$0xff]
  %v3358 = vld [vmem:[%s2 + $0x748] sm:$0xff]
  %v3359 = vld [vmem:[%s2 + $0x750] sm:$0xff]
  %v3360 = vld [vmem:[%s2 + $0x758] sm:$0xff]
  %v3361 = vld [vmem:[%s2 + $0x760] sm:$0xff]
  %v3362 = vld [vmem:[%s2 + $0x768] sm:$0xff]
  %v3363 = vld [vmem:[%s2 + $0x770] sm:$0xff]
  %v3364 = vld [vmem:[%s2 + $0x778] sm:$0xff]
  %v3365 = vld [vmem:[%s2 + $0x780] sm:$0xff]
  %v3366 = vld [vmem:[%s2 + $0x788] sm:$0xff]
  %v3367 = vld [vmem:[%s2 + $0x790] sm:$0xff]
  %v3368 = vld [vmem:[%s2 + $0x798] sm:$0xff]
  %v3369 = vld [vmem:[%s2 + $0x7a0] sm:$0xff]
  %v3370 = vld [vmem:[%s2 + $0x7a8] sm:$0xff]
  %v3371 = vld [vmem:[%s2 + $0x7b0] sm:$0xff]
  %v3372 = vld [vmem:[%s2 + $0x7b8] sm:$0xff]
  %v3373 = vld [vmem:[%s2 + $0x7c0] sm:$0xff]
  %v3374 = vld [vmem:[%s2 + $0x7c8] sm:$0xff]
  %v3375 = vld [vmem:[%s2 + $0x7d0] sm:$0xff]
  %v3376 = vld [vmem:[%s2 + $0x7d8] sm:$0xff]
  %v3377 = vld [vmem:[%s2 + $0x7e0] sm:$0xff]
  %v3378 = vld [vmem:[%s2 + $0x7e8] sm:$0xff]
  %v3379 = vld [vmem:[%s2 + $0x7f0] sm:$0xff]
  %v3380 = vld [vmem:[%s2 + $0x7f8] sm:$0xff]
  %v3381 = vld [vmem:[%s2 + $0x800] sm:$0xff]
  %v3382 = vld [vmem:[%s2 + $0x808] sm:$0xff]
  %v3383 = vmul.f32 %v3125, %v2610
  %v3384 = vmul.f32 %v3126, %v2612
  %v3385 = vmul.f32 %v3127, %v2614
  %v3386 = vmul.f32 %v3128, %v2616
  %v3387 = vmul.f32 %v3129, %v2618
  %v3388 = vmul.f32 %v3130, %v2620
  %v3389 = vmul.f32 %v3131, %v2622
  %v3390 = vmul.f32 %v3132, %v2624
  %v3391 = vmul.f32 %v3133, %v2626
  %v3392 = vmul.f32 %v3134, %v2628
  %v3393 = vmul.f32 %v3135, %v2630
  %v3394 = vmul.f32 %v3136, %v2632
  %v3395 = vmul.f32 %v3137, %v2634
  %v3396 = vmul.f32 %v3138, %v2636
  %v3397 = vmul.f32 %v3139, %v2638
  %v3398 = vmul.f32 %v3140, %v2640
  %v3399 = vmul.f32 %v3141, %v2642
  %v3400 = vmul.f32 %v3142, %v2644
  %v3401 = vmul.f32 %v3143, %v2646
  %v3402 = vmul.f32 %v3144, %v2648
  %v3403 = vmul.f32 %v3145, %v2650
  %v3404 = vmul.f32 %v3146, %v2652
  %v3405 = vmul.f32 %v3147, %v2654
  %v3406 = vmul.f32 %v3148, %v2656
  %v3407 = vmul.f32 %v3149, %v2658
  %v3408 = vmul.f32 %v3150, %v2660
  %v3409 = vmul.f32 %v3151, %v2662
  %v3410 = vmul.f32 %v3152, %v2664
  %v3411 = vmul.f32 %v3153, %v2666
  %v3412 = vmul.f32 %v3154, %v2668
  %v3413 = vmul.f32 %v3155, %v2670
  %v3414 = vmul.f32 %v3156, %v2672
  %v3415 = vmul.f32 %v3157, %v2674
  %v3416 = vmul.f32 %v3158, %v2676
  %v3417 = vmul.f32 %v3159, %v2678
  %v3418 = vmul.f32 %v3160, %v2680
  %v3419 = vmul.f32 %v3161, %v2682
  %v3420 = vmul.f32 %v3162, %v2684
  %v3421 = vmul.f32 %v3163, %v2686
  %v3422 = vmul.f32 %v3164, %v2688
  %v3423 = vmul.f32 %v3165, %v2690
  %v3424 = vmul.f32 %v3166, %v2692
  %v3425 = vmul.f32 %v3167, %v2694
  %v3426 = vmul.f32 %v3168, %v2696
  %v3427 = vmul.f32 %v3169, %v2698
  %v3428 = vmul.f32 %v3170, %v2700
  %v3429 = vmul.f32 %v3171, %v2702
  %v3430 = vmul.f32 %v3172, %v2704
  %v3431 = vmul.f32 %v3173, %v2706
  %v3432 = vmul.f32 %v3174, %v2708
  %v3433 = vmul.f32 %v3175, %v2710
  %v3434 = vmul.f32 %v3176, %v2712
  %v3435 = vmul.f32 %v3177, %v2714
  %v3436 = vmul.f32 %v3178, %v2716
  %v3437 = vmul.f32 %v3179, %v2718
  %v3438 = vmul.f32 %v3180, %v2720
  %v3439 = vmul.f32 %v3181, %v2722
  %v3440 = vmul.f32 %v3182, %v2724
  %v3441 = vmul.f32 %v3183, %v2726
  %v3442 = vmul.f32 %v3184, %v2728
  %v3443 = vmul.f32 %v3185, %v2730
  %v3444 = vmul.f32 %v3186, %v2732
  %v3445 = vmul.f32 %v3187, %v2734
  %v3446 = vmul.f32 %v3188, %v2736
  %v3447 = vmul.f32 %v3189, %v2738
  %v3448 = vmul.f32 %v3190, %v2740
  %v3449 = vmul.f32 %v3191, %v2742
  %v3450 = vmul.f32 %v3192, %v2744
  %v3451 = vmul.f32 %v3193, %v2746
  %v3452 = vmul.f32 %v3194, %v2748
  %v3453 = vmul.f32 %v3195, %v2750
  %v3454 = vmul.f32 %v3196, %v2752
  %v3455 = vmul.f32 %v3197, %v2754
  %v3456 = vmul.f32 %v3198, %v2756
  %v3457 = vmul.f32 %v3199, %v2758
  %v3458 = vmul.f32 %v3200, %v2760
  %v3459 = vmul.f32 %v3201, %v2762
  %v3460 = vmul.f32 %v3202, %v2764
  %v3461 = vmul.f32 %v3203, %v2766
  %v3462 = vmul.f32 %v3204, %v2768
  %v3463 = vmul.f32 %v3205, %v2770
  %v3464 = vmul.f32 %v3206, %v2772
  %v3465 = vmul.f32 %v3207, %v2774
  %v3466 = vmul.f32 %v3208, %v2776
  %v3467 = vmul.f32 %v3209, %v2778
  %v3468 = vmul.f32 %v3210, %v2780
  %v3469 = vmul.f32 %v3211, %v2782
  %v3470 = vmul.f32 %v3212, %v2784
  %v3471 = vmul.f32 %v3213, %v2786
  %v3472 = vmul.f32 %v3214, %v2788
  %v3473 = vmul.f32 %v3215, %v2790
  %v3474 = vmul.f32 %v3216, %v2792
  %v3475 = vmul.f32 %v3217, %v2794
  %v3476 = vmul.f32 %v3218, %v2796
  %v3477 = vmul.f32 %v3219, %v2798
  %v3478 = vmul.f32 %v3220, %v2800
  %v3479 = vmul.f32 %v3221, %v2802
  %v3480 = vmul.f32 %v3222, %v2804
  %v3481 = vmul.f32 %v3223, %v2806
  %v3482 = vmul.f32 %v3224, %v2808
  %v3483 = vmul.f32 %v3225, %v2810
  %v3484 = vmul.f32 %v3226, %v2812
  %v3485 = vmul.f32 %v3227, %v2814
  %v3486 = vmul.f32 %v3228, %v2816
  %v3487 = vmul.f32 %v3229, %v2818
  %v3488 = vmul.f32 %v3230, %v2820
  %v3489 = vmul.f32 %v3231, %v2822
  %v3490 = vmul.f32 %v3232, %v2824
  %v3491 = vmul.f32 %v3233, %v2826
  %v3492 = vmul.f32 %v3234, %v2828
  %v3493 = vmul.f32 %v3235, %v2830
  %v3494 = vmul.f32 %v3236, %v2832
  %v3495 = vmul.f32 %v3237, %v2834
  %v3496 = vmul.f32 %v3238, %v2836
  %v3497 = vmul.f32 %v3239, %v2838
  %v3498 = vmul.f32 %v3240, %v2840
  %v3499 = vmul.f32 %v3241, %v2842
  %v3500 = vmul.f32 %v3242, %v2844
  %v3501 = vmul.f32 %v3243, %v2846
  %v3502 = vmul.f32 %v3244, %v2848
  %v3503 = vmul.f32 %v3245, %v2850
  %v3504 = vmul.f32 %v3246, %v2852
  %v3505 = vmul.f32 %v3247, %v2854
  %v3506 = vmul.f32 %v3248, %v2856
  %v3507 = vmul.f32 %v3249, %v2858
  %v3508 = vmul.f32 %v3250, %v2860
  %v3509 = vmul.f32 %v3251, %v2862
  %v3510 = vmul.f32 %v3252, %v2864
  %v3511 = vmul.f32 %v3253, %v2866
  %v3512 = vmul.f32 %v3254, %v2868
  %v3513 = vmul.f32 %v3255, %v2870
  %v3514 = vmul.f32 %v3256, %v2872
  %v3515 = vmul.f32 %v3257, %v2874
  %v3516 = vmul.f32 %v3258, %v2876
  %v3517 = vmul.f32 %v3259, %v2878
  %v3518 = vmul.f32 %v3260, %v2880
  %v3519 = vmul.f32 %v3261, %v2882
  %v3520 = vmul.f32 %v3262, %v2884
  %v3521 = vmul.f32 %v3263, %v2886
  %v3522 = vmul.f32 %v3264, %v2888
  %v3523 = vmul.f32 %v3265, %v2890
  %v3524 = vmul.f32 %v3266, %v2892
  %v3525 = vmul.f32 %v3267, %v2894
  %v3526 = vmul.f32 %v3268, %v2896
  %v3527 = vmul.f32 %v3269, %v2898
  %v3528 = vmul.f32 %v3270, %v2900
  %v3529 = vmul.f32 %v3271, %v2902
  %v3530 = vmul.f32 %v3272, %v2904
  %v3531 = vmul.f32 %v3273, %v2906
  %v3532 = vmul.f32 %v3274, %v2908
  %v3533 = vmul.f32 %v3275, %v2910
  %v3534 = vmul.f32 %v3276, %v2912
  %v3535 = vmul.f32 %v3277, %v2914
  %v3536 = vmul.f32 %v3278, %v2916
  %v3537 = vmul.f32 %v3279, %v2918
  %v3538 = vmul.f32 %v3280, %v2920
  %v3539 = vmul.f32 %v3281, %v2922
  %v3540 = vmul.f32 %v3282, %v2924
  %v3541 = vmul.f32 %v3283, %v2926
  %v3542 = vmul.f32 %v3284, %v2928
  %v3543 = vmul.f32 %v3285, %v2930
  %v3544 = vmul.f32 %v3286, %v2932
  %v3545 = vmul.f32 %v3287, %v2934
  %v3546 = vmul.f32 %v3288, %v2936
  %v3547 = vmul.f32 %v3289, %v2938
  %v3548 = vmul.f32 %v3290, %v2940
  %v3549 = vmul.f32 %v3291, %v2942
  %v3550 = vmul.f32 %v3292, %v2944
  %v3551 = vmul.f32 %v3293, %v2946
  %v3552 = vmul.f32 %v3294, %v2948
  %v3553 = vmul.f32 %v3295, %v2950
  %v3554 = vmul.f32 %v3296, %v2952
  %v3555 = vmul.f32 %v3297, %v2954
  %v3556 = vmul.f32 %v3298, %v2956
  %v3557 = vmul.f32 %v3299, %v2958
  %v3558 = vmul.f32 %v3300, %v2960
  %v3559 = vmul.f32 %v3301, %v2962
  %v3560 = vmul.f32 %v3302, %v2964
  %v3561 = vmul.f32 %v3303, %v2966
  %v3562 = vmul.f32 %v3304, %v2968
  %v3563 = vmul.f32 %v3305, %v2970
  %v3564 = vmul.f32 %v3306, %v2972
  %v3565 = vmul.f32 %v3307, %v2974
  %v3566 = vmul.f32 %v3308, %v2976
  %v3567 = vmul.f32 %v3309, %v2978
  %v3568 = vmul.f32 %v3310, %v2980
  %v3569 = vmul.f32 %v3311, %v2982
  %v3570 = vmul.f32 %v3312, %v2984
  %v3571 = vmul.f32 %v3313, %v2986
  %v3572 = vmul.f32 %v3314, %v2988
  %v3573 = vmul.f32 %v3315, %v2990
  %v3574 = vmul.f32 %v3316, %v2992
  %v3575 = vmul.f32 %v3317, %v2994
  %v3576 = vmul.f32 %v3318, %v2996
  %v3577 = vmul.f32 %v3319, %v2998
  %v3578 = vmul.f32 %v3320, %v3000
  %v3579 = vmul.f32 %v3321, %v3002
  %v3580 = vmul.f32 %v3322, %v3004
  %v3581 = vmul.f32 %v3323, %v3006
  %v3582 = vmul.f32 %v3324, %v3008
  %v3583 = vmul.f32 %v3325, %v3010
  %v3584 = vmul.f32 %v3326, %v3012
  %v3585 = vmul.f32 %v3327, %v3014
  %v3586 = vmul.f32 %v3328, %v3016
  %v3587 = vmul.f32 %v3329, %v3018
  %v3588 = vmul.f32 %v3330, %v3020
  %v3589 = vmul.f32 %v3331, %v3022
  %v3590 = vmul.f32 %v3332, %v3024
  %v3591 = vmul.f32 %v3333, %v3026
  %v3592 = vmul.f32 %v3334, %v3028
  %v3593 = vmul.f32 %v3335, %v3030
  %v3594 = vmul.f32 %v3336, %v3032
  %v3595 = vmul.f32 %v3337, %v3034
  %v3596 = vmul.f32 %v3338, %v3036
  %v3597 = vmul.f32 %v3339, %v3038
  %v3598 = vmul.f32 %v3340, %v3040
  %v3599 = vmul.f32 %v3341, %v3042
  %v3600 = vmul.f32 %v3342, %v3044
  %v3601 = vmul.f32 %v3343, %v3046
  %v3602 = vmul.f32 %v3344, %v3048
  %v3603 = vmul.f32 %v3345, %v3050
  %v3604 = vmul.f32 %v3346, %v3052
  %v3605 = vmul.f32 %v3347, %v3054
  %v3606 = vmul.f32 %v3348, %v3056
  %v3607 = vmul.f32 %v3349, %v3058
  %v3608 = vmul.f32 %v3350, %v3060
  %v3609 = vmul.f32 %v3351, %v3062
  %v3610 = vmul.f32 %v3352, %v3064
  %v3611 = vmul.f32 %v3353, %v3066
  %v3612 = vmul.f32 %v3354, %v3068
  %v3613 = vmul.f32 %v3355, %v3070
  %v3614 = vmul.f32 %v3356, %v3072
  %v3615 = vmul.f32 %v3357, %v3074
  %v3616 = vmul.f32 %v3358, %v3076
  %v3617 = vmul.f32 %v3359, %v3078
  %v3618 = vmul.f32 %v3360, %v3080
  %v3619 = vmul.f32 %v3361, %v3082
  %v3620 = vmul.f32 %v3362, %v3084
  %v3621 = vmul.f32 %v3363, %v3086
  %v3622 = vmul.f32 %v3364, %v3088
  %v3623 = vmul.f32 %v3365, %v3090
  %v3624 = vmul.f32 %v3366, %v3092
  %v3625 = vmul.f32 %v3367, %v3094
  %v3626 = vmul.f32 %v3368, %v3096
  %v3627 = vmul.f32 %v3369, %v3098
  %v3628 = vmul.f32 %v3370, %v3100
  %v3629 = vmul.f32 %v3371, %v3102
  %v3630 = vmul.f32 %v3372, %v3104
  %v3631 = vmul.f32 %v3373, %v3106
  %v3632 = vmul.f32 %v3374, %v3108
  %v3633 = vmul.f32 %v3375, %v3110
  %v3634 = vmul.f32 %v3376, %v3112
  %v3635 = vmul.f32 %v3377, %v3114
  %v3636 = vmul.f32 %v3378, %v3116
  %v3637 = vmul.f32 %v3379, %v3118
  %v3638 = vmul.f32 %v3380, %v3120
  %v3639 = vmul.f32 %v3381, %v3122
  %v3640 = vmul.f32 %v3382, %v3124
  %v3641 = vpack.c.bf16 %v3384, %v3383
  %v3642 = vpack.c.bf16 %v3386, %v3385
  %v3643 = vpack.c.bf16 %v3388, %v3387
  %v3644 = vpack.c.bf16 %v3390, %v3389
  %v3645 = vpack.c.bf16 %v3392, %v3391
  %v3646 = vpack.c.bf16 %v3394, %v3393
  %v3647 = vpack.c.bf16 %v3396, %v3395
  %v3648 = vpack.c.bf16 %v3398, %v3397
  %v3649 = vpack.c.bf16 %v3400, %v3399
  %v3650 = vpack.c.bf16 %v3402, %v3401
  %v3651 = vpack.c.bf16 %v3404, %v3403
  %v3652 = vpack.c.bf16 %v3406, %v3405
  %v3653 = vpack.c.bf16 %v3408, %v3407
  %v3654 = vpack.c.bf16 %v3410, %v3409
  %v3655 = vpack.c.bf16 %v3412, %v3411
  %v3656 = vpack.c.bf16 %v3414, %v3413
  %v3657 = vpack.c.bf16 %v3416, %v3415
  %v3658 = vpack.c.bf16 %v3418, %v3417
  %v3659 = vpack.c.bf16 %v3420, %v3419
  %v3660 = vpack.c.bf16 %v3422, %v3421
  %v3661 = vpack.c.bf16 %v3424, %v3423
  %v3662 = vpack.c.bf16 %v3426, %v3425
  %v3663 = vpack.c.bf16 %v3428, %v3427
  %v3664 = vpack.c.bf16 %v3430, %v3429
  %v3665 = vpack.c.bf16 %v3432, %v3431
  %v3666 = vpack.c.bf16 %v3434, %v3433
  %v3667 = vpack.c.bf16 %v3436, %v3435
  %v3668 = vpack.c.bf16 %v3438, %v3437
  %v3669 = vpack.c.bf16 %v3440, %v3439
  %v3670 = vpack.c.bf16 %v3442, %v3441
  %v3671 = vpack.c.bf16 %v3444, %v3443
  %v3672 = vpack.c.bf16 %v3446, %v3445
  %v3673 = vpack.c.bf16 %v3448, %v3447
  %v3674 = vpack.c.bf16 %v3450, %v3449
  %v3675 = vpack.c.bf16 %v3452, %v3451
  %v3676 = vpack.c.bf16 %v3454, %v3453
  %v3677 = vpack.c.bf16 %v3456, %v3455
  %v3678 = vpack.c.bf16 %v3458, %v3457
  %v3679 = vpack.c.bf16 %v3460, %v3459
  %v3680 = vpack.c.bf16 %v3462, %v3461
  %v3681 = vpack.c.bf16 %v3464, %v3463
  %v3682 = vpack.c.bf16 %v3466, %v3465
  %v3683 = vpack.c.bf16 %v3468, %v3467
  %v3684 = vpack.c.bf16 %v3470, %v3469
  %v3685 = vpack.c.bf16 %v3472, %v3471
  %v3686 = vpack.c.bf16 %v3474, %v3473
  %v3687 = vpack.c.bf16 %v3476, %v3475
  %v3688 = vpack.c.bf16 %v3478, %v3477
  %v3689 = vpack.c.bf16 %v3480, %v3479
  %v3690 = vpack.c.bf16 %v3482, %v3481
  %v3691 = vpack.c.bf16 %v3484, %v3483
  %v3692 = vpack.c.bf16 %v3486, %v3485
  %v3693 = vpack.c.bf16 %v3488, %v3487
  %v3694 = vpack.c.bf16 %v3490, %v3489
  %v3695 = vpack.c.bf16 %v3492, %v3491
  %v3696 = vpack.c.bf16 %v3494, %v3493
  %v3697 = vpack.c.bf16 %v3496, %v3495
  %v3698 = vpack.c.bf16 %v3498, %v3497
  %v3699 = vpack.c.bf16 %v3500, %v3499
  %v3700 = vpack.c.bf16 %v3502, %v3501
  %v3701 = vpack.c.bf16 %v3504, %v3503
  %v3702 = vpack.c.bf16 %v3506, %v3505
  %v3703 = vpack.c.bf16 %v3508, %v3507
  %v3704 = vpack.c.bf16 %v3510, %v3509
  %v3705 = vpack.c.bf16 %v3512, %v3511
  %v3706 = vpack.c.bf16 %v3514, %v3513
  %v3707 = vpack.c.bf16 %v3516, %v3515
  %v3708 = vpack.c.bf16 %v3518, %v3517
  %v3709 = vpack.c.bf16 %v3520, %v3519
  %v3710 = vpack.c.bf16 %v3522, %v3521
  %v3711 = vpack.c.bf16 %v3524, %v3523
  %v3712 = vpack.c.bf16 %v3526, %v3525
  %v3713 = vpack.c.bf16 %v3528, %v3527
  %v3714 = vpack.c.bf16 %v3530, %v3529
  %v3715 = vpack.c.bf16 %v3532, %v3531
  %v3716 = vpack.c.bf16 %v3534, %v3533
  %v3717 = vpack.c.bf16 %v3536, %v3535
  %v3718 = vpack.c.bf16 %v3538, %v3537
  %v3719 = vpack.c.bf16 %v3540, %v3539
  %v3720 = vpack.c.bf16 %v3542, %v3541
  %v3721 = vpack.c.bf16 %v3544, %v3543
  %v3722 = vpack.c.bf16 %v3546, %v3545
  %v3723 = vpack.c.bf16 %v3548, %v3547
  %v3724 = vpack.c.bf16 %v3550, %v3549
  %v3725 = vpack.c.bf16 %v3552, %v3551
  %v3726 = vpack.c.bf16 %v3554, %v3553
  %v3727 = vpack.c.bf16 %v3556, %v3555
  %v3728 = vpack.c.bf16 %v3558, %v3557
  %v3729 = vpack.c.bf16 %v3560, %v3559
  %v3730 = vpack.c.bf16 %v3562, %v3561
  %v3731 = vpack.c.bf16 %v3564, %v3563
  %v3732 = vpack.c.bf16 %v3566, %v3565
  %v3733 = vpack.c.bf16 %v3568, %v3567
  %v3734 = vpack.c.bf16 %v3570, %v3569
  %v3735 = vpack.c.bf16 %v3572, %v3571
  %v3736 = vpack.c.bf16 %v3574, %v3573
  %v3737 = vpack.c.bf16 %v3576, %v3575
  %v3738 = vpack.c.bf16 %v3578, %v3577
  %v3739 = vpack.c.bf16 %v3580, %v3579
  %v3740 = vpack.c.bf16 %v3582, %v3581
  %v3741 = vpack.c.bf16 %v3584, %v3583
  %v3742 = vpack.c.bf16 %v3586, %v3585
  %v3743 = vpack.c.bf16 %v3588, %v3587
  %v3744 = vpack.c.bf16 %v3590, %v3589
  %v3745 = vpack.c.bf16 %v3592, %v3591
  %v3746 = vpack.c.bf16 %v3594, %v3593
  %v3747 = vpack.c.bf16 %v3596, %v3595
  %v3748 = vpack.c.bf16 %v3598, %v3597
  %v3749 = vpack.c.bf16 %v3600, %v3599
  %v3750 = vpack.c.bf16 %v3602, %v3601
  %v3751 = vpack.c.bf16 %v3604, %v3603
  %v3752 = vpack.c.bf16 %v3606, %v3605
  %v3753 = vpack.c.bf16 %v3608, %v3607
  %v3754 = vpack.c.bf16 %v3610, %v3609
  %v3755 = vpack.c.bf16 %v3612, %v3611
  %v3756 = vpack.c.bf16 %v3614, %v3613
  %v3757 = vpack.c.bf16 %v3616, %v3615
  %v3758 = vpack.c.bf16 %v3618, %v3617
  %v3759 = vpack.c.bf16 %v3620, %v3619
  %v3760 = vpack.c.bf16 %v3622, %v3621
  %v3761 = vpack.c.bf16 %v3624, %v3623
  %v3762 = vpack.c.bf16 %v3626, %v3625
  %v3763 = vpack.c.bf16 %v3628, %v3627
  %v3764 = vpack.c.bf16 %v3630, %v3629
  %v3765 = vpack.c.bf16 %v3632, %v3631
  %v3766 = vpack.c.bf16 %v3634, %v3633
  %v3767 = vpack.c.bf16 %v3636, %v3635
  %v3768 = vpack.c.bf16 %v3638, %v3637
  %v3769 = vpack.c.bf16 %v3640, %v3639
  %v3770 = vld [vmem:[%s3] sm:$0xff]
  %v3771 = vld [vmem:[%s3 + $0x8] sm:$0xff]
  %v3772 = vld [vmem:[%s3 + $0x10] sm:$0xff]
  %v3773 = vld [vmem:[%s3 + $0x18] sm:$0xff]
  %v3774 = vld [vmem:[%s3 + $0x20] sm:$0xff]
  %v3775 = vld [vmem:[%s3 + $0x28] sm:$0xff]
  %v3776 = vld [vmem:[%s3 + $0x30] sm:$0xff]
  %v3777 = vld [vmem:[%s3 + $0x38] sm:$0xff]
  %v3778 = vld [vmem:[%s3 + $0x40] sm:$0xf]
  %v3779 = vld [vmem:[%s3 + $0x44] sm:$0xff]
  %v3780 = vld [vmem:[%s3 + $0x4c] sm:$0xff]
  %v3781 = vld [vmem:[%s3 + $0x54] sm:$0xff]
  %v3782 = vld [vmem:[%s3 + $0x5c] sm:$0xff]
  %v3783 = vld [vmem:[%s3 + $0x64] sm:$0xff]
  %v3784 = vld [vmem:[%s3 + $0x6c] sm:$0xff]
  %v3785 = vld [vmem:[%s3 + $0x74] sm:$0xff]
  %v3786 = vld [vmem:[%s3 + $0x7c] sm:$0xff]
  %v3787 = vld [vmem:[%s3 + $0x84] sm:$0xf]
  %v3788 = vld [vmem:[%s3 + $0x88] sm:$0xff]
  %v3789 = vld [vmem:[%s3 + $0x90] sm:$0xff]
  %v3790 = vld [vmem:[%s3 + $0x98] sm:$0xff]
  %v3791 = vld [vmem:[%s3 + $0xa0] sm:$0xff]
  %v3792 = vld [vmem:[%s3 + $0xa8] sm:$0xff]
  %v3793 = vld [vmem:[%s3 + $0xb0] sm:$0xff]
  %v3794 = vld [vmem:[%s3 + $0xb8] sm:$0xff]
  %v3795 = vld [vmem:[%s3 + $0xc0] sm:$0xff]
  %v3796 = vld [vmem:[%s3 + $0xc8] sm:$0xf]
  %v3797 = vld [vmem:[%s3 + $0xcc] sm:$0xff]
  %v3798 = vld [vmem:[%s3 + $0xd4] sm:$0xff]
  %v3799 = vld [vmem:[%s3 + $0xdc] sm:$0xff]
  %v3800 = vld [vmem:[%s3 + $0xe4] sm:$0xff]
  %v3801 = vld [vmem:[%s3 + $0xec] sm:$0xff]
  %v3802 = vld [vmem:[%s3 + $0xf4] sm:$0xff]
  %v3803 = vld [vmem:[%s3 + $0xfc] sm:$0xff]
  %v3804 = vld [vmem:[%s3 + $0x104] sm:$0xff]
  %v3805 = vld [vmem:[%s3 + $0x10c] sm:$0xf]
  %v3806 = vld [vmem:[%s3 + $0x110] sm:$0xff]
  %v3807 = vld [vmem:[%s3 + $0x118] sm:$0xff]
  %v3808 = vld [vmem:[%s3 + $0x120] sm:$0xff]
  %v3809 = vld [vmem:[%s3 + $0x128] sm:$0xff]
  %v3810 = vld [vmem:[%s3 + $0x130] sm:$0xff]
  %v3811 = vld [vmem:[%s3 + $0x138] sm:$0xff]
  %v3812 = vld [vmem:[%s3 + $0x140] sm:$0xff]
  %v3813 = vld [vmem:[%s3 + $0x148] sm:$0xff]
  %v3814 = vld [vmem:[%s3 + $0x150] sm:$0xf]
  %v3815 = vld [vmem:[%s3 + $0x154] sm:$0xff]
  %v3816 = vld [vmem:[%s3 + $0x15c] sm:$0xff]
  %v3817 = vld [vmem:[%s3 + $0x164] sm:$0xff]
  %v3818 = vld [vmem:[%s3 + $0x16c] sm:$0xff]
  %v3819 = vld [vmem:[%s3 + $0x174] sm:$0xff]
  %v3820 = vld [vmem:[%s3 + $0x17c] sm:$0xff]
  %v3821 = vld [vmem:[%s3 + $0x184] sm:$0xff]
  %v3822 = vld [vmem:[%s3 + $0x18c] sm:$0xff]
  %v3823 = vld [vmem:[%s3 + $0x194] sm:$0xf]
  %v3824 = vld [vmem:[%s3 + $0x198] sm:$0xff]
  %v3825 = vld [vmem:[%s3 + $0x1a0] sm:$0xff]
  %v3826 = vld [vmem:[%s3 + $0x1a8] sm:$0xff]
  %v3827 = vld [vmem:[%s3 + $0x1b0] sm:$0xff]
  %v3828 = vld [vmem:[%s3 + $0x1b8] sm:$0xff]
  %v3829 = vld [vmem:[%s3 + $0x1c0] sm:$0xff]
  %v3830 = vld [vmem:[%s3 + $0x1c8] sm:$0xff]
  %v3831 = vld [vmem:[%s3 + $0x1d0] sm:$0xff]
  %v3832 = vld [vmem:[%s3 + $0x1d8] sm:$0xf]
  %v3833 = vld [vmem:[%s3 + $0x1dc] sm:$0xff]
  %v3834 = vld [vmem:[%s3 + $0x1e4] sm:$0xff]
  %v3835 = vld [vmem:[%s3 + $0x1ec] sm:$0xff]
  %v3836 = vld [vmem:[%s3 + $0x1f4] sm:$0xff]
  %v3837 = vld [vmem:[%s3 + $0x1fc] sm:$0xff]
  %v3838 = vld [vmem:[%s3 + $0x204] sm:$0xff]
  %v3839 = vld [vmem:[%s3 + $0x20c] sm:$0xff]
  %v3840 = vld [vmem:[%s3 + $0x214] sm:$0xff]
  %v3841 = vld [vmem:[%s3 + $0x21c] sm:$0xf]
  %v3842 = vld [vmem:[%s3 + $0x220] sm:$0xff]
  %v3843 = vld [vmem:[%s3 + $0x228] sm:$0xff]
  %v3844 = vld [vmem:[%s3 + $0x230] sm:$0xff]
  %v3845 = vld [vmem:[%s3 + $0x238] sm:$0xff]
  %v3846 = vld [vmem:[%s3 + $0x240] sm:$0xff]
  %v3847 = vld [vmem:[%s3 + $0x248] sm:$0xff]
  %v3848 = vld [vmem:[%s3 + $0x250] sm:$0xff]
  %v3849 = vld [vmem:[%s3 + $0x258] sm:$0xff]
  %v3850 = vld [vmem:[%s3 + $0x260] sm:$0xf]
  %v3851 = vld [vmem:[%s3 + $0x264] sm:$0xff]
  %v3852 = vld [vmem:[%s3 + $0x26c] sm:$0xff]
  %v3853 = vld [vmem:[%s3 + $0x274] sm:$0xff]
  %v3854 = vld [vmem:[%s3 + $0x27c] sm:$0xff]
  %v3855 = vld [vmem:[%s3 + $0x284] sm:$0xff]
  %v3856 = vld [vmem:[%s3 + $0x28c] sm:$0xff]
  %v3857 = vld [vmem:[%s3 + $0x294] sm:$0xff]
  %v3858 = vld [vmem:[%s3 + $0x29c] sm:$0xff]
  %v3859 = vld [vmem:[%s3 + $0x2a4] sm:$0xf]
  %v3860 = vld [vmem:[%s3 + $0x2a8] sm:$0xff]
  %v3861 = vld [vmem:[%s3 + $0x2b0] sm:$0xff]
  %v3862 = vld [vmem:[%s3 + $0x2b8] sm:$0xff]
  %v3863 = vld [vmem:[%s3 + $0x2c0] sm:$0xff]
  %v3864 = vld [vmem:[%s3 + $0x2c8] sm:$0xff]
  %v3865 = vld [vmem:[%s3 + $0x2d0] sm:$0xff]
  %v3866 = vld [vmem:[%s3 + $0x2d8] sm:$0xff]
  %v3867 = vld [vmem:[%s3 + $0x2e0] sm:$0xff]
  %v3868 = vld [vmem:[%s3 + $0x2e8] sm:$0xf]
  %v3869 = vld [vmem:[%s3 + $0x2ec] sm:$0xff]
  %v3870 = vld [vmem:[%s3 + $0x2f4] sm:$0xff]
  %v3871 = vld [vmem:[%s3 + $0x2fc] sm:$0xff]
  %v3872 = vld [vmem:[%s3 + $0x304] sm:$0xff]
  %v3873 = vld [vmem:[%s3 + $0x30c] sm:$0xff]
  %v3874 = vld [vmem:[%s3 + $0x314] sm:$0xff]
  %v3875 = vld [vmem:[%s3 + $0x31c] sm:$0xff]
  %v3876 = vld [vmem:[%s3 + $0x324] sm:$0xff]
  %v3877 = vld [vmem:[%s3 + $0x32c] sm:$0xf]
  %v3878 = vld [vmem:[%s3 + $0x330] sm:$0xff]
  %v3879 = vld [vmem:[%s3 + $0x338] sm:$0xff]
  %v3880 = vld [vmem:[%s3 + $0x340] sm:$0xff]
  %v3881 = vld [vmem:[%s3 + $0x348] sm:$0xff]
  %v3882 = vld [vmem:[%s3 + $0x350] sm:$0xff]
  %v3883 = vld [vmem:[%s3 + $0x358] sm:$0xff]
  %v3884 = vld [vmem:[%s3 + $0x360] sm:$0xff]
  %v3885 = vld [vmem:[%s3 + $0x368] sm:$0xff]
  %v3886 = vld [vmem:[%s3 + $0x370] sm:$0xf]
  %v3887 = vld [vmem:[%s3 + $0x374] sm:$0xff]
  %v3888 = vld [vmem:[%s3 + $0x37c] sm:$0xff]
  %v3889 = vld [vmem:[%s3 + $0x384] sm:$0xff]
  %v3890 = vld [vmem:[%s3 + $0x38c] sm:$0xff]
  %v3891 = vld [vmem:[%s3 + $0x394] sm:$0xff]
  %v3892 = vld [vmem:[%s3 + $0x39c] sm:$0xff]
  %v3893 = vld [vmem:[%s3 + $0x3a4] sm:$0xff]
  %v3894 = vld [vmem:[%s3 + $0x3ac] sm:$0xff]
  %v3895 = vld [vmem:[%s3 + $0x3b4] sm:$0xf]
  %v3896 = vld [vmem:[%s3 + $0x3b8] sm:$0xff]
  %v3897 = vld [vmem:[%s3 + $0x3c0] sm:$0xff]
  %v3898 = vld [vmem:[%s3 + $0x3c8] sm:$0xff]
  %v3899 = vld [vmem:[%s3 + $0x3d0] sm:$0xff]
  %v3900 = vld [vmem:[%s3 + $0x3d8] sm:$0xff]
  %v3901 = vld [vmem:[%s3 + $0x3e0] sm:$0xff]
  %v3902 = vld [vmem:[%s3 + $0x3e8] sm:$0xff]
  %v3903 = vld [vmem:[%s3 + $0x3f0] sm:$0xff]
  %v3904 = vld [vmem:[%s3 + $0x3f8] sm:$0xf]
  %v3905 = vld [vmem:[%s3 + $0x3fc] sm:$0xff]
  %v3906 = vld [vmem:[%s3 + $0x404] sm:$0xff]
  %v3907 = vld [vmem:[%s3 + $0x40c] sm:$0xff]
  %v3908 = vld [vmem:[%s3 + $0x414] sm:$0xff]
  %v3909 = vld [vmem:[%s3 + $0x41c] sm:$0xff]
  %v3910 = vld [vmem:[%s3 + $0x424] sm:$0xff]
  %v3911 = vld [vmem:[%s3 + $0x42c] sm:$0xff]
  %v3912 = vld [vmem:[%s3 + $0x434] sm:$0xff]
  %v3913 = vld [vmem:[%s3 + $0x43c] sm:$0xf]
  %v3914 = vld [vmem:[%s3 + $0x440] sm:$0xff]
  %v3915 = vld [vmem:[%s3 + $0x448] sm:$0xff]
  %v3916 = vld [vmem:[%s3 + $0x450] sm:$0xff]
  %v3917 = vld [vmem:[%s3 + $0x458] sm:$0xff]
  %v3918 = vld [vmem:[%s3 + $0x460] sm:$0xff]
  %v3919 = vld [vmem:[%s3 + $0x468] sm:$0xff]
  %v3920 = vld [vmem:[%s3 + $0x470] sm:$0xff]
  %v3921 = vld [vmem:[%s3 + $0x478] sm:$0xff]
  %v3922 = vld [vmem:[%s3 + $0x480] sm:$0xf]
  %v3923 = vld [vmem:[%s3 + $0x484] sm:$0xff]
  %v3924 = vld [vmem:[%s3 + $0x48c] sm:$0xff]
  %v3925 = vld [vmem:[%s3 + $0x494] sm:$0xff]
  %v3926 = vld [vmem:[%s3 + $0x49c] sm:$0xff]
  %v3927 = vld [vmem:[%s3 + $0x4a4] sm:$0xff]
  %v3928 = vld [vmem:[%s3 + $0x4ac] sm:$0xff]
  %v3929 = vld [vmem:[%s3 + $0x4b4] sm:$0xff]
  %v3930 = vld [vmem:[%s3 + $0x4bc] sm:$0xff]
  %v3931 = vld [vmem:[%s3 + $0x4c4] sm:$0xf]
  %v3932 = vld [vmem:[%s3 + $0x4c8] sm:$0xff]
  %v3933 = vld [vmem:[%s3 + $0x4d0] sm:$0xff]
  %v3934 = vld [vmem:[%s3 + $0x4d8] sm:$0xff]
  %v3935 = vld [vmem:[%s3 + $0x4e0] sm:$0xff]
  %v3936 = vld [vmem:[%s3 + $0x4e8] sm:$0xff]
  %v3937 = vld [vmem:[%s3 + $0x4f0] sm:$0xff]
  %v3938 = vld [vmem:[%s3 + $0x4f8] sm:$0xff]
  %v3939 = vld [vmem:[%s3 + $0x500] sm:$0xff]
  %v3940 = vld [vmem:[%s3 + $0x508] sm:$0xf]
  %v3941 = vld [vmem:[%s3 + $0x50c] sm:$0xff]
  %v3942 = vld [vmem:[%s3 + $0x514] sm:$0xff]
  %v3943 = vld [vmem:[%s3 + $0x51c] sm:$0xff]
  %v3944 = vld [vmem:[%s3 + $0x524] sm:$0xff]
  %v3945 = vld [vmem:[%s3 + $0x52c] sm:$0xff]
  %v3946 = vld [vmem:[%s3 + $0x534] sm:$0xff]
  %v3947 = vld [vmem:[%s3 + $0x53c] sm:$0xff]
  %v3948 = vld [vmem:[%s3 + $0x544] sm:$0xff]
  %v3949 = vld [vmem:[%s3 + $0x54c] sm:$0xf]
  %v3950 = vld [vmem:[%s3 + $0x550] sm:$0xff]
  %v3951 = vld [vmem:[%s3 + $0x558] sm:$0xff]
  %v3952 = vld [vmem:[%s3 + $0x560] sm:$0xff]
  %v3953 = vld [vmem:[%s3 + $0x568] sm:$0xff]
  %v3954 = vld [vmem:[%s3 + $0x570] sm:$0xff]
  %v3955 = vld [vmem:[%s3 + $0x578] sm:$0xff]
  %v3956 = vld [vmem:[%s3 + $0x580] sm:$0xff]
  %v3957 = vld [vmem:[%s3 + $0x588] sm:$0xff]
  %v3958 = vld [vmem:[%s3 + $0x590] sm:$0xf]
  %v3959 = vld [vmem:[%s3 + $0x594] sm:$0xff]
  %v3960 = vld [vmem:[%s3 + $0x59c] sm:$0xff]
  %v3961 = vld [vmem:[%s3 + $0x5a4] sm:$0xff]
  %v3962 = vld [vmem:[%s3 + $0x5ac] sm:$0xff]
  %v3963 = vld [vmem:[%s3 + $0x5b4] sm:$0xff]
  %v3964 = vld [vmem:[%s3 + $0x5bc] sm:$0xff]
  %v3965 = vld [vmem:[%s3 + $0x5c4] sm:$0xff]
  %v3966 = vld [vmem:[%s3 + $0x5cc] sm:$0xff]
  %v3967 = vld [vmem:[%s3 + $0x5d4] sm:$0xf]
  %v3968 = vld [vmem:[%s3 + $0x5d8] sm:$0xff]
  %v3969 = vld [vmem:[%s3 + $0x5e0] sm:$0xff]
  %v3970 = vld [vmem:[%s3 + $0x5e8] sm:$0xff]
  %v3971 = vld [vmem:[%s3 + $0x5f0] sm:$0xff]
  %v3972 = vld [vmem:[%s3 + $0x5f8] sm:$0xff]
  %v3973 = vld [vmem:[%s3 + $0x600] sm:$0xff]
  %v3974 = vld [vmem:[%s3 + $0x608] sm:$0xff]
  %v3975 = vld [vmem:[%s3 + $0x610] sm:$0xff]
  %v3976 = vld [vmem:[%s3 + $0x618] sm:$0xf]
  %v3977 = vld [vmem:[%s3 + $0x61c] sm:$0xff]
  %v3978 = vld [vmem:[%s3 + $0x624] sm:$0xff]
  %v3979 = vld [vmem:[%s3 + $0x62c] sm:$0xff]
  %v3980 = vld [vmem:[%s3 + $0x634] sm:$0xff]
  %v3981 = vld [vmem:[%s3 + $0x63c] sm:$0xff]
  %v3982 = vld [vmem:[%s3 + $0x644] sm:$0xff]
  %v3983 = vld [vmem:[%s3 + $0x64c] sm:$0xff]
  %v3984 = vld [vmem:[%s3 + $0x654] sm:$0xff]
  %v3985 = vld [vmem:[%s3 + $0x65c] sm:$0xf]
  %v3986 = vld [vmem:[%s3 + $0x660] sm:$0xff]
  %v3987 = vld [vmem:[%s3 + $0x668] sm:$0xff]
  %v3988 = vld [vmem:[%s3 + $0x670] sm:$0xff]
  %v3989 = vld [vmem:[%s3 + $0x678] sm:$0xff]
  %v3990 = vld [vmem:[%s3 + $0x680] sm:$0xff]
  %v3991 = vld [vmem:[%s3 + $0x688] sm:$0xff]
  %v3992 = vld [vmem:[%s3 + $0x690] sm:$0xff]
  %v3993 = vld [vmem:[%s3 + $0x698] sm:$0xff]
  %v3994 = vld [vmem:[%s3 + $0x6a0] sm:$0xf]
  %v3995 = vld [vmem:[%s3 + $0x6a4] sm:$0xff]
  %v3996 = vld [vmem:[%s3 + $0x6ac] sm:$0xff]
  %v3997 = vld [vmem:[%s3 + $0x6b4] sm:$0xff]
  %v3998 = vld [vmem:[%s3 + $0x6bc] sm:$0xff]
  %v3999 = vld [vmem:[%s3 + $0x6c4] sm:$0xff]
  %v4000 = vld [vmem:[%s3 + $0x6cc] sm:$0xff]
  %v4001 = vld [vmem:[%s3 + $0x6d4] sm:$0xff]
  %v4002 = vld [vmem:[%s3 + $0x6dc] sm:$0xff]
  %v4003 = vld [vmem:[%s3 + $0x6e4] sm:$0xf]
  %v4004 = vld [vmem:[%s3 + $0x6e8] sm:$0xff]
  %v4005 = vld [vmem:[%s3 + $0x6f0] sm:$0xff]
  %v4006 = vld [vmem:[%s3 + $0x6f8] sm:$0xff]
  %v4007 = vld [vmem:[%s3 + $0x700] sm:$0xff]
  %v4008 = vld [vmem:[%s3 + $0x708] sm:$0xff]
  %v4009 = vld [vmem:[%s3 + $0x710] sm:$0xff]
  %v4010 = vld [vmem:[%s3 + $0x718] sm:$0xff]
  %v4011 = vld [vmem:[%s3 + $0x720] sm:$0xff]
  %v4012 = vld [vmem:[%s3 + $0x728] sm:$0xf]
  %v4013 = vld [vmem:[%s3 + $0x72c] sm:$0xff]
  %v4014 = vld [vmem:[%s3 + $0x734] sm:$0xff]
  %v4015 = vld [vmem:[%s3 + $0x73c] sm:$0xff]
  %v4016 = vld [vmem:[%s3 + $0x744] sm:$0xff]
  %v4017 = vld [vmem:[%s3 + $0x74c] sm:$0xff]
  %v4018 = vld [vmem:[%s3 + $0x754] sm:$0xff]
  %v4019 = vld [vmem:[%s3 + $0x75c] sm:$0xff]
  %v4020 = vld [vmem:[%s3 + $0x764] sm:$0xff]
  %v4021 = vld [vmem:[%s3 + $0x76c] sm:$0xf]
  %v4022 = vld [vmem:[%s3 + $0x770] sm:$0xff]
  %v4023 = vld [vmem:[%s3 + $0x778] sm:$0xff]
  %v4024 = vld [vmem:[%s3 + $0x780] sm:$0xff]
  %v4025 = vld [vmem:[%s3 + $0x788] sm:$0xff]
  %v4026 = vld [vmem:[%s3 + $0x790] sm:$0xff]
  %v4027 = vld [vmem:[%s3 + $0x798] sm:$0xff]
  %v4028 = vld [vmem:[%s3 + $0x7a0] sm:$0xff]
  %v4029 = vld [vmem:[%s3 + $0x7a8] sm:$0xff]
  %v4030 = vld [vmem:[%s3 + $0x7b0] sm:$0xf]
  %v4031 = vld [vmem:[%s3 + $0x7b4] sm:$0xff]
  %v4032 = vld [vmem:[%s3 + $0x7bc] sm:$0xff]
  %v4033 = vld [vmem:[%s3 + $0x7c4] sm:$0xff]
  %v4034 = vld [vmem:[%s3 + $0x7cc] sm:$0xff]
  %v4035 = vld [vmem:[%s3 + $0x7d4] sm:$0xff]
  %v4036 = vld [vmem:[%s3 + $0x7dc] sm:$0xff]
  %v4037 = vld [vmem:[%s3 + $0x7e4] sm:$0xff]
  %v4038 = vld [vmem:[%s3 + $0x7ec] sm:$0xff]
  %v4039 = vld [vmem:[%s3 + $0x7f4] sm:$0xf]
  %v4040 = vld [vmem:[%s3 + $0x7f8] sm:$0xff]
  %v4041 = vld [vmem:[%s3 + $0x800] sm:$0xff]
  %v4042 = vld [vmem:[%s3 + $0x808] sm:$0xff]
  %v4043 = vld [vmem:[%s3 + $0x810] sm:$0xff]
  %v4044 = vld [vmem:[%s3 + $0x818] sm:$0xff]
  %v4045 = vld [vmem:[%s3 + $0x820] sm:$0xff]
  %v4046 = vld [vmem:[%s3 + $0x828] sm:$0xff]
  %v4047 = vld [vmem:[%s3 + $0x830] sm:$0xff]
  %v4048 = vld [vmem:[%s3 + $0x838] sm:$0xf]
  %v4049 = vld [vmem:[%s3 + $0x83c] sm:$0xff]
  %v4050 = vld [vmem:[%s3 + $0x844] sm:$0xff]
  %v4051 = vld [vmem:[%s3 + $0x84c] sm:$0xff]
  %v4052 = vld [vmem:[%s3 + $0x854] sm:$0xff]
  %v4053 = vld [vmem:[%s3 + $0x85c] sm:$0xff]
  %v4054 = vld [vmem:[%s3 + $0x864] sm:$0xff]
  %v4055 = vld [vmem:[%s3 + $0x86c] sm:$0xff]
  %v4056 = vld [vmem:[%s3 + $0x874] sm:$0xff]
  %v4057 = vld [vmem:[%s3 + $0x87c] sm:$0xf]
  %v4058 = vld [vmem:[%s3 + $0x880] sm:$0xff]
  %v4059 = vld [vmem:[%s3 + $0x888] sm:$0xff]
  %v4060 = vld [vmem:[%s3 + $0x890] sm:$0xff]
  %v4061 = vld [vmem:[%s3 + $0x898] sm:$0xff]
  %v4062 = vld [vmem:[%s3 + $0x8a0] sm:$0xff]
  %v4063 = vld [vmem:[%s3 + $0x8a8] sm:$0xff]
  %v4064 = vld [vmem:[%s3 + $0x8b0] sm:$0xff]
  %v4065 = vld [vmem:[%s3 + $0x8b8] sm:$0xff]
  %v4066 = vld [vmem:[%s3 + $0x8c0] sm:$0xf]
  %v4067 = vld [vmem:[%s3 + $0x8c4] sm:$0xff]
  %v4068 = vld [vmem:[%s3 + $0x8cc] sm:$0xff]
  %v4069 = vld [vmem:[%s3 + $0x8d4] sm:$0xff]
  %v4070 = vld [vmem:[%s3 + $0x8dc] sm:$0xff]
  %v4071 = vld [vmem:[%s3 + $0x8e4] sm:$0xff]
  %v4072 = vld [vmem:[%s3 + $0x8ec] sm:$0xff]
  %v4073 = vld [vmem:[%s3 + $0x8f4] sm:$0xff]
  %v4074 = vld [vmem:[%s3 + $0x8fc] sm:$0xff]
  %v4075 = vld [vmem:[%s3 + $0x904] sm:$0xf]
  %v4076 = vld [vmem:[%s3 + $0x908] sm:$0xff]
  %v4077 = vld [vmem:[%s3 + $0x910] sm:$0xff]
  %v4078 = vld [vmem:[%s3 + $0x918] sm:$0xff]
  %v4079 = vld [vmem:[%s3 + $0x920] sm:$0xff]
  %v4080 = vld [vmem:[%s3 + $0x928] sm:$0xff]
  %v4081 = vld [vmem:[%s3 + $0x930] sm:$0xff]
  %v4082 = vld [vmem:[%s3 + $0x938] sm:$0xff]
  %v4083 = vld [vmem:[%s3 + $0x940] sm:$0xff]
  %v4084 = vld [vmem:[%s3 + $0x948] sm:$0xf]
  %v4085 = vld [vmem:[%s3 + $0x94c] sm:$0xff]
  %v4086 = vld [vmem:[%s3 + $0x954] sm:$0xff]
  %v4087 = vld [vmem:[%s3 + $0x95c] sm:$0xff]
  %v4088 = vld [vmem:[%s3 + $0x964] sm:$0xff]
  %v4089 = vld [vmem:[%s3 + $0x96c] sm:$0xff]
  %v4090 = vld [vmem:[%s3 + $0x974] sm:$0xff]
  %v4091 = vld [vmem:[%s3 + $0x97c] sm:$0xff]
  %v4092 = vld [vmem:[%s3 + $0x984] sm:$0xff]
  %v4093 = vld [vmem:[%s3 + $0x98c] sm:$0xf]
  %v4094 = vld [vmem:[%s3 + $0x990] sm:$0xff]
  %v4095 = vld [vmem:[%s3 + $0x998] sm:$0xff]
  %v4096 = vld [vmem:[%s3 + $0x9a0] sm:$0xff]
  %v4097 = vld [vmem:[%s3 + $0x9a8] sm:$0xff]
  %v4098 = vld [vmem:[%s3 + $0x9b0] sm:$0xff]
  %v4099 = vld [vmem:[%s3 + $0x9b8] sm:$0xff]
  %v4100 = vld [vmem:[%s3 + $0x9c0] sm:$0xff]
  %v4101 = vld [vmem:[%s3 + $0x9c8] sm:$0xff]
  %v4102 = vld [vmem:[%s3 + $0x9d0] sm:$0xf]
  %v4103 = vld [vmem:[%s3 + $0x9d4] sm:$0xff]
  %v4104 = vld [vmem:[%s3 + $0x9dc] sm:$0xff]
  %v4105 = vld [vmem:[%s3 + $0x9e4] sm:$0xff]
  %v4106 = vld [vmem:[%s3 + $0x9ec] sm:$0xff]
  %v4107 = vld [vmem:[%s3 + $0x9f4] sm:$0xff]
  %v4108 = vld [vmem:[%s3 + $0x9fc] sm:$0xff]
  %v4109 = vld [vmem:[%s3 + $0xa04] sm:$0xff]
  %v4110 = vld [vmem:[%s3 + $0xa0c] sm:$0xff]
  %v4111 = vld [vmem:[%s3 + $0xa14] sm:$0xf]
  %v4112 = vld [vmem:[%s3 + $0xa18] sm:$0xff]
  %v4113 = vld [vmem:[%s3 + $0xa20] sm:$0xff]
  %v4114 = vld [vmem:[%s3 + $0xa28] sm:$0xff]
  %v4115 = vld [vmem:[%s3 + $0xa30] sm:$0xff]
  %v4116 = vld [vmem:[%s3 + $0xa38] sm:$0xff]
  %v4117 = vld [vmem:[%s3 + $0xa40] sm:$0xff]
  %v4118 = vld [vmem:[%s3 + $0xa48] sm:$0xff]
  %v4119 = vld [vmem:[%s3 + $0xa50] sm:$0xff]
  %v4120 = vld [vmem:[%s3 + $0xa58] sm:$0xf]
  %v4121 = vld [vmem:[%s3 + $0xa5c] sm:$0xff]
  %v4122 = vld [vmem:[%s3 + $0xa64] sm:$0xff]
  %v4123 = vld [vmem:[%s3 + $0xa6c] sm:$0xff]
  %v4124 = vld [vmem:[%s3 + $0xa74] sm:$0xff]
  %v4125 = vld [vmem:[%s3 + $0xa7c] sm:$0xff]
  %v4126 = vld [vmem:[%s3 + $0xa84] sm:$0xff]
  %v4127 = vld [vmem:[%s3 + $0xa8c] sm:$0xff]
  %v4128 = vld [vmem:[%s3 + $0xa94] sm:$0xff]
  %v4129 = vld [vmem:[%s3 + $0xa9c] sm:$0xf]
  %v4130 = vld [vmem:[%s3 + $0xaa0] sm:$0xff]
  %v4131 = vld [vmem:[%s3 + $0xaa8] sm:$0xff]
  %v4132 = vld [vmem:[%s3 + $0xab0] sm:$0xff]
  %v4133 = vld [vmem:[%s3 + $0xab8] sm:$0xff]
  %v4134 = vld [vmem:[%s3 + $0xac0] sm:$0xff]
  %v4135 = vld [vmem:[%s3 + $0xac8] sm:$0xff]
  %v4136 = vld [vmem:[%s3 + $0xad0] sm:$0xff]
  %v4137 = vld [vmem:[%s3 + $0xad8] sm:$0xff]
  %v4138 = vld [vmem:[%s3 + $0xae0] sm:$0xf]
  %v4139 = vld [vmem:[%s3 + $0xae4] sm:$0xff]
  %v4140 = vld [vmem:[%s3 + $0xaec] sm:$0xff]
  %v4141 = vld [vmem:[%s3 + $0xaf4] sm:$0xff]
  %v4142 = vld [vmem:[%s3 + $0xafc] sm:$0xff]
  %v4143 = vld [vmem:[%s3 + $0xb04] sm:$0xff]
  %v4144 = vld [vmem:[%s3 + $0xb0c] sm:$0xff]
  %v4145 = vld [vmem:[%s3 + $0xb14] sm:$0xff]
  %v4146 = vld [vmem:[%s3 + $0xb1c] sm:$0xff]
  %v4147 = vld [vmem:[%s3 + $0xb24] sm:$0xf]
  %v4148 = vld [vmem:[%s3 + $0xb28] sm:$0xff]
  %v4149 = vld [vmem:[%s3 + $0xb30] sm:$0xff]
  %v4150 = vld [vmem:[%s3 + $0xb38] sm:$0xff]
  %v4151 = vld [vmem:[%s3 + $0xb40] sm:$0xff]
  %v4152 = vld [vmem:[%s3 + $0xb48] sm:$0xff]
  %v4153 = vld [vmem:[%s3 + $0xb50] sm:$0xff]
  %v4154 = vld [vmem:[%s3 + $0xb58] sm:$0xff]
  %v4155 = vld [vmem:[%s3 + $0xb60] sm:$0xff]
  %v4156 = vld [vmem:[%s3 + $0xb68] sm:$0xf]
  %v4544 = vunpack.c.l.b16 %v3770
  %v4545 = vunpack.c.h.b16 %v3770
  %v4546 = vunpack.c.l.b16 %v3771
  %v4547 = vunpack.c.h.b16 %v3771
  %v4548 = vunpack.c.l.b16 %v3772
  %v4549 = vunpack.c.h.b16 %v3772
  %v4550 = vunpack.c.l.b16 %v3773
  %v4551 = vunpack.c.h.b16 %v3773
  %v4552 = vunpack.c.l.b16 %v3774
  %v4553 = vunpack.c.h.b16 %v3774
  %v4554 = vunpack.c.l.b16 %v3775
  %v4555 = vunpack.c.h.b16 %v3775
  %v4556 = vunpack.c.l.b16 %v3776
  %v4557 = vunpack.c.h.b16 %v3776
  %v4558 = vunpack.c.l.b16 %v3777
  %v4559 = vunpack.c.h.b16 %v3777
  %v4560 = vunpack.c.l.b16 %v3778
  %v4561 = vunpack.c.l.b16 %v3779
  %v4562 = vunpack.c.h.b16 %v3779
  %v4563 = vunpack.c.l.b16 %v3780
  %v4564 = vunpack.c.h.b16 %v3780
  %v4565 = vunpack.c.l.b16 %v3781
  %v4566 = vunpack.c.h.b16 %v3781
  %v4567 = vunpack.c.l.b16 %v3782
  %v4568 = vunpack.c.h.b16 %v3782
  %v4569 = vunpack.c.l.b16 %v3783
  %v4570 = vunpack.c.h.b16 %v3783
  %v4571 = vunpack.c.l.b16 %v3784
  %v4572 = vunpack.c.h.b16 %v3784
  %v4573 = vunpack.c.l.b16 %v3785
  %v4574 = vunpack.c.h.b16 %v3785
  %v4575 = vunpack.c.l.b16 %v3786
  %v4576 = vunpack.c.h.b16 %v3786
  %v4577 = vunpack.c.l.b16 %v3787
  %v4578 = vunpack.c.l.b16 %v3788
  %v4579 = vunpack.c.h.b16 %v3788
  %v4580 = vunpack.c.l.b16 %v3789
  %v4581 = vunpack.c.h.b16 %v3789
  %v4582 = vunpack.c.l.b16 %v3790
  %v4583 = vunpack.c.h.b16 %v3790
  %v4584 = vunpack.c.l.b16 %v3791
  %v4585 = vunpack.c.h.b16 %v3791
  %v4586 = vunpack.c.l.b16 %v3792
  %v4587 = vunpack.c.h.b16 %v3792
  %v4588 = vunpack.c.l.b16 %v3793
  %v4589 = vunpack.c.h.b16 %v3793
  %v4590 = vunpack.c.l.b16 %v3794
  %v4591 = vunpack.c.h.b16 %v3794
  %v4592 = vunpack.c.l.b16 %v3795
  %v4593 = vunpack.c.h.b16 %v3795
  %v4594 = vunpack.c.l.b16 %v3796
  %v4595 = vunpack.c.l.b16 %v3797
  %v4596 = vunpack.c.h.b16 %v3797
  %v4597 = vunpack.c.l.b16 %v3798
  %v4598 = vunpack.c.h.b16 %v3798
  %v4599 = vunpack.c.l.b16 %v3799
  %v4600 = vunpack.c.h.b16 %v3799
  %v4601 = vunpack.c.l.b16 %v3800
  %v4602 = vunpack.c.h.b16 %v3800
  %v4603 = vunpack.c.l.b16 %v3801
  %v4604 = vunpack.c.h.b16 %v3801
  %v4605 = vunpack.c.l.b16 %v3802
  %v4606 = vunpack.c.h.b16 %v3802
  %v4607 = vunpack.c.l.b16 %v3803
  %v4608 = vunpack.c.h.b16 %v3803
  %v4609 = vunpack.c.l.b16 %v3804
  %v4610 = vunpack.c.h.b16 %v3804
  %v4611 = vunpack.c.l.b16 %v3805
  %v4612 = vunpack.c.l.b16 %v3806
  %v4613 = vunpack.c.h.b16 %v3806
  %v4614 = vunpack.c.l.b16 %v3807
  %v4615 = vunpack.c.h.b16 %v3807
  %v4616 = vunpack.c.l.b16 %v3808
  %v4617 = vunpack.c.h.b16 %v3808
  %v4618 = vunpack.c.l.b16 %v3809
  %v4619 = vunpack.c.h.b16 %v3809
  %v4620 = vunpack.c.l.b16 %v3810
  %v4621 = vunpack.c.h.b16 %v3810
  %v4622 = vunpack.c.l.b16 %v3811
  %v4623 = vunpack.c.h.b16 %v3811
  %v4624 = vunpack.c.l.b16 %v3812
  %v4625 = vunpack.c.h.b16 %v3812
  %v4626 = vunpack.c.l.b16 %v3813
  %v4627 = vunpack.c.h.b16 %v3813
  %v4628 = vunpack.c.l.b16 %v3814
  %v4629 = vunpack.c.l.b16 %v3815
  %v4630 = vunpack.c.h.b16 %v3815
  %v4631 = vunpack.c.l.b16 %v3816
  %v4632 = vunpack.c.h.b16 %v3816
  %v4633 = vunpack.c.l.b16 %v3817
  %v4634 = vunpack.c.h.b16 %v3817
  %v4635 = vunpack.c.l.b16 %v3818
  %v4636 = vunpack.c.h.b16 %v3818
  %v4637 = vunpack.c.l.b16 %v3819
  %v4638 = vunpack.c.h.b16 %v3819
  %v4639 = vunpack.c.l.b16 %v3820
  %v4640 = vunpack.c.h.b16 %v3820
  %v4641 = vunpack.c.l.b16 %v3821
  %v4642 = vunpack.c.h.b16 %v3821
  %v4643 = vunpack.c.l.b16 %v3822
  %v4644 = vunpack.c.h.b16 %v3822
  %v4645 = vunpack.c.l.b16 %v3823
  %v4646 = vunpack.c.l.b16 %v3824
  %v4647 = vunpack.c.h.b16 %v3824
  %v4648 = vunpack.c.l.b16 %v3825
  %v4649 = vunpack.c.h.b16 %v3825
  %v4650 = vunpack.c.l.b16 %v3826
  %v4651 = vunpack.c.h.b16 %v3826
  %v4652 = vunpack.c.l.b16 %v3827
  %v4653 = vunpack.c.h.b16 %v3827
  %v4654 = vunpack.c.l.b16 %v3828
  %v4655 = vunpack.c.h.b16 %v3828
  %v4656 = vunpack.c.l.b16 %v3829
  %v4657 = vunpack.c.h.b16 %v3829
  %v4658 = vunpack.c.l.b16 %v3830
  %v4659 = vunpack.c.h.b16 %v3830
  %v4660 = vunpack.c.l.b16 %v3831
  %v4661 = vunpack.c.h.b16 %v3831
  %v4662 = vunpack.c.l.b16 %v3832
  %v4663 = vunpack.c.l.b16 %v3833
  %v4664 = vunpack.c.h.b16 %v3833
  %v4665 = vunpack.c.l.b16 %v3834
  %v4666 = vunpack.c.h.b16 %v3834
  %v4667 = vunpack.c.l.b16 %v3835
  %v4668 = vunpack.c.h.b16 %v3835
  %v4669 = vunpack.c.l.b16 %v3836
  %v4670 = vunpack.c.h.b16 %v3836
  %v4671 = vunpack.c.l.b16 %v3837
  %v4672 = vunpack.c.h.b16 %v3837
  %v4673 = vunpack.c.l.b16 %v3838
  %v4674 = vunpack.c.h.b16 %v3838
  %v4675 = vunpack.c.l.b16 %v3839
  %v4676 = vunpack.c.h.b16 %v3839
  %v4677 = vunpack.c.l.b16 %v3840
  %v4678 = vunpack.c.h.b16 %v3840
  %v4679 = vunpack.c.l.b16 %v3841
  %v4680 = vunpack.c.l.b16 %v3842
  %v4681 = vunpack.c.h.b16 %v3842
  %v4682 = vunpack.c.l.b16 %v3843
  %v4683 = vunpack.c.h.b16 %v3843
  %v4684 = vunpack.c.l.b16 %v3844
  %v4685 = vunpack.c.h.b16 %v3844
  %v4686 = vunpack.c.l.b16 %v3845
  %v4687 = vunpack.c.h.b16 %v3845
  %v4688 = vunpack.c.l.b16 %v3846
  %v4689 = vunpack.c.h.b16 %v3846
  %v4690 = vunpack.c.l.b16 %v3847
  %v4691 = vunpack.c.h.b16 %v3847
  %v4692 = vunpack.c.l.b16 %v3848
  %v4693 = vunpack.c.h.b16 %v3848
  %v4694 = vunpack.c.l.b16 %v3849
  %v4695 = vunpack.c.h.b16 %v3849
  %v4696 = vunpack.c.l.b16 %v3850
  %v4697 = vunpack.c.l.b16 %v3851
  %v4698 = vunpack.c.h.b16 %v3851
  %v4699 = vunpack.c.l.b16 %v3852
  %v4700 = vunpack.c.h.b16 %v3852
  %v4701 = vunpack.c.l.b16 %v3853
  %v4702 = vunpack.c.h.b16 %v3853
  %v4703 = vunpack.c.l.b16 %v3854
  %v4704 = vunpack.c.h.b16 %v3854
  %v4705 = vunpack.c.l.b16 %v3855
  %v4706 = vunpack.c.h.b16 %v3855
  %v4707 = vunpack.c.l.b16 %v3856
  %v4708 = vunpack.c.h.b16 %v3856
  %v4709 = vunpack.c.l.b16 %v3857
  %v4710 = vunpack.c.h.b16 %v3857
  %v4711 = vunpack.c.l.b16 %v3858
  %v4712 = vunpack.c.h.b16 %v3858
  %v4713 = vunpack.c.l.b16 %v3859
  %v4714 = vunpack.c.l.b16 %v3860
  %v4715 = vunpack.c.h.b16 %v3860
  %v4716 = vunpack.c.l.b16 %v3861
  %v4717 = vunpack.c.h.b16 %v3861
  %v4718 = vunpack.c.l.b16 %v3862
  %v4719 = vunpack.c.h.b16 %v3862
  %v4720 = vunpack.c.l.b16 %v3863
  %v4721 = vunpack.c.h.b16 %v3863
  %v4722 = vunpack.c.l.b16 %v3864
  %v4723 = vunpack.c.h.b16 %v3864
  %v4724 = vunpack.c.l.b16 %v3865
  %v4725 = vunpack.c.h.b16 %v3865
  %v4726 = vunpack.c.l.b16 %v3866
  %v4727 = vunpack.c.h.b16 %v3866
  %v4728 = vunpack.c.l.b16 %v3867
  %v4729 = vunpack.c.h.b16 %v3867
  %v4730 = vunpack.c.l.b16 %v3868
  %v4731 = vunpack.c.l.b16 %v3869
  %v4732 = vunpack.c.h.b16 %v3869
  %v4733 = vunpack.c.l.b16 %v3870
  %v4734 = vunpack.c.h.b16 %v3870
  %v4735 = vunpack.c.l.b16 %v3871
  %v4736 = vunpack.c.h.b16 %v3871
  %v4737 = vunpack.c.l.b16 %v3872
  %v4738 = vunpack.c.h.b16 %v3872
  %v4739 = vunpack.c.l.b16 %v3873
  %v4740 = vunpack.c.h.b16 %v3873
  %v4741 = vunpack.c.l.b16 %v3874
  %v4742 = vunpack.c.h.b16 %v3874
  %v4743 = vunpack.c.l.b16 %v3875
  %v4744 = vunpack.c.h.b16 %v3875
  %v4745 = vunpack.c.l.b16 %v3876
  %v4746 = vunpack.c.h.b16 %v3876
  %v4747 = vunpack.c.l.b16 %v3877
  %v4748 = vunpack.c.l.b16 %v3878
  %v4749 = vunpack.c.h.b16 %v3878
  %v4750 = vunpack.c.l.b16 %v3879
  %v4751 = vunpack.c.h.b16 %v3879
  %v4752 = vunpack.c.l.b16 %v3880
  %v4753 = vunpack.c.h.b16 %v3880
  %v4754 = vunpack.c.l.b16 %v3881
  %v4755 = vunpack.c.h.b16 %v3881
  %v4756 = vunpack.c.l.b16 %v3882
  %v4757 = vunpack.c.h.b16 %v3882
  %v4758 = vunpack.c.l.b16 %v3883
  %v4759 = vunpack.c.h.b16 %v3883
  %v4760 = vunpack.c.l.b16 %v3884
  %v4761 = vunpack.c.h.b16 %v3884
  %v4762 = vunpack.c.l.b16 %v3885
  %v4763 = vunpack.c.h.b16 %v3885
  %v4764 = vunpack.c.l.b16 %v3886
  %v4765 = vunpack.c.l.b16 %v3887
  %v4766 = vunpack.c.h.b16 %v3887
  %v4767 = vunpack.c.l.b16 %v3888
  %v4768 = vunpack.c.h.b16 %v3888
  %v4769 = vunpack.c.l.b16 %v3889
  %v4770 = vunpack.c.h.b16 %v3889
  %v4771 = vunpack.c.l.b16 %v3890
  %v4772 = vunpack.c.h.b16 %v3890
  %v4773 = vunpack.c.l.b16 %v3891
  %v4774 = vunpack.c.h.b16 %v3891
  %v4775 = vunpack.c.l.b16 %v3892
  %v4776 = vunpack.c.h.b16 %v3892
  %v4777 = vunpack.c.l.b16 %v3893
  %v4778 = vunpack.c.h.b16 %v3893
  %v4779 = vunpack.c.l.b16 %v3894
  %v4780 = vunpack.c.h.b16 %v3894
  %v4781 = vunpack.c.l.b16 %v3895
  %v4782 = vunpack.c.l.b16 %v3896
  %v4783 = vunpack.c.h.b16 %v3896
  %v4784 = vunpack.c.l.b16 %v3897
  %v4785 = vunpack.c.h.b16 %v3897
  %v4786 = vunpack.c.l.b16 %v3898
  %v4787 = vunpack.c.h.b16 %v3898
  %v4788 = vunpack.c.l.b16 %v3899
  %v4789 = vunpack.c.h.b16 %v3899
  %v4790 = vunpack.c.l.b16 %v3900
  %v4791 = vunpack.c.h.b16 %v3900
  %v4792 = vunpack.c.l.b16 %v3901
  %v4793 = vunpack.c.h.b16 %v3901
  %v4794 = vunpack.c.l.b16 %v3902
  %v4795 = vunpack.c.h.b16 %v3902
  %v4796 = vunpack.c.l.b16 %v3903
  %v4797 = vunpack.c.h.b16 %v3903
  %v4798 = vunpack.c.l.b16 %v3904
  %v4799 = vunpack.c.l.b16 %v3905
  %v4800 = vunpack.c.h.b16 %v3905
  %v4801 = vunpack.c.l.b16 %v3906
  %v4802 = vunpack.c.h.b16 %v3906
  %v4803 = vunpack.c.l.b16 %v3907
  %v4804 = vunpack.c.h.b16 %v3907
  %v4805 = vunpack.c.l.b16 %v3908
  %v4806 = vunpack.c.h.b16 %v3908
  %v4807 = vunpack.c.l.b16 %v3909
  %v4808 = vunpack.c.h.b16 %v3909
  %v4809 = vunpack.c.l.b16 %v3910
  %v4810 = vunpack.c.h.b16 %v3910
  %v4811 = vunpack.c.l.b16 %v3911
  %v4812 = vunpack.c.h.b16 %v3911
  %v4813 = vunpack.c.l.b16 %v3912
  %v4814 = vunpack.c.h.b16 %v3912
  %v4815 = vunpack.c.l.b16 %v3913
  %v4816 = vunpack.c.l.b16 %v3914
  %v4817 = vunpack.c.h.b16 %v3914
  %v4818 = vunpack.c.l.b16 %v3915
  %v4819 = vunpack.c.h.b16 %v3915
  %v4820 = vunpack.c.l.b16 %v3916
  %v4821 = vunpack.c.h.b16 %v3916
  %v4822 = vunpack.c.l.b16 %v3917
  %v4823 = vunpack.c.h.b16 %v3917
  %v4824 = vunpack.c.l.b16 %v3918
  %v4825 = vunpack.c.h.b16 %v3918
  %v4826 = vunpack.c.l.b16 %v3919
  %v4827 = vunpack.c.h.b16 %v3919
  %v4828 = vunpack.c.l.b16 %v3920
  %v4829 = vunpack.c.h.b16 %v3920
  %v4830 = vunpack.c.l.b16 %v3921
  %v4831 = vunpack.c.h.b16 %v3921
  %v4832 = vunpack.c.l.b16 %v3922
  %v4833 = vunpack.c.l.b16 %v3923
  %v4834 = vunpack.c.h.b16 %v3923
  %v4835 = vunpack.c.l.b16 %v3924
  %v4836 = vunpack.c.h.b16 %v3924
  %v4837 = vunpack.c.l.b16 %v3925
  %v4838 = vunpack.c.h.b16 %v3925
  %v4839 = vunpack.c.l.b16 %v3926
  %v4840 = vunpack.c.h.b16 %v3926
  %v4841 = vunpack.c.l.b16 %v3927
  %v4842 = vunpack.c.h.b16 %v3927
  %v4843 = vunpack.c.l.b16 %v3928
  %v4844 = vunpack.c.h.b16 %v3928
  %v4845 = vunpack.c.l.b16 %v3929
  %v4846 = vunpack.c.h.b16 %v3929
  %v4847 = vunpack.c.l.b16 %v3930
  %v4848 = vunpack.c.h.b16 %v3930
  %v4849 = vunpack.c.l.b16 %v3931
  %v4850 = vunpack.c.l.b16 %v3932
  %v4851 = vunpack.c.h.b16 %v3932
  %v4852 = vunpack.c.l.b16 %v3933
  %v4853 = vunpack.c.h.b16 %v3933
  %v4854 = vunpack.c.l.b16 %v3934
  %v4855 = vunpack.c.h.b16 %v3934
  %v4856 = vunpack.c.l.b16 %v3935
  %v4857 = vunpack.c.h.b16 %v3935
  %v4858 = vunpack.c.l.b16 %v3936
  %v4859 = vunpack.c.h.b16 %v3936
  %v4860 = vunpack.c.l.b16 %v3937
  %v4861 = vunpack.c.h.b16 %v3937
  %v4862 = vunpack.c.l.b16 %v3938
  %v4863 = vunpack.c.h.b16 %v3938
  %v4864 = vunpack.c.l.b16 %v3939
  %v4865 = vunpack.c.h.b16 %v3939
  %v4866 = vunpack.c.l.b16 %v3940
  %v4867 = vunpack.c.l.b16 %v3941
  %v4868 = vunpack.c.h.b16 %v3941
  %v4869 = vunpack.c.l.b16 %v3942
  %v4870 = vunpack.c.h.b16 %v3942
  %v4871 = vunpack.c.l.b16 %v3943
  %v4872 = vunpack.c.h.b16 %v3943
  %v4873 = vunpack.c.l.b16 %v3944
  %v4874 = vunpack.c.h.b16 %v3944
  %v4875 = vunpack.c.l.b16 %v3945
  %v4876 = vunpack.c.h.b16 %v3945
  %v4877 = vunpack.c.l.b16 %v3946
  %v4878 = vunpack.c.h.b16 %v3946
  %v4879 = vunpack.c.l.b16 %v3947
  %v4880 = vunpack.c.h.b16 %v3947
  %v4881 = vunpack.c.l.b16 %v3948
  %v4882 = vunpack.c.h.b16 %v3948
  %v4883 = vunpack.c.l.b16 %v3949
  %v4884 = vunpack.c.l.b16 %v3950
  %v4885 = vunpack.c.h.b16 %v3950
  %v4886 = vunpack.c.l.b16 %v3951
  %v4887 = vunpack.c.h.b16 %v3951
  %v4888 = vunpack.c.l.b16 %v3952
  %v4889 = vunpack.c.h.b16 %v3952
  %v4890 = vunpack.c.l.b16 %v3953
  %v4891 = vunpack.c.h.b16 %v3953
  %v4892 = vunpack.c.l.b16 %v3954
  %v4893 = vunpack.c.h.b16 %v3954
  %v4894 = vunpack.c.l.b16 %v3955
  %v4895 = vunpack.c.h.b16 %v3955
  %v4896 = vunpack.c.l.b16 %v3956
  %v4897 = vunpack.c.h.b16 %v3956
  %v4898 = vunpack.c.l.b16 %v3957
  %v4899 = vunpack.c.h.b16 %v3957
  %v4900 = vunpack.c.l.b16 %v3958
  %v4901 = vunpack.c.l.b16 %v3959
  %v4902 = vunpack.c.h.b16 %v3959
  %v4903 = vunpack.c.l.b16 %v3960
  %v4904 = vunpack.c.h.b16 %v3960
  %v4905 = vunpack.c.l.b16 %v3961
  %v4906 = vunpack.c.h.b16 %v3961
  %v4907 = vunpack.c.l.b16 %v3962
  %v4908 = vunpack.c.h.b16 %v3962
  %v4909 = vunpack.c.l.b16 %v3963
  %v4910 = vunpack.c.h.b16 %v3963
  %v4911 = vunpack.c.l.b16 %v3964
  %v4912 = vunpack.c.h.b16 %v3964
  %v4913 = vunpack.c.l.b16 %v3965
  %v4914 = vunpack.c.h.b16 %v3965
  %v4915 = vunpack.c.l.b16 %v3966
  %v4916 = vunpack.c.h.b16 %v3966
  %v4917 = vunpack.c.l.b16 %v3967
  %v4918 = vunpack.c.l.b16 %v3968
  %v4919 = vunpack.c.h.b16 %v3968
  %v4920 = vunpack.c.l.b16 %v3969
  %v4921 = vunpack.c.h.b16 %v3969
  %v4922 = vunpack.c.l.b16 %v3970
  %v4923 = vunpack.c.h.b16 %v3970
  %v4924 = vunpack.c.l.b16 %v3971
  %v4925 = vunpack.c.h.b16 %v3971
  %v4926 = vunpack.c.l.b16 %v3972
  %v4927 = vunpack.c.h.b16 %v3972
  %v4928 = vunpack.c.l.b16 %v3973
  %v4929 = vunpack.c.h.b16 %v3973
  %v4930 = vunpack.c.l.b16 %v3974
  %v4931 = vunpack.c.h.b16 %v3974
  %v4932 = vunpack.c.l.b16 %v3975
  %v4933 = vunpack.c.h.b16 %v3975
  %v4934 = vunpack.c.l.b16 %v3976
  %v4935 = vunpack.c.l.b16 %v3977
  %v4936 = vunpack.c.h.b16 %v3977
  %v4937 = vunpack.c.l.b16 %v3978
  %v4938 = vunpack.c.h.b16 %v3978
  %v4939 = vunpack.c.l.b16 %v3979
  %v4940 = vunpack.c.h.b16 %v3979
  %v4941 = vunpack.c.l.b16 %v3980
  %v4942 = vunpack.c.h.b16 %v3980
  %v4943 = vunpack.c.l.b16 %v3981
  %v4944 = vunpack.c.h.b16 %v3981
  %v4945 = vunpack.c.l.b16 %v3982
  %v4946 = vunpack.c.h.b16 %v3982
  %v4947 = vunpack.c.l.b16 %v3983
  %v4948 = vunpack.c.h.b16 %v3983
  %v4949 = vunpack.c.l.b16 %v3984
  %v4950 = vunpack.c.h.b16 %v3984
  %v4951 = vunpack.c.l.b16 %v3985
  %v4952 = vunpack.c.l.b16 %v3986
  %v4953 = vunpack.c.h.b16 %v3986
  %v4954 = vunpack.c.l.b16 %v3987
  %v4955 = vunpack.c.h.b16 %v3987
  %v4956 = vunpack.c.l.b16 %v3988
  %v4957 = vunpack.c.h.b16 %v3988
  %v4958 = vunpack.c.l.b16 %v3989
  %v4959 = vunpack.c.h.b16 %v3989
  %v4960 = vunpack.c.l.b16 %v3990
  %v4961 = vunpack.c.h.b16 %v3990
  %v4962 = vunpack.c.l.b16 %v3991
  %v4963 = vunpack.c.h.b16 %v3991
  %v4964 = vunpack.c.l.b16 %v3992
  %v4965 = vunpack.c.h.b16 %v3992
  %v4966 = vunpack.c.l.b16 %v3993
  %v4967 = vunpack.c.h.b16 %v3993
  %v4968 = vunpack.c.l.b16 %v3994
  %v4969 = vunpack.c.l.b16 %v3995
  %v4970 = vunpack.c.h.b16 %v3995
  %v4971 = vunpack.c.l.b16 %v3996
  %v4972 = vunpack.c.h.b16 %v3996
  %v4973 = vunpack.c.l.b16 %v3997
  %v4974 = vunpack.c.h.b16 %v3997
  %v4975 = vunpack.c.l.b16 %v3998
  %v4976 = vunpack.c.h.b16 %v3998
  %v4977 = vunpack.c.l.b16 %v3999
  %v4978 = vunpack.c.h.b16 %v3999
  %v4979 = vunpack.c.l.b16 %v4000
  %v4980 = vunpack.c.h.b16 %v4000
  %v4981 = vunpack.c.l.b16 %v4001
  %v4982 = vunpack.c.h.b16 %v4001
  %v4983 = vunpack.c.l.b16 %v4002
  %v4984 = vunpack.c.h.b16 %v4002
  %v4985 = vunpack.c.l.b16 %v4003
  %v4986 = vunpack.c.l.b16 %v4004
  %v4987 = vunpack.c.h.b16 %v4004
  %v4988 = vunpack.c.l.b16 %v4005
  %v4989 = vunpack.c.h.b16 %v4005
  %v4990 = vunpack.c.l.b16 %v4006
  %v4991 = vunpack.c.h.b16 %v4006
  %v4992 = vunpack.c.l.b16 %v4007
  %v4993 = vunpack.c.h.b16 %v4007
  %v4994 = vunpack.c.l.b16 %v4008
  %v4995 = vunpack.c.h.b16 %v4008
  %v4996 = vunpack.c.l.b16 %v4009
  %v4997 = vunpack.c.h.b16 %v4009
  %v4998 = vunpack.c.l.b16 %v4010
  %v4999 = vunpack.c.h.b16 %v4010
  %v5000 = vunpack.c.l.b16 %v4011
  %v5001 = vunpack.c.h.b16 %v4011
  %v5002 = vunpack.c.l.b16 %v4012
  %v5003 = vunpack.c.l.b16 %v4013
  %v5004 = vunpack.c.h.b16 %v4013
  %v5005 = vunpack.c.l.b16 %v4014
  %v5006 = vunpack.c.h.b16 %v4014
  %v5007 = vunpack.c.l.b16 %v4015
  %v5008 = vunpack.c.h.b16 %v4015
  %v5009 = vunpack.c.l.b16 %v4016
  %v5010 = vunpack.c.h.b16 %v4016
  %v5011 = vunpack.c.l.b16 %v4017
  %v5012 = vunpack.c.h.b16 %v4017
  %v5013 = vunpack.c.l.b16 %v4018
  %v5014 = vunpack.c.h.b16 %v4018
  %v5015 = vunpack.c.l.b16 %v4019
  %v5016 = vunpack.c.h.b16 %v4019
  %v5017 = vunpack.c.l.b16 %v4020
  %v5018 = vunpack.c.h.b16 %v4020
  %v5019 = vunpack.c.l.b16 %v4021
  %v5020 = vunpack.c.l.b16 %v4022
  %v5021 = vunpack.c.h.b16 %v4022
  %v5022 = vunpack.c.l.b16 %v4023
  %v5023 = vunpack.c.h.b16 %v4023
  %v5024 = vunpack.c.l.b16 %v4024
  %v5025 = vunpack.c.h.b16 %v4024
  %v5026 = vunpack.c.l.b16 %v4025
  %v5027 = vunpack.c.h.b16 %v4025
  %v5028 = vunpack.c.l.b16 %v4026
  %v5029 = vunpack.c.h.b16 %v4026
  %v5030 = vunpack.c.l.b16 %v4027
  %v5031 = vunpack.c.h.b16 %v4027
  %v5032 = vunpack.c.l.b16 %v4028
  %v5033 = vunpack.c.h.b16 %v4028
  %v5034 = vunpack.c.l.b16 %v4029
  %v5035 = vunpack.c.h.b16 %v4029
  %v5036 = vunpack.c.l.b16 %v4030
  %v5037 = vunpack.c.l.b16 %v4031
  %v5038 = vunpack.c.h.b16 %v4031
  %v5039 = vunpack.c.l.b16 %v4032
  %v5040 = vunpack.c.h.b16 %v4032
  %v5041 = vunpack.c.l.b16 %v4033
  %v5042 = vunpack.c.h.b16 %v4033
  %v5043 = vunpack.c.l.b16 %v4034
  %v5044 = vunpack.c.h.b16 %v4034
  %v5045 = vunpack.c.l.b16 %v4035
  %v5046 = vunpack.c.h.b16 %v4035
  %v5047 = vunpack.c.l.b16 %v4036
  %v5048 = vunpack.c.h.b16 %v4036
  %v5049 = vunpack.c.l.b16 %v4037
  %v5050 = vunpack.c.h.b16 %v4037
  %v5051 = vunpack.c.l.b16 %v4038
  %v5052 = vunpack.c.h.b16 %v4038
  %v5053 = vunpack.c.l.b16 %v4039
  %v5054 = vunpack.c.l.b16 %v4040
  %v5055 = vunpack.c.h.b16 %v4040
  %v5056 = vunpack.c.l.b16 %v4041
  %v5057 = vunpack.c.h.b16 %v4041
  %v5058 = vunpack.c.l.b16 %v4042
  %v5059 = vunpack.c.h.b16 %v4042
  %v5060 = vunpack.c.l.b16 %v4043
  %v5061 = vunpack.c.h.b16 %v4043
  %v5062 = vunpack.c.l.b16 %v4044
  %v5063 = vunpack.c.h.b16 %v4044
  %v5064 = vunpack.c.l.b16 %v4045
  %v5065 = vunpack.c.h.b16 %v4045
  %v5066 = vunpack.c.l.b16 %v4046
  %v5067 = vunpack.c.h.b16 %v4046
  %v5068 = vunpack.c.l.b16 %v4047
  %v5069 = vunpack.c.h.b16 %v4047
  %v5070 = vunpack.c.l.b16 %v4048
  %v5071 = vunpack.c.l.b16 %v4049
  %v5072 = vunpack.c.h.b16 %v4049
  %v5073 = vunpack.c.l.b16 %v4050
  %v5074 = vunpack.c.h.b16 %v4050
  %v5075 = vunpack.c.l.b16 %v4051
  %v5076 = vunpack.c.h.b16 %v4051
  %v5077 = vunpack.c.l.b16 %v4052
  %v5078 = vunpack.c.h.b16 %v4052
  %v5079 = vunpack.c.l.b16 %v4053
  %v5080 = vunpack.c.h.b16 %v4053
  %v5081 = vunpack.c.l.b16 %v4054
  %v5082 = vunpack.c.h.b16 %v4054
  %v5083 = vunpack.c.l.b16 %v4055
  %v5084 = vunpack.c.h.b16 %v4055
  %v5085 = vunpack.c.l.b16 %v4056
  %v5086 = vunpack.c.h.b16 %v4056
  %v5087 = vunpack.c.l.b16 %v4057
  %v5088 = vunpack.c.l.b16 %v4058
  %v5089 = vunpack.c.h.b16 %v4058
  %v5090 = vunpack.c.l.b16 %v4059
  %v5091 = vunpack.c.h.b16 %v4059
  %v5092 = vunpack.c.l.b16 %v4060
  %v5093 = vunpack.c.h.b16 %v4060
  %v5094 = vunpack.c.l.b16 %v4061
  %v5095 = vunpack.c.h.b16 %v4061
  %v5096 = vunpack.c.l.b16 %v4062
  %v5097 = vunpack.c.h.b16 %v4062
  %v5098 = vunpack.c.l.b16 %v4063
  %v5099 = vunpack.c.h.b16 %v4063
  %v5100 = vunpack.c.l.b16 %v4064
  %v5101 = vunpack.c.h.b16 %v4064
  %v5102 = vunpack.c.l.b16 %v4065
  %v5103 = vunpack.c.h.b16 %v4065
  %v5104 = vunpack.c.l.b16 %v4066
  %v5105 = vunpack.c.l.b16 %v4067
  %v5106 = vunpack.c.h.b16 %v4067
  %v5107 = vunpack.c.l.b16 %v4068
  %v5108 = vunpack.c.h.b16 %v4068
  %v5109 = vunpack.c.l.b16 %v4069
  %v5110 = vunpack.c.h.b16 %v4069
  %v5111 = vunpack.c.l.b16 %v4070
  %v5112 = vunpack.c.h.b16 %v4070
  %v5113 = vunpack.c.l.b16 %v4071
  %v5114 = vunpack.c.h.b16 %v4071
  %v5115 = vunpack.c.l.b16 %v4072
  %v5116 = vunpack.c.h.b16 %v4072
  %v5117 = vunpack.c.l.b16 %v4073
  %v5118 = vunpack.c.h.b16 %v4073
  %v5119 = vunpack.c.l.b16 %v4074
  %v5120 = vunpack.c.h.b16 %v4074
  %v5121 = vunpack.c.l.b16 %v4075
  %v5122 = vunpack.c.l.b16 %v4076
  %v5123 = vunpack.c.h.b16 %v4076
  %v5124 = vunpack.c.l.b16 %v4077
  %v5125 = vunpack.c.h.b16 %v4077
  %v5126 = vunpack.c.l.b16 %v4078
  %v5127 = vunpack.c.h.b16 %v4078
  %v5128 = vunpack.c.l.b16 %v4079
  %v5129 = vunpack.c.h.b16 %v4079
  %v5130 = vunpack.c.l.b16 %v4080
  %v5131 = vunpack.c.h.b16 %v4080
  %v5132 = vunpack.c.l.b16 %v4081
  %v5133 = vunpack.c.h.b16 %v4081
  %v5134 = vunpack.c.l.b16 %v4082
  %v5135 = vunpack.c.h.b16 %v4082
  %v5136 = vunpack.c.l.b16 %v4083
  %v5137 = vunpack.c.h.b16 %v4083
  %v5138 = vunpack.c.l.b16 %v4084
  %v5139 = vunpack.c.l.b16 %v4085
  %v5140 = vunpack.c.h.b16 %v4085
  %v5141 = vunpack.c.l.b16 %v4086
  %v5142 = vunpack.c.h.b16 %v4086
  %v5143 = vunpack.c.l.b16 %v4087
  %v5144 = vunpack.c.h.b16 %v4087
  %v5145 = vunpack.c.l.b16 %v4088
  %v5146 = vunpack.c.h.b16 %v4088
  %v5147 = vunpack.c.l.b16 %v4089
  %v5148 = vunpack.c.h.b16 %v4089
  %v5149 = vunpack.c.l.b16 %v4090
  %v5150 = vunpack.c.h.b16 %v4090
  %v5151 = vunpack.c.l.b16 %v4091
  %v5152 = vunpack.c.h.b16 %v4091
  %v5153 = vunpack.c.l.b16 %v4092
  %v5154 = vunpack.c.h.b16 %v4092
  %v5155 = vunpack.c.l.b16 %v4093
  %v5156 = vunpack.c.l.b16 %v4094
  %v5157 = vunpack.c.h.b16 %v4094
  %v5158 = vunpack.c.l.b16 %v4095
  %v5159 = vunpack.c.h.b16 %v4095
  %v5160 = vunpack.c.l.b16 %v4096
  %v5161 = vunpack.c.h.b16 %v4096
  %v5162 = vunpack.c.l.b16 %v4097
  %v5163 = vunpack.c.h.b16 %v4097
  %v5164 = vunpack.c.l.b16 %v4098
  %v5165 = vunpack.c.h.b16 %v4098
  %v5166 = vunpack.c.l.b16 %v4099
  %v5167 = vunpack.c.h.b16 %v4099
  %v5168 = vunpack.c.l.b16 %v4100
  %v5169 = vunpack.c.h.b16 %v4100
  %v5170 = vunpack.c.l.b16 %v4101
  %v5171 = vunpack.c.h.b16 %v4101
  %v5172 = vunpack.c.l.b16 %v4102
  %v5173 = vunpack.c.l.b16 %v4103
  %v5174 = vunpack.c.h.b16 %v4103
  %v5175 = vunpack.c.l.b16 %v4104
  %v5176 = vunpack.c.h.b16 %v4104
  %v5177 = vunpack.c.l.b16 %v4105
  %v5178 = vunpack.c.h.b16 %v4105
  %v5179 = vunpack.c.l.b16 %v4106
  %v5180 = vunpack.c.h.b16 %v4106
  %v5181 = vunpack.c.l.b16 %v4107
  %v5182 = vunpack.c.h.b16 %v4107
  %v5183 = vunpack.c.l.b16 %v4108
  %v5184 = vunpack.c.h.b16 %v4108
  %v5185 = vunpack.c.l.b16 %v4109
  %v5186 = vunpack.c.h.b16 %v4109
  %v5187 = vunpack.c.l.b16 %v4110
  %v5188 = vunpack.c.h.b16 %v4110
  %v5189 = vunpack.c.l.b16 %v4111
  %v5190 = vunpack.c.l.b16 %v4112
  %v5191 = vunpack.c.h.b16 %v4112
  %v5192 = vunpack.c.l.b16 %v4113
  %v5193 = vunpack.c.h.b16 %v4113
  %v5194 = vunpack.c.l.b16 %v4114
  %v5195 = vunpack.c.h.b16 %v4114
  %v5196 = vunpack.c.l.b16 %v4115
  %v5197 = vunpack.c.h.b16 %v4115
  %v5198 = vunpack.c.l.b16 %v4116
  %v5199 = vunpack.c.h.b16 %v4116
  %v5200 = vunpack.c.l.b16 %v4117
  %v5201 = vunpack.c.h.b16 %v4117
  %v5202 = vunpack.c.l.b16 %v4118
  %v5203 = vunpack.c.h.b16 %v4118
  %v5204 = vunpack.c.l.b16 %v4119
  %v5205 = vunpack.c.h.b16 %v4119
  %v5206 = vunpack.c.l.b16 %v4120
  %v5207 = vunpack.c.l.b16 %v4121
  %v5208 = vunpack.c.h.b16 %v4121
  %v5209 = vunpack.c.l.b16 %v4122
  %v5210 = vunpack.c.h.b16 %v4122
  %v5211 = vunpack.c.l.b16 %v4123
  %v5212 = vunpack.c.h.b16 %v4123
  %v5213 = vunpack.c.l.b16 %v4124
  %v5214 = vunpack.c.h.b16 %v4124
  %v5215 = vunpack.c.l.b16 %v4125
  %v5216 = vunpack.c.h.b16 %v4125
  %v5217 = vunpack.c.l.b16 %v4126
  %v5218 = vunpack.c.h.b16 %v4126
  %v5219 = vunpack.c.l.b16 %v4127
  %v5220 = vunpack.c.h.b16 %v4127
  %v5221 = vunpack.c.l.b16 %v4128
  %v5222 = vunpack.c.h.b16 %v4128
  %v5223 = vunpack.c.l.b16 %v4129
  %v5224 = vunpack.c.l.b16 %v4130
  %v5225 = vunpack.c.h.b16 %v4130
  %v5226 = vunpack.c.l.b16 %v4131
  %v5227 = vunpack.c.h.b16 %v4131
  %v5228 = vunpack.c.l.b16 %v4132
  %v5229 = vunpack.c.h.b16 %v4132
  %v5230 = vunpack.c.l.b16 %v4133
  %v5231 = vunpack.c.h.b16 %v4133
  %v5232 = vunpack.c.l.b16 %v4134
  %v5233 = vunpack.c.h.b16 %v4134
  %v5234 = vunpack.c.l.b16 %v4135
  %v5235 = vunpack.c.h.b16 %v4135
  %v5236 = vunpack.c.l.b16 %v4136
  %v5237 = vunpack.c.h.b16 %v4136
  %v5238 = vunpack.c.l.b16 %v4137
  %v5239 = vunpack.c.h.b16 %v4137
  %v5240 = vunpack.c.l.b16 %v4138
  %v5241 = vunpack.c.l.b16 %v4139
  %v5242 = vunpack.c.h.b16 %v4139
  %v5243 = vunpack.c.l.b16 %v4140
  %v5244 = vunpack.c.h.b16 %v4140
  %v5245 = vunpack.c.l.b16 %v4141
  %v5246 = vunpack.c.h.b16 %v4141
  %v5247 = vunpack.c.l.b16 %v4142
  %v5248 = vunpack.c.h.b16 %v4142
  %v5249 = vunpack.c.l.b16 %v4143
  %v5250 = vunpack.c.h.b16 %v4143
  %v5251 = vunpack.c.l.b16 %v4144
  %v5252 = vunpack.c.h.b16 %v4144
  %v5253 = vunpack.c.l.b16 %v4145
  %v5254 = vunpack.c.h.b16 %v4145
  %v5255 = vunpack.c.l.b16 %v4146
  %v5256 = vunpack.c.h.b16 %v4146
  %v5257 = vunpack.c.l.b16 %v4147
  %v5258 = vunpack.c.l.b16 %v4148
  %v5259 = vunpack.c.h.b16 %v4148
  %v5260 = vunpack.c.l.b16 %v4149
  %v5261 = vunpack.c.h.b16 %v4149
  %v5262 = vunpack.c.l.b16 %v4150
  %v5263 = vunpack.c.h.b16 %v4150
  %v5264 = vunpack.c.l.b16 %v4151
  %v5265 = vunpack.c.h.b16 %v4151
  %v5266 = vunpack.c.l.b16 %v4152
  %v5267 = vunpack.c.h.b16 %v4152
  %v5268 = vunpack.c.l.b16 %v4153
  %v5269 = vunpack.c.h.b16 %v4153
  %v5270 = vunpack.c.l.b16 %v4154
  %v5271 = vunpack.c.h.b16 %v4154
  %v5272 = vunpack.c.l.b16 %v4155
  %v5273 = vunpack.c.h.b16 %v4155
  %v5274 = vunpack.c.l.b16 %v4156
  %v5275 = vpack.c.b16 %v4561, %v4544
  %v5276 = vpack.c.b16 %v4562, %v4545
  %v5277 = vpack.c.b16 %v4563, %v4546
  %v5278 = vpack.c.b16 %v4564, %v4547
  %v5279 = vpack.c.b16 %v4565, %v4548
  %v5280 = vpack.c.b16 %v4566, %v4549
  %v5281 = vpack.c.b16 %v4567, %v4550
  %v5282 = vpack.c.b16 %v4568, %v4551
  %v5283 = vpack.c.b16 %v4569, %v4552
  %v5284 = vpack.c.b16 %v4570, %v4553
  %v5285 = vpack.c.b16 %v4571, %v4554
  %v5286 = vpack.c.b16 %v4572, %v4555
  %v5287 = vpack.c.b16 %v4573, %v4556
  %v5288 = vpack.c.b16 %v4574, %v4557
  %v5289 = vpack.c.b16 %v4575, %v4558
  %v5290 = vpack.c.b16 %v4576, %v4559
  %v5291 = vpack.c.b16 %v4577, %v4560
  %v5292 = vpack.c.b16 %v4595, %v4578
  %v5293 = vpack.c.b16 %v4596, %v4579
  %v5294 = vpack.c.b16 %v4597, %v4580
  %v5295 = vpack.c.b16 %v4598, %v4581
  %v5296 = vpack.c.b16 %v4599, %v4582
  %v5297 = vpack.c.b16 %v4600, %v4583
  %v5298 = vpack.c.b16 %v4601, %v4584
  %v5299 = vpack.c.b16 %v4602, %v4585
  %v5300 = vpack.c.b16 %v4603, %v4586
  %v5301 = vpack.c.b16 %v4604, %v4587
  %v5302 = vpack.c.b16 %v4605, %v4588
  %v5303 = vpack.c.b16 %v4606, %v4589
  %v5304 = vpack.c.b16 %v4607, %v4590
  %v5305 = vpack.c.b16 %v4608, %v4591
  %v5306 = vpack.c.b16 %v4609, %v4592
  %v5307 = vpack.c.b16 %v4610, %v4593
  %v5308 = vpack.c.b16 %v4611, %v4594
  %v5309 = vpack.c.b16 %v4629, %v4612
  %v5310 = vpack.c.b16 %v4630, %v4613
  %v5311 = vpack.c.b16 %v4631, %v4614
  %v5312 = vpack.c.b16 %v4632, %v4615
  %v5313 = vpack.c.b16 %v4633, %v4616
  %v5314 = vpack.c.b16 %v4634, %v4617
  %v5315 = vpack.c.b16 %v4635, %v4618
  %v5316 = vpack.c.b16 %v4636, %v4619
  %v5317 = vpack.c.b16 %v4637, %v4620
  %v5318 = vpack.c.b16 %v4638, %v4621
  %v5319 = vpack.c.b16 %v4639, %v4622
  %v5320 = vpack.c.b16 %v4640, %v4623
  %v5321 = vpack.c.b16 %v4641, %v4624
  %v5322 = vpack.c.b16 %v4642, %v4625
  %v5323 = vpack.c.b16 %v4643, %v4626
  %v5324 = vpack.c.b16 %v4644, %v4627
  %v5325 = vpack.c.b16 %v4645, %v4628
  %v5326 = vpack.c.b16 %v4663, %v4646
  %v5327 = vpack.c.b16 %v4664, %v4647
  %v5328 = vpack.c.b16 %v4665, %v4648
  %v5329 = vpack.c.b16 %v4666, %v4649
  %v5330 = vpack.c.b16 %v4667, %v4650
  %v5331 = vpack.c.b16 %v4668, %v4651
  %v5332 = vpack.c.b16 %v4669, %v4652
  %v5333 = vpack.c.b16 %v4670, %v4653
  %v5334 = vpack.c.b16 %v4671, %v4654
  %v5335 = vpack.c.b16 %v4672, %v4655
  %v5336 = vpack.c.b16 %v4673, %v4656
  %v5337 = vpack.c.b16 %v4674, %v4657
  %v5338 = vpack.c.b16 %v4675, %v4658
  %v5339 = vpack.c.b16 %v4676, %v4659
  %v5340 = vpack.c.b16 %v4677, %v4660
  %v5341 = vpack.c.b16 %v4678, %v4661
  %v5342 = vpack.c.b16 %v4679, %v4662
  %v5343 = vpack.c.b16 %v4697, %v4680
  %v5344 = vpack.c.b16 %v4698, %v4681
  %v5345 = vpack.c.b16 %v4699, %v4682
  %v5346 = vpack.c.b16 %v4700, %v4683
  %v5347 = vpack.c.b16 %v4701, %v4684
  %v5348 = vpack.c.b16 %v4702, %v4685
  %v5349 = vpack.c.b16 %v4703, %v4686
  %v5350 = vpack.c.b16 %v4704, %v4687
  %v5351 = vpack.c.b16 %v4705, %v4688
  %v5352 = vpack.c.b16 %v4706, %v4689
  %v5353 = vpack.c.b16 %v4707, %v4690
  %v5354 = vpack.c.b16 %v4708, %v4691
  %v5355 = vpack.c.b16 %v4709, %v4692
  %v5356 = vpack.c.b16 %v4710, %v4693
  %v5357 = vpack.c.b16 %v4711, %v4694
  %v5358 = vpack.c.b16 %v4712, %v4695
  %v5359 = vpack.c.b16 %v4713, %v4696
  %v5360 = vpack.c.b16 %v4731, %v4714
  %v5361 = vpack.c.b16 %v4732, %v4715
  %v5362 = vpack.c.b16 %v4733, %v4716
  %v5363 = vpack.c.b16 %v4734, %v4717
  %v5364 = vpack.c.b16 %v4735, %v4718
  %v5365 = vpack.c.b16 %v4736, %v4719
  %v5366 = vpack.c.b16 %v4737, %v4720
  %v5367 = vpack.c.b16 %v4738, %v4721
  %v5368 = vpack.c.b16 %v4739, %v4722
  %v5369 = vpack.c.b16 %v4740, %v4723
  %v5370 = vpack.c.b16 %v4741, %v4724
  %v5371 = vpack.c.b16 %v4742, %v4725
  %v5372 = vpack.c.b16 %v4743, %v4726
  %v5373 = vpack.c.b16 %v4744, %v4727
  %v5374 = vpack.c.b16 %v4745, %v4728
  %v5375 = vpack.c.b16 %v4746, %v4729
  %v5376 = vpack.c.b16 %v4747, %v4730
  %v5377 = vpack.c.b16 %v4765, %v4748
  %v5378 = vpack.c.b16 %v4766, %v4749
  %v5379 = vpack.c.b16 %v4767, %v4750
  %v5380 = vpack.c.b16 %v4768, %v4751
  %v5381 = vpack.c.b16 %v4769, %v4752
  %v5382 = vpack.c.b16 %v4770, %v4753
  %v5383 = vpack.c.b16 %v4771, %v4754
  %v5384 = vpack.c.b16 %v4772, %v4755
  %v5385 = vpack.c.b16 %v4773, %v4756
  %v5386 = vpack.c.b16 %v4774, %v4757
  %v5387 = vpack.c.b16 %v4775, %v4758
  %v5388 = vpack.c.b16 %v4776, %v4759
  %v5389 = vpack.c.b16 %v4777, %v4760
  %v5390 = vpack.c.b16 %v4778, %v4761
  %v5391 = vpack.c.b16 %v4779, %v4762
  %v5392 = vpack.c.b16 %v4780, %v4763
  %v5393 = vpack.c.b16 %v4781, %v4764
  %v5394 = vpack.c.b16 %v4799, %v4782
  %v5395 = vpack.c.b16 %v4800, %v4783
  %v5396 = vpack.c.b16 %v4801, %v4784
  %v5397 = vpack.c.b16 %v4802, %v4785
  %v5398 = vpack.c.b16 %v4803, %v4786
  %v5399 = vpack.c.b16 %v4804, %v4787
  %v5400 = vpack.c.b16 %v4805, %v4788
  %v5401 = vpack.c.b16 %v4806, %v4789
  %v5402 = vpack.c.b16 %v4807, %v4790
  %v5403 = vpack.c.b16 %v4808, %v4791
  %v5404 = vpack.c.b16 %v4809, %v4792
  %v5405 = vpack.c.b16 %v4810, %v4793
  %v5406 = vpack.c.b16 %v4811, %v4794
  %v5407 = vpack.c.b16 %v4812, %v4795
  %v5408 = vpack.c.b16 %v4813, %v4796
  %v5409 = vpack.c.b16 %v4814, %v4797
  %v5410 = vpack.c.b16 %v4815, %v4798
  %v5411 = vpack.c.b16 %v4833, %v4816
  %v5412 = vpack.c.b16 %v4834, %v4817
  %v5413 = vpack.c.b16 %v4835, %v4818
  %v5414 = vpack.c.b16 %v4836, %v4819
  %v5415 = vpack.c.b16 %v4837, %v4820
  %v5416 = vpack.c.b16 %v4838, %v4821
  %v5417 = vpack.c.b16 %v4839, %v4822
  %v5418 = vpack.c.b16 %v4840, %v4823
  %v5419 = vpack.c.b16 %v4841, %v4824
  %v5420 = vpack.c.b16 %v4842, %v4825
  %v5421 = vpack.c.b16 %v4843, %v4826
  %v5422 = vpack.c.b16 %v4844, %v4827
  %v5423 = vpack.c.b16 %v4845, %v4828
  %v5424 = vpack.c.b16 %v4846, %v4829
  %v5425 = vpack.c.b16 %v4847, %v4830
  %v5426 = vpack.c.b16 %v4848, %v4831
  %v5427 = vpack.c.b16 %v4849, %v4832
  %v5428 = vpack.c.b16 %v4867, %v4850
  %v5429 = vpack.c.b16 %v4868, %v4851
  %v5430 = vpack.c.b16 %v4869, %v4852
  %v5431 = vpack.c.b16 %v4870, %v4853
  %v5432 = vpack.c.b16 %v4871, %v4854
  %v5433 = vpack.c.b16 %v4872, %v4855
  %v5434 = vpack.c.b16 %v4873, %v4856
  %v5435 = vpack.c.b16 %v4874, %v4857
  %v5436 = vpack.c.b16 %v4875, %v4858
  %v5437 = vpack.c.b16 %v4876, %v4859
  %v5438 = vpack.c.b16 %v4877, %v4860
  %v5439 = vpack.c.b16 %v4878, %v4861
  %v5440 = vpack.c.b16 %v4879, %v4862
  %v5441 = vpack.c.b16 %v4880, %v4863
  %v5442 = vpack.c.b16 %v4881, %v4864
  %v5443 = vpack.c.b16 %v4882, %v4865
  %v5444 = vpack.c.b16 %v4883, %v4866
  %v5445 = vpack.c.b16 %v4901, %v4884
  %v5446 = vpack.c.b16 %v4902, %v4885
  %v5447 = vpack.c.b16 %v4903, %v4886
  %v5448 = vpack.c.b16 %v4904, %v4887
  %v5449 = vpack.c.b16 %v4905, %v4888
  %v5450 = vpack.c.b16 %v4906, %v4889
  %v5451 = vpack.c.b16 %v4907, %v4890
  %v5452 = vpack.c.b16 %v4908, %v4891
  %v5453 = vpack.c.b16 %v4909, %v4892
  %v5454 = vpack.c.b16 %v4910, %v4893
  %v5455 = vpack.c.b16 %v4911, %v4894
  %v5456 = vpack.c.b16 %v4912, %v4895
  %v5457 = vpack.c.b16 %v4913, %v4896
  %v5458 = vpack.c.b16 %v4914, %v4897
  %v5459 = vpack.c.b16 %v4915, %v4898
  %v5460 = vpack.c.b16 %v4916, %v4899
  %v5461 = vpack.c.b16 %v4917, %v4900
  %v5462 = vpack.c.b16 %v4935, %v4918
  %v5463 = vpack.c.b16 %v4936, %v4919
  %v5464 = vpack.c.b16 %v4937, %v4920
  %v5465 = vpack.c.b16 %v4938, %v4921
  %v5466 = vpack.c.b16 %v4939, %v4922
  %v5467 = vpack.c.b16 %v4940, %v4923
  %v5468 = vpack.c.b16 %v4941, %v4924
  %v5469 = vpack.c.b16 %v4942, %v4925
  %v5470 = vpack.c.b16 %v4943, %v4926
  %v5471 = vpack.c.b16 %v4944, %v4927
  %v5472 = vpack.c.b16 %v4945, %v4928
  %v5473 = vpack.c.b16 %v4946, %v4929
  %v5474 = vpack.c.b16 %v4947, %v4930
  %v5475 = vpack.c.b16 %v4948, %v4931
  %v5476 = vpack.c.b16 %v4949, %v4932
  %v5477 = vpack.c.b16 %v4950, %v4933
  %v5478 = vpack.c.b16 %v4951, %v4934
  %v5479 = vpack.c.b16 %v4969, %v4952
  %v5480 = vpack.c.b16 %v4970, %v4953
  %v5481 = vpack.c.b16 %v4971, %v4954
  %v5482 = vpack.c.b16 %v4972, %v4955
  %v5483 = vpack.c.b16 %v4973, %v4956
  %v5484 = vpack.c.b16 %v4974, %v4957
  %v5485 = vpack.c.b16 %v4975, %v4958
  %v5486 = vpack.c.b16 %v4976, %v4959
  %v5487 = vpack.c.b16 %v4977, %v4960
  %v5488 = vpack.c.b16 %v4978, %v4961
  %v5489 = vpack.c.b16 %v4979, %v4962
  %v5490 = vpack.c.b16 %v4980, %v4963
  %v5491 = vpack.c.b16 %v4981, %v4964
  %v5492 = vpack.c.b16 %v4982, %v4965
  %v5493 = vpack.c.b16 %v4983, %v4966
  %v5494 = vpack.c.b16 %v4984, %v4967
  %v5495 = vpack.c.b16 %v4985, %v4968
  %v5496 = vpack.c.b16 %v5003, %v4986
  %v5497 = vpack.c.b16 %v5004, %v4987
  %v5498 = vpack.c.b16 %v5005, %v4988
  %v5499 = vpack.c.b16 %v5006, %v4989
  %v5500 = vpack.c.b16 %v5007, %v4990
  %v5501 = vpack.c.b16 %v5008, %v4991
  %v5502 = vpack.c.b16 %v5009, %v4992
  %v5503 = vpack.c.b16 %v5010, %v4993
  %v5504 = vpack.c.b16 %v5011, %v4994
  %v5505 = vpack.c.b16 %v5012, %v4995
  %v5506 = vpack.c.b16 %v5013, %v4996
  %v5507 = vpack.c.b16 %v5014, %v4997
  %v5508 = vpack.c.b16 %v5015, %v4998
  %v5509 = vpack.c.b16 %v5016, %v4999
  %v5510 = vpack.c.b16 %v5017, %v5000
  %v5511 = vpack.c.b16 %v5018, %v5001
  %v5512 = vpack.c.b16 %v5019, %v5002
  %v5513 = vpack.c.b16 %v5037, %v5020
  %v5514 = vpack.c.b16 %v5038, %v5021
  %v5515 = vpack.c.b16 %v5039, %v5022
  %v5516 = vpack.c.b16 %v5040, %v5023
  %v5517 = vpack.c.b16 %v5041, %v5024
  %v5518 = vpack.c.b16 %v5042, %v5025
  %v5519 = vpack.c.b16 %v5043, %v5026
  %v5520 = vpack.c.b16 %v5044, %v5027
  %v5521 = vpack.c.b16 %v5045, %v5028
  %v5522 = vpack.c.b16 %v5046, %v5029
  %v5523 = vpack.c.b16 %v5047, %v5030
  %v5524 = vpack.c.b16 %v5048, %v5031
  %v5525 = vpack.c.b16 %v5049, %v5032
  %v5526 = vpack.c.b16 %v5050, %v5033
  %v5527 = vpack.c.b16 %v5051, %v5034
  %v5528 = vpack.c.b16 %v5052, %v5035
  %v5529 = vpack.c.b16 %v5053, %v5036
  %v5530 = vpack.c.b16 %v5071, %v5054
  %v5531 = vpack.c.b16 %v5072, %v5055
  %v5532 = vpack.c.b16 %v5073, %v5056
  %v5533 = vpack.c.b16 %v5074, %v5057
  %v5534 = vpack.c.b16 %v5075, %v5058
  %v5535 = vpack.c.b16 %v5076, %v5059
  %v5536 = vpack.c.b16 %v5077, %v5060
  %v5537 = vpack.c.b16 %v5078, %v5061
  %v5538 = vpack.c.b16 %v5079, %v5062
  %v5539 = vpack.c.b16 %v5080, %v5063
  %v5540 = vpack.c.b16 %v5081, %v5064
  %v5541 = vpack.c.b16 %v5082, %v5065
  %v5542 = vpack.c.b16 %v5083, %v5066
  %v5543 = vpack.c.b16 %v5084, %v5067
  %v5544 = vpack.c.b16 %v5085, %v5068
  %v5545 = vpack.c.b16 %v5086, %v5069
  %v5546 = vpack.c.b16 %v5087, %v5070
  %v5547 = vpack.c.b16 %v5105, %v5088
  %v5548 = vpack.c.b16 %v5106, %v5089
  %v5549 = vpack.c.b16 %v5107, %v5090
  %v5550 = vpack.c.b16 %v5108, %v5091
  %v5551 = vpack.c.b16 %v5109, %v5092
  %v5552 = vpack.c.b16 %v5110, %v5093
  %v5553 = vpack.c.b16 %v5111, %v5094
  %v5554 = vpack.c.b16 %v5112, %v5095
  %v5555 = vpack.c.b16 %v5113, %v5096
  %v5556 = vpack.c.b16 %v5114, %v5097
  %v5557 = vpack.c.b16 %v5115, %v5098
  %v5558 = vpack.c.b16 %v5116, %v5099
  %v5559 = vpack.c.b16 %v5117, %v5100
  %v5560 = vpack.c.b16 %v5118, %v5101
  %v5561 = vpack.c.b16 %v5119, %v5102
  %v5562 = vpack.c.b16 %v5120, %v5103
  %v5563 = vpack.c.b16 %v5121, %v5104
  %v5564 = vpack.c.b16 %v5139, %v5122
  %v5565 = vpack.c.b16 %v5140, %v5123
  %v5566 = vpack.c.b16 %v5141, %v5124
  %v5567 = vpack.c.b16 %v5142, %v5125
  %v5568 = vpack.c.b16 %v5143, %v5126
  %v5569 = vpack.c.b16 %v5144, %v5127
  %v5570 = vpack.c.b16 %v5145, %v5128
  %v5571 = vpack.c.b16 %v5146, %v5129
  %v5572 = vpack.c.b16 %v5147, %v5130
  %v5573 = vpack.c.b16 %v5148, %v5131
  %v5574 = vpack.c.b16 %v5149, %v5132
  %v5575 = vpack.c.b16 %v5150, %v5133
  %v5576 = vpack.c.b16 %v5151, %v5134
  %v5577 = vpack.c.b16 %v5152, %v5135
  %v5578 = vpack.c.b16 %v5153, %v5136
  %v5579 = vpack.c.b16 %v5154, %v5137
  %v5580 = vpack.c.b16 %v5155, %v5138
  %v5581 = vpack.c.b16 %v5173, %v5156
  %v5582 = vpack.c.b16 %v5174, %v5157
  %v5583 = vpack.c.b16 %v5175, %v5158
  %v5584 = vpack.c.b16 %v5176, %v5159
  %v5585 = vpack.c.b16 %v5177, %v5160
  %v5586 = vpack.c.b16 %v5178, %v5161
  %v5587 = vpack.c.b16 %v5179, %v5162
  %v5588 = vpack.c.b16 %v5180, %v5163
  %v5589 = vpack.c.b16 %v5181, %v5164
  %v5590 = vpack.c.b16 %v5182, %v5165
  %v5591 = vpack.c.b16 %v5183, %v5166
  %v5592 = vpack.c.b16 %v5184, %v5167
  %v5593 = vpack.c.b16 %v5185, %v5168
  %v5594 = vpack.c.b16 %v5186, %v5169
  %v5595 = vpack.c.b16 %v5187, %v5170
  %v5596 = vpack.c.b16 %v5188, %v5171
  %v5597 = vpack.c.b16 %v5189, %v5172
  %v5598 = vpack.c.b16 %v5207, %v5190
  %v5599 = vpack.c.b16 %v5208, %v5191
  %v5600 = vpack.c.b16 %v5209, %v5192
  %v5601 = vpack.c.b16 %v5210, %v5193
  %v5602 = vpack.c.b16 %v5211, %v5194
  %v5603 = vpack.c.b16 %v5212, %v5195
  %v5604 = vpack.c.b16 %v5213, %v5196
  %v5605 = vpack.c.b16 %v5214, %v5197
  %v5606 = vpack.c.b16 %v5215, %v5198
  %v5607 = vpack.c.b16 %v5216, %v5199
  %v5608 = vpack.c.b16 %v5217, %v5200
  %v5609 = vpack.c.b16 %v5218, %v5201
  %v5610 = vpack.c.b16 %v5219, %v5202
  %v5611 = vpack.c.b16 %v5220, %v5203
  %v5612 = vpack.c.b16 %v5221, %v5204
  %v5613 = vpack.c.b16 %v5222, %v5205
  %v5614 = vpack.c.b16 %v5223, %v5206
  %v5615 = vpack.c.b16 %v5241, %v5224
  %v5616 = vpack.c.b16 %v5242, %v5225
  %v5617 = vpack.c.b16 %v5243, %v5226
  %v5618 = vpack.c.b16 %v5244, %v5227
  %v5619 = vpack.c.b16 %v5245, %v5228
  %v5620 = vpack.c.b16 %v5246, %v5229
  %v5621 = vpack.c.b16 %v5247, %v5230
  %v5622 = vpack.c.b16 %v5248, %v5231
  %v5623 = vpack.c.b16 %v5249, %v5232
  %v5624 = vpack.c.b16 %v5250, %v5233
  %v5625 = vpack.c.b16 %v5251, %v5234
  %v5626 = vpack.c.b16 %v5252, %v5235
  %v5627 = vpack.c.b16 %v5253, %v5236
  %v5628 = vpack.c.b16 %v5254, %v5237
  %v5629 = vpack.c.b16 %v5255, %v5238
  %v5630 = vpack.c.b16 %v5256, %v5239
  %v5631 = vpack.c.b16 %v5257, %v5240
  %v5632 = vpack.c.b16 %v5258, %v5258
  %v5633 = vpack.c.b16 %v5259, %v5259
  %v5634 = vpack.c.b16 %v5260, %v5260
  %v5635 = vpack.c.b16 %v5261, %v5261
  %v5636 = vpack.c.b16 %v5262, %v5262
  %v5637 = vpack.c.b16 %v5263, %v5263
  %v5638 = vpack.c.b16 %v5264, %v5264
  %v5639 = vpack.c.b16 %v5265, %v5265
  %v5640 = vpack.c.b16 %v5266, %v5266
  %v5641 = vpack.c.b16 %v5267, %v5267
  %v5642 = vpack.c.b16 %v5268, %v5268
  %v5643 = vpack.c.b16 %v5269, %v5269
  %v5644 = vpack.c.b16 %v5270, %v5270
  %v5645 = vpack.c.b16 %v5271, %v5271
  %v5646 = vpack.c.b16 %v5272, %v5272
  %v5647 = vpack.c.b16 %v5273, %v5273
  %v5648 = vpack.c.b16 %v5274, %v5274
  %vm6001 = vcmask 130048
  %v6003 = vsel %vm6001, %v5291, 0
  %v6006 = vsel %vm6001, %v5308, 0
  %v6009 = vsel %vm6001, %v5325, 0
  %v6012 = vsel %vm6001, %v5342, 0
  %v6015 = vsel %vm6001, %v5359, 0
  %v6018 = vsel %vm6001, %v5376, 0
  %v6021 = vsel %vm6001, %v5393, 0
  %v6024 = vsel %vm6001, %v5410, 0
  %v6027 = vsel %vm6001, %v5427, 0
  %v6030 = vsel %vm6001, %v5444, 0
  %v6033 = vsel %vm6001, %v5461, 0
  %v6036 = vsel %vm6001, %v5478, 0
  %v6039 = vsel %vm6001, %v5495, 0
  %v6042 = vsel %vm6001, %v5512, 0
  %v6045 = vsel %vm6001, %v5529, 0
  %v6048 = vsel %vm6001, %v5546, 0
  %v6051 = vsel %vm6001, %v5563, 0
  %v6054 = vsel %vm6001, %v5580, 0
  %v6057 = vsel %vm6001, %v5597, 0
  %v6060 = vsel %vm6001, %v5614, 0
  %v6063 = vsel %vm6001, %v5631, 0
  %v6066 = vsel %vm6001, %v5648, 0
  %6068 = vmatprep.subr.bf16.mxu0 0
  %6069 = vmatpush1.bf16.msra.mxu0 %v3648
  %6070 = vmatprep.subr.bf16.mxu0 0
  %6071 = vmatpush1.bf16.msra.mxu0 %v3647
  %6072 = vmatprep.subr.bf16.mxu0 0
  %6073 = vmatpush1.bf16.msra.mxu0 %v3646
  %6074 = vmatprep.subr.bf16.mxu0 0
  %6075 = vmatpush1.bf16.msra.mxu0 %v3645
  %6076 = vmatprep.subr.bf16.mxu0 0
  %6077 = vmatpush1.bf16.msra.mxu0 %v3644
  %6078 = vmatprep.subr.bf16.mxu0 0
  %6079 = vmatpush1.bf16.msra.mxu0 %v3643
  %6080 = vmatprep.subr.bf16.mxu0 0
  %6081 = vmatpush1.bf16.msra.mxu0 %v3642
  %6082 = vmatprep.subr.bf16.mxu0 0
  %6083 = vmatpush1.bf16.msra.mxu0 %v3641
  %6084 = vmatprep.subr.bf16.mxu0 0
  %6085 = vmatpush2.bf16.msra.mxu0 %v3656
  %6086 = vmatprep.subr.bf16.mxu0 0
  %6087 = vmatpush2.bf16.msra.mxu0 %v3655
  %6088 = vmatprep.subr.bf16.mxu0 0
  %6089 = vmatpush2.bf16.msra.mxu0 %v3654
  %6090 = vmatprep.subr.bf16.mxu0 0
  %6091 = vmatpush2.bf16.msra.mxu0 %v3653
  %6092 = vmatprep.subr.bf16.mxu0 0
  %6093 = vmatpush2.bf16.msra.mxu0 %v3652
  %6094 = vmatprep.subr.bf16.mxu0 0
  %6095 = vmatpush2.bf16.msra.mxu0 %v3651
  %6096 = vmatprep.subr.bf16.mxu0 0
  %6097 = vmatpush2.bf16.msra.mxu0 %v3650
  %6098 = vmatprep.subr.bf16.mxu0 0
  %6099 = vmatpush2.bf16.msra.mxu0 %v3649
  %6100 = vmatprep.mubr.bf16.mxu0 %v5276
  %6101 = vmatmul.mubr.bf16.gmra.mxu0 %v5275
  %v6102 = vpop.f32.mrf.mxu0
  %v6103 = vadd.f32 0.0, %v6102
  %v6104 = vpop.f32.mrf.mxu0
  %v6105 = vpop.f32.mrf.mxu0
  %v6106 = vadd.f32 0.0, %v6105
  %v6107 = vpop.f32.mrf.mxu0
  %6108 = vmatprep.mubr.bf16.mxu0 %v5293
  %6109 = vmatmul.mubr.bf16.gmra.mxu0 %v5292
  %v6110 = vpop.f32.mrf.mxu0
  %v6111 = vadd.f32 0.0, %v6110
  %v6112 = vpop.f32.mrf.mxu0
  %v6113 = vpop.f32.mrf.mxu0
  %v6114 = vadd.f32 0.0, %v6113
  %v6115 = vpop.f32.mrf.mxu0
  %6116 = vmatprep.mubr.bf16.mxu0 %v5310
  %6117 = vmatmul.mubr.bf16.gmra.mxu0 %v5309
  %v6118 = vpop.f32.mrf.mxu0
  %v6119 = vadd.f32 0.0, %v6118
  %v6120 = vpop.f32.mrf.mxu0
  %v6121 = vpop.f32.mrf.mxu0
  %v6122 = vadd.f32 0.0, %v6121
  %v6123 = vpop.f32.mrf.mxu0
  %6124 = vmatprep.mubr.bf16.mxu0 %v5327
  %6125 = vmatmul.mubr.bf16.gmra.mxu0 %v5326
  %v6126 = vpop.f32.mrf.mxu0
  %v6127 = vadd.f32 0.0, %v6126
  %v6128 = vpop.f32.mrf.mxu0
  %v6129 = vpop.f32.mrf.mxu0
  %v6130 = vadd.f32 0.0, %v6129
  %v6131 = vpop.f32.mrf.mxu0
  %6132 = vmatprep.mubr.bf16.mxu0 %v5344
  %6133 = vmatmul.mubr.bf16.gmra.mxu0 %v5343
  %v6134 = vpop.f32.mrf.mxu0
  %v6135 = vadd.f32 0.0, %v6134
  %v6136 = vpop.f32.mrf.mxu0
  %v6137 = vpop.f32.mrf.mxu0
  %v6138 = vadd.f32 0.0, %v6137
  %v6139 = vpop.f32.mrf.mxu0
  %6140 = vmatprep.mubr.bf16.mxu0 %v5361
  %6141 = vmatmul.mubr.bf16.gmra.mxu0 %v5360
  %v6142 = vpop.f32.mrf.mxu0
  %v6143 = vadd.f32 0.0, %v6142
  %v6144 = vpop.f32.mrf.mxu0
  %v6145 = vpop.f32.mrf.mxu0
  %v6146 = vadd.f32 0.0, %v6145
  %v6147 = vpop.f32.mrf.mxu0
  %6148 = vmatprep.mubr.bf16.mxu0 %v5378
  %6149 = vmatmul.mubr.bf16.gmra.mxu0 %v5377
  %v6150 = vpop.f32.mrf.mxu0
  %v6151 = vadd.f32 0.0, %v6150
  %v6152 = vpop.f32.mrf.mxu0
  %v6153 = vpop.f32.mrf.mxu0
  %v6154 = vadd.f32 0.0, %v6153
  %v6155 = vpop.f32.mrf.mxu0
  %6156 = vmatprep.mubr.bf16.mxu0 %v5395
  %6157 = vmatmul.mubr.bf16.gmra.mxu0 %v5394
  %v6158 = vpop.f32.mrf.mxu0
  %v6159 = vadd.f32 0.0, %v6158
  %v6160 = vpop.f32.mrf.mxu0
  %v6161 = vpop.f32.mrf.mxu0
  %v6162 = vadd.f32 0.0, %v6161
  %v6163 = vpop.f32.mrf.mxu0
  %6164 = vmatprep.mubr.bf16.mxu0 %v5412
  %6165 = vmatmul.mubr.bf16.gmra.mxu0 %v5411
  %v6166 = vpop.f32.mrf.mxu0
  %v6167 = vadd.f32 0.0, %v6166
  %v6168 = vpop.f32.mrf.mxu0
  %v6169 = vpop.f32.mrf.mxu0
  %v6170 = vadd.f32 0.0, %v6169
  %v6171 = vpop.f32.mrf.mxu0
  %6172 = vmatprep.mubr.bf16.mxu0 %v5429
  %6173 = vmatmul.mubr.bf16.gmra.mxu0 %v5428
  %v6174 = vpop.f32.mrf.mxu0
  %v6175 = vadd.f32 0.0, %v6174
  %v6176 = vpop.f32.mrf.mxu0
  %v6177 = vpop.f32.mrf.mxu0
  %v6178 = vadd.f32 0.0, %v6177
  %v6179 = vpop.f32.mrf.mxu0
  %6180 = vmatprep.mubr.bf16.mxu0 %v5446
  %6181 = vmatmul.mubr.bf16.gmra.mxu0 %v5445
  %v6182 = vpop.f32.mrf.mxu0
  %v6183 = vadd.f32 0.0, %v6182
  %v6184 = vpop.f32.mrf.mxu0
  %v6185 = vpop.f32.mrf.mxu0
  %v6186 = vadd.f32 0.0, %v6185
  %v6187 = vpop.f32.mrf.mxu0
  %6188 = vmatprep.mubr.bf16.mxu0 %v5463
  %6189 = vmatmul.mubr.bf16.gmra.mxu0 %v5462
  %v6190 = vpop.f32.mrf.mxu0
  %v6191 = vadd.f32 0.0, %v6190
  %v6192 = vpop.f32.mrf.mxu0
  %v6193 = vpop.f32.mrf.mxu0
  %v6194 = vadd.f32 0.0, %v6193
  %v6195 = vpop.f32.mrf.mxu0
  %6196 = vmatprep.mubr.bf16.mxu0 %v5480
  %6197 = vmatmul.mubr.bf16.gmra.mxu0 %v5479
  %v6198 = vpop.f32.mrf.mxu0
  %v6199 = vadd.f32 0.0, %v6198
  %v6200 = vpop.f32.mrf.mxu0
  %v6201 = vpop.f32.mrf.mxu0
  %v6202 = vadd.f32 0.0, %v6201
  %v6203 = vpop.f32.mrf.mxu0
  %6204 = vmatprep.mubr.bf16.mxu0 %v5497
  %6205 = vmatmul.mubr.bf16.gmra.mxu0 %v5496
  %v6206 = vpop.f32.mrf.mxu0
  %v6207 = vadd.f32 0.0, %v6206
  %v6208 = vpop.f32.mrf.mxu0
  %v6209 = vpop.f32.mrf.mxu0
  %v6210 = vadd.f32 0.0, %v6209
  %v6211 = vpop.f32.mrf.mxu0
  %6212 = vmatprep.mubr.bf16.mxu0 %v5514
  %6213 = vmatmul.mubr.bf16.gmra.mxu0 %v5513
  %v6214 = vpop.f32.mrf.mxu0
  %v6215 = vadd.f32 0.0, %v6214
  %v6216 = vpop.f32.mrf.mxu0
  %v6217 = vpop.f32.mrf.mxu0
  %v6218 = vadd.f32 0.0, %v6217
  %v6219 = vpop.f32.mrf.mxu0
  %6220 = vmatprep.mubr.bf16.mxu0 %v5531
  %6221 = vmatmul.mubr.bf16.gmra.mxu0 %v5530
  %v6222 = vpop.f32.mrf.mxu0
  %v6223 = vadd.f32 0.0, %v6222
  %v6224 = vpop.f32.mrf.mxu0
  %v6225 = vpop.f32.mrf.mxu0
  %v6226 = vadd.f32 0.0, %v6225
  %v6227 = vpop.f32.mrf.mxu0
  %6228 = vmatprep.mubr.bf16.mxu0 %v5548
  %6229 = vmatmul.mubr.bf16.gmra.mxu0 %v5547
  %v6230 = vpop.f32.mrf.mxu0
  %v6231 = vadd.f32 0.0, %v6230
  %v6232 = vpop.f32.mrf.mxu0
  %v6233 = vpop.f32.mrf.mxu0
  %v6234 = vadd.f32 0.0, %v6233
  %v6235 = vpop.f32.mrf.mxu0
  %6236 = vmatprep.mubr.bf16.mxu0 %v5565
  %6237 = vmatmul.mubr.bf16.gmra.mxu0 %v5564
  %v6238 = vpop.f32.mrf.mxu0
  %v6239 = vadd.f32 0.0, %v6238
  %v6240 = vpop.f32.mrf.mxu0
  %v6241 = vpop.f32.mrf.mxu0
  %v6242 = vadd.f32 0.0, %v6241
  %v6243 = vpop.f32.mrf.mxu0
  %6244 = vmatprep.mubr.bf16.mxu0 %v5582
  %6245 = vmatmul.mubr.bf16.gmra.mxu0 %v5581
  %v6246 = vpop.f32.mrf.mxu0
  %v6247 = vadd.f32 0.0, %v6246
  %v6248 = vpop.f32.mrf.mxu0
  %v6249 = vpop.f32.mrf.mxu0
  %v6250 = vadd.f32 0.0, %v6249
  %v6251 = vpop.f32.mrf.mxu0
  %6252 = vmatprep.mubr.bf16.mxu0 %v5599
  %6253 = vmatmul.mubr.bf16.gmra.mxu0 %v5598
  %v6254 = vpop.f32.mrf.mxu0
  %v6255 = vadd.f32 0.0, %v6254
  %v6256 = vpop.f32.mrf.mxu0
  %v6257 = vpop.f32.mrf.mxu0
  %v6258 = vadd.f32 0.0, %v6257
  %v6259 = vpop.f32.mrf.mxu0
  %6260 = vmatprep.mubr.bf16.mxu0 %v5616
  %6261 = vmatmul.mubr.bf16.gmra.mxu0 %v5615
  %v6262 = vpop.f32.mrf.mxu0
  %v6263 = vadd.f32 0.0, %v6262
  %v6264 = vpop.f32.mrf.mxu0
  %v6265 = vpop.f32.mrf.mxu0
  %v6266 = vadd.f32 0.0, %v6265
  %v6267 = vpop.f32.mrf.mxu0
  %6268 = vmatprep.mubr.bf16.mxu0 %v5633
  %6269 = vmatmul.mubr.bf16.gmra.mxu0 %v5632
  %v6270 = vpop.f32.mrf.mxu0
  %v6271 = vadd.f32 0.0, %v6270
  %v6272 = vpop.f32.mrf.mxu0
  %v6273 = vpop.f32.mrf.mxu0
  %v6274 = vpop.f32.mrf.mxu0
  %6275 = vdwg.mxu0
  %6276 = vmatprep.subr.bf16.mxu0 0
  %6277 = vmatpush1.bf16.msra.mxu0 %v3664
  %6278 = vmatprep.subr.bf16.mxu0 0
  %6279 = vmatpush1.bf16.msra.mxu0 %v3663
  %6280 = vmatprep.subr.bf16.mxu0 0
  %6281 = vmatpush1.bf16.msra.mxu0 %v3662
  %6282 = vmatprep.subr.bf16.mxu0 0
  %6283 = vmatpush1.bf16.msra.mxu0 %v3661
  %6284 = vmatprep.subr.bf16.mxu0 0
  %6285 = vmatpush1.bf16.msra.mxu0 %v3660
  %6286 = vmatprep.subr.bf16.mxu0 0
  %6287 = vmatpush1.bf16.msra.mxu0 %v3659
  %6288 = vmatprep.subr.bf16.mxu0 0
  %6289 = vmatpush1.bf16.msra.mxu0 %v3658
  %6290 = vmatprep.subr.bf16.mxu0 0
  %6291 = vmatpush1.bf16.msra.mxu0 %v3657
  %6292 = vmatprep.subr.bf16.mxu0 0
  %6293 = vmatpush2.bf16.msra.mxu0 %v3672
  %6294 = vmatprep.subr.bf16.mxu0 0
  %6295 = vmatpush2.bf16.msra.mxu0 %v3671
  %6296 = vmatprep.subr.bf16.mxu0 0
  %6297 = vmatpush2.bf16.msra.mxu0 %v3670
  %6298 = vmatprep.subr.bf16.mxu0 0
  %6299 = vmatpush2.bf16.msra.mxu0 %v3669
  %6300 = vmatprep.subr.bf16.mxu0 0
  %6301 = vmatpush2.bf16.msra.mxu0 %v3668
  %6302 = vmatprep.subr.bf16.mxu0 0
  %6303 = vmatpush2.bf16.msra.mxu0 %v3667
  %6304 = vmatprep.subr.bf16.mxu0 0
  %6305 = vmatpush2.bf16.msra.mxu0 %v3666
  %6306 = vmatprep.subr.bf16.mxu0 0
  %6307 = vmatpush2.bf16.msra.mxu0 %v3665
  %6308 = vmatprep.mubr.bf16.mxu0 %v5278
  %6309 = vmatmul.mubr.bf16.gmra.mxu0 %v5277
  %v6310 = vpop.f32.mrf.mxu0
  %v6311 = vadd.f32 %v6103, %v6310
  %v6312 = vpop.f32.mrf.mxu0
  %v6313 = vpop.f32.mrf.mxu0
  %v6314 = vadd.f32 %v6106, %v6313
  %v6315 = vpop.f32.mrf.mxu0
  %6316 = vmatprep.mubr.bf16.mxu0 %v5295
  %6317 = vmatmul.mubr.bf16.gmra.mxu0 %v5294
  %v6318 = vpop.f32.mrf.mxu0
  %v6319 = vadd.f32 %v6111, %v6318
  %v6320 = vpop.f32.mrf.mxu0
  %v6321 = vpop.f32.mrf.mxu0
  %v6322 = vadd.f32 %v6114, %v6321
  %v6323 = vpop.f32.mrf.mxu0
  %6324 = vmatprep.mubr.bf16.mxu0 %v5312
  %6325 = vmatmul.mubr.bf16.gmra.mxu0 %v5311
  %v6326 = vpop.f32.mrf.mxu0
  %v6327 = vadd.f32 %v6119, %v6326
  %v6328 = vpop.f32.mrf.mxu0
  %v6329 = vpop.f32.mrf.mxu0
  %v6330 = vadd.f32 %v6122, %v6329
  %v6331 = vpop.f32.mrf.mxu0
  %6332 = vmatprep.mubr.bf16.mxu0 %v5329
  %6333 = vmatmul.mubr.bf16.gmra.mxu0 %v5328
  %v6334 = vpop.f32.mrf.mxu0
  %v6335 = vadd.f32 %v6127, %v6334
  %v6336 = vpop.f32.mrf.mxu0
  %v6337 = vpop.f32.mrf.mxu0
  %v6338 = vadd.f32 %v6130, %v6337
  %v6339 = vpop.f32.mrf.mxu0
  %6340 = vmatprep.mubr.bf16.mxu0 %v5346
  %6341 = vmatmul.mubr.bf16.gmra.mxu0 %v5345
  %v6342 = vpop.f32.mrf.mxu0
  %v6343 = vadd.f32 %v6135, %v6342
  %v6344 = vpop.f32.mrf.mxu0
  %v6345 = vpop.f32.mrf.mxu0
  %v6346 = vadd.f32 %v6138, %v6345
  %v6347 = vpop.f32.mrf.mxu0
  %6348 = vmatprep.mubr.bf16.mxu0 %v5363
  %6349 = vmatmul.mubr.bf16.gmra.mxu0 %v5362
  %v6350 = vpop.f32.mrf.mxu0
  %v6351 = vadd.f32 %v6143, %v6350
  %v6352 = vpop.f32.mrf.mxu0
  %v6353 = vpop.f32.mrf.mxu0
  %v6354 = vadd.f32 %v6146, %v6353
  %v6355 = vpop.f32.mrf.mxu0
  %6356 = vmatprep.mubr.bf16.mxu0 %v5380
  %6357 = vmatmul.mubr.bf16.gmra.mxu0 %v5379
  %v6358 = vpop.f32.mrf.mxu0
  %v6359 = vadd.f32 %v6151, %v6358
  %v6360 = vpop.f32.mrf.mxu0
  %v6361 = vpop.f32.mrf.mxu0
  %v6362 = vadd.f32 %v6154, %v6361
  %v6363 = vpop.f32.mrf.mxu0
  %6364 = vmatprep.mubr.bf16.mxu0 %v5397
  %6365 = vmatmul.mubr.bf16.gmra.mxu0 %v5396
  %v6366 = vpop.f32.mrf.mxu0
  %v6367 = vadd.f32 %v6159, %v6366
  %v6368 = vpop.f32.mrf.mxu0
  %v6369 = vpop.f32.mrf.mxu0
  %v6370 = vadd.f32 %v6162, %v6369
  %v6371 = vpop.f32.mrf.mxu0
  %6372 = vmatprep.mubr.bf16.mxu0 %v5414
  %6373 = vmatmul.mubr.bf16.gmra.mxu0 %v5413
  %v6374 = vpop.f32.mrf.mxu0
  %v6375 = vadd.f32 %v6167, %v6374
  %v6376 = vpop.f32.mrf.mxu0
  %v6377 = vpop.f32.mrf.mxu0
  %v6378 = vadd.f32 %v6170, %v6377
  %v6379 = vpop.f32.mrf.mxu0
  %6380 = vmatprep.mubr.bf16.mxu0 %v5431
  %6381 = vmatmul.mubr.bf16.gmra.mxu0 %v5430
  %v6382 = vpop.f32.mrf.mxu0
  %v6383 = vadd.f32 %v6175, %v6382
  %v6384 = vpop.f32.mrf.mxu0
  %v6385 = vpop.f32.mrf.mxu0
  %v6386 = vadd.f32 %v6178, %v6385
  %v6387 = vpop.f32.mrf.mxu0
  %6388 = vmatprep.mubr.bf16.mxu0 %v5448
  %6389 = vmatmul.mubr.bf16.gmra.mxu0 %v5447
  %v6390 = vpop.f32.mrf.mxu0
  %v6391 = vadd.f32 %v6183, %v6390
  %v6392 = vpop.f32.mrf.mxu0
  %v6393 = vpop.f32.mrf.mxu0
  %v6394 = vadd.f32 %v6186, %v6393
  %v6395 = vpop.f32.mrf.mxu0
  %6396 = vmatprep.mubr.bf16.mxu0 %v5465
  %6397 = vmatmul.mubr.bf16.gmra.mxu0 %v5464
  %v6398 = vpop.f32.mrf.mxu0
  %v6399 = vadd.f32 %v6191, %v6398
  %v6400 = vpop.f32.mrf.mxu0
  %v6401 = vpop.f32.mrf.mxu0
  %v6402 = vadd.f32 %v6194, %v6401
  %v6403 = vpop.f32.mrf.mxu0
  %6404 = vmatprep.mubr.bf16.mxu0 %v5482
  %6405 = vmatmul.mubr.bf16.gmra.mxu0 %v5481
  %v6406 = vpop.f32.mrf.mxu0
  %v6407 = vadd.f32 %v6199, %v6406
  %v6408 = vpop.f32.mrf.mxu0
  %v6409 = vpop.f32.mrf.mxu0
  %v6410 = vadd.f32 %v6202, %v6409
  %v6411 = vpop.f32.mrf.mxu0
  %6412 = vmatprep.mubr.bf16.mxu0 %v5499
  %6413 = vmatmul.mubr.bf16.gmra.mxu0 %v5498
  %v6414 = vpop.f32.mrf.mxu0
  %v6415 = vadd.f32 %v6207, %v6414
  %v6416 = vpop.f32.mrf.mxu0
  %v6417 = vpop.f32.mrf.mxu0
  %v6418 = vadd.f32 %v6210, %v6417
  %v6419 = vpop.f32.mrf.mxu0
  %6420 = vmatprep.mubr.bf16.mxu0 %v5516
  %6421 = vmatmul.mubr.bf16.gmra.mxu0 %v5515
  %v6422 = vpop.f32.mrf.mxu0
  %v6423 = vadd.f32 %v6215, %v6422
  %v6424 = vpop.f32.mrf.mxu0
  %v6425 = vpop.f32.mrf.mxu0
  %v6426 = vadd.f32 %v6218, %v6425
  %v6427 = vpop.f32.mrf.mxu0
  %6428 = vmatprep.mubr.bf16.mxu0 %v5533
  %6429 = vmatmul.mubr.bf16.gmra.mxu0 %v5532
  %v6430 = vpop.f32.mrf.mxu0
  %v6431 = vadd.f32 %v6223, %v6430
  %v6432 = vpop.f32.mrf.mxu0
  %v6433 = vpop.f32.mrf.mxu0
  %v6434 = vadd.f32 %v6226, %v6433
  %v6435 = vpop.f32.mrf.mxu0
  %6436 = vmatprep.mubr.bf16.mxu0 %v5550
  %6437 = vmatmul.mubr.bf16.gmra.mxu0 %v5549
  %v6438 = vpop.f32.mrf.mxu0
  %v6439 = vadd.f32 %v6231, %v6438
  %v6440 = vpop.f32.mrf.mxu0
  %v6441 = vpop.f32.mrf.mxu0
  %v6442 = vadd.f32 %v6234, %v6441
  %v6443 = vpop.f32.mrf.mxu0
  %6444 = vmatprep.mubr.bf16.mxu0 %v5567
  %6445 = vmatmul.mubr.bf16.gmra.mxu0 %v5566
  %v6446 = vpop.f32.mrf.mxu0
  %v6447 = vadd.f32 %v6239, %v6446
  %v6448 = vpop.f32.mrf.mxu0
  %v6449 = vpop.f32.mrf.mxu0
  %v6450 = vadd.f32 %v6242, %v6449
  %v6451 = vpop.f32.mrf.mxu0
  %6452 = vmatprep.mubr.bf16.mxu0 %v5584
  %6453 = vmatmul.mubr.bf16.gmra.mxu0 %v5583
  %v6454 = vpop.f32.mrf.mxu0
  %v6455 = vadd.f32 %v6247, %v6454
  %v6456 = vpop.f32.mrf.mxu0
  %v6457 = vpop.f32.mrf.mxu0
  %v6458 = vadd.f32 %v6250, %v6457
  %v6459 = vpop.f32.mrf.mxu0
  %6460 = vmatprep.mubr.bf16.mxu0 %v5601
  %6461 = vmatmul.mubr.bf16.gmra.mxu0 %v5600
  %v6462 = vpop.f32.mrf.mxu0
  %v6463 = vadd.f32 %v6255, %v6462
  %v6464 = vpop.f32.mrf.mxu0
  %v6465 = vpop.f32.mrf.mxu0
  %v6466 = vadd.f32 %v6258, %v6465
  %v6467 = vpop.f32.mrf.mxu0
  %6468 = vmatprep.mubr.bf16.mxu0 %v5618
  %6469 = vmatmul.mubr.bf16.gmra.mxu0 %v5617
  %v6470 = vpop.f32.mrf.mxu0
  %v6471 = vadd.f32 %v6263, %v6470
  %v6472 = vpop.f32.mrf.mxu0
  %v6473 = vpop.f32.mrf.mxu0
  %v6474 = vadd.f32 %v6266, %v6473
  %v6475 = vpop.f32.mrf.mxu0
  %6476 = vmatprep.mubr.bf16.mxu0 %v5635
  %6477 = vmatmul.mubr.bf16.gmra.mxu0 %v5634
  %v6478 = vpop.f32.mrf.mxu0
  %v6479 = vadd.f32 %v6271, %v6478
  %v6480 = vpop.f32.mrf.mxu0
  %v6481 = vpop.f32.mrf.mxu0
  %v6482 = vpop.f32.mrf.mxu0
  %6483 = vdwg.mxu0
  %6484 = vmatprep.subr.bf16.mxu0 0
  %6485 = vmatpush1.bf16.msra.mxu0 %v3680
  %6486 = vmatprep.subr.bf16.mxu0 0
  %6487 = vmatpush1.bf16.msra.mxu0 %v3679
  %6488 = vmatprep.subr.bf16.mxu0 0
  %6489 = vmatpush1.bf16.msra.mxu0 %v3678
  %6490 = vmatprep.subr.bf16.mxu0 0
  %6491 = vmatpush1.bf16.msra.mxu0 %v3677
  %6492 = vmatprep.subr.bf16.mxu0 0
  %6493 = vmatpush1.bf16.msra.mxu0 %v3676
  %6494 = vmatprep.subr.bf16.mxu0 0
  %6495 = vmatpush1.bf16.msra.mxu0 %v3675
  %6496 = vmatprep.subr.bf16.mxu0 0
  %6497 = vmatpush1.bf16.msra.mxu0 %v3674
  %6498 = vmatprep.subr.bf16.mxu0 0
  %6499 = vmatpush1.bf16.msra.mxu0 %v3673
  %6500 = vmatprep.subr.bf16.mxu0 0
  %6501 = vmatpush2.bf16.msra.mxu0 %v3688
  %6502 = vmatprep.subr.bf16.mxu0 0
  %6503 = vmatpush2.bf16.msra.mxu0 %v3687
  %6504 = vmatprep.subr.bf16.mxu0 0
  %6505 = vmatpush2.bf16.msra.mxu0 %v3686
  %6506 = vmatprep.subr.bf16.mxu0 0
  %6507 = vmatpush2.bf16.msra.mxu0 %v3685
  %6508 = vmatprep.subr.bf16.mxu0 0
  %6509 = vmatpush2.bf16.msra.mxu0 %v3684
  %6510 = vmatprep.subr.bf16.mxu0 0
  %6511 = vmatpush2.bf16.msra.mxu0 %v3683
  %6512 = vmatprep.subr.bf16.mxu0 0
  %6513 = vmatpush2.bf16.msra.mxu0 %v3682
  %6514 = vmatprep.subr.bf16.mxu0 0
  %6515 = vmatpush2.bf16.msra.mxu0 %v3681
  %6516 = vmatprep.mubr.bf16.mxu0 %v5280
  %6517 = vmatmul.mubr.bf16.gmra.mxu0 %v5279
  %v6518 = vpop.f32.mrf.mxu0
  %v6519 = vadd.f32 %v6311, %v6518
  %v6520 = vpop.f32.mrf.mxu0
  %v6521 = vpop.f32.mrf.mxu0
  %v6522 = vadd.f32 %v6314, %v6521
  %v6523 = vpop.f32.mrf.mxu0
  %6524 = vmatprep.mubr.bf16.mxu0 %v5297
  %6525 = vmatmul.mubr.bf16.gmra.mxu0 %v5296
  %v6526 = vpop.f32.mrf.mxu0
  %v6527 = vadd.f32 %v6319, %v6526
  %v6528 = vpop.f32.mrf.mxu0
  %v6529 = vpop.f32.mrf.mxu0
  %v6530 = vadd.f32 %v6322, %v6529
  %v6531 = vpop.f32.mrf.mxu0
  %6532 = vmatprep.mubr.bf16.mxu0 %v5314
  %6533 = vmatmul.mubr.bf16.gmra.mxu0 %v5313
  %v6534 = vpop.f32.mrf.mxu0
  %v6535 = vadd.f32 %v6327, %v6534
  %v6536 = vpop.f32.mrf.mxu0
  %v6537 = vpop.f32.mrf.mxu0
  %v6538 = vadd.f32 %v6330, %v6537
  %v6539 = vpop.f32.mrf.mxu0
  %6540 = vmatprep.mubr.bf16.mxu0 %v5331
  %6541 = vmatmul.mubr.bf16.gmra.mxu0 %v5330
  %v6542 = vpop.f32.mrf.mxu0
  %v6543 = vadd.f32 %v6335, %v6542
  %v6544 = vpop.f32.mrf.mxu0
  %v6545 = vpop.f32.mrf.mxu0
  %v6546 = vadd.f32 %v6338, %v6545
  %v6547 = vpop.f32.mrf.mxu0
  %6548 = vmatprep.mubr.bf16.mxu0 %v5348
  %6549 = vmatmul.mubr.bf16.gmra.mxu0 %v5347
  %v6550 = vpop.f32.mrf.mxu0
  %v6551 = vadd.f32 %v6343, %v6550
  %v6552 = vpop.f32.mrf.mxu0
  %v6553 = vpop.f32.mrf.mxu0
  %v6554 = vadd.f32 %v6346, %v6553
  %v6555 = vpop.f32.mrf.mxu0
  %6556 = vmatprep.mubr.bf16.mxu0 %v5365
  %6557 = vmatmul.mubr.bf16.gmra.mxu0 %v5364
  %v6558 = vpop.f32.mrf.mxu0
  %v6559 = vadd.f32 %v6351, %v6558
  %v6560 = vpop.f32.mrf.mxu0
  %v6561 = vpop.f32.mrf.mxu0
  %v6562 = vadd.f32 %v6354, %v6561
  %v6563 = vpop.f32.mrf.mxu0
  %6564 = vmatprep.mubr.bf16.mxu0 %v5382
  %6565 = vmatmul.mubr.bf16.gmra.mxu0 %v5381
  %v6566 = vpop.f32.mrf.mxu0
  %v6567 = vadd.f32 %v6359, %v6566
  %v6568 = vpop.f32.mrf.mxu0
  %v6569 = vpop.f32.mrf.mxu0
  %v6570 = vadd.f32 %v6362, %v6569
  %v6571 = vpop.f32.mrf.mxu0
  %6572 = vmatprep.mubr.bf16.mxu0 %v5399
  %6573 = vmatmul.mubr.bf16.gmra.mxu0 %v5398
  %v6574 = vpop.f32.mrf.mxu0
  %v6575 = vadd.f32 %v6367, %v6574
  %v6576 = vpop.f32.mrf.mxu0
  %v6577 = vpop.f32.mrf.mxu0
  %v6578 = vadd.f32 %v6370, %v6577
  %v6579 = vpop.f32.mrf.mxu0
  %6580 = vmatprep.mubr.bf16.mxu0 %v5416
  %6581 = vmatmul.mubr.bf16.gmra.mxu0 %v5415
  %v6582 = vpop.f32.mrf.mxu0
  %v6583 = vadd.f32 %v6375, %v6582
  %v6584 = vpop.f32.mrf.mxu0
  %v6585 = vpop.f32.mrf.mxu0
  %v6586 = vadd.f32 %v6378, %v6585
  %v6587 = vpop.f32.mrf.mxu0
  %6588 = vmatprep.mubr.bf16.mxu0 %v5433
  %6589 = vmatmul.mubr.bf16.gmra.mxu0 %v5432
  %v6590 = vpop.f32.mrf.mxu0
  %v6591 = vadd.f32 %v6383, %v6590
  %v6592 = vpop.f32.mrf.mxu0
  %v6593 = vpop.f32.mrf.mxu0
  %v6594 = vadd.f32 %v6386, %v6593
  %v6595 = vpop.f32.mrf.mxu0
  %6596 = vmatprep.mubr.bf16.mxu0 %v5450
  %6597 = vmatmul.mubr.bf16.gmra.mxu0 %v5449
  %v6598 = vpop.f32.mrf.mxu0
  %v6599 = vadd.f32 %v6391, %v6598
  %v6600 = vpop.f32.mrf.mxu0
  %v6601 = vpop.f32.mrf.mxu0
  %v6602 = vadd.f32 %v6394, %v6601
  %v6603 = vpop.f32.mrf.mxu0
  %6604 = vmatprep.mubr.bf16.mxu0 %v5467
  %6605 = vmatmul.mubr.bf16.gmra.mxu0 %v5466
  %v6606 = vpop.f32.mrf.mxu0
  %v6607 = vadd.f32 %v6399, %v6606
  %v6608 = vpop.f32.mrf.mxu0
  %v6609 = vpop.f32.mrf.mxu0
  %v6610 = vadd.f32 %v6402, %v6609
  %v6611 = vpop.f32.mrf.mxu0
  %6612 = vmatprep.mubr.bf16.mxu0 %v5484
  %6613 = vmatmul.mubr.bf16.gmra.mxu0 %v5483
  %v6614 = vpop.f32.mrf.mxu0
  %v6615 = vadd.f32 %v6407, %v6614
  %v6616 = vpop.f32.mrf.mxu0
  %v6617 = vpop.f32.mrf.mxu0
  %v6618 = vadd.f32 %v6410, %v6617
  %v6619 = vpop.f32.mrf.mxu0
  %6620 = vmatprep.mubr.bf16.mxu0 %v5501
  %6621 = vmatmul.mubr.bf16.gmra.mxu0 %v5500
  %v6622 = vpop.f32.mrf.mxu0
  %v6623 = vadd.f32 %v6415, %v6622
  %v6624 = vpop.f32.mrf.mxu0
  %v6625 = vpop.f32.mrf.mxu0
  %v6626 = vadd.f32 %v6418, %v6625
  %v6627 = vpop.f32.mrf.mxu0
  %6628 = vmatprep.mubr.bf16.mxu0 %v5518
  %6629 = vmatmul.mubr.bf16.gmra.mxu0 %v5517
  %v6630 = vpop.f32.mrf.mxu0
  %v6631 = vadd.f32 %v6423, %v6630
  %v6632 = vpop.f32.mrf.mxu0
  %v6633 = vpop.f32.mrf.mxu0
  %v6634 = vadd.f32 %v6426, %v6633
  %v6635 = vpop.f32.mrf.mxu0
  %6636 = vmatprep.mubr.bf16.mxu0 %v5535
  %6637 = vmatmul.mubr.bf16.gmra.mxu0 %v5534
  %v6638 = vpop.f32.mrf.mxu0
  %v6639 = vadd.f32 %v6431, %v6638
  %v6640 = vpop.f32.mrf.mxu0
  %v6641 = vpop.f32.mrf.mxu0
  %v6642 = vadd.f32 %v6434, %v6641
  %v6643 = vpop.f32.mrf.mxu0
  %6644 = vmatprep.mubr.bf16.mxu0 %v5552
  %6645 = vmatmul.mubr.bf16.gmra.mxu0 %v5551
  %v6646 = vpop.f32.mrf.mxu0
  %v6647 = vadd.f32 %v6439, %v6646
  %v6648 = vpop.f32.mrf.mxu0
  %v6649 = vpop.f32.mrf.mxu0
  %v6650 = vadd.f32 %v6442, %v6649
  %v6651 = vpop.f32.mrf.mxu0
  %6652 = vmatprep.mubr.bf16.mxu0 %v5569
  %6653 = vmatmul.mubr.bf16.gmra.mxu0 %v5568
  %v6654 = vpop.f32.mrf.mxu0
  %v6655 = vadd.f32 %v6447, %v6654
  %v6656 = vpop.f32.mrf.mxu0
  %v6657 = vpop.f32.mrf.mxu0
  %v6658 = vadd.f32 %v6450, %v6657
  %v6659 = vpop.f32.mrf.mxu0
  %6660 = vmatprep.mubr.bf16.mxu0 %v5586
  %6661 = vmatmul.mubr.bf16.gmra.mxu0 %v5585
  %v6662 = vpop.f32.mrf.mxu0
  %v6663 = vadd.f32 %v6455, %v6662
  %v6664 = vpop.f32.mrf.mxu0
  %v6665 = vpop.f32.mrf.mxu0
  %v6666 = vadd.f32 %v6458, %v6665
  %v6667 = vpop.f32.mrf.mxu0
  %6668 = vmatprep.mubr.bf16.mxu0 %v5603
  %6669 = vmatmul.mubr.bf16.gmra.mxu0 %v5602
  %v6670 = vpop.f32.mrf.mxu0
  %v6671 = vadd.f32 %v6463, %v6670
  %v6672 = vpop.f32.mrf.mxu0
  %v6673 = vpop.f32.mrf.mxu0
  %v6674 = vadd.f32 %v6466, %v6673
  %v6675 = vpop.f32.mrf.mxu0
  %6676 = vmatprep.mubr.bf16.mxu0 %v5620
  %6677 = vmatmul.mubr.bf16.gmra.mxu0 %v5619
  %v6678 = vpop.f32.mrf.mxu0
  %v6679 = vadd.f32 %v6471, %v6678
  %v6680 = vpop.f32.mrf.mxu0
  %v6681 = vpop.f32.mrf.mxu0
  %v6682 = vadd.f32 %v6474, %v6681
  %v6683 = vpop.f32.mrf.mxu0
  %6684 = vmatprep.mubr.bf16.mxu0 %v5637
  %6685 = vmatmul.mubr.bf16.gmra.mxu0 %v5636
  %v6686 = vpop.f32.mrf.mxu0
  %v6687 = vadd.f32 %v6479, %v6686
  %v6688 = vpop.f32.mrf.mxu0
  %v6689 = vpop.f32.mrf.mxu0
  %v6690 = vpop.f32.mrf.mxu0
  %6691 = vdwg.mxu0
  %6692 = vmatprep.subr.bf16.mxu0 0
  %6693 = vmatpush1.bf16.msra.mxu0 %v3696
  %6694 = vmatprep.subr.bf16.mxu0 0
  %6695 = vmatpush1.bf16.msra.mxu0 %v3695
  %6696 = vmatprep.subr.bf16.mxu0 0
  %6697 = vmatpush1.bf16.msra.mxu0 %v3694
  %6698 = vmatprep.subr.bf16.mxu0 0
  %6699 = vmatpush1.bf16.msra.mxu0 %v3693
  %6700 = vmatprep.subr.bf16.mxu0 0
  %6701 = vmatpush1.bf16.msra.mxu0 %v3692
  %6702 = vmatprep.subr.bf16.mxu0 0
  %6703 = vmatpush1.bf16.msra.mxu0 %v3691
  %6704 = vmatprep.subr.bf16.mxu0 0
  %6705 = vmatpush1.bf16.msra.mxu0 %v3690
  %6706 = vmatprep.subr.bf16.mxu0 0
  %6707 = vmatpush1.bf16.msra.mxu0 %v3689
  %6708 = vmatprep.subr.bf16.mxu0 0
  %6709 = vmatpush2.bf16.msra.mxu0 %v3704
  %6710 = vmatprep.subr.bf16.mxu0 0
  %6711 = vmatpush2.bf16.msra.mxu0 %v3703
  %6712 = vmatprep.subr.bf16.mxu0 0
  %6713 = vmatpush2.bf16.msra.mxu0 %v3702
  %6714 = vmatprep.subr.bf16.mxu0 0
  %6715 = vmatpush2.bf16.msra.mxu0 %v3701
  %6716 = vmatprep.subr.bf16.mxu0 0
  %6717 = vmatpush2.bf16.msra.mxu0 %v3700
  %6718 = vmatprep.subr.bf16.mxu0 0
  %6719 = vmatpush2.bf16.msra.mxu0 %v3699
  %6720 = vmatprep.subr.bf16.mxu0 0
  %6721 = vmatpush2.bf16.msra.mxu0 %v3698
  %6722 = vmatprep.subr.bf16.mxu0 0
  %6723 = vmatpush2.bf16.msra.mxu0 %v3697
  %6724 = vmatprep.mubr.bf16.mxu0 %v5282
  %6725 = vmatmul.mubr.bf16.gmra.mxu0 %v5281
  %v6726 = vpop.f32.mrf.mxu0
  %v6727 = vadd.f32 %v6519, %v6726
  %v6728 = vpop.f32.mrf.mxu0
  %v6729 = vpop.f32.mrf.mxu0
  %v6730 = vadd.f32 %v6522, %v6729
  %v6731 = vpop.f32.mrf.mxu0
  %6732 = vmatprep.mubr.bf16.mxu0 %v5299
  %6733 = vmatmul.mubr.bf16.gmra.mxu0 %v5298
  %v6734 = vpop.f32.mrf.mxu0
  %v6735 = vadd.f32 %v6527, %v6734
  %v6736 = vpop.f32.mrf.mxu0
  %v6737 = vpop.f32.mrf.mxu0
  %v6738 = vadd.f32 %v6530, %v6737
  %v6739 = vpop.f32.mrf.mxu0
  %6740 = vmatprep.mubr.bf16.mxu0 %v5316
  %6741 = vmatmul.mubr.bf16.gmra.mxu0 %v5315
  %v6742 = vpop.f32.mrf.mxu0
  %v6743 = vadd.f32 %v6535, %v6742
  %v6744 = vpop.f32.mrf.mxu0
  %v6745 = vpop.f32.mrf.mxu0
  %v6746 = vadd.f32 %v6538, %v6745
  %v6747 = vpop.f32.mrf.mxu0
  %6748 = vmatprep.mubr.bf16.mxu0 %v5333
  %6749 = vmatmul.mubr.bf16.gmra.mxu0 %v5332
  %v6750 = vpop.f32.mrf.mxu0
  %v6751 = vadd.f32 %v6543, %v6750
  %v6752 = vpop.f32.mrf.mxu0
  %v6753 = vpop.f32.mrf.mxu0
  %v6754 = vadd.f32 %v6546, %v6753
  %v6755 = vpop.f32.mrf.mxu0
  %6756 = vmatprep.mubr.bf16.mxu0 %v5350
  %6757 = vmatmul.mubr.bf16.gmra.mxu0 %v5349
  %v6758 = vpop.f32.mrf.mxu0
  %v6759 = vadd.f32 %v6551, %v6758
  %v6760 = vpop.f32.mrf.mxu0
  %v6761 = vpop.f32.mrf.mxu0
  %v6762 = vadd.f32 %v6554, %v6761
  %v6763 = vpop.f32.mrf.mxu0
  %6764 = vmatprep.mubr.bf16.mxu0 %v5367
  %6765 = vmatmul.mubr.bf16.gmra.mxu0 %v5366
  %v6766 = vpop.f32.mrf.mxu0
  %v6767 = vadd.f32 %v6559, %v6766
  %v6768 = vpop.f32.mrf.mxu0
  %v6769 = vpop.f32.mrf.mxu0
  %v6770 = vadd.f32 %v6562, %v6769
  %v6771 = vpop.f32.mrf.mxu0
  %6772 = vmatprep.mubr.bf16.mxu0 %v5384
  %6773 = vmatmul.mubr.bf16.gmra.mxu0 %v5383
  %v6774 = vpop.f32.mrf.mxu0
  %v6775 = vadd.f32 %v6567, %v6774
  %v6776 = vpop.f32.mrf.mxu0
  %v6777 = vpop.f32.mrf.mxu0
  %v6778 = vadd.f32 %v6570, %v6777
  %v6779 = vpop.f32.mrf.mxu0
  %6780 = vmatprep.mubr.bf16.mxu0 %v5401
  %6781 = vmatmul.mubr.bf16.gmra.mxu0 %v5400
  %v6782 = vpop.f32.mrf.mxu0
  %v6783 = vadd.f32 %v6575, %v6782
  %v6784 = vpop.f32.mrf.mxu0
  %v6785 = vpop.f32.mrf.mxu0
  %v6786 = vadd.f32 %v6578, %v6785
  %v6787 = vpop.f32.mrf.mxu0
  %6788 = vmatprep.mubr.bf16.mxu0 %v5418
  %6789 = vmatmul.mubr.bf16.gmra.mxu0 %v5417
  %v6790 = vpop.f32.mrf.mxu0
  %v6791 = vadd.f32 %v6583, %v6790
  %v6792 = vpop.f32.mrf.mxu0
  %v6793 = vpop.f32.mrf.mxu0
  %v6794 = vadd.f32 %v6586, %v6793
  %v6795 = vpop.f32.mrf.mxu0
  %6796 = vmatprep.mubr.bf16.mxu0 %v5435
  %6797 = vmatmul.mubr.bf16.gmra.mxu0 %v5434
  %v6798 = vpop.f32.mrf.mxu0
  %v6799 = vadd.f32 %v6591, %v6798
  %v6800 = vpop.f32.mrf.mxu0
  %v6801 = vpop.f32.mrf.mxu0
  %v6802 = vadd.f32 %v6594, %v6801
  %v6803 = vpop.f32.mrf.mxu0
  %6804 = vmatprep.mubr.bf16.mxu0 %v5452
  %6805 = vmatmul.mubr.bf16.gmra.mxu0 %v5451
  %v6806 = vpop.f32.mrf.mxu0
  %v6807 = vadd.f32 %v6599, %v6806
  %v6808 = vpop.f32.mrf.mxu0
  %v6809 = vpop.f32.mrf.mxu0
  %v6810 = vadd.f32 %v6602, %v6809
  %v6811 = vpop.f32.mrf.mxu0
  %6812 = vmatprep.mubr.bf16.mxu0 %v5469
  %6813 = vmatmul.mubr.bf16.gmra.mxu0 %v5468
  %v6814 = vpop.f32.mrf.mxu0
  %v6815 = vadd.f32 %v6607, %v6814
  %v6816 = vpop.f32.mrf.mxu0
  %v6817 = vpop.f32.mrf.mxu0
  %v6818 = vadd.f32 %v6610, %v6817
  %v6819 = vpop.f32.mrf.mxu0
  %6820 = vmatprep.mubr.bf16.mxu0 %v5486
  %6821 = vmatmul.mubr.bf16.gmra.mxu0 %v5485
  %v6822 = vpop.f32.mrf.mxu0
  %v6823 = vadd.f32 %v6615, %v6822
  %v6824 = vpop.f32.mrf.mxu0
  %v6825 = vpop.f32.mrf.mxu0
  %v6826 = vadd.f32 %v6618, %v6825
  %v6827 = vpop.f32.mrf.mxu0
  %6828 = vmatprep.mubr.bf16.mxu0 %v5503
  %6829 = vmatmul.mubr.bf16.gmra.mxu0 %v5502
  %v6830 = vpop.f32.mrf.mxu0
  %v6831 = vadd.f32 %v6623, %v6830
  %v6832 = vpop.f32.mrf.mxu0
  %v6833 = vpop.f32.mrf.mxu0
  %v6834 = vadd.f32 %v6626, %v6833
  %v6835 = vpop.f32.mrf.mxu0
  %6836 = vmatprep.mubr.bf16.mxu0 %v5520
  %6837 = vmatmul.mubr.bf16.gmra.mxu0 %v5519
  %v6838 = vpop.f32.mrf.mxu0
  %v6839 = vadd.f32 %v6631, %v6838
  %v6840 = vpop.f32.mrf.mxu0
  %v6841 = vpop.f32.mrf.mxu0
  %v6842 = vadd.f32 %v6634, %v6841
  %v6843 = vpop.f32.mrf.mxu0
  %6844 = vmatprep.mubr.bf16.mxu0 %v5537
  %6845 = vmatmul.mubr.bf16.gmra.mxu0 %v5536
  %v6846 = vpop.f32.mrf.mxu0
  %v6847 = vadd.f32 %v6639, %v6846
  %v6848 = vpop.f32.mrf.mxu0
  %v6849 = vpop.f32.mrf.mxu0
  %v6850 = vadd.f32 %v6642, %v6849
  %v6851 = vpop.f32.mrf.mxu0
  %6852 = vmatprep.mubr.bf16.mxu0 %v5554
  %6853 = vmatmul.mubr.bf16.gmra.mxu0 %v5553
  %v6854 = vpop.f32.mrf.mxu0
  %v6855 = vadd.f32 %v6647, %v6854
  %v6856 = vpop.f32.mrf.mxu0
  %v6857 = vpop.f32.mrf.mxu0
  %v6858 = vadd.f32 %v6650, %v6857
  %v6859 = vpop.f32.mrf.mxu0
  %6860 = vmatprep.mubr.bf16.mxu0 %v5571
  %6861 = vmatmul.mubr.bf16.gmra.mxu0 %v5570
  %v6862 = vpop.f32.mrf.mxu0
  %v6863 = vadd.f32 %v6655, %v6862
  %v6864 = vpop.f32.mrf.mxu0
  %v6865 = vpop.f32.mrf.mxu0
  %v6866 = vadd.f32 %v6658, %v6865
  %v6867 = vpop.f32.mrf.mxu0
  %6868 = vmatprep.mubr.bf16.mxu0 %v5588
  %6869 = vmatmul.mubr.bf16.gmra.mxu0 %v5587
  %v6870 = vpop.f32.mrf.mxu0
  %v6871 = vadd.f32 %v6663, %v6870
  %v6872 = vpop.f32.mrf.mxu0
  %v6873 = vpop.f32.mrf.mxu0
  %v6874 = vadd.f32 %v6666, %v6873
  %v6875 = vpop.f32.mrf.mxu0
  %6876 = vmatprep.mubr.bf16.mxu0 %v5605
  %6877 = vmatmul.mubr.bf16.gmra.mxu0 %v5604
  %v6878 = vpop.f32.mrf.mxu0
  %v6879 = vadd.f32 %v6671, %v6878
  %v6880 = vpop.f32.mrf.mxu0
  %v6881 = vpop.f32.mrf.mxu0
  %v6882 = vadd.f32 %v6674, %v6881
  %v6883 = vpop.f32.mrf.mxu0
  %6884 = vmatprep.mubr.bf16.mxu0 %v5622
  %6885 = vmatmul.mubr.bf16.gmra.mxu0 %v5621
  %v6886 = vpop.f32.mrf.mxu0
  %v6887 = vadd.f32 %v6679, %v6886
  %v6888 = vpop.f32.mrf.mxu0
  %v6889 = vpop.f32.mrf.mxu0
  %v6890 = vadd.f32 %v6682, %v6889
  %v6891 = vpop.f32.mrf.mxu0
  %6892 = vmatprep.mubr.bf16.mxu0 %v5639
  %6893 = vmatmul.mubr.bf16.gmra.mxu0 %v5638
  %v6894 = vpop.f32.mrf.mxu0
  %v6895 = vadd.f32 %v6687, %v6894
  %v6896 = vpop.f32.mrf.mxu0
  %v6897 = vpop.f32.mrf.mxu0
  %v6898 = vpop.f32.mrf.mxu0
  %6899 = vdwg.mxu0
  %6900 = vmatprep.subr.bf16.mxu0 0
  %6901 = vmatpush1.bf16.msra.mxu0 %v3712
  %6902 = vmatprep.subr.bf16.mxu0 0
  %6903 = vmatpush1.bf16.msra.mxu0 %v3711
  %6904 = vmatprep.subr.bf16.mxu0 0
  %6905 = vmatpush1.bf16.msra.mxu0 %v3710
  %6906 = vmatprep.subr.bf16.mxu0 0
  %6907 = vmatpush1.bf16.msra.mxu0 %v3709
  %6908 = vmatprep.subr.bf16.mxu0 0
  %6909 = vmatpush1.bf16.msra.mxu0 %v3708
  %6910 = vmatprep.subr.bf16.mxu0 0
  %6911 = vmatpush1.bf16.msra.mxu0 %v3707
  %6912 = vmatprep.subr.bf16.mxu0 0
  %6913 = vmatpush1.bf16.msra.mxu0 %v3706
  %6914 = vmatprep.subr.bf16.mxu0 0
  %6915 = vmatpush1.bf16.msra.mxu0 %v3705
  %6916 = vmatprep.subr.bf16.mxu0 0
  %6917 = vmatpush2.bf16.msra.mxu0 %v3720
  %6918 = vmatprep.subr.bf16.mxu0 0
  %6919 = vmatpush2.bf16.msra.mxu0 %v3719
  %6920 = vmatprep.subr.bf16.mxu0 0
  %6921 = vmatpush2.bf16.msra.mxu0 %v3718
  %6922 = vmatprep.subr.bf16.mxu0 0
  %6923 = vmatpush2.bf16.msra.mxu0 %v3717
  %6924 = vmatprep.subr.bf16.mxu0 0
  %6925 = vmatpush2.bf16.msra.mxu0 %v3716
  %6926 = vmatprep.subr.bf16.mxu0 0
  %6927 = vmatpush2.bf16.msra.mxu0 %v3715
  %6928 = vmatprep.subr.bf16.mxu0 0
  %6929 = vmatpush2.bf16.msra.mxu0 %v3714
  %6930 = vmatprep.subr.bf16.mxu0 0
  %6931 = vmatpush2.bf16.msra.mxu0 %v3713
  %6932 = vmatprep.mubr.bf16.mxu0 %v5284
  %6933 = vmatmul.mubr.bf16.gmra.mxu0 %v5283
  %v6934 = vpop.f32.mrf.mxu0
  %v6935 = vadd.f32 %v6727, %v6934
  %v6936 = vpop.f32.mrf.mxu0
  %v6937 = vpop.f32.mrf.mxu0
  %v6938 = vadd.f32 %v6730, %v6937
  %v6939 = vpop.f32.mrf.mxu0
  %6940 = vmatprep.mubr.bf16.mxu0 %v5301
  %6941 = vmatmul.mubr.bf16.gmra.mxu0 %v5300
  %v6942 = vpop.f32.mrf.mxu0
  %v6943 = vadd.f32 %v6735, %v6942
  %v6944 = vpop.f32.mrf.mxu0
  %v6945 = vpop.f32.mrf.mxu0
  %v6946 = vadd.f32 %v6738, %v6945
  %v6947 = vpop.f32.mrf.mxu0
  %6948 = vmatprep.mubr.bf16.mxu0 %v5318
  %6949 = vmatmul.mubr.bf16.gmra.mxu0 %v5317
  %v6950 = vpop.f32.mrf.mxu0
  %v6951 = vadd.f32 %v6743, %v6950
  %v6952 = vpop.f32.mrf.mxu0
  %v6953 = vpop.f32.mrf.mxu0
  %v6954 = vadd.f32 %v6746, %v6953
  %v6955 = vpop.f32.mrf.mxu0
  %6956 = vmatprep.mubr.bf16.mxu0 %v5335
  %6957 = vmatmul.mubr.bf16.gmra.mxu0 %v5334
  %v6958 = vpop.f32.mrf.mxu0
  %v6959 = vadd.f32 %v6751, %v6958
  %v6960 = vpop.f32.mrf.mxu0
  %v6961 = vpop.f32.mrf.mxu0
  %v6962 = vadd.f32 %v6754, %v6961
  %v6963 = vpop.f32.mrf.mxu0
  %6964 = vmatprep.mubr.bf16.mxu0 %v5352
  %6965 = vmatmul.mubr.bf16.gmra.mxu0 %v5351
  %v6966 = vpop.f32.mrf.mxu0
  %v6967 = vadd.f32 %v6759, %v6966
  %v6968 = vpop.f32.mrf.mxu0
  %v6969 = vpop.f32.mrf.mxu0
  %v6970 = vadd.f32 %v6762, %v6969
  %v6971 = vpop.f32.mrf.mxu0
  %6972 = vmatprep.mubr.bf16.mxu0 %v5369
  %6973 = vmatmul.mubr.bf16.gmra.mxu0 %v5368
  %v6974 = vpop.f32.mrf.mxu0
  %v6975 = vadd.f32 %v6767, %v6974
  %v6976 = vpop.f32.mrf.mxu0
  %v6977 = vpop.f32.mrf.mxu0
  %v6978 = vadd.f32 %v6770, %v6977
  %v6979 = vpop.f32.mrf.mxu0
  %6980 = vmatprep.mubr.bf16.mxu0 %v5386
  %6981 = vmatmul.mubr.bf16.gmra.mxu0 %v5385
  %v6982 = vpop.f32.mrf.mxu0
  %v6983 = vadd.f32 %v6775, %v6982
  %v6984 = vpop.f32.mrf.mxu0
  %v6985 = vpop.f32.mrf.mxu0
  %v6986 = vadd.f32 %v6778, %v6985
  %v6987 = vpop.f32.mrf.mxu0
  %6988 = vmatprep.mubr.bf16.mxu0 %v5403
  %6989 = vmatmul.mubr.bf16.gmra.mxu0 %v5402
  %v6990 = vpop.f32.mrf.mxu0
  %v6991 = vadd.f32 %v6783, %v6990
  %v6992 = vpop.f32.mrf.mxu0
  %v6993 = vpop.f32.mrf.mxu0
  %v6994 = vadd.f32 %v6786, %v6993
  %v6995 = vpop.f32.mrf.mxu0
  %6996 = vmatprep.mubr.bf16.mxu0 %v5420
  %6997 = vmatmul.mubr.bf16.gmra.mxu0 %v5419
  %v6998 = vpop.f32.mrf.mxu0
  %v6999 = vadd.f32 %v6791, %v6998
  %v7000 = vpop.f32.mrf.mxu0
  %v7001 = vpop.f32.mrf.mxu0
  %v7002 = vadd.f32 %v6794, %v7001
  %v7003 = vpop.f32.mrf.mxu0
  %7004 = vmatprep.mubr.bf16.mxu0 %v5437
  %7005 = vmatmul.mubr.bf16.gmra.mxu0 %v5436
  %v7006 = vpop.f32.mrf.mxu0
  %v7007 = vadd.f32 %v6799, %v7006
  %v7008 = vpop.f32.mrf.mxu0
  %v7009 = vpop.f32.mrf.mxu0
  %v7010 = vadd.f32 %v6802, %v7009
  %v7011 = vpop.f32.mrf.mxu0
  %7012 = vmatprep.mubr.bf16.mxu0 %v5454
  %7013 = vmatmul.mubr.bf16.gmra.mxu0 %v5453
  %v7014 = vpop.f32.mrf.mxu0
  %v7015 = vadd.f32 %v6807, %v7014
  %v7016 = vpop.f32.mrf.mxu0
  %v7017 = vpop.f32.mrf.mxu0
  %v7018 = vadd.f32 %v6810, %v7017
  %v7019 = vpop.f32.mrf.mxu0
  %7020 = vmatprep.mubr.bf16.mxu0 %v5471
  %7021 = vmatmul.mubr.bf16.gmra.mxu0 %v5470
  %v7022 = vpop.f32.mrf.mxu0
  %v7023 = vadd.f32 %v6815, %v7022
  %v7024 = vpop.f32.mrf.mxu0
  %v7025 = vpop.f32.mrf.mxu0
  %v7026 = vadd.f32 %v6818, %v7025
  %v7027 = vpop.f32.mrf.mxu0
  %7028 = vmatprep.mubr.bf16.mxu0 %v5488
  %7029 = vmatmul.mubr.bf16.gmra.mxu0 %v5487
  %v7030 = vpop.f32.mrf.mxu0
  %v7031 = vadd.f32 %v6823, %v7030
  %v7032 = vpop.f32.mrf.mxu0
  %v7033 = vpop.f32.mrf.mxu0
  %v7034 = vadd.f32 %v6826, %v7033
  %v7035 = vpop.f32.mrf.mxu0
  %7036 = vmatprep.mubr.bf16.mxu0 %v5505
  %7037 = vmatmul.mubr.bf16.gmra.mxu0 %v5504
  %v7038 = vpop.f32.mrf.mxu0
  %v7039 = vadd.f32 %v6831, %v7038
  %v7040 = vpop.f32.mrf.mxu0
  %v7041 = vpop.f32.mrf.mxu0
  %v7042 = vadd.f32 %v6834, %v7041
  %v7043 = vpop.f32.mrf.mxu0
  %7044 = vmatprep.mubr.bf16.mxu0 %v5522
  %7045 = vmatmul.mubr.bf16.gmra.mxu0 %v5521
  %v7046 = vpop.f32.mrf.mxu0
  %v7047 = vadd.f32 %v6839, %v7046
  %v7048 = vpop.f32.mrf.mxu0
  %v7049 = vpop.f32.mrf.mxu0
  %v7050 = vadd.f32 %v6842, %v7049
  %v7051 = vpop.f32.mrf.mxu0
  %7052 = vmatprep.mubr.bf16.mxu0 %v5539
  %7053 = vmatmul.mubr.bf16.gmra.mxu0 %v5538
  %v7054 = vpop.f32.mrf.mxu0
  %v7055 = vadd.f32 %v6847, %v7054
  %v7056 = vpop.f32.mrf.mxu0
  %v7057 = vpop.f32.mrf.mxu0
  %v7058 = vadd.f32 %v6850, %v7057
  %v7059 = vpop.f32.mrf.mxu0
  %7060 = vmatprep.mubr.bf16.mxu0 %v5556
  %7061 = vmatmul.mubr.bf16.gmra.mxu0 %v5555
  %v7062 = vpop.f32.mrf.mxu0
  %v7063 = vadd.f32 %v6855, %v7062
  %v7064 = vpop.f32.mrf.mxu0
  %v7065 = vpop.f32.mrf.mxu0
  %v7066 = vadd.f32 %v6858, %v7065
  %v7067 = vpop.f32.mrf.mxu0
  %7068 = vmatprep.mubr.bf16.mxu0 %v5573
  %7069 = vmatmul.mubr.bf16.gmra.mxu0 %v5572
  %v7070 = vpop.f32.mrf.mxu0
  %v7071 = vadd.f32 %v6863, %v7070
  %v7072 = vpop.f32.mrf.mxu0
  %v7073 = vpop.f32.mrf.mxu0
  %v7074 = vadd.f32 %v6866, %v7073
  %v7075 = vpop.f32.mrf.mxu0
  %7076 = vmatprep.mubr.bf16.mxu0 %v5590
  %7077 = vmatmul.mubr.bf16.gmra.mxu0 %v5589
  %v7078 = vpop.f32.mrf.mxu0
  %v7079 = vadd.f32 %v6871, %v7078
  %v7080 = vpop.f32.mrf.mxu0
  %v7081 = vpop.f32.mrf.mxu0
  %v7082 = vadd.f32 %v6874, %v7081
  %v7083 = vpop.f32.mrf.mxu0
  %7084 = vmatprep.mubr.bf16.mxu0 %v5607
  %7085 = vmatmul.mubr.bf16.gmra.mxu0 %v5606
  %v7086 = vpop.f32.mrf.mxu0
  %v7087 = vadd.f32 %v6879, %v7086
  %v7088 = vpop.f32.mrf.mxu0
  %v7089 = vpop.f32.mrf.mxu0
  %v7090 = vadd.f32 %v6882, %v7089
  %v7091 = vpop.f32.mrf.mxu0
  %7092 = vmatprep.mubr.bf16.mxu0 %v5624
  %7093 = vmatmul.mubr.bf16.gmra.mxu0 %v5623
  %v7094 = vpop.f32.mrf.mxu0
  %v7095 = vadd.f32 %v6887, %v7094
  %v7096 = vpop.f32.mrf.mxu0
  %v7097 = vpop.f32.mrf.mxu0
  %v7098 = vadd.f32 %v6890, %v7097
  %v7099 = vpop.f32.mrf.mxu0
  %7100 = vmatprep.mubr.bf16.mxu0 %v5641
  %7101 = vmatmul.mubr.bf16.gmra.mxu0 %v5640
  %v7102 = vpop.f32.mrf.mxu0
  %v7103 = vadd.f32 %v6895, %v7102
  %v7104 = vpop.f32.mrf.mxu0
  %v7105 = vpop.f32.mrf.mxu0
  %v7106 = vpop.f32.mrf.mxu0
  %7107 = vdwg.mxu0
  %7108 = vmatprep.subr.bf16.mxu0 0
  %7109 = vmatpush1.bf16.msra.mxu0 %v3728
  %7110 = vmatprep.subr.bf16.mxu0 0
  %7111 = vmatpush1.bf16.msra.mxu0 %v3727
  %7112 = vmatprep.subr.bf16.mxu0 0
  %7113 = vmatpush1.bf16.msra.mxu0 %v3726
  %7114 = vmatprep.subr.bf16.mxu0 0
  %7115 = vmatpush1.bf16.msra.mxu0 %v3725
  %7116 = vmatprep.subr.bf16.mxu0 0
  %7117 = vmatpush1.bf16.msra.mxu0 %v3724
  %7118 = vmatprep.subr.bf16.mxu0 0
  %7119 = vmatpush1.bf16.msra.mxu0 %v3723
  %7120 = vmatprep.subr.bf16.mxu0 0
  %7121 = vmatpush1.bf16.msra.mxu0 %v3722
  %7122 = vmatprep.subr.bf16.mxu0 0
  %7123 = vmatpush1.bf16.msra.mxu0 %v3721
  %7124 = vmatprep.subr.bf16.mxu0 0
  %7125 = vmatpush2.bf16.msra.mxu0 %v3736
  %7126 = vmatprep.subr.bf16.mxu0 0
  %7127 = vmatpush2.bf16.msra.mxu0 %v3735
  %7128 = vmatprep.subr.bf16.mxu0 0
  %7129 = vmatpush2.bf16.msra.mxu0 %v3734
  %7130 = vmatprep.subr.bf16.mxu0 0
  %7131 = vmatpush2.bf16.msra.mxu0 %v3733
  %7132 = vmatprep.subr.bf16.mxu0 0
  %7133 = vmatpush2.bf16.msra.mxu0 %v3732
  %7134 = vmatprep.subr.bf16.mxu0 0
  %7135 = vmatpush2.bf16.msra.mxu0 %v3731
  %7136 = vmatprep.subr.bf16.mxu0 0
  %7137 = vmatpush2.bf16.msra.mxu0 %v3730
  %7138 = vmatprep.subr.bf16.mxu0 0
  %7139 = vmatpush2.bf16.msra.mxu0 %v3729
  %7140 = vmatprep.mubr.bf16.mxu0 %v5286
  %7141 = vmatmul.mubr.bf16.gmra.mxu0 %v5285
  %v7142 = vpop.f32.mrf.mxu0
  %v7143 = vadd.f32 %v6935, %v7142
  %v7144 = vpop.f32.mrf.mxu0
  %v7145 = vpop.f32.mrf.mxu0
  %v7146 = vadd.f32 %v6938, %v7145
  %v7147 = vpop.f32.mrf.mxu0
  %7148 = vmatprep.mubr.bf16.mxu0 %v5303
  %7149 = vmatmul.mubr.bf16.gmra.mxu0 %v5302
  %v7150 = vpop.f32.mrf.mxu0
  %v7151 = vadd.f32 %v6943, %v7150
  %v7152 = vpop.f32.mrf.mxu0
  %v7153 = vpop.f32.mrf.mxu0
  %v7154 = vadd.f32 %v6946, %v7153
  %v7155 = vpop.f32.mrf.mxu0
  %7156 = vmatprep.mubr.bf16.mxu0 %v5320
  %7157 = vmatmul.mubr.bf16.gmra.mxu0 %v5319
  %v7158 = vpop.f32.mrf.mxu0
  %v7159 = vadd.f32 %v6951, %v7158
  %v7160 = vpop.f32.mrf.mxu0
  %v7161 = vpop.f32.mrf.mxu0
  %v7162 = vadd.f32 %v6954, %v7161
  %v7163 = vpop.f32.mrf.mxu0
  %7164 = vmatprep.mubr.bf16.mxu0 %v5337
  %7165 = vmatmul.mubr.bf16.gmra.mxu0 %v5336
  %v7166 = vpop.f32.mrf.mxu0
  %v7167 = vadd.f32 %v6959, %v7166
  %v7168 = vpop.f32.mrf.mxu0
  %v7169 = vpop.f32.mrf.mxu0
  %v7170 = vadd.f32 %v6962, %v7169
  %v7171 = vpop.f32.mrf.mxu0
  %7172 = vmatprep.mubr.bf16.mxu0 %v5354
  %7173 = vmatmul.mubr.bf16.gmra.mxu0 %v5353
  %v7174 = vpop.f32.mrf.mxu0
  %v7175 = vadd.f32 %v6967, %v7174
  %v7176 = vpop.f32.mrf.mxu0
  %v7177 = vpop.f32.mrf.mxu0
  %v7178 = vadd.f32 %v6970, %v7177
  %v7179 = vpop.f32.mrf.mxu0
  %7180 = vmatprep.mubr.bf16.mxu0 %v5371
  %7181 = vmatmul.mubr.bf16.gmra.mxu0 %v5370
  %v7182 = vpop.f32.mrf.mxu0
  %v7183 = vadd.f32 %v6975, %v7182
  %v7184 = vpop.f32.mrf.mxu0
  %v7185 = vpop.f32.mrf.mxu0
  %v7186 = vadd.f32 %v6978, %v7185
  %v7187 = vpop.f32.mrf.mxu0
  %7188 = vmatprep.mubr.bf16.mxu0 %v5388
  %7189 = vmatmul.mubr.bf16.gmra.mxu0 %v5387
  %v7190 = vpop.f32.mrf.mxu0
  %v7191 = vadd.f32 %v6983, %v7190
  %v7192 = vpop.f32.mrf.mxu0
  %v7193 = vpop.f32.mrf.mxu0
  %v7194 = vadd.f32 %v6986, %v7193
  %v7195 = vpop.f32.mrf.mxu0
  %7196 = vmatprep.mubr.bf16.mxu0 %v5405
  %7197 = vmatmul.mubr.bf16.gmra.mxu0 %v5404
  %v7198 = vpop.f32.mrf.mxu0
  %v7199 = vadd.f32 %v6991, %v7198
  %v7200 = vpop.f32.mrf.mxu0
  %v7201 = vpop.f32.mrf.mxu0
  %v7202 = vadd.f32 %v6994, %v7201
  %v7203 = vpop.f32.mrf.mxu0
  %7204 = vmatprep.mubr.bf16.mxu0 %v5422
  %7205 = vmatmul.mubr.bf16.gmra.mxu0 %v5421
  %v7206 = vpop.f32.mrf.mxu0
  %v7207 = vadd.f32 %v6999, %v7206
  %v7208 = vpop.f32.mrf.mxu0
  %v7209 = vpop.f32.mrf.mxu0
  %v7210 = vadd.f32 %v7002, %v7209
  %v7211 = vpop.f32.mrf.mxu0
  %7212 = vmatprep.mubr.bf16.mxu0 %v5439
  %7213 = vmatmul.mubr.bf16.gmra.mxu0 %v5438
  %v7214 = vpop.f32.mrf.mxu0
  %v7215 = vadd.f32 %v7007, %v7214
  %v7216 = vpop.f32.mrf.mxu0
  %v7217 = vpop.f32.mrf.mxu0
  %v7218 = vadd.f32 %v7010, %v7217
  %v7219 = vpop.f32.mrf.mxu0
  %7220 = vmatprep.mubr.bf16.mxu0 %v5456
  %7221 = vmatmul.mubr.bf16.gmra.mxu0 %v5455
  %v7222 = vpop.f32.mrf.mxu0
  %v7223 = vadd.f32 %v7015, %v7222
  %v7224 = vpop.f32.mrf.mxu0
  %v7225 = vpop.f32.mrf.mxu0
  %v7226 = vadd.f32 %v7018, %v7225
  %v7227 = vpop.f32.mrf.mxu0
  %7228 = vmatprep.mubr.bf16.mxu0 %v5473
  %7229 = vmatmul.mubr.bf16.gmra.mxu0 %v5472
  %v7230 = vpop.f32.mrf.mxu0
  %v7231 = vadd.f32 %v7023, %v7230
  %v7232 = vpop.f32.mrf.mxu0
  %v7233 = vpop.f32.mrf.mxu0
  %v7234 = vadd.f32 %v7026, %v7233
  %v7235 = vpop.f32.mrf.mxu0
  %7236 = vmatprep.mubr.bf16.mxu0 %v5490
  %7237 = vmatmul.mubr.bf16.gmra.mxu0 %v5489
  %v7238 = vpop.f32.mrf.mxu0
  %v7239 = vadd.f32 %v7031, %v7238
  %v7240 = vpop.f32.mrf.mxu0
  %v7241 = vpop.f32.mrf.mxu0
  %v7242 = vadd.f32 %v7034, %v7241
  %v7243 = vpop.f32.mrf.mxu0
  %7244 = vmatprep.mubr.bf16.mxu0 %v5507
  %7245 = vmatmul.mubr.bf16.gmra.mxu0 %v5506
  %v7246 = vpop.f32.mrf.mxu0
  %v7247 = vadd.f32 %v7039, %v7246
  %v7248 = vpop.f32.mrf.mxu0
  %v7249 = vpop.f32.mrf.mxu0
  %v7250 = vadd.f32 %v7042, %v7249
  %v7251 = vpop.f32.mrf.mxu0
  %7252 = vmatprep.mubr.bf16.mxu0 %v5524
  %7253 = vmatmul.mubr.bf16.gmra.mxu0 %v5523
  %v7254 = vpop.f32.mrf.mxu0
  %v7255 = vadd.f32 %v7047, %v7254
  %v7256 = vpop.f32.mrf.mxu0
  %v7257 = vpop.f32.mrf.mxu0
  %v7258 = vadd.f32 %v7050, %v7257
  %v7259 = vpop.f32.mrf.mxu0
  %7260 = vmatprep.mubr.bf16.mxu0 %v5541
  %7261 = vmatmul.mubr.bf16.gmra.mxu0 %v5540
  %v7262 = vpop.f32.mrf.mxu0
  %v7263 = vadd.f32 %v7055, %v7262
  %v7264 = vpop.f32.mrf.mxu0
  %v7265 = vpop.f32.mrf.mxu0
  %v7266 = vadd.f32 %v7058, %v7265
  %v7267 = vpop.f32.mrf.mxu0
  %7268 = vmatprep.mubr.bf16.mxu0 %v5558
  %7269 = vmatmul.mubr.bf16.gmra.mxu0 %v5557
  %v7270 = vpop.f32.mrf.mxu0
  %v7271 = vadd.f32 %v7063, %v7270
  %v7272 = vpop.f32.mrf.mxu0
  %v7273 = vpop.f32.mrf.mxu0
  %v7274 = vadd.f32 %v7066, %v7273
  %v7275 = vpop.f32.mrf.mxu0
  %7276 = vmatprep.mubr.bf16.mxu0 %v5575
  %7277 = vmatmul.mubr.bf16.gmra.mxu0 %v5574
  %v7278 = vpop.f32.mrf.mxu0
  %v7279 = vadd.f32 %v7071, %v7278
  %v7280 = vpop.f32.mrf.mxu0
  %v7281 = vpop.f32.mrf.mxu0
  %v7282 = vadd.f32 %v7074, %v7281
  %v7283 = vpop.f32.mrf.mxu0
  %7284 = vmatprep.mubr.bf16.mxu0 %v5592
  %7285 = vmatmul.mubr.bf16.gmra.mxu0 %v5591
  %v7286 = vpop.f32.mrf.mxu0
  %v7287 = vadd.f32 %v7079, %v7286
  %v7288 = vpop.f32.mrf.mxu0
  %v7289 = vpop.f32.mrf.mxu0
  %v7290 = vadd.f32 %v7082, %v7289
  %v7291 = vpop.f32.mrf.mxu0
  %7292 = vmatprep.mubr.bf16.mxu0 %v5609
  %7293 = vmatmul.mubr.bf16.gmra.mxu0 %v5608
  %v7294 = vpop.f32.mrf.mxu0
  %v7295 = vadd.f32 %v7087, %v7294
  %v7296 = vpop.f32.mrf.mxu0
  %v7297 = vpop.f32.mrf.mxu0
  %v7298 = vadd.f32 %v7090, %v7297
  %v7299 = vpop.f32.mrf.mxu0
  %7300 = vmatprep.mubr.bf16.mxu0 %v5626
  %7301 = vmatmul.mubr.bf16.gmra.mxu0 %v5625
  %v7302 = vpop.f32.mrf.mxu0
  %v7303 = vadd.f32 %v7095, %v7302
  %v7304 = vpop.f32.mrf.mxu0
  %v7305 = vpop.f32.mrf.mxu0
  %v7306 = vadd.f32 %v7098, %v7305
  %v7307 = vpop.f32.mrf.mxu0
  %7308 = vmatprep.mubr.bf16.mxu0 %v5643
  %7309 = vmatmul.mubr.bf16.gmra.mxu0 %v5642
  %v7310 = vpop.f32.mrf.mxu0
  %v7311 = vadd.f32 %v7103, %v7310
  %v7312 = vpop.f32.mrf.mxu0
  %v7313 = vpop.f32.mrf.mxu0
  %v7314 = vpop.f32.mrf.mxu0
  %7315 = vdwg.mxu0
  %7316 = vmatprep.subr.bf16.mxu0 0
  %7317 = vmatpush1.bf16.msra.mxu0 %v3744
  %7318 = vmatprep.subr.bf16.mxu0 0
  %7319 = vmatpush1.bf16.msra.mxu0 %v3743
  %7320 = vmatprep.subr.bf16.mxu0 0
  %7321 = vmatpush1.bf16.msra.mxu0 %v3742
  %7322 = vmatprep.subr.bf16.mxu0 0
  %7323 = vmatpush1.bf16.msra.mxu0 %v3741
  %7324 = vmatprep.subr.bf16.mxu0 0
  %7325 = vmatpush1.bf16.msra.mxu0 %v3740
  %7326 = vmatprep.subr.bf16.mxu0 0
  %7327 = vmatpush1.bf16.msra.mxu0 %v3739
  %7328 = vmatprep.subr.bf16.mxu0 0
  %7329 = vmatpush1.bf16.msra.mxu0 %v3738
  %7330 = vmatprep.subr.bf16.mxu0 0
  %7331 = vmatpush1.bf16.msra.mxu0 %v3737
  %7332 = vmatprep.subr.bf16.mxu0 0
  %7333 = vmatpush2.bf16.msra.mxu0 %v3752
  %7334 = vmatprep.subr.bf16.mxu0 0
  %7335 = vmatpush2.bf16.msra.mxu0 %v3751
  %7336 = vmatprep.subr.bf16.mxu0 0
  %7337 = vmatpush2.bf16.msra.mxu0 %v3750
  %7338 = vmatprep.subr.bf16.mxu0 0
  %7339 = vmatpush2.bf16.msra.mxu0 %v3749
  %7340 = vmatprep.subr.bf16.mxu0 0
  %7341 = vmatpush2.bf16.msra.mxu0 %v3748
  %7342 = vmatprep.subr.bf16.mxu0 0
  %7343 = vmatpush2.bf16.msra.mxu0 %v3747
  %7344 = vmatprep.subr.bf16.mxu0 0
  %7345 = vmatpush2.bf16.msra.mxu0 %v3746
  %7346 = vmatprep.subr.bf16.mxu0 0
  %7347 = vmatpush2.bf16.msra.mxu0 %v3745
  %7348 = vmatprep.mubr.bf16.mxu0 %v5288
  %7349 = vmatmul.mubr.bf16.gmra.mxu0 %v5287
  %v7350 = vpop.f32.mrf.mxu0
  %v7351 = vadd.f32 %v7143, %v7350
  %v7352 = vpop.f32.mrf.mxu0
  %v7353 = vpop.f32.mrf.mxu0
  %v7354 = vadd.f32 %v7146, %v7353
  %v7355 = vpop.f32.mrf.mxu0
  %7356 = vmatprep.mubr.bf16.mxu0 %v5305
  %7357 = vmatmul.mubr.bf16.gmra.mxu0 %v5304
  %v7358 = vpop.f32.mrf.mxu0
  %v7359 = vadd.f32 %v7151, %v7358
  %v7360 = vpop.f32.mrf.mxu0
  %v7361 = vpop.f32.mrf.mxu0
  %v7362 = vadd.f32 %v7154, %v7361
  %v7363 = vpop.f32.mrf.mxu0
  %7364 = vmatprep.mubr.bf16.mxu0 %v5322
  %7365 = vmatmul.mubr.bf16.gmra.mxu0 %v5321
  %v7366 = vpop.f32.mrf.mxu0
  %v7367 = vadd.f32 %v7159, %v7366
  %v7368 = vpop.f32.mrf.mxu0
  %v7369 = vpop.f32.mrf.mxu0
  %v7370 = vadd.f32 %v7162, %v7369
  %v7371 = vpop.f32.mrf.mxu0
  %7372 = vmatprep.mubr.bf16.mxu0 %v5339
  %7373 = vmatmul.mubr.bf16.gmra.mxu0 %v5338
  %v7374 = vpop.f32.mrf.mxu0
  %v7375 = vadd.f32 %v7167, %v7374
  %v7376 = vpop.f32.mrf.mxu0
  %v7377 = vpop.f32.mrf.mxu0
  %v7378 = vadd.f32 %v7170, %v7377
  %v7379 = vpop.f32.mrf.mxu0
  %7380 = vmatprep.mubr.bf16.mxu0 %v5356
  %7381 = vmatmul.mubr.bf16.gmra.mxu0 %v5355
  %v7382 = vpop.f32.mrf.mxu0
  %v7383 = vadd.f32 %v7175, %v7382
  %v7384 = vpop.f32.mrf.mxu0
  %v7385 = vpop.f32.mrf.mxu0
  %v7386 = vadd.f32 %v7178, %v7385
  %v7387 = vpop.f32.mrf.mxu0
  %7388 = vmatprep.mubr.bf16.mxu0 %v5373
  %7389 = vmatmul.mubr.bf16.gmra.mxu0 %v5372
  %v7390 = vpop.f32.mrf.mxu0
  %v7391 = vadd.f32 %v7183, %v7390
  %v7392 = vpop.f32.mrf.mxu0
  %v7393 = vpop.f32.mrf.mxu0
  %v7394 = vadd.f32 %v7186, %v7393
  %v7395 = vpop.f32.mrf.mxu0
  %7396 = vmatprep.mubr.bf16.mxu0 %v5390
  %7397 = vmatmul.mubr.bf16.gmra.mxu0 %v5389
  %v7398 = vpop.f32.mrf.mxu0
  %v7399 = vadd.f32 %v7191, %v7398
  %v7400 = vpop.f32.mrf.mxu0
  %v7401 = vpop.f32.mrf.mxu0
  %v7402 = vadd.f32 %v7194, %v7401
  %v7403 = vpop.f32.mrf.mxu0
  %7404 = vmatprep.mubr.bf16.mxu0 %v5407
  %7405 = vmatmul.mubr.bf16.gmra.mxu0 %v5406
  %v7406 = vpop.f32.mrf.mxu0
  %v7407 = vadd.f32 %v7199, %v7406
  %v7408 = vpop.f32.mrf.mxu0
  %v7409 = vpop.f32.mrf.mxu0
  %v7410 = vadd.f32 %v7202, %v7409
  %v7411 = vpop.f32.mrf.mxu0
  %7412 = vmatprep.mubr.bf16.mxu0 %v5424
  %7413 = vmatmul.mubr.bf16.gmra.mxu0 %v5423
  %v7414 = vpop.f32.mrf.mxu0
  %v7415 = vadd.f32 %v7207, %v7414
  %v7416 = vpop.f32.mrf.mxu0
  %v7417 = vpop.f32.mrf.mxu0
  %v7418 = vadd.f32 %v7210, %v7417
  %v7419 = vpop.f32.mrf.mxu0
  %7420 = vmatprep.mubr.bf16.mxu0 %v5441
  %7421 = vmatmul.mubr.bf16.gmra.mxu0 %v5440
  %v7422 = vpop.f32.mrf.mxu0
  %v7423 = vadd.f32 %v7215, %v7422
  %v7424 = vpop.f32.mrf.mxu0
  %v7425 = vpop.f32.mrf.mxu0
  %v7426 = vadd.f32 %v7218, %v7425
  %v7427 = vpop.f32.mrf.mxu0
  %7428 = vmatprep.mubr.bf16.mxu0 %v5458
  %7429 = vmatmul.mubr.bf16.gmra.mxu0 %v5457
  %v7430 = vpop.f32.mrf.mxu0
  %v7431 = vadd.f32 %v7223, %v7430
  %v7432 = vpop.f32.mrf.mxu0
  %v7433 = vpop.f32.mrf.mxu0
  %v7434 = vadd.f32 %v7226, %v7433
  %v7435 = vpop.f32.mrf.mxu0
  %7436 = vmatprep.mubr.bf16.mxu0 %v5475
  %7437 = vmatmul.mubr.bf16.gmra.mxu0 %v5474
  %v7438 = vpop.f32.mrf.mxu0
  %v7439 = vadd.f32 %v7231, %v7438
  %v7440 = vpop.f32.mrf.mxu0
  %v7441 = vpop.f32.mrf.mxu0
  %v7442 = vadd.f32 %v7234, %v7441
  %v7443 = vpop.f32.mrf.mxu0
  %7444 = vmatprep.mubr.bf16.mxu0 %v5492
  %7445 = vmatmul.mubr.bf16.gmra.mxu0 %v5491
  %v7446 = vpop.f32.mrf.mxu0
  %v7447 = vadd.f32 %v7239, %v7446
  %v7448 = vpop.f32.mrf.mxu0
  %v7449 = vpop.f32.mrf.mxu0
  %v7450 = vadd.f32 %v7242, %v7449
  %v7451 = vpop.f32.mrf.mxu0
  %7452 = vmatprep.mubr.bf16.mxu0 %v5509
  %7453 = vmatmul.mubr.bf16.gmra.mxu0 %v5508
  %v7454 = vpop.f32.mrf.mxu0
  %v7455 = vadd.f32 %v7247, %v7454
  %v7456 = vpop.f32.mrf.mxu0
  %v7457 = vpop.f32.mrf.mxu0
  %v7458 = vadd.f32 %v7250, %v7457
  %v7459 = vpop.f32.mrf.mxu0
  %7460 = vmatprep.mubr.bf16.mxu0 %v5526
  %7461 = vmatmul.mubr.bf16.gmra.mxu0 %v5525
  %v7462 = vpop.f32.mrf.mxu0
  %v7463 = vadd.f32 %v7255, %v7462
  %v7464 = vpop.f32.mrf.mxu0
  %v7465 = vpop.f32.mrf.mxu0
  %v7466 = vadd.f32 %v7258, %v7465
  %v7467 = vpop.f32.mrf.mxu0
  %7468 = vmatprep.mubr.bf16.mxu0 %v5543
  %7469 = vmatmul.mubr.bf16.gmra.mxu0 %v5542
  %v7470 = vpop.f32.mrf.mxu0
  %v7471 = vadd.f32 %v7263, %v7470
  %v7472 = vpop.f32.mrf.mxu0
  %v7473 = vpop.f32.mrf.mxu0
  %v7474 = vadd.f32 %v7266, %v7473
  %v7475 = vpop.f32.mrf.mxu0
  %7476 = vmatprep.mubr.bf16.mxu0 %v5560
  %7477 = vmatmul.mubr.bf16.gmra.mxu0 %v5559
  %v7478 = vpop.f32.mrf.mxu0
  %v7479 = vadd.f32 %v7271, %v7478
  %v7480 = vpop.f32.mrf.mxu0
  %v7481 = vpop.f32.mrf.mxu0
  %v7482 = vadd.f32 %v7274, %v7481
  %v7483 = vpop.f32.mrf.mxu0
  %7484 = vmatprep.mubr.bf16.mxu0 %v5577
  %7485 = vmatmul.mubr.bf16.gmra.mxu0 %v5576
  %v7486 = vpop.f32.mrf.mxu0
  %v7487 = vadd.f32 %v7279, %v7486
  %v7488 = vpop.f32.mrf.mxu0
  %v7489 = vpop.f32.mrf.mxu0
  %v7490 = vadd.f32 %v7282, %v7489
  %v7491 = vpop.f32.mrf.mxu0
  %7492 = vmatprep.mubr.bf16.mxu0 %v5594
  %7493 = vmatmul.mubr.bf16.gmra.mxu0 %v5593
  %v7494 = vpop.f32.mrf.mxu0
  %v7495 = vadd.f32 %v7287, %v7494
  %v7496 = vpop.f32.mrf.mxu0
  %v7497 = vpop.f32.mrf.mxu0
  %v7498 = vadd.f32 %v7290, %v7497
  %v7499 = vpop.f32.mrf.mxu0
  %7500 = vmatprep.mubr.bf16.mxu0 %v5611
  %7501 = vmatmul.mubr.bf16.gmra.mxu0 %v5610
  %v7502 = vpop.f32.mrf.mxu0
  %v7503 = vadd.f32 %v7295, %v7502
  %v7504 = vpop.f32.mrf.mxu0
  %v7505 = vpop.f32.mrf.mxu0
  %v7506 = vadd.f32 %v7298, %v7505
  %v7507 = vpop.f32.mrf.mxu0
  %7508 = vmatprep.mubr.bf16.mxu0 %v5628
  %7509 = vmatmul.mubr.bf16.gmra.mxu0 %v5627
  %v7510 = vpop.f32.mrf.mxu0
  %v7511 = vadd.f32 %v7303, %v7510
  %v7512 = vpop.f32.mrf.mxu0
  %v7513 = vpop.f32.mrf.mxu0
  %v7514 = vadd.f32 %v7306, %v7513
  %v7515 = vpop.f32.mrf.mxu0
  %7516 = vmatprep.mubr.bf16.mxu0 %v5645
  %7517 = vmatmul.mubr.bf16.gmra.mxu0 %v5644
  %v7518 = vpop.f32.mrf.mxu0
  %v7519 = vadd.f32 %v7311, %v7518
  %v7520 = vpop.f32.mrf.mxu0
  %v7521 = vpop.f32.mrf.mxu0
  %v7522 = vpop.f32.mrf.mxu0
  %7523 = vdwg.mxu0
  %7524 = vmatprep.subr.bf16.mxu0 0
  %7525 = vmatpush1.bf16.msra.mxu0 %v3760
  %7526 = vmatprep.subr.bf16.mxu0 0
  %7527 = vmatpush1.bf16.msra.mxu0 %v3759
  %7528 = vmatprep.subr.bf16.mxu0 0
  %7529 = vmatpush1.bf16.msra.mxu0 %v3758
  %7530 = vmatprep.subr.bf16.mxu0 0
  %7531 = vmatpush1.bf16.msra.mxu0 %v3757
  %7532 = vmatprep.subr.bf16.mxu0 0
  %7533 = vmatpush1.bf16.msra.mxu0 %v3756
  %7534 = vmatprep.subr.bf16.mxu0 0
  %7535 = vmatpush1.bf16.msra.mxu0 %v3755
  %7536 = vmatprep.subr.bf16.mxu0 0
  %7537 = vmatpush1.bf16.msra.mxu0 %v3754
  %7538 = vmatprep.subr.bf16.mxu0 0
  %7539 = vmatpush1.bf16.msra.mxu0 %v3753
  %7540 = vmatprep.subr.bf16.mxu0 0
  %7541 = vmatpush2.bf16.msra.mxu0 %v3768
  %7542 = vmatprep.subr.bf16.mxu0 0
  %7543 = vmatpush2.bf16.msra.mxu0 %v3767
  %7544 = vmatprep.subr.bf16.mxu0 0
  %7545 = vmatpush2.bf16.msra.mxu0 %v3766
  %7546 = vmatprep.subr.bf16.mxu0 0
  %7547 = vmatpush2.bf16.msra.mxu0 %v3765
  %7548 = vmatprep.subr.bf16.mxu0 0
  %7549 = vmatpush2.bf16.msra.mxu0 %v3764
  %7550 = vmatprep.subr.bf16.mxu0 0
  %7551 = vmatpush2.bf16.msra.mxu0 %v3763
  %7552 = vmatprep.subr.bf16.mxu0 0
  %7553 = vmatpush2.bf16.msra.mxu0 %v3762
  %7554 = vmatprep.subr.bf16.mxu0 0
  %7555 = vmatpush2.bf16.msra.mxu0 %v3761
  %7556 = vmatprep.mubr.bf16.mxu0 %v5290
  %7557 = vmatmul.mubr.bf16.gmra.mxu0 %v5289
  %v7558 = vpop.f32.mrf.mxu0
  %v7559 = vadd.f32 %v7351, %v7558
  %v7560 = vpop.f32.mrf.mxu0
  %v7561 = vpop.f32.mrf.mxu0
  %v7562 = vadd.f32 %v7354, %v7561
  %v7563 = vpop.f32.mrf.mxu0
  %7564 = vmatprep.mubr.bf16.mxu0 %v5307
  %7565 = vmatmul.mubr.bf16.gmra.mxu0 %v5306
  %v7566 = vpop.f32.mrf.mxu0
  %v7567 = vadd.f32 %v7359, %v7566
  %v7568 = vpop.f32.mrf.mxu0
  %v7569 = vpop.f32.mrf.mxu0
  %v7570 = vadd.f32 %v7362, %v7569
  %v7571 = vpop.f32.mrf.mxu0
  %7572 = vmatprep.mubr.bf16.mxu0 %v5324
  %7573 = vmatmul.mubr.bf16.gmra.mxu0 %v5323
  %v7574 = vpop.f32.mrf.mxu0
  %v7575 = vadd.f32 %v7367, %v7574
  %v7576 = vpop.f32.mrf.mxu0
  %v7577 = vpop.f32.mrf.mxu0
  %v7578 = vadd.f32 %v7370, %v7577
  %v7579 = vpop.f32.mrf.mxu0
  %7580 = vmatprep.mubr.bf16.mxu0 %v5341
  %7581 = vmatmul.mubr.bf16.gmra.mxu0 %v5340
  %v7582 = vpop.f32.mrf.mxu0
  %v7583 = vadd.f32 %v7375, %v7582
  %v7584 = vpop.f32.mrf.mxu0
  %v7585 = vpop.f32.mrf.mxu0
  %v7586 = vadd.f32 %v7378, %v7585
  %v7587 = vpop.f32.mrf.mxu0
  %7588 = vmatprep.mubr.bf16.mxu0 %v5358
  %7589 = vmatmul.mubr.bf16.gmra.mxu0 %v5357
  %v7590 = vpop.f32.mrf.mxu0
  %v7591 = vadd.f32 %v7383, %v7590
  %v7592 = vpop.f32.mrf.mxu0
  %v7593 = vpop.f32.mrf.mxu0
  %v7594 = vadd.f32 %v7386, %v7593
  %v7595 = vpop.f32.mrf.mxu0
  %7596 = vmatprep.mubr.bf16.mxu0 %v5375
  %7597 = vmatmul.mubr.bf16.gmra.mxu0 %v5374
  %v7598 = vpop.f32.mrf.mxu0
  %v7599 = vadd.f32 %v7391, %v7598
  %v7600 = vpop.f32.mrf.mxu0
  %v7601 = vpop.f32.mrf.mxu0
  %v7602 = vadd.f32 %v7394, %v7601
  %v7603 = vpop.f32.mrf.mxu0
  %7604 = vmatprep.mubr.bf16.mxu0 %v5392
  %7605 = vmatmul.mubr.bf16.gmra.mxu0 %v5391
  %v7606 = vpop.f32.mrf.mxu0
  %v7607 = vadd.f32 %v7399, %v7606
  %v7608 = vpop.f32.mrf.mxu0
  %v7609 = vpop.f32.mrf.mxu0
  %v7610 = vadd.f32 %v7402, %v7609
  %v7611 = vpop.f32.mrf.mxu0
  %7612 = vmatprep.mubr.bf16.mxu0 %v5409
  %7613 = vmatmul.mubr.bf16.gmra.mxu0 %v5408
  %v7614 = vpop.f32.mrf.mxu0
  %v7615 = vadd.f32 %v7407, %v7614
  %v7616 = vpop.f32.mrf.mxu0
  %v7617 = vpop.f32.mrf.mxu0
  %v7618 = vadd.f32 %v7410, %v7617
  %v7619 = vpop.f32.mrf.mxu0
  %7620 = vmatprep.mubr.bf16.mxu0 %v5426
  %7621 = vmatmul.mubr.bf16.gmra.mxu0 %v5425
  %v7622 = vpop.f32.mrf.mxu0
  %v7623 = vadd.f32 %v7415, %v7622
  %v7624 = vpop.f32.mrf.mxu0
  %v7625 = vpop.f32.mrf.mxu0
  %v7626 = vadd.f32 %v7418, %v7625
  %v7627 = vpop.f32.mrf.mxu0
  %7628 = vmatprep.mubr.bf16.mxu0 %v5443
  %7629 = vmatmul.mubr.bf16.gmra.mxu0 %v5442
  %v7630 = vpop.f32.mrf.mxu0
  %v7631 = vadd.f32 %v7423, %v7630
  %v7632 = vpop.f32.mrf.mxu0
  %v7633 = vpop.f32.mrf.mxu0
  %v7634 = vadd.f32 %v7426, %v7633
  %v7635 = vpop.f32.mrf.mxu0
  %7636 = vmatprep.mubr.bf16.mxu0 %v5460
  %7637 = vmatmul.mubr.bf16.gmra.mxu0 %v5459
  %v7638 = vpop.f32.mrf.mxu0
  %v7639 = vadd.f32 %v7431, %v7638
  %v7640 = vpop.f32.mrf.mxu0
  %v7641 = vpop.f32.mrf.mxu0
  %v7642 = vadd.f32 %v7434, %v7641
  %v7643 = vpop.f32.mrf.mxu0
  %7644 = vmatprep.mubr.bf16.mxu0 %v5477
  %7645 = vmatmul.mubr.bf16.gmra.mxu0 %v5476
  %v7646 = vpop.f32.mrf.mxu0
  %v7647 = vadd.f32 %v7439, %v7646
  %v7648 = vpop.f32.mrf.mxu0
  %v7649 = vpop.f32.mrf.mxu0
  %v7650 = vadd.f32 %v7442, %v7649
  %v7651 = vpop.f32.mrf.mxu0
  %7652 = vmatprep.mubr.bf16.mxu0 %v5494
  %7653 = vmatmul.mubr.bf16.gmra.mxu0 %v5493
  %v7654 = vpop.f32.mrf.mxu0
  %v7655 = vadd.f32 %v7447, %v7654
  %v7656 = vpop.f32.mrf.mxu0
  %v7657 = vpop.f32.mrf.mxu0
  %v7658 = vadd.f32 %v7450, %v7657
  %v7659 = vpop.f32.mrf.mxu0
  %7660 = vmatprep.mubr.bf16.mxu0 %v5511
  %7661 = vmatmul.mubr.bf16.gmra.mxu0 %v5510
  %v7662 = vpop.f32.mrf.mxu0
  %v7663 = vadd.f32 %v7455, %v7662
  %v7664 = vpop.f32.mrf.mxu0
  %v7665 = vpop.f32.mrf.mxu0
  %v7666 = vadd.f32 %v7458, %v7665
  %v7667 = vpop.f32.mrf.mxu0
  %7668 = vmatprep.mubr.bf16.mxu0 %v5528
  %7669 = vmatmul.mubr.bf16.gmra.mxu0 %v5527
  %v7670 = vpop.f32.mrf.mxu0
  %v7671 = vadd.f32 %v7463, %v7670
  %v7672 = vpop.f32.mrf.mxu0
  %v7673 = vpop.f32.mrf.mxu0
  %v7674 = vadd.f32 %v7466, %v7673
  %v7675 = vpop.f32.mrf.mxu0
  %7676 = vmatprep.mubr.bf16.mxu0 %v5545
  %7677 = vmatmul.mubr.bf16.gmra.mxu0 %v5544
  %v7678 = vpop.f32.mrf.mxu0
  %v7679 = vadd.f32 %v7471, %v7678
  %v7680 = vpop.f32.mrf.mxu0
  %v7681 = vpop.f32.mrf.mxu0
  %v7682 = vadd.f32 %v7474, %v7681
  %v7683 = vpop.f32.mrf.mxu0
  %7684 = vmatprep.mubr.bf16.mxu0 %v5562
  %7685 = vmatmul.mubr.bf16.gmra.mxu0 %v5561
  %v7686 = vpop.f32.mrf.mxu0
  %v7687 = vadd.f32 %v7479, %v7686
  %v7688 = vpop.f32.mrf.mxu0
  %v7689 = vpop.f32.mrf.mxu0
  %v7690 = vadd.f32 %v7482, %v7689
  %v7691 = vpop.f32.mrf.mxu0
  %7692 = vmatprep.mubr.bf16.mxu0 %v5579
  %7693 = vmatmul.mubr.bf16.gmra.mxu0 %v5578
  %v7694 = vpop.f32.mrf.mxu0
  %v7695 = vadd.f32 %v7487, %v7694
  %v7696 = vpop.f32.mrf.mxu0
  %v7697 = vpop.f32.mrf.mxu0
  %v7698 = vadd.f32 %v7490, %v7697
  %v7699 = vpop.f32.mrf.mxu0
  %7700 = vmatprep.mubr.bf16.mxu0 %v5596
  %7701 = vmatmul.mubr.bf16.gmra.mxu0 %v5595
  %v7702 = vpop.f32.mrf.mxu0
  %v7703 = vadd.f32 %v7495, %v7702
  %v7704 = vpop.f32.mrf.mxu0
  %v7705 = vpop.f32.mrf.mxu0
  %v7706 = vadd.f32 %v7498, %v7705
  %v7707 = vpop.f32.mrf.mxu0
  %7708 = vmatprep.mubr.bf16.mxu0 %v5613
  %7709 = vmatmul.mubr.bf16.gmra.mxu0 %v5612
  %v7710 = vpop.f32.mrf.mxu0
  %v7711 = vadd.f32 %v7503, %v7710
  %v7712 = vpop.f32.mrf.mxu0
  %v7713 = vpop.f32.mrf.mxu0
  %v7714 = vadd.f32 %v7506, %v7713
  %v7715 = vpop.f32.mrf.mxu0
  %7716 = vmatprep.mubr.bf16.mxu0 %v5630
  %7717 = vmatmul.mubr.bf16.gmra.mxu0 %v5629
  %v7718 = vpop.f32.mrf.mxu0
  %v7719 = vadd.f32 %v7511, %v7718
  %v7720 = vpop.f32.mrf.mxu0
  %v7721 = vpop.f32.mrf.mxu0
  %v7722 = vadd.f32 %v7514, %v7721
  %v7723 = vpop.f32.mrf.mxu0
  %7724 = vmatprep.mubr.bf16.mxu0 %v5647
  %7725 = vmatmul.mubr.bf16.gmra.mxu0 %v5646
  %v7726 = vpop.f32.mrf.mxu0
  %v7727 = vadd.f32 %v7519, %v7726
  %v7728 = vpop.f32.mrf.mxu0
  %v7729 = vpop.f32.mrf.mxu0
  %v7730 = vpop.f32.mrf.mxu0
  %7731 = vdwg.mxu0
  %7732 = vmatprep.subr.bf16.mxu0 0
  %7733 = vmatpush1.bf16.msra.mxu0 0
  %7734 = vmatprep.subr.bf16.mxu0 0
  %7735 = vmatpush1.bf16.msra.mxu0 0
  %7736 = vmatprep.subr.bf16.mxu0 0
  %7737 = vmatpush1.bf16.msra.mxu0 0
  %7738 = vmatprep.subr.bf16.mxu0 0
  %7739 = vmatpush1.bf16.msra.mxu0 0
  %7740 = vmatprep.subr.bf16.mxu0 0
  %7741 = vmatpush1.bf16.msra.mxu0 0
  %7742 = vmatprep.subr.bf16.mxu0 0
  %7743 = vmatpush1.bf16.msra.mxu0 0
  %7744 = vmatprep.subr.bf16.mxu0 0
  %7745 = vmatpush1.bf16.msra.mxu0 0
  %7746 = vmatprep.subr.bf16.mxu0 0
  %7747 = vmatpush1.bf16.msra.mxu0 %v3769
  %7748 = vmatprep.subr.bf16.mxu0 0
  %7749 = vmatpush2.bf16.msra.mxu0 0
  %7750 = vmatprep.subr.bf16.mxu0 0
  %7751 = vmatpush2.bf16.msra.mxu0 0
  %7752 = vmatprep.subr.bf16.mxu0 0
  %7753 = vmatpush2.bf16.msra.mxu0 0
  %7754 = vmatprep.subr.bf16.mxu0 0
  %7755 = vmatpush2.bf16.msra.mxu0 0
  %7756 = vmatprep.subr.bf16.mxu0 0
  %7757 = vmatpush2.bf16.msra.mxu0 0
  %7758 = vmatprep.subr.bf16.mxu0 0
  %7759 = vmatpush2.bf16.msra.mxu0 0
  %7760 = vmatprep.subr.bf16.mxu0 0
  %7761 = vmatpush2.bf16.msra.mxu0 0
  %7762 = vmatprep.subr.bf16.mxu0 0
  %7763 = vmatpush2.bf16.msra.mxu0 0
  %7764 = vmatprep.mubr.bf16.mxu0 0
  %7765 = vmatmul.mubr.bf16.gmra.mxu0 %v6003
  %v7766 = vpop.f32.mrf.mxu0
  %v7767 = vadd.f32 %v7559, %v7766
  %v7768 = vpop.f32.mrf.mxu0
  %v7769 = vpop.f32.mrf.mxu0
  %v7770 = vadd.f32 %v7562, %v7769
  %v7771 = vpop.f32.mrf.mxu0
  %7772 = vmatprep.mubr.bf16.mxu0 0
  %7773 = vmatmul.mubr.bf16.gmra.mxu0 %v6006
  %v7774 = vpop.f32.mrf.mxu0
  %v7775 = vadd.f32 %v7567, %v7774
  %v7776 = vpop.f32.mrf.mxu0
  %v7777 = vpop.f32.mrf.mxu0
  %v7778 = vadd.f32 %v7570, %v7777
  %v7779 = vpop.f32.mrf.mxu0
  %7780 = vmatprep.mubr.bf16.mxu0 0
  %7781 = vmatmul.mubr.bf16.gmra.mxu0 %v6009
  %v7782 = vpop.f32.mrf.mxu0
  %v7783 = vadd.f32 %v7575, %v7782
  %v7784 = vpop.f32.mrf.mxu0
  %v7785 = vpop.f32.mrf.mxu0
  %v7786 = vadd.f32 %v7578, %v7785
  %v7787 = vpop.f32.mrf.mxu0
  %7788 = vmatprep.mubr.bf16.mxu0 0
  %7789 = vmatmul.mubr.bf16.gmra.mxu0 %v6012
  %v7790 = vpop.f32.mrf.mxu0
  %v7791 = vadd.f32 %v7583, %v7790
  %v7792 = vpop.f32.mrf.mxu0
  %v7793 = vpop.f32.mrf.mxu0
  %v7794 = vadd.f32 %v7586, %v7793
  %v7795 = vpop.f32.mrf.mxu0
  %7796 = vmatprep.mubr.bf16.mxu0 0
  %7797 = vmatmul.mubr.bf16.gmra.mxu0 %v6015
  %v7798 = vpop.f32.mrf.mxu0
  %v7799 = vadd.f32 %v7591, %v7798
  %v7800 = vpop.f32.mrf.mxu0
  %v7801 = vpop.f32.mrf.mxu0
  %v7802 = vadd.f32 %v7594, %v7801
  %v7803 = vpop.f32.mrf.mxu0
  %7804 = vmatprep.mubr.bf16.mxu0 0
  %7805 = vmatmul.mubr.bf16.gmra.mxu0 %v6018
  %v7806 = vpop.f32.mrf.mxu0
  %v7807 = vadd.f32 %v7599, %v7806
  %v7808 = vpop.f32.mrf.mxu0
  %v7809 = vpop.f32.mrf.mxu0
  %v7810 = vadd.f32 %v7602, %v7809
  %v7811 = vpop.f32.mrf.mxu0
  %7812 = vmatprep.mubr.bf16.mxu0 0
  %7813 = vmatmul.mubr.bf16.gmra.mxu0 %v6021
  %v7814 = vpop.f32.mrf.mxu0
  %v7815 = vadd.f32 %v7607, %v7814
  %v7816 = vpop.f32.mrf.mxu0
  %v7817 = vpop.f32.mrf.mxu0
  %v7818 = vadd.f32 %v7610, %v7817
  %v7819 = vpop.f32.mrf.mxu0
  %7820 = vmatprep.mubr.bf16.mxu0 0
  %7821 = vmatmul.mubr.bf16.gmra.mxu0 %v6024
  %v7822 = vpop.f32.mrf.mxu0
  %v7823 = vadd.f32 %v7615, %v7822
  %v7824 = vpop.f32.mrf.mxu0
  %v7825 = vpop.f32.mrf.mxu0
  %v7826 = vadd.f32 %v7618, %v7825
  %v7827 = vpop.f32.mrf.mxu0
  %7828 = vmatprep.mubr.bf16.mxu0 0
  %7829 = vmatmul.mubr.bf16.gmra.mxu0 %v6027
  %v7830 = vpop.f32.mrf.mxu0
  %v7831 = vadd.f32 %v7623, %v7830
  %v7832 = vpop.f32.mrf.mxu0
  %v7833 = vpop.f32.mrf.mxu0
  %v7834 = vadd.f32 %v7626, %v7833
  %v7835 = vpop.f32.mrf.mxu0
  %7836 = vmatprep.mubr.bf16.mxu0 0
  %7837 = vmatmul.mubr.bf16.gmra.mxu0 %v6030
  %v7838 = vpop.f32.mrf.mxu0
  %v7839 = vadd.f32 %v7631, %v7838
  %v7840 = vpop.f32.mrf.mxu0
  %v7841 = vpop.f32.mrf.mxu0
  %v7842 = vadd.f32 %v7634, %v7841
  %v7843 = vpop.f32.mrf.mxu0
  %7844 = vmatprep.mubr.bf16.mxu0 0
  %7845 = vmatmul.mubr.bf16.gmra.mxu0 %v6033
  %v7846 = vpop.f32.mrf.mxu0
  %v7847 = vadd.f32 %v7639, %v7846
  %v7848 = vpop.f32.mrf.mxu0
  %v7849 = vpop.f32.mrf.mxu0
  %v7850 = vadd.f32 %v7642, %v7849
  %v7851 = vpop.f32.mrf.mxu0
  %7852 = vmatprep.mubr.bf16.mxu0 0
  %7853 = vmatmul.mubr.bf16.gmra.mxu0 %v6036
  %v7854 = vpop.f32.mrf.mxu0
  %v7855 = vadd.f32 %v7647, %v7854
  %v7856 = vpop.f32.mrf.mxu0
  %v7857 = vpop.f32.mrf.mxu0
  %v7858 = vadd.f32 %v7650, %v7857
  %v7859 = vpop.f32.mrf.mxu0
  %7860 = vmatprep.mubr.bf16.mxu0 0
  %7861 = vmatmul.mubr.bf16.gmra.mxu0 %v6039
  %v7862 = vpop.f32.mrf.mxu0
  %v7863 = vadd.f32 %v7655, %v7862
  %v7864 = vpop.f32.mrf.mxu0
  %v7865 = vpop.f32.mrf.mxu0
  %v7866 = vadd.f32 %v7658, %v7865
  %v7867 = vpop.f32.mrf.mxu0
  %7868 = vmatprep.mubr.bf16.mxu0 0
  %7869 = vmatmul.mubr.bf16.gmra.mxu0 %v6042
  %v7870 = vpop.f32.mrf.mxu0
  %v7871 = vadd.f32 %v7663, %v7870
  %v7872 = vpop.f32.mrf.mxu0
  %v7873 = vpop.f32.mrf.mxu0
  %v7874 = vadd.f32 %v7666, %v7873
  %v7875 = vpop.f32.mrf.mxu0
  %7876 = vmatprep.mubr.bf16.mxu0 0
  %7877 = vmatmul.mubr.bf16.gmra.mxu0 %v6045
  %v7878 = vpop.f32.mrf.mxu0
  %v7879 = vadd.f32 %v7671, %v7878
  %v7880 = vpop.f32.mrf.mxu0
  %v7881 = vpop.f32.mrf.mxu0
  %v7882 = vadd.f32 %v7674, %v7881
  %v7883 = vpop.f32.mrf.mxu0
  %7884 = vmatprep.mubr.bf16.mxu0 0
  %7885 = vmatmul.mubr.bf16.gmra.mxu0 %v6048
  %v7886 = vpop.f32.mrf.mxu0
  %v7887 = vadd.f32 %v7679, %v7886
  %v7888 = vpop.f32.mrf.mxu0
  %v7889 = vpop.f32.mrf.mxu0
  %v7890 = vadd.f32 %v7682, %v7889
  %v7891 = vpop.f32.mrf.mxu0
  %7892 = vmatprep.mubr.bf16.mxu0 0
  %7893 = vmatmul.mubr.bf16.gmra.mxu0 %v6051
  %v7894 = vpop.f32.mrf.mxu0
  %v7895 = vadd.f32 %v7687, %v7894
  %v7896 = vpop.f32.mrf.mxu0
  %v7897 = vpop.f32.mrf.mxu0
  %v7898 = vadd.f32 %v7690, %v7897
  %v7899 = vpop.f32.mrf.mxu0
  %7900 = vmatprep.mubr.bf16.mxu0 0
  %7901 = vmatmul.mubr.bf16.gmra.mxu0 %v6054
  %v7902 = vpop.f32.mrf.mxu0
  %v7903 = vadd.f32 %v7695, %v7902
  %v7904 = vpop.f32.mrf.mxu0
  %v7905 = vpop.f32.mrf.mxu0
  %v7906 = vadd.f32 %v7698, %v7905
  %v7907 = vpop.f32.mrf.mxu0
  %7908 = vmatprep.mubr.bf16.mxu0 0
  %7909 = vmatmul.mubr.bf16.gmra.mxu0 %v6057
  %v7910 = vpop.f32.mrf.mxu0
  %v7911 = vadd.f32 %v7703, %v7910
  %v7912 = vpop.f32.mrf.mxu0
  %v7913 = vpop.f32.mrf.mxu0
  %v7914 = vadd.f32 %v7706, %v7913
  %v7915 = vpop.f32.mrf.mxu0
  %7916 = vmatprep.mubr.bf16.mxu0 0
  %7917 = vmatmul.mubr.bf16.gmra.mxu0 %v6060
  %v7918 = vpop.f32.mrf.mxu0
  %v7919 = vadd.f32 %v7711, %v7918
  %v7920 = vpop.f32.mrf.mxu0
  %v7921 = vpop.f32.mrf.mxu0
  %v7922 = vadd.f32 %v7714, %v7921
  %v7923 = vpop.f32.mrf.mxu0
  %7924 = vmatprep.mubr.bf16.mxu0 0
  %7925 = vmatmul.mubr.bf16.gmra.mxu0 %v6063
  %v7926 = vpop.f32.mrf.mxu0
  %v7927 = vadd.f32 %v7719, %v7926
  %v7928 = vpop.f32.mrf.mxu0
  %v7929 = vpop.f32.mrf.mxu0
  %v7930 = vadd.f32 %v7722, %v7929
  %v7931 = vpop.f32.mrf.mxu0
  %7932 = vmatprep.mubr.bf16.mxu0 0
  %7933 = vmatmul.mubr.bf16.gmra.mxu0 %v6066
  %v7934 = vpop.f32.mrf.mxu0
  %v7935 = vadd.f32 %v7727, %v7934
  %v7936 = vpop.f32.mrf.mxu0
  %v7937 = vpop.f32.mrf.mxu0
  %v7938 = vpop.f32.mrf.mxu0
  %7939 = vdwg.mxu0
  %vm7940 = vcmask 400384
  %v7941 = vsel %vm7940, %v7767, 0.0
  %7942 = vadd.xlane.f32.xlu0 %v7941
  %v7943 = vpop.xlane.xlu0 %7942
  %v7944 = vsel %vm7940, %v7770, 0.0
  %7945 = vadd.xlane.f32.xlu0 %v7944
  %v7946 = vpop.xlane.xlu0 %7945
  %v7947 = vsel %vm7940, %v7775, 0.0
  %7948 = vadd.xlane.f32.xlu0 %v7947
  %v7949 = vpop.xlane.xlu0 %7948
  %v7950 = vsel %vm7940, %v7778, 0.0
  %7951 = vadd.xlane.f32.xlu0 %v7950
  %v7952 = vpop.xlane.xlu0 %7951
  %v7953 = vsel %vm7940, %v7783, 0.0
  %7954 = vadd.xlane.f32.xlu0 %v7953
  %v7955 = vpop.xlane.xlu0 %7954
  %v7956 = vsel %vm7940, %v7786, 0.0
  %7957 = vadd.xlane.f32.xlu0 %v7956
  %v7958 = vpop.xlane.xlu0 %7957
  %v7959 = vsel %vm7940, %v7791, 0.0
  %7960 = vadd.xlane.f32.xlu0 %v7959
  %v7961 = vpop.xlane.xlu0 %7960
  %v7962 = vsel %vm7940, %v7794, 0.0
  %7963 = vadd.xlane.f32.xlu0 %v7962
  %v7964 = vpop.xlane.xlu0 %7963
  %v7965 = vsel %vm7940, %v7799, 0.0
  %7966 = vadd.xlane.f32.xlu0 %v7965
  %v7967 = vpop.xlane.xlu0 %7966
  %v7968 = vsel %vm7940, %v7802, 0.0
  %7969 = vadd.xlane.f32.xlu0 %v7968
  %v7970 = vpop.xlane.xlu0 %7969
  %v7971 = vsel %vm7940, %v7807, 0.0
  %7972 = vadd.xlane.f32.xlu0 %v7971
  %v7973 = vpop.xlane.xlu0 %7972
  %v7974 = vsel %vm7940, %v7810, 0.0
  %7975 = vadd.xlane.f32.xlu0 %v7974
  %v7976 = vpop.xlane.xlu0 %7975
  %v7977 = vsel %vm7940, %v7815, 0.0
  %7978 = vadd.xlane.f32.xlu0 %v7977
  %v7979 = vpop.xlane.xlu0 %7978
  %v7980 = vsel %vm7940, %v7818, 0.0
  %7981 = vadd.xlane.f32.xlu0 %v7980
  %v7982 = vpop.xlane.xlu0 %7981
  %v7983 = vsel %vm7940, %v7823, 0.0
  %7984 = vadd.xlane.f32.xlu0 %v7983
  %v7985 = vpop.xlane.xlu0 %7984
  %v7986 = vsel %vm7940, %v7826, 0.0
  %7987 = vadd.xlane.f32.xlu0 %v7986
  %v7988 = vpop.xlane.xlu0 %7987
  %v7989 = vsel %vm7940, %v7831, 0.0
  %7990 = vadd.xlane.f32.xlu0 %v7989
  %v7991 = vpop.xlane.xlu0 %7990
  %v7992 = vsel %vm7940, %v7834, 0.0
  %7993 = vadd.xlane.f32.xlu0 %v7992
  %v7994 = vpop.xlane.xlu0 %7993
  %v7995 = vsel %vm7940, %v7839, 0.0
  %7996 = vadd.xlane.f32.xlu0 %v7995
  %v7997 = vpop.xlane.xlu0 %7996
  %v7998 = vsel %vm7940, %v7842, 0.0
  %7999 = vadd.xlane.f32.xlu0 %v7998
  %v8000 = vpop.xlane.xlu0 %7999
  %v8001 = vsel %vm7940, %v7847, 0.0
  %8002 = vadd.xlane.f32.xlu0 %v8001
  %v8003 = vpop.xlane.xlu0 %8002
  %v8004 = vsel %vm7940, %v7850, 0.0
  %8005 = vadd.xlane.f32.xlu0 %v8004
  %v8006 = vpop.xlane.xlu0 %8005
  %v8007 = vsel %vm7940, %v7855, 0.0
  %8008 = vadd.xlane.f32.xlu0 %v8007
  %v8009 = vpop.xlane.xlu0 %8008
  %v8010 = vsel %vm7940, %v7858, 0.0
  %8011 = vadd.xlane.f32.xlu0 %v8010
  %v8012 = vpop.xlane.xlu0 %8011
  %v8013 = vsel %vm7940, %v7863, 0.0
  %8014 = vadd.xlane.f32.xlu0 %v8013
  %v8015 = vpop.xlane.xlu0 %8014
  %v8016 = vsel %vm7940, %v7866, 0.0
  %8017 = vadd.xlane.f32.xlu0 %v8016
  %v8018 = vpop.xlane.xlu0 %8017
  %v8019 = vsel %vm7940, %v7871, 0.0
  %8020 = vadd.xlane.f32.xlu0 %v8019
  %v8021 = vpop.xlane.xlu0 %8020
  %v8022 = vsel %vm7940, %v7874, 0.0
  %8023 = vadd.xlane.f32.xlu0 %v8022
  %v8024 = vpop.xlane.xlu0 %8023
  %v8025 = vsel %vm7940, %v7879, 0.0
  %8026 = vadd.xlane.f32.xlu0 %v8025
  %v8027 = vpop.xlane.xlu0 %8026
  %v8028 = vsel %vm7940, %v7882, 0.0
  %8029 = vadd.xlane.f32.xlu0 %v8028
  %v8030 = vpop.xlane.xlu0 %8029
  %v8031 = vsel %vm7940, %v7887, 0.0
  %8032 = vadd.xlane.f32.xlu0 %v8031
  %v8033 = vpop.xlane.xlu0 %8032
  %v8034 = vsel %vm7940, %v7890, 0.0
  %8035 = vadd.xlane.f32.xlu0 %v8034
  %v8036 = vpop.xlane.xlu0 %8035
  %v8037 = vsel %vm7940, %v7895, 0.0
  %8038 = vadd.xlane.f32.xlu0 %v8037
  %v8039 = vpop.xlane.xlu0 %8038
  %v8040 = vsel %vm7940, %v7898, 0.0
  %8041 = vadd.xlane.f32.xlu0 %v8040
  %v8042 = vpop.xlane.xlu0 %8041
  %v8043 = vsel %vm7940, %v7903, 0.0
  %8044 = vadd.xlane.f32.xlu0 %v8043
  %v8045 = vpop.xlane.xlu0 %8044
  %v8046 = vsel %vm7940, %v7906, 0.0
  %8047 = vadd.xlane.f32.xlu0 %v8046
  %v8048 = vpop.xlane.xlu0 %8047
  %v8049 = vsel %vm7940, %v7911, 0.0
  %8050 = vadd.xlane.f32.xlu0 %v8049
  %v8051 = vpop.xlane.xlu0 %8050
  %v8052 = vsel %vm7940, %v7914, 0.0
  %8053 = vadd.xlane.f32.xlu0 %v8052
  %v8054 = vpop.xlane.xlu0 %8053
  %v8055 = vsel %vm7940, %v7919, 0.0
  %8056 = vadd.xlane.f32.xlu0 %v8055
  %v8057 = vpop.xlane.xlu0 %8056
  %v8058 = vsel %vm7940, %v7922, 0.0
  %8059 = vadd.xlane.f32.xlu0 %v8058
  %v8060 = vpop.xlane.xlu0 %8059
  %v8061 = vsel %vm7940, %v7927, 0.0
  %8062 = vadd.xlane.f32.xlu0 %v8061
  %v8063 = vpop.xlane.xlu0 %8062
  %v8064 = vsel %vm7940, %v7930, 0.0
  %8065 = vadd.xlane.f32.xlu0 %v8064
  %v8066 = vpop.xlane.xlu0 %8065
  %v8067 = vsel %vm7940, %v7935, 0.0
  %8068 = vadd.xlane.f32.xlu0 %v8067
  %v8069 = vpop.xlane.xlu0 %8068
  %v8070 = vmul.f32 %v7943, 0.020408163
  %v8071 = vmul.f32 %v7946, 0.020408163
  %v8072 = vmul.f32 %v7949, 0.020408163
  %v8073 = vmul.f32 %v7952, 0.020408163
  %v8074 = vmul.f32 %v7955, 0.020408163
  %v8075 = vmul.f32 %v7958, 0.020408163
  %v8076 = vmul.f32 %v7961, 0.020408163
  %v8077 = vmul.f32 %v7964, 0.020408163
  %v8078 = vmul.f32 %v7967, 0.020408163
  %v8079 = vmul.f32 %v7970, 0.020408163
  %v8080 = vmul.f32 %v7973, 0.020408163
  %v8081 = vmul.f32 %v7976, 0.020408163
  %v8082 = vmul.f32 %v7979, 0.020408163
  %v8083 = vmul.f32 %v7982, 0.020408163
  %v8084 = vmul.f32 %v7985, 0.020408163
  %v8085 = vmul.f32 %v7988, 0.020408163
  %v8086 = vmul.f32 %v7991, 0.020408163
  %v8087 = vmul.f32 %v7994, 0.020408163
  %v8088 = vmul.f32 %v7997, 0.020408163
  %v8089 = vmul.f32 %v8000, 0.020408163
  %v8090 = vmul.f32 %v8003, 0.020408163
  %v8091 = vmul.f32 %v8006, 0.020408163
  %v8092 = vmul.f32 %v8009, 0.020408163
  %v8093 = vmul.f32 %v8012, 0.020408163
  %v8094 = vmul.f32 %v8015, 0.020408163
  %v8095 = vmul.f32 %v8018, 0.020408163
  %v8096 = vmul.f32 %v8021, 0.020408163
  %v8097 = vmul.f32 %v8024, 0.020408163
  %v8098 = vmul.f32 %v8027, 0.020408163
  %v8099 = vmul.f32 %v8030, 0.020408163
  %v8100 = vmul.f32 %v8033, 0.020408163
  %v8101 = vmul.f32 %v8036, 0.020408163
  %v8102 = vmul.f32 %v8039, 0.020408163
  %v8103 = vmul.f32 %v8042, 0.020408163
  %v8104 = vmul.f32 %v8045, 0.020408163
  %v8105 = vmul.f32 %v8048, 0.020408163
  %v8106 = vmul.f32 %v8051, 0.020408163
  %v8107 = vmul.f32 %v8054, 0.020408163
  %v8108 = vmul.f32 %v8057, 0.020408163
  %v8109 = vmul.f32 %v8060, 0.020408163
  %v8110 = vmul.f32 %v8063, 0.020408163
  %v8111 = vmul.f32 %v8066, 0.020408163
  %v8112 = vmul.f32 %v8069, 0.020408163
  %v8113 = vsub.f32 %v7767, %v8070
  %v8114 = vsub.f32 %v7770, %v8071
  %v8115 = vsub.f32 %v7775, %v8072
  %v8116 = vsub.f32 %v7778, %v8073
  %v8117 = vsub.f32 %v7783, %v8074
  %v8118 = vsub.f32 %v7786, %v8075
  %v8119 = vsub.f32 %v7791, %v8076
  %v8120 = vsub.f32 %v7794, %v8077
  %v8121 = vsub.f32 %v7799, %v8078
  %v8122 = vsub.f32 %v7802, %v8079
  %v8123 = vsub.f32 %v7807, %v8080
  %v8124 = vsub.f32 %v7810, %v8081
  %v8125 = vsub.f32 %v7815, %v8082
  %v8126 = vsub.f32 %v7818, %v8083
  %v8127 = vsub.f32 %v7823, %v8084
  %v8128 = vsub.f32 %v7826, %v8085
  %v8129 = vsub.f32 %v7831, %v8086
  %v8130 = vsub.f32 %v7834, %v8087
  %v8131 = vsub.f32 %v7839, %v8088
  %v8132 = vsub.f32 %v7842, %v8089
  %v8133 = vsub.f32 %v7847, %v8090
  %v8134 = vsub.f32 %v7850, %v8091
  %v8135 = vsub.f32 %v7855, %v8092
  %v8136 = vsub.f32 %v7858, %v8093
  %v8137 = vsub.f32 %v7863, %v8094
  %v8138 = vsub.f32 %v7866, %v8095
  %v8139 = vsub.f32 %v7871, %v8096
  %v8140 = vsub.f32 %v7874, %v8097
  %v8141 = vsub.f32 %v7879, %v8098
  %v8142 = vsub.f32 %v7882, %v8099
  %v8143 = vsub.f32 %v7887, %v8100
  %v8144 = vsub.f32 %v7890, %v8101
  %v8145 = vsub.f32 %v7895, %v8102
  %v8146 = vsub.f32 %v7898, %v8103
  %v8147 = vsub.f32 %v7903, %v8104
  %v8148 = vsub.f32 %v7906, %v8105
  %v8149 = vsub.f32 %v7911, %v8106
  %v8150 = vsub.f32 %v7914, %v8107
  %v8151 = vsub.f32 %v7919, %v8108
  %v8152 = vsub.f32 %v7922, %v8109
  %v8153 = vsub.f32 %v7927, %v8110
  %v8154 = vsub.f32 %v7930, %v8111
  %v8155 = vsub.f32 %v7935, %v8112
  %v8156 = vmul.f32 %v8113, %v8113
  %v8157 = vmul.f32 %v8114, %v8114
  %v8158 = vmul.f32 %v8115, %v8115
  %v8159 = vmul.f32 %v8116, %v8116
  %v8160 = vmul.f32 %v8117, %v8117
  %v8161 = vmul.f32 %v8118, %v8118
  %v8162 = vmul.f32 %v8119, %v8119
  %v8163 = vmul.f32 %v8120, %v8120
  %v8164 = vmul.f32 %v8121, %v8121
  %v8165 = vmul.f32 %v8122, %v8122
  %v8166 = vmul.f32 %v8123, %v8123
  %v8167 = vmul.f32 %v8124, %v8124
  %v8168 = vmul.f32 %v8125, %v8125
  %v8169 = vmul.f32 %v8126, %v8126
  %v8170 = vmul.f32 %v8127, %v8127
  %v8171 = vmul.f32 %v8128, %v8128
  %v8172 = vmul.f32 %v8129, %v8129
  %v8173 = vmul.f32 %v8130, %v8130
  %v8174 = vmul.f32 %v8131, %v8131
  %v8175 = vmul.f32 %v8132, %v8132
  %v8176 = vmul.f32 %v8133, %v8133
  %v8177 = vmul.f32 %v8134, %v8134
  %v8178 = vmul.f32 %v8135, %v8135
  %v8179 = vmul.f32 %v8136, %v8136
  %v8180 = vmul.f32 %v8137, %v8137
  %v8181 = vmul.f32 %v8138, %v8138
  %v8182 = vmul.f32 %v8139, %v8139
  %v8183 = vmul.f32 %v8140, %v8140
  %v8184 = vmul.f32 %v8141, %v8141
  %v8185 = vmul.f32 %v8142, %v8142
  %v8186 = vmul.f32 %v8143, %v8143
  %v8187 = vmul.f32 %v8144, %v8144
  %v8188 = vmul.f32 %v8145, %v8145
  %v8189 = vmul.f32 %v8146, %v8146
  %v8190 = vmul.f32 %v8147, %v8147
  %v8191 = vmul.f32 %v8148, %v8148
  %v8192 = vmul.f32 %v8149, %v8149
  %v8193 = vmul.f32 %v8150, %v8150
  %v8194 = vmul.f32 %v8151, %v8151
  %v8195 = vmul.f32 %v8152, %v8152
  %v8196 = vmul.f32 %v8153, %v8153
  %v8197 = vmul.f32 %v8154, %v8154
  %v8198 = vmul.f32 %v8155, %v8155
  %v8199 = vsel %vm7940, %v8156, 0.0
  %8200 = vadd.xlane.f32.xlu0 %v8199
  %v8201 = vpop.xlane.xlu0 %8200
  %v8202 = vsel %vm7940, %v8157, 0.0
  %8203 = vadd.xlane.f32.xlu0 %v8202
  %v8204 = vpop.xlane.xlu0 %8203
  %v8205 = vsel %vm7940, %v8158, 0.0
  %8206 = vadd.xlane.f32.xlu0 %v8205
  %v8207 = vpop.xlane.xlu0 %8206
  %v8208 = vsel %vm7940, %v8159, 0.0
  %8209 = vadd.xlane.f32.xlu0 %v8208
  %v8210 = vpop.xlane.xlu0 %8209
  %v8211 = vsel %vm7940, %v8160, 0.0
  %8212 = vadd.xlane.f32.xlu0 %v8211
  %v8213 = vpop.xlane.xlu0 %8212
  %v8214 = vsel %vm7940, %v8161, 0.0
  %8215 = vadd.xlane.f32.xlu0 %v8214
  %v8216 = vpop.xlane.xlu0 %8215
  %v8217 = vsel %vm7940, %v8162, 0.0
  %8218 = vadd.xlane.f32.xlu0 %v8217
  %v8219 = vpop.xlane.xlu0 %8218
  %v8220 = vsel %vm7940, %v8163, 0.0
  %8221 = vadd.xlane.f32.xlu0 %v8220
  %v8222 = vpop.xlane.xlu0 %8221
  %v8223 = vsel %vm7940, %v8164, 0.0
  %8224 = vadd.xlane.f32.xlu0 %v8223
  %v8225 = vpop.xlane.xlu0 %8224
  %v8226 = vsel %vm7940, %v8165, 0.0
  %8227 = vadd.xlane.f32.xlu0 %v8226
  %v8228 = vpop.xlane.xlu0 %8227
  %v8229 = vsel %vm7940, %v8166, 0.0
  %8230 = vadd.xlane.f32.xlu0 %v8229
  %v8231 = vpop.xlane.xlu0 %8230
  %v8232 = vsel %vm7940, %v8167, 0.0
  %8233 = vadd.xlane.f32.xlu0 %v8232
  %v8234 = vpop.xlane.xlu0 %8233
  %v8235 = vsel %vm7940, %v8168, 0.0
  %8236 = vadd.xlane.f32.xlu0 %v8235
  %v8237 = vpop.xlane.xlu0 %8236
  %v8238 = vsel %vm7940, %v8169, 0.0
  %8239 = vadd.xlane.f32.xlu0 %v8238
  %v8240 = vpop.xlane.xlu0 %8239
  %v8241 = vsel %vm7940, %v8170, 0.0
  %8242 = vadd.xlane.f32.xlu0 %v8241
  %v8243 = vpop.xlane.xlu0 %8242
  %v8244 = vsel %vm7940, %v8171, 0.0
  %8245 = vadd.xlane.f32.xlu0 %v8244
  %v8246 = vpop.xlane.xlu0 %8245
  %v8247 = vsel %vm7940, %v8172, 0.0
  %8248 = vadd.xlane.f32.xlu0 %v8247
  %v8249 = vpop.xlane.xlu0 %8248
  %v8250 = vsel %vm7940, %v8173, 0.0
  %8251 = vadd.xlane.f32.xlu0 %v8250
  %v8252 = vpop.xlane.xlu0 %8251
  %v8253 = vsel %vm7940, %v8174, 0.0
  %8254 = vadd.xlane.f32.xlu0 %v8253
  %v8255 = vpop.xlane.xlu0 %8254
  %v8256 = vsel %vm7940, %v8175, 0.0
  %8257 = vadd.xlane.f32.xlu0 %v8256
  %v8258 = vpop.xlane.xlu0 %8257
  %v8259 = vsel %vm7940, %v8176, 0.0
  %8260 = vadd.xlane.f32.xlu0 %v8259
  %v8261 = vpop.xlane.xlu0 %8260
  %v8262 = vsel %vm7940, %v8177, 0.0
  %8263 = vadd.xlane.f32.xlu0 %v8262
  %v8264 = vpop.xlane.xlu0 %8263
  %v8265 = vsel %vm7940, %v8178, 0.0
  %8266 = vadd.xlane.f32.xlu0 %v8265
  %v8267 = vpop.xlane.xlu0 %8266
  %v8268 = vsel %vm7940, %v8179, 0.0
  %8269 = vadd.xlane.f32.xlu0 %v8268
  %v8270 = vpop.xlane.xlu0 %8269
  %v8271 = vsel %vm7940, %v8180, 0.0
  %8272 = vadd.xlane.f32.xlu0 %v8271
  %v8273 = vpop.xlane.xlu0 %8272
  %v8274 = vsel %vm7940, %v8181, 0.0
  %8275 = vadd.xlane.f32.xlu0 %v8274
  %v8276 = vpop.xlane.xlu0 %8275
  %v8277 = vsel %vm7940, %v8182, 0.0
  %8278 = vadd.xlane.f32.xlu0 %v8277
  %v8279 = vpop.xlane.xlu0 %8278
  %v8280 = vsel %vm7940, %v8183, 0.0
  %8281 = vadd.xlane.f32.xlu0 %v8280
  %v8282 = vpop.xlane.xlu0 %8281
  %v8283 = vsel %vm7940, %v8184, 0.0
  %8284 = vadd.xlane.f32.xlu0 %v8283
  %v8285 = vpop.xlane.xlu0 %8284
  %v8286 = vsel %vm7940, %v8185, 0.0
  %8287 = vadd.xlane.f32.xlu0 %v8286
  %v8288 = vpop.xlane.xlu0 %8287
  %v8289 = vsel %vm7940, %v8186, 0.0
  %8290 = vadd.xlane.f32.xlu0 %v8289
  %v8291 = vpop.xlane.xlu0 %8290
  %v8292 = vsel %vm7940, %v8187, 0.0
  %8293 = vadd.xlane.f32.xlu0 %v8292
  %v8294 = vpop.xlane.xlu0 %8293
  %v8295 = vsel %vm7940, %v8188, 0.0
  %8296 = vadd.xlane.f32.xlu0 %v8295
  %v8297 = vpop.xlane.xlu0 %8296
  %v8298 = vsel %vm7940, %v8189, 0.0
  %8299 = vadd.xlane.f32.xlu0 %v8298
  %v8300 = vpop.xlane.xlu0 %8299
  %v8301 = vsel %vm7940, %v8190, 0.0
  %8302 = vadd.xlane.f32.xlu0 %v8301
  %v8303 = vpop.xlane.xlu0 %8302
  %v8304 = vsel %vm7940, %v8191, 0.0
  %8305 = vadd.xlane.f32.xlu0 %v8304
  %v8306 = vpop.xlane.xlu0 %8305
  %v8307 = vsel %vm7940, %v8192, 0.0
  %8308 = vadd.xlane.f32.xlu0 %v8307
  %v8309 = vpop.xlane.xlu0 %8308
  %v8310 = vsel %vm7940, %v8193, 0.0
  %8311 = vadd.xlane.f32.xlu0 %v8310
  %v8312 = vpop.xlane.xlu0 %8311
  %v8313 = vsel %vm7940, %v8194, 0.0
  %8314 = vadd.xlane.f32.xlu0 %v8313
  %v8315 = vpop.xlane.xlu0 %8314
  %v8316 = vsel %vm7940, %v8195, 0.0
  %8317 = vadd.xlane.f32.xlu0 %v8316
  %v8318 = vpop.xlane.xlu0 %8317
  %v8319 = vsel %vm7940, %v8196, 0.0
  %8320 = vadd.xlane.f32.xlu0 %v8319
  %v8321 = vpop.xlane.xlu0 %8320
  %v8322 = vsel %vm7940, %v8197, 0.0
  %8323 = vadd.xlane.f32.xlu0 %v8322
  %v8324 = vpop.xlane.xlu0 %8323
  %v8325 = vsel %vm7940, %v8198, 0.0
  %8326 = vadd.xlane.f32.xlu0 %v8325
  %v8327 = vpop.xlane.xlu0 %8326
  %v8328 = vmul.f32 %v8201, 0.020408163
  %v8329 = vmul.f32 %v8204, 0.020408163
  %v8330 = vmul.f32 %v8207, 0.020408163
  %v8331 = vmul.f32 %v8210, 0.020408163
  %v8332 = vmul.f32 %v8213, 0.020408163
  %v8333 = vmul.f32 %v8216, 0.020408163
  %v8334 = vmul.f32 %v8219, 0.020408163
  %v8335 = vmul.f32 %v8222, 0.020408163
  %v8336 = vmul.f32 %v8225, 0.020408163
  %v8337 = vmul.f32 %v8228, 0.020408163
  %v8338 = vmul.f32 %v8231, 0.020408163
  %v8339 = vmul.f32 %v8234, 0.020408163
  %v8340 = vmul.f32 %v8237, 0.020408163
  %v8341 = vmul.f32 %v8240, 0.020408163
  %v8342 = vmul.f32 %v8243, 0.020408163
  %v8343 = vmul.f32 %v8246, 0.020408163
  %v8344 = vmul.f32 %v8249, 0.020408163
  %v8345 = vmul.f32 %v8252, 0.020408163
  %v8346 = vmul.f32 %v8255, 0.020408163
  %v8347 = vmul.f32 %v8258, 0.020408163
  %v8348 = vmul.f32 %v8261, 0.020408163
  %v8349 = vmul.f32 %v8264, 0.020408163
  %v8350 = vmul.f32 %v8267, 0.020408163
  %v8351 = vmul.f32 %v8270, 0.020408163
  %v8352 = vmul.f32 %v8273, 0.020408163
  %v8353 = vmul.f32 %v8276, 0.020408163
  %v8354 = vmul.f32 %v8279, 0.020408163
  %v8355 = vmul.f32 %v8282, 0.020408163
  %v8356 = vmul.f32 %v8285, 0.020408163
  %v8357 = vmul.f32 %v8288, 0.020408163
  %v8358 = vmul.f32 %v8291, 0.020408163
  %v8359 = vmul.f32 %v8294, 0.020408163
  %v8360 = vmul.f32 %v8297, 0.020408163
  %v8361 = vmul.f32 %v8300, 0.020408163
  %v8362 = vmul.f32 %v8303, 0.020408163
  %v8363 = vmul.f32 %v8306, 0.020408163
  %v8364 = vmul.f32 %v8309, 0.020408163
  %v8365 = vmul.f32 %v8312, 0.020408163
  %v8366 = vmul.f32 %v8315, 0.020408163
  %v8367 = vmul.f32 %v8318, 0.020408163
  %v8368 = vmul.f32 %v8321, 0.020408163
  %v8369 = vmul.f32 %v8324, 0.020408163
  %v8370 = vmul.f32 %v8327, 0.020408163
  %v8371 = vadd.f32 %v8328, 0.001
  %v8372 = vadd.f32 %v8329, 0.001
  %v8373 = vadd.f32 %v8330, 0.001
  %v8374 = vadd.f32 %v8331, 0.001
  %v8375 = vadd.f32 %v8332, 0.001
  %v8376 = vadd.f32 %v8333, 0.001
  %v8377 = vadd.f32 %v8334, 0.001
  %v8378 = vadd.f32 %v8335, 0.001
  %v8379 = vadd.f32 %v8336, 0.001
  %v8380 = vadd.f32 %v8337, 0.001
  %v8381 = vadd.f32 %v8338, 0.001
  %v8382 = vadd.f32 %v8339, 0.001
  %v8383 = vadd.f32 %v8340, 0.001
  %v8384 = vadd.f32 %v8341, 0.001
  %v8385 = vadd.f32 %v8342, 0.001
  %v8386 = vadd.f32 %v8343, 0.001
  %v8387 = vadd.f32 %v8344, 0.001
  %v8388 = vadd.f32 %v8345, 0.001
  %v8389 = vadd.f32 %v8346, 0.001
  %v8390 = vadd.f32 %v8347, 0.001
  %v8391 = vadd.f32 %v8348, 0.001
  %v8392 = vadd.f32 %v8349, 0.001
  %v8393 = vadd.f32 %v8350, 0.001
  %v8394 = vadd.f32 %v8351, 0.001
  %v8395 = vadd.f32 %v8352, 0.001
  %v8396 = vadd.f32 %v8353, 0.001
  %v8397 = vadd.f32 %v8354, 0.001
  %v8398 = vadd.f32 %v8355, 0.001
  %v8399 = vadd.f32 %v8356, 0.001
  %v8400 = vadd.f32 %v8357, 0.001
  %v8401 = vadd.f32 %v8358, 0.001
  %v8402 = vadd.f32 %v8359, 0.001
  %v8403 = vadd.f32 %v8360, 0.001
  %v8404 = vadd.f32 %v8361, 0.001
  %v8405 = vadd.f32 %v8362, 0.001
  %v8406 = vadd.f32 %v8363, 0.001
  %v8407 = vadd.f32 %v8364, 0.001
  %v8408 = vadd.f32 %v8365, 0.001
  %v8409 = vadd.f32 %v8366, 0.001
  %v8410 = vadd.f32 %v8367, 0.001
  %v8411 = vadd.f32 %v8368, 0.001
  %v8412 = vadd.f32 %v8369, 0.001
  %v8413 = vadd.f32 %v8370, 0.001
  %v8414 = vrsqrt.pop %v8371
  %v8415 = vrsqrt.pop %v8372
  %v8416 = vrsqrt.pop %v8373
  %v8417 = vrsqrt.pop %v8374
  %v8418 = vrsqrt.pop %v8375
  %v8419 = vrsqrt.pop %v8376
  %v8420 = vrsqrt.pop %v8377
  %v8421 = vrsqrt.pop %v8378
  %v8422 = vrsqrt.pop %v8379
  %v8423 = vrsqrt.pop %v8380
  %v8424 = vrsqrt.pop %v8381
  %v8425 = vrsqrt.pop %v8382
  %v8426 = vrsqrt.pop %v8383
  %v8427 = vrsqrt.pop %v8384
  %v8428 = vrsqrt.pop %v8385
  %v8429 = vrsqrt.pop %v8386
  %v8430 = vrsqrt.pop %v8387
  %v8431 = vrsqrt.pop %v8388
  %v8432 = vrsqrt.pop %v8389
  %v8433 = vrsqrt.pop %v8390
  %v8434 = vrsqrt.pop %v8391
  %v8435 = vrsqrt.pop %v8392
  %v8436 = vrsqrt.pop %v8393
  %v8437 = vrsqrt.pop %v8394
  %v8438 = vrsqrt.pop %v8395
  %v8439 = vrsqrt.pop %v8396
  %v8440 = vrsqrt.pop %v8397
  %v8441 = vrsqrt.pop %v8398
  %v8442 = vrsqrt.pop %v8399
  %v8443 = vrsqrt.pop %v8400
  %v8444 = vrsqrt.pop %v8401
  %v8445 = vrsqrt.pop %v8402
  %v8446 = vrsqrt.pop %v8403
  %v8447 = vrsqrt.pop %v8404
  %v8448 = vrsqrt.pop %v8405
  %v8449 = vrsqrt.pop %v8406
  %v8450 = vrsqrt.pop %v8407
  %v8451 = vrsqrt.pop %v8408
  %v8452 = vrsqrt.pop %v8409
  %v8453 = vrsqrt.pop %v8410
  %v8454 = vrsqrt.pop %v8411
  %v8455 = vrsqrt.pop %v8412
  %v8456 = vrsqrt.pop %v8413
  %v8457 = vld [vmem:[%s4] sm:$0xff]
  %v8458 = vld [vmem:[%s4 + $0x8] sm:$0xff]
  %v8459 = vld [vmem:[%s4 + $0x10] sm:$0xff]
  %v8460 = vld [vmem:[%s4 + $0x18] sm:$0xff]
  %v8461 = vld [vmem:[%s4 + $0x20] sm:$0xff]
  %v8462 = vld [vmem:[%s4 + $0x28] sm:$0xff]
  %v8463 = vld [vmem:[%s4 + $0x30] sm:$0xff]
  %v8464 = vld [vmem:[%s4 + $0x38] sm:$0xff]
  %v8465 = vld [vmem:[%s4 + $0x40] sm:$0xff]
  %v8466 = vld [vmem:[%s4 + $0x48] sm:$0xff]
  %v8467 = vld [vmem:[%s4 + $0x50] sm:$0xff]
  %v8468 = vld [vmem:[%s4 + $0x58] sm:$0xff]
  %v8469 = vld [vmem:[%s4 + $0x60] sm:$0xff]
  %v8470 = vld [vmem:[%s4 + $0x68] sm:$0xff]
  %v8471 = vld [vmem:[%s4 + $0x70] sm:$0xff]
  %v8472 = vld [vmem:[%s4 + $0x78] sm:$0xff]
  %v8473 = vld [vmem:[%s4 + $0x80] sm:$0xff]
  %v8474 = vld [vmem:[%s4 + $0x88] sm:$0xff]
  %v8475 = vld [vmem:[%s4 + $0x90] sm:$0xff]
  %v8476 = vld [vmem:[%s4 + $0x98] sm:$0xff]
  %v8477 = vld [vmem:[%s4 + $0xa0] sm:$0xff]
  %v8478 = vld [vmem:[%s4 + $0xa8] sm:$0xff]
  %v8479 = vld [vmem:[%s4 + $0xb0] sm:$0xff]
  %v8480 = vld [vmem:[%s4 + $0xb8] sm:$0xff]
  %v8481 = vld [vmem:[%s4 + $0xc0] sm:$0xff]
  %v8482 = vld [vmem:[%s4 + $0xc8] sm:$0xff]
  %v8483 = vld [vmem:[%s4 + $0xd0] sm:$0xff]
  %v8484 = vld [vmem:[%s4 + $0xd8] sm:$0xff]
  %v8485 = vld [vmem:[%s4 + $0xe0] sm:$0xff]
  %v8486 = vld [vmem:[%s4 + $0xe8] sm:$0xff]
  %v8487 = vld [vmem:[%s4 + $0xf0] sm:$0xff]
  %v8488 = vld [vmem:[%s4 + $0xf8] sm:$0xff]
  %v8489 = vld [vmem:[%s4 + $0x100] sm:$0xff]
  %v8490 = vld [vmem:[%s4 + $0x108] sm:$0xff]
  %v8491 = vld [vmem:[%s4 + $0x110] sm:$0xff]
  %v8492 = vld [vmem:[%s4 + $0x118] sm:$0xff]
  %v8493 = vld [vmem:[%s4 + $0x120] sm:$0xff]
  %v8494 = vld [vmem:[%s4 + $0x128] sm:$0xff]
  %v8495 = vld [vmem:[%s4 + $0x130] sm:$0xff]
  %v8496 = vld [vmem:[%s4 + $0x138] sm:$0xff]
  %v8497 = vld [vmem:[%s4 + $0x140] sm:$0xff]
  %v8498 = vld [vmem:[%s4 + $0x148] sm:$0xff]
  %v8499 = vld [vmem:[%s4 + $0x150] sm:$0xff]
  %v8500 = vmul.f32 %v8414, %v8457
  %v8501 = vmul.f32 %v8415, %v8458
  %v8502 = vmul.f32 %v8416, %v8459
  %v8503 = vmul.f32 %v8417, %v8460
  %v8504 = vmul.f32 %v8418, %v8461
  %v8505 = vmul.f32 %v8419, %v8462
  %v8506 = vmul.f32 %v8420, %v8463
  %v8507 = vmul.f32 %v8421, %v8464
  %v8508 = vmul.f32 %v8422, %v8465
  %v8509 = vmul.f32 %v8423, %v8466
  %v8510 = vmul.f32 %v8424, %v8467
  %v8511 = vmul.f32 %v8425, %v8468
  %v8512 = vmul.f32 %v8426, %v8469
  %v8513 = vmul.f32 %v8427, %v8470
  %v8514 = vmul.f32 %v8428, %v8471
  %v8515 = vmul.f32 %v8429, %v8472
  %v8516 = vmul.f32 %v8430, %v8473
  %v8517 = vmul.f32 %v8431, %v8474
  %v8518 = vmul.f32 %v8432, %v8475
  %v8519 = vmul.f32 %v8433, %v8476
  %v8520 = vmul.f32 %v8434, %v8477
  %v8521 = vmul.f32 %v8435, %v8478
  %v8522 = vmul.f32 %v8436, %v8479
  %v8523 = vmul.f32 %v8437, %v8480
  %v8524 = vmul.f32 %v8438, %v8481
  %v8525 = vmul.f32 %v8439, %v8482
  %v8526 = vmul.f32 %v8440, %v8483
  %v8527 = vmul.f32 %v8441, %v8484
  %v8528 = vmul.f32 %v8442, %v8485
  %v8529 = vmul.f32 %v8443, %v8486
  %v8530 = vmul.f32 %v8444, %v8487
  %v8531 = vmul.f32 %v8445, %v8488
  %v8532 = vmul.f32 %v8446, %v8489
  %v8533 = vmul.f32 %v8447, %v8490
  %v8534 = vmul.f32 %v8448, %v8491
  %v8535 = vmul.f32 %v8449, %v8492
  %v8536 = vmul.f32 %v8450, %v8493
  %v8537 = vmul.f32 %v8451, %v8494
  %v8538 = vmul.f32 %v8452, %v8495
  %v8539 = vmul.f32 %v8453, %v8496
  %v8540 = vmul.f32 %v8454, %v8497
  %v8541 = vmul.f32 %v8455, %v8498
  %v8542 = vmul.f32 %v8456, %v8499
  %8544 = vset.pattern.permute.xlu0 0
  %8545 = vperm.xlu0 %8544, %v8500
  %v8546 = vpop.permute.xlu0 %8545
  %8549 = vset.pattern.permute.xlu0 0
  %8550 = vperm.xlu0 %8549, %v8501
  %v8551 = vpop.permute.xlu0 %8550
  %8554 = vset.pattern.permute.xlu0 0
  %8555 = vperm.xlu0 %8554, %v8502
  %v8556 = vpop.permute.xlu0 %8555
  %8559 = vset.pattern.permute.xlu0 0
  %8560 = vperm.xlu0 %8559, %v8503
  %v8561 = vpop.permute.xlu0 %8560
  %8564 = vset.pattern.permute.xlu0 0
  %8565 = vperm.xlu0 %8564, %v8504
  %v8566 = vpop.permute.xlu0 %8565
  %8569 = vset.pattern.permute.xlu0 0
  %8570 = vperm.xlu0 %8569, %v8505
  %v8571 = vpop.permute.xlu0 %8570
  %8574 = vset.pattern.permute.xlu0 0
  %8575 = vperm.xlu0 %8574, %v8506
  %v8576 = vpop.permute.xlu0 %8575
  %8579 = vset.pattern.permute.xlu0 0
  %8580 = vperm.xlu0 %8579, %v8507
  %v8581 = vpop.permute.xlu0 %8580
  %8584 = vset.pattern.permute.xlu0 0
  %8585 = vperm.xlu0 %8584, %v8508
  %v8586 = vpop.permute.xlu0 %8585
  %8589 = vset.pattern.permute.xlu0 0
  %8590 = vperm.xlu0 %8589, %v8509
  %v8591 = vpop.permute.xlu0 %8590
  %8594 = vset.pattern.permute.xlu0 0
  %8595 = vperm.xlu0 %8594, %v8510
  %v8596 = vpop.permute.xlu0 %8595
  %8599 = vset.pattern.permute.xlu0 0
  %8600 = vperm.xlu0 %8599, %v8511
  %v8601 = vpop.permute.xlu0 %8600
  %8604 = vset.pattern.permute.xlu0 0
  %8605 = vperm.xlu0 %8604, %v8512
  %v8606 = vpop.permute.xlu0 %8605
  %8609 = vset.pattern.permute.xlu0 0
  %8610 = vperm.xlu0 %8609, %v8513
  %v8611 = vpop.permute.xlu0 %8610
  %8614 = vset.pattern.permute.xlu0 0
  %8615 = vperm.xlu0 %8614, %v8514
  %v8616 = vpop.permute.xlu0 %8615
  %8619 = vset.pattern.permute.xlu0 0
  %8620 = vperm.xlu0 %8619, %v8515
  %v8621 = vpop.permute.xlu0 %8620
  %8624 = vset.pattern.permute.xlu0 0
  %8625 = vperm.xlu0 %8624, %v8516
  %v8626 = vpop.permute.xlu0 %8625
  %8629 = vset.pattern.permute.xlu0 0
  %8630 = vperm.xlu0 %8629, %v8517
  %v8631 = vpop.permute.xlu0 %8630
  %8634 = vset.pattern.permute.xlu0 0
  %8635 = vperm.xlu0 %8634, %v8518
  %v8636 = vpop.permute.xlu0 %8635
  %8639 = vset.pattern.permute.xlu0 0
  %8640 = vperm.xlu0 %8639, %v8519
  %v8641 = vpop.permute.xlu0 %8640
  %8644 = vset.pattern.permute.xlu0 0
  %8645 = vperm.xlu0 %8644, %v8520
  %v8646 = vpop.permute.xlu0 %8645
  %8649 = vset.pattern.permute.xlu0 0
  %8650 = vperm.xlu0 %8649, %v8521
  %v8651 = vpop.permute.xlu0 %8650
  %8654 = vset.pattern.permute.xlu0 0
  %8655 = vperm.xlu0 %8654, %v8522
  %v8656 = vpop.permute.xlu0 %8655
  %8659 = vset.pattern.permute.xlu0 0
  %8660 = vperm.xlu0 %8659, %v8523
  %v8661 = vpop.permute.xlu0 %8660
  %8664 = vset.pattern.permute.xlu0 0
  %8665 = vperm.xlu0 %8664, %v8524
  %v8666 = vpop.permute.xlu0 %8665
  %8669 = vset.pattern.permute.xlu0 0
  %8670 = vperm.xlu0 %8669, %v8525
  %v8671 = vpop.permute.xlu0 %8670
  %8674 = vset.pattern.permute.xlu0 0
  %8675 = vperm.xlu0 %8674, %v8526
  %v8676 = vpop.permute.xlu0 %8675
  %8679 = vset.pattern.permute.xlu0 0
  %8680 = vperm.xlu0 %8679, %v8527
  %v8681 = vpop.permute.xlu0 %8680
  %8684 = vset.pattern.permute.xlu0 0
  %8685 = vperm.xlu0 %8684, %v8528
  %v8686 = vpop.permute.xlu0 %8685
  %8689 = vset.pattern.permute.xlu0 0
  %8690 = vperm.xlu0 %8689, %v8529
  %v8691 = vpop.permute.xlu0 %8690
  %8694 = vset.pattern.permute.xlu0 0
  %8695 = vperm.xlu0 %8694, %v8530
  %v8696 = vpop.permute.xlu0 %8695
  %8699 = vset.pattern.permute.xlu0 0
  %8700 = vperm.xlu0 %8699, %v8531
  %v8701 = vpop.permute.xlu0 %8700
  %8704 = vset.pattern.permute.xlu0 0
  %8705 = vperm.xlu0 %8704, %v8532
  %v8706 = vpop.permute.xlu0 %8705
  %8709 = vset.pattern.permute.xlu0 0
  %8710 = vperm.xlu0 %8709, %v8533
  %v8711 = vpop.permute.xlu0 %8710
  %8714 = vset.pattern.permute.xlu0 0
  %8715 = vperm.xlu0 %8714, %v8534
  %v8716 = vpop.permute.xlu0 %8715
  %8719 = vset.pattern.permute.xlu0 0
  %8720 = vperm.xlu0 %8719, %v8535
  %v8721 = vpop.permute.xlu0 %8720
  %8724 = vset.pattern.permute.xlu0 0
  %8725 = vperm.xlu0 %8724, %v8536
  %v8726 = vpop.permute.xlu0 %8725
  %8729 = vset.pattern.permute.xlu0 0
  %8730 = vperm.xlu0 %8729, %v8537
  %v8731 = vpop.permute.xlu0 %8730
  %8734 = vset.pattern.permute.xlu0 0
  %8735 = vperm.xlu0 %8734, %v8538
  %v8736 = vpop.permute.xlu0 %8735
  %8739 = vset.pattern.permute.xlu0 0
  %8740 = vperm.xlu0 %8739, %v8539
  %v8741 = vpop.permute.xlu0 %8740
  %8744 = vset.pattern.permute.xlu0 0
  %8745 = vperm.xlu0 %8744, %v8540
  %v8746 = vpop.permute.xlu0 %8745
  %8749 = vset.pattern.permute.xlu0 0
  %8750 = vperm.xlu0 %8749, %v8541
  %v8751 = vpop.permute.xlu0 %8750
  %8754 = vset.pattern.permute.xlu0 0
  %8755 = vperm.xlu0 %8754, %v8542
  %v8756 = vpop.permute.xlu0 %8755
  %v8758 = vmul.f32 %v8113, %v8546
  %v8759 = vmul.f32 %v8114, %v8551
  %v8760 = vmul.f32 %v8115, %v8556
  %v8761 = vmul.f32 %v8116, %v8561
  %v8762 = vmul.f32 %v8117, %v8566
  %v8763 = vmul.f32 %v8118, %v8571
  %v8764 = vmul.f32 %v8119, %v8576
  %v8765 = vmul.f32 %v8120, %v8581
  %v8766 = vmul.f32 %v8121, %v8586
  %v8767 = vmul.f32 %v8122, %v8591
  %v8768 = vmul.f32 %v8123, %v8596
  %v8769 = vmul.f32 %v8124, %v8601
  %v8770 = vmul.f32 %v8125, %v8606
  %v8771 = vmul.f32 %v8126, %v8611
  %v8772 = vmul.f32 %v8127, %v8616
  %v8773 = vmul.f32 %v8128, %v8621
  %v8774 = vmul.f32 %v8129, %v8626
  %v8775 = vmul.f32 %v8130, %v8631
  %v8776 = vmul.f32 %v8131, %v8636
  %v8777 = vmul.f32 %v8132, %v8641
  %v8778 = vmul.f32 %v8133, %v8646
  %v8779 = vmul.f32 %v8134, %v8651
  %v8780 = vmul.f32 %v8135, %v8656
  %v8781 = vmul.f32 %v8136, %v8661
  %v8782 = vmul.f32 %v8137, %v8666
  %v8783 = vmul.f32 %v8138, %v8671
  %v8784 = vmul.f32 %v8139, %v8676
  %v8785 = vmul.f32 %v8140, %v8681
  %v8786 = vmul.f32 %v8141, %v8686
  %v8787 = vmul.f32 %v8142, %v8691
  %v8788 = vmul.f32 %v8143, %v8696
  %v8789 = vmul.f32 %v8144, %v8701
  %v8790 = vmul.f32 %v8145, %v8706
  %v8791 = vmul.f32 %v8146, %v8711
  %v8792 = vmul.f32 %v8147, %v8716
  %v8793 = vmul.f32 %v8148, %v8721
  %v8794 = vmul.f32 %v8149, %v8726
  %v8795 = vmul.f32 %v8150, %v8731
  %v8796 = vmul.f32 %v8151, %v8736
  %v8797 = vmul.f32 %v8152, %v8741
  %v8798 = vmul.f32 %v8153, %v8746
  %v8799 = vmul.f32 %v8154, %v8751
  %v8800 = vmul.f32 %v8155, %v8756
  %8802 = vset.pattern.permute.xlu0 1
  %8803 = vperm.xlu0 %8802, %v8457
  %v8804 = vpop.permute.xlu0 %8803
  %8807 = vset.pattern.permute.xlu0 1
  %8808 = vperm.xlu0 %8807, %v8458
  %v8809 = vpop.permute.xlu0 %8808
  %8812 = vset.pattern.permute.xlu0 1
  %8813 = vperm.xlu0 %8812, %v8459
  %v8814 = vpop.permute.xlu0 %8813
  %8817 = vset.pattern.permute.xlu0 1
  %8818 = vperm.xlu0 %8817, %v8460
  %v8819 = vpop.permute.xlu0 %8818
  %8822 = vset.pattern.permute.xlu0 1
  %8823 = vperm.xlu0 %8822, %v8461
  %v8824 = vpop.permute.xlu0 %8823
  %8827 = vset.pattern.permute.xlu0 1
  %8828 = vperm.xlu0 %8827, %v8462
  %v8829 = vpop.permute.xlu0 %8828
  %8832 = vset.pattern.permute.xlu0 1
  %8833 = vperm.xlu0 %8832, %v8463
  %v8834 = vpop.permute.xlu0 %8833
  %8837 = vset.pattern.permute.xlu0 1
  %8838 = vperm.xlu0 %8837, %v8464
  %v8839 = vpop.permute.xlu0 %8838
  %8842 = vset.pattern.permute.xlu0 1
  %8843 = vperm.xlu0 %8842, %v8465
  %v8844 = vpop.permute.xlu0 %8843
  %8847 = vset.pattern.permute.xlu0 1
  %8848 = vperm.xlu0 %8847, %v8466
  %v8849 = vpop.permute.xlu0 %8848
  %8852 = vset.pattern.permute.xlu0 1
  %8853 = vperm.xlu0 %8852, %v8467
  %v8854 = vpop.permute.xlu0 %8853
  %8857 = vset.pattern.permute.xlu0 1
  %8858 = vperm.xlu0 %8857, %v8468
  %v8859 = vpop.permute.xlu0 %8858
  %8862 = vset.pattern.permute.xlu0 1
  %8863 = vperm.xlu0 %8862, %v8469
  %v8864 = vpop.permute.xlu0 %8863
  %8867 = vset.pattern.permute.xlu0 1
  %8868 = vperm.xlu0 %8867, %v8470
  %v8869 = vpop.permute.xlu0 %8868
  %8872 = vset.pattern.permute.xlu0 1
  %8873 = vperm.xlu0 %8872, %v8471
  %v8874 = vpop.permute.xlu0 %8873
  %8877 = vset.pattern.permute.xlu0 1
  %8878 = vperm.xlu0 %8877, %v8472
  %v8879 = vpop.permute.xlu0 %8878
  %8882 = vset.pattern.permute.xlu0 1
  %8883 = vperm.xlu0 %8882, %v8473
  %v8884 = vpop.permute.xlu0 %8883
  %8887 = vset.pattern.permute.xlu0 1
  %8888 = vperm.xlu0 %8887, %v8474
  %v8889 = vpop.permute.xlu0 %8888
  %8892 = vset.pattern.permute.xlu0 1
  %8893 = vperm.xlu0 %8892, %v8475
  %v8894 = vpop.permute.xlu0 %8893
  %8897 = vset.pattern.permute.xlu0 1
  %8898 = vperm.xlu0 %8897, %v8476
  %v8899 = vpop.permute.xlu0 %8898
  %8902 = vset.pattern.permute.xlu0 1
  %8903 = vperm.xlu0 %8902, %v8477
  %v8904 = vpop.permute.xlu0 %8903
  %8907 = vset.pattern.permute.xlu0 1
  %8908 = vperm.xlu0 %8907, %v8478
  %v8909 = vpop.permute.xlu0 %8908
  %8912 = vset.pattern.permute.xlu0 1
  %8913 = vperm.xlu0 %8912, %v8479
  %v8914 = vpop.permute.xlu0 %8913
  %8917 = vset.pattern.permute.xlu0 1
  %8918 = vperm.xlu0 %8917, %v8480
  %v8919 = vpop.permute.xlu0 %8918
  %8922 = vset.pattern.permute.xlu0 1
  %8923 = vperm.xlu0 %8922, %v8481
  %v8924 = vpop.permute.xlu0 %8923
  %8927 = vset.pattern.permute.xlu0 1
  %8928 = vperm.xlu0 %8927, %v8482
  %v8929 = vpop.permute.xlu0 %8928
  %8932 = vset.pattern.permute.xlu0 1
  %8933 = vperm.xlu0 %8932, %v8483
  %v8934 = vpop.permute.xlu0 %8933
  %8937 = vset.pattern.permute.xlu0 1
  %8938 = vperm.xlu0 %8937, %v8484
  %v8939 = vpop.permute.xlu0 %8938
  %8942 = vset.pattern.permute.xlu0 1
  %8943 = vperm.xlu0 %8942, %v8485
  %v8944 = vpop.permute.xlu0 %8943
  %8947 = vset.pattern.permute.xlu0 1
  %8948 = vperm.xlu0 %8947, %v8486
  %v8949 = vpop.permute.xlu0 %8948
  %8952 = vset.pattern.permute.xlu0 1
  %8953 = vperm.xlu0 %8952, %v8487
  %v8954 = vpop.permute.xlu0 %8953
  %8957 = vset.pattern.permute.xlu0 1
  %8958 = vperm.xlu0 %8957, %v8488
  %v8959 = vpop.permute.xlu0 %8958
  %8962 = vset.pattern.permute.xlu0 1
  %8963 = vperm.xlu0 %8962, %v8489
  %v8964 = vpop.permute.xlu0 %8963
  %8967 = vset.pattern.permute.xlu0 1
  %8968 = vperm.xlu0 %8967, %v8490
  %v8969 = vpop.permute.xlu0 %8968
  %8972 = vset.pattern.permute.xlu0 1
  %8973 = vperm.xlu0 %8972, %v8491
  %v8974 = vpop.permute.xlu0 %8973
  %8977 = vset.pattern.permute.xlu0 1
  %8978 = vperm.xlu0 %8977, %v8492
  %v8979 = vpop.permute.xlu0 %8978
  %8982 = vset.pattern.permute.xlu0 1
  %8983 = vperm.xlu0 %8982, %v8493
  %v8984 = vpop.permute.xlu0 %8983
  %8987 = vset.pattern.permute.xlu0 1
  %8988 = vperm.xlu0 %8987, %v8494
  %v8989 = vpop.permute.xlu0 %8988
  %8992 = vset.pattern.permute.xlu0 1
  %8993 = vperm.xlu0 %8992, %v8495
  %v8994 = vpop.permute.xlu0 %8993
  %8997 = vset.pattern.permute.xlu0 1
  %8998 = vperm.xlu0 %8997, %v8496
  %v8999 = vpop.permute.xlu0 %8998
  %9002 = vset.pattern.permute.xlu0 1
  %9003 = vperm.xlu0 %9002, %v8497
  %v9004 = vpop.permute.xlu0 %9003
  %9007 = vset.pattern.permute.xlu0 1
  %9008 = vperm.xlu0 %9007, %v8498
  %v9009 = vpop.permute.xlu0 %9008
  %9012 = vset.pattern.permute.xlu0 1
  %9013 = vperm.xlu0 %9012, %v8499
  %v9014 = vpop.permute.xlu0 %9013
  %v9016 = vadd.f32 %v8758, %v8804
  %v9017 = vadd.f32 %v8759, %v8809
  %v9018 = vadd.f32 %v8760, %v8814
  %v9019 = vadd.f32 %v8761, %v8819
  %v9020 = vadd.f32 %v8762, %v8824
  %v9021 = vadd.f32 %v8763, %v8829
  %v9022 = vadd.f32 %v8764, %v8834
  %v9023 = vadd.f32 %v8765, %v8839
  %v9024 = vadd.f32 %v8766, %v8844
  %v9025 = vadd.f32 %v8767, %v8849
  %v9026 = vadd.f32 %v8768, %v8854
  %v9027 = vadd.f32 %v8769, %v8859
  %v9028 = vadd.f32 %v8770, %v8864
  %v9029 = vadd.f32 %v8771, %v8869
  %v9030 = vadd.f32 %v8772, %v8874
  %v9031 = vadd.f32 %v8773, %v8879
  %v9032 = vadd.f32 %v8774, %v8884
  %v9033 = vadd.f32 %v8775, %v8889
  %v9034 = vadd.f32 %v8776, %v8894
  %v9035 = vadd.f32 %v8777, %v8899
  %v9036 = vadd.f32 %v8778, %v8904
  %v9037 = vadd.f32 %v8779, %v8909
  %v9038 = vadd.f32 %v8780, %v8914
  %v9039 = vadd.f32 %v8781, %v8919
  %v9040 = vadd.f32 %v8782, %v8924
  %v9041 = vadd.f32 %v8783, %v8929
  %v9042 = vadd.f32 %v8784, %v8934
  %v9043 = vadd.f32 %v8785, %v8939
  %v9044 = vadd.f32 %v8786, %v8944
  %v9045 = vadd.f32 %v8787, %v8949
  %v9046 = vadd.f32 %v8788, %v8954
  %v9047 = vadd.f32 %v8789, %v8959
  %v9048 = vadd.f32 %v8790, %v8964
  %v9049 = vadd.f32 %v8791, %v8969
  %v9050 = vadd.f32 %v8792, %v8974
  %v9051 = vadd.f32 %v8793, %v8979
  %v9052 = vadd.f32 %v8794, %v8984
  %v9053 = vadd.f32 %v8795, %v8989
  %v9054 = vadd.f32 %v8796, %v8994
  %v9055 = vadd.f32 %v8797, %v8999
  %v9056 = vadd.f32 %v8798, %v9004
  %v9057 = vadd.f32 %v8799, %v9009
  %v9058 = vadd.f32 %v8800, %v9014
  %9059 = vst.msk [vmem:[%s5] sm:$0xff] %vm7940, %v9016
  %9060 = vst.msk [vmem:[%s5 + $0x8] sm:$0xff] %vm7940, %v9017
  %9061 = vst.msk [vmem:[%s5 + $0x10] sm:$0xff] %vm7940, %v9018
  %9062 = vst.msk [vmem:[%s5 + $0x18] sm:$0xff] %vm7940, %v9019
  %9063 = vst.msk [vmem:[%s5 + $0x20] sm:$0xff] %vm7940, %v9020
  %9064 = vst.msk [vmem:[%s5 + $0x28] sm:$0xff] %vm7940, %v9021
  %9065 = vst.msk [vmem:[%s5 + $0x30] sm:$0xff] %vm7940, %v9022
  %9066 = vst.msk [vmem:[%s5 + $0x38] sm:$0xff] %vm7940, %v9023
  %9067 = vst.msk [vmem:[%s5 + $0x40] sm:$0xff] %vm7940, %v9024
  %9068 = vst.msk [vmem:[%s5 + $0x48] sm:$0xff] %vm7940, %v9025
  %9069 = vst.msk [vmem:[%s5 + $0x50] sm:$0xff] %vm7940, %v9026
  %9070 = vst.msk [vmem:[%s5 + $0x58] sm:$0xff] %vm7940, %v9027
  %9071 = vst.msk [vmem:[%s5 + $0x60] sm:$0xff] %vm7940, %v9028
  %9072 = vst.msk [vmem:[%s5 + $0x68] sm:$0xff] %vm7940, %v9029
  %9073 = vst.msk [vmem:[%s5 + $0x70] sm:$0xff] %vm7940, %v9030
  %9074 = vst.msk [vmem:[%s5 + $0x78] sm:$0xff] %vm7940, %v9031
  %9075 = vst.msk [vmem:[%s5 + $0x80] sm:$0xff] %vm7940, %v9032
  %9076 = vst.msk [vmem:[%s5 + $0x88] sm:$0xff] %vm7940, %v9033
  %9077 = vst.msk [vmem:[%s5 + $0x90] sm:$0xff] %vm7940, %v9034
  %9078 = vst.msk [vmem:[%s5 + $0x98] sm:$0xff] %vm7940, %v9035
  %9079 = vst.msk [vmem:[%s5 + $0xa0] sm:$0xff] %vm7940, %v9036
  %9080 = vst.msk [vmem:[%s5 + $0xa8] sm:$0xff] %vm7940, %v9037
  %9081 = vst.msk [vmem:[%s5 + $0xb0] sm:$0xff] %vm7940, %v9038
  %9082 = vst.msk [vmem:[%s5 + $0xb8] sm:$0xff] %vm7940, %v9039
  %9083 = vst.msk [vmem:[%s5 + $0xc0] sm:$0xff] %vm7940, %v9040
  %9084 = vst.msk [vmem:[%s5 + $0xc8] sm:$0xff] %vm7940, %v9041
  %9085 = vst.msk [vmem:[%s5 + $0xd0] sm:$0xff] %vm7940, %v9042
  %9086 = vst.msk [vmem:[%s5 + $0xd8] sm:$0xff] %vm7940, %v9043
  %9087 = vst.msk [vmem:[%s5 + $0xe0] sm:$0xff] %vm7940, %v9044
  %9088 = vst.msk [vmem:[%s5 + $0xe8] sm:$0xff] %vm7940, %v9045
  %9089 = vst.msk [vmem:[%s5 + $0xf0] sm:$0xff] %vm7940, %v9046
  %9090 = vst.msk [vmem:[%s5 + $0xf8] sm:$0xff] %vm7940, %v9047
  %9091 = vst.msk [vmem:[%s5 + $0x100] sm:$0xff] %vm7940, %v9048
  %9092 = vst.msk [vmem:[%s5 + $0x108] sm:$0xff] %vm7940, %v9049
  %9093 = vst.msk [vmem:[%s5 + $0x110] sm:$0xff] %vm7940, %v9050
  %9094 = vst.msk [vmem:[%s5 + $0x118] sm:$0xff] %vm7940, %v9051
  %9095 = vst.msk [vmem:[%s5 + $0x120] sm:$0xff] %vm7940, %v9052
  %9096 = vst.msk [vmem:[%s5 + $0x128] sm:$0xff] %vm7940, %v9053
  %9097 = vst.msk [vmem:[%s5 + $0x130] sm:$0xff] %vm7940, %v9054
  %9098 = vst.msk [vmem:[%s5 + $0x138] sm:$0xff] %vm7940, %v9055
  %9099 = vst.msk [vmem:[%s5 + $0x140] sm:$0xff] %vm7940, %v9056
  %9100 = vst.msk [vmem:[%s5 + $0x148] sm:$0xff] %vm7940, %v9057
  %9101 = vst.msk [vmem:[%s5 + $0x150] sm:$0xff] %vm7940, %v9058
  // Predicated region
  $region22: #{module_forward.1} parent=0 // pred_check
    _
  $region23: #{module_forward.1} parent=0 // pred_check_branch
    %9103 = sbr.rel (0) target = $region25
  $region24: #{module_forward.1} parent=0 // pred_region
    _
  $region25: #{module_forward.1} parent=0 // pred_fallthru
    _
  // Predicated region
  $region26: #{module_forward.1} parent=0 // pred_check
    _
  $region27: #{module_forward.1} parent=0 // pred_check_branch
    %9105 = sbr.rel (0) target = $region29
  $region28: #{module_forward.1} parent=0 // pred_region
    _
  $region29: #{module_forward.1} parent=0 // pred_fallthru
    _

</llo_original>
